<compile_context>
chip_gen: v6e
topology: v6e:2x2x1
jax: 0.10.0
libtpu: 0.0.40
codegen_flags: <defaults>
</compile_context>

<pallas_src>
import functools
import math

import jax
import jax.numpy as jnp
from jax.experimental import pallas as pl
from jax.experimental.pallas import tpu as pltpu


def _layernorm(v, gamma, beta, eps=1e-5):
    mu = jnp.mean(v, axis=-1, keepdims=True)
    var = jnp.mean((v - mu) ** 2, axis=-1, keepdims=True)
    return (v - mu) * jax.lax.rsqrt(var + eps) * gamma + beta


def encoder_block_kernel(
    x_ref,
    wq_ref, bq_ref, wk_ref, bk_ref, wv_ref, bv_ref, wo_ref, bo_ref,
    g1_ref, be1_ref, g2_ref, be2_ref,
    w1_ref, b1_ref, w2_ref, b2_ref,
    o_ref,
    *, num_heads, q_tile,
):
    f32, bf16 = jnp.float32, jnp.bfloat16
    S, D = x_ref.shape                       # batch dim squeezed away by BlockSpec
    H = num_heads
    dh = D // H
    scale = 1.0 / math.sqrt(dh)

    qi = pl.program_id(1)
    q_start = pl.multiple_of(qi * q_tile, q_tile)

    g1, be1 = g1_ref[0], be1_ref[0]

    # ---- sublayer 1: x + MHSA(LN(x)), causal mask --------------------------
    # K/V need LN(x) over the full sequence; Q only needs the current tile.
    # K/V are recomputed per query tile so every grid step is independent and
    # both grid axes can be megacore-'parallel'.
    xn_kv = _layernorm(x_ref[...], g1, be1).astype(bf16)            # (S, D)
    x_q = x_ref[pl.ds(q_start, q_tile), :]                          # (TQ, D) f32
    xn_q = _layernorm(x_q, g1, be1).astype(bf16)

    # QKV projections: bf16 operands on the MXU, f32 accumulation.
    q = jnp.dot(xn_q, wq_ref[...], preferred_element_type=f32) + bq_ref[0]
    q = q * scale                                                   # fold 1/sqrt(dh) into q
    k = jnp.dot(xn_kv, wk_ref[...], preferred_element_type=f32) + bk_ref[0]
    v = jnp.dot(xn_kv, wv_ref[...], preferred_element_type=f32) + bv_ref[0]

    # Head-major (H, seq, dh) layout so attention is two batched dot_generals
    # with a *leading* batch dim (no per-head loop, no .T, no concatenate).
    q_h = pltpu.einshape("qhd->hqd", q.astype(bf16).reshape(q_tile, H, dh))
    k_h = pltpu.einshape("khd->hkd", k.astype(bf16).reshape(S, H, dh))
    v_h = pltpu.einshape("khd->hkd", v.astype(bf16).reshape(S, H, dh))

    s = jnp.einsum("hqd,hkd->hqk", q_h, k_h,
                   preferred_element_type=f32)                      # (H, TQ, S)

    # Causal ("subsequent") mask generated in-kernel: key position <= query position.
    # TODO(synk): general user-supplied (non-causal) masks would need the mask
    # passed back in as an input (or a block-mask prefetch table).
    row = q_start + jax.lax.broadcasted_iota(jnp.int32, s.shape, 1)
    col = jax.lax.broadcasted_iota(jnp.int32, s.shape, 2)
    s = jnp.where(col <= row, s, -1e9)

    # Softmax in f32 on the VPU; denominator reciprocal on the EUP.
    s = s - jnp.max(s, axis=-1, keepdims=True)
    p = jnp.exp(s)
    p = p * pl.reciprocal(jnp.sum(p, axis=-1, keepdims=True), approx=True)

    ctx = jnp.einsum("hqk,hkd->hqd", p.astype(bf16), v_h,
                     preferred_element_type=f32)                    # (H, TQ, dh)
    ctx = pltpu.einshape("hqd->qhd", ctx.astype(bf16)).reshape(q_tile, D)

    attn = jnp.dot(ctx, wo_ref[...], preferred_element_type=f32) + bo_ref[0]
    x1 = x_q + attn                       # dropout == identity (eval mode)

    # ---- sublayer 2: x1 + FFN(LN(x1)) ---------------------------------------
    # TODO(synk): for very large Dff / long S on v7x (64 MiB VMEM): K-tile the Dff
    # contraction, single-buffer the constant weight blocks (pl.Buffered(1)) and
    # use an online-softmax KV loop instead of full-S scores per tile.
    xn2 = _layernorm(x1, g2_ref[0], be2_ref[0]).astype(bf16)
    hidden = jnp.dot(xn2, w1_ref[...], preferred_element_type=f32) + b1_ref[0]
    hidden = jnp.maximum(hidden, 0.0).astype(bf16)                  # ReLU
    ff = jnp.dot(hidden, w2_ref[...], preferred_element_type=f32) + b2_ref[0]

    o_ref[...] = (x1 + ff).astype(o_ref.dtype)


def encoder_block(x, params, *, num_heads, q_tile=None):
    B, S, D = x.shape
    Dff = params["w1"].shape[1]
    assert D % num_heads == 0
    if q_tile is None:
        q_tile = min(S, 256)
    assert S % q_tile == 0
    nq = S // q_tile

    const = lambda shape: pl.BlockSpec(shape, lambda b, qi: (0,) * len(shape))

    in_specs = [
        # Full sequence per batch element (resident across the query-tile axis).
        pl.BlockSpec((pl.Squeezed(), S, D), lambda b, qi: (b, 0, 0)),
        const((D, D)), const((1, D)),          # Wq, bq
        const((D, D)), const((1, D)),          # Wk, bk
        const((D, D)), const((1, D)),          # Wv, bv
        const((D, D)), const((1, D)),          # Wo, bo
        const((1, D)), const((1, D)),          # ln1 gamma, beta
        const((1, D)), const((1, D)),          # ln2 gamma, beta
        const((D, Dff)), const((1, Dff)),      # W1, b1
        const((Dff, D)), const((1, D)),        # W2, b2
    ]
    out_spec = pl.BlockSpec((pl.Squeezed(), q_tile, D), lambda b, qi: (b, qi, 0))

    kernel = functools.partial(encoder_block_kernel,
                               num_heads=num_heads, q_tile=q_tile)

    return pl.pallas_call(
        kernel,
        out_shape=jax.ShapeDtypeStruct((B, S, D), jnp.float32),
        grid_spec=pltpu.PrefetchScalarGridSpec(
            num_scalar_prefetch=0,
            grid=(B, nq),
            in_specs=in_specs,
            out_specs=out_spec,
        ),
        compiler_params=pltpu.CompilerParams(
            dimension_semantics=("parallel", "parallel")),
    )(
        x,
        params["wq"], params["bq"], params["wk"], params["bk"],
        params["wv"], params["bv"], params["wo"], params["bo"],
        params["g1"], params["be1"], params["g2"], params["be2"],
        params["w1"], params["b1"], params["w2"], params["b2"],
    )


def make_params(key, D, Dff):
    ks = jax.random.split(key, 6)
    s = 1.0 / math.sqrt(D)
    f32, bf16 = jnp.float32, jnp.bfloat16
    return {
        # Matmul weights stored (in, out) and in bf16 (native MXU dtype).
        "wq": (jax.random.normal(ks[0], (D, D), f32) * s).astype(bf16),
        "wk": (jax.random.normal(ks[1], (D, D), f32) * s).astype(bf16),
        "wv": (jax.random.normal(ks[2], (D, D), f32) * s).astype(bf16),
        "wo": (jax.random.normal(ks[3], (D, D), f32) * s).astype(bf16),
        "w1": (jax.random.normal(ks[4], (D, Dff), f32) * s).astype(bf16),
        "w2": (jax.random.normal(ks[5], (Dff, D), f32) * (1.0 / math.sqrt(Dff))).astype(bf16),
        "bq": jnp.zeros((1, D), f32),
        "bk": jnp.zeros((1, D), f32),
        "bv": jnp.zeros((1, D), f32),
        "bo": jnp.zeros((1, D), f32),
        "b1": jnp.zeros((1, Dff), f32),
        "b2": jnp.zeros((1, D), f32),
        # nn.LayerNorm defaults: weight=1, bias=0 (kept in f32 for VPU math).
        "g1": jnp.ones((1, D), f32),
        "be1": jnp.zeros((1, D), f32),
        "g2": jnp.ones((1, D), f32),
        "be2": jnp.zeros((1, D), f32),
    }


def encoder_block_ref(x, params, *, num_heads):
    """Pure-JAX reference with the same bf16-operand / f32-accum quantization."""
    B, S, D = x.shape
    H = num_heads
    dh = D // H
    f32, bf16 = jnp.float32, jnp.bfloat16

    def ln(v, g, b):
        mu = jnp.mean(v, -1, keepdims=True)
        var = jnp.mean((v - mu) ** 2, -1, keepdims=True)
        return (v - mu) * jax.lax.rsqrt(var + 1e-5) * g + b

    def mm(a, w):
        return jnp.dot(a.astype(bf16), w, preferred_element_type=f32)

    xn = ln(x, params["g1"][0], params["be1"][0])
    q = (mm(xn, params["wq"]) + params["bq"][0]) * (1.0 / math.sqrt(dh))
    k = mm(xn, params["wk"]) + params["bk"][0]
    v = mm(xn, params["wv"]) + params["bv"][0]
    q = q.reshape(B, S, H, dh).transpose(0, 2, 1, 3).astype(bf16)
    k = k.reshape(B, S, H, dh).transpose(0, 2, 1, 3).astype(bf16)
    v = v.reshape(B, S, H, dh).transpose(0, 2, 1, 3).astype(bf16)
    s = jnp.einsum("bhqd,bhkd->bhqk", q, k, preferred_element_type=f32)
    causal = jnp.tril(jnp.ones((S, S), bool))
    s = jnp.where(causal, s, -1e9)
    p = jax.nn.softmax(s, axis=-1)
    ctx = jnp.einsum("bhqk,bhkd->bhqd", p.astype(bf16), v, preferred_element_type=f32)
    ctx = ctx.transpose(0, 2, 1, 3).reshape(B, S, D)
    x1 = x + mm(ctx, params["wo"]) + params["bo"][0]
    xn2 = ln(x1, params["g2"][0], params["be2"][0])
    h1 = jnp.maximum(mm(xn2, params["w1"]) + params["b1"][0], 0.0)
    ff = mm(h1, params["w2"]) + params["b2"][0]
    return x1 + ff


if __name__ == "__main__":
    # 128-aligned small shapes so tiles are lane-dense and the (B, S-tile) grid
    # actually has >1 query tile (q_tile=64 -> grid (2, 2)).
    B, S, D, H, Dff = 2, 128, 128, 4, 256

    key = jax.random.PRNGKey(0)
    kx, kp = jax.random.split(key)
    x = jax.random.normal(kx, (B, S, D), jnp.float32)
    params = make_params(kp, D, Dff)

    out = encoder_block(x, params, num_heads=H, q_tile=64)
    jax.block_until_ready(out)
    assert out.shape == (B, S, D)

    ref = encoder_block_ref(x, params, num_heads=H)
    max_err = float(jnp.max(jnp.abs(out - ref)))
    assert jnp.allclose(out, ref, atol=5e-2, rtol=5e-2), max_err

    print("KERNEL_OK")
</pallas_src>

<mosaic_0001>
module attributes {stable_mosaic.version = 11 : i64} {
  func.func @encoder_block_kernel(%arg0: i32, %arg1: i32, %arg2: memref<1x128x128xf32, #tpu.memory_space<vmem>>, %arg3: memref<128x128xbf16, #tpu.memory_space<vmem>>, %arg4: memref<1x128xf32, #tpu.memory_space<vmem>>, %arg5: memref<128x128xbf16, #tpu.memory_space<vmem>>, %arg6: memref<1x128xf32, #tpu.memory_space<vmem>>, %arg7: memref<128x128xbf16, #tpu.memory_space<vmem>>, %arg8: memref<1x128xf32, #tpu.memory_space<vmem>>, %arg9: memref<128x128xbf16, #tpu.memory_space<vmem>>, %arg10: memref<1x128xf32, #tpu.memory_space<vmem>>, %arg11: memref<1x128xf32, #tpu.memory_space<vmem>>, %arg12: memref<1x128xf32, #tpu.memory_space<vmem>>, %arg13: memref<1x128xf32, #tpu.memory_space<vmem>>, %arg14: memref<1x128xf32, #tpu.memory_space<vmem>>, %arg15: memref<128x256xbf16, #tpu.memory_space<vmem>>, %arg16: memref<1x256xf32, #tpu.memory_space<vmem>>, %arg17: memref<256x128xbf16, #tpu.memory_space<vmem>>, %arg18: memref<1x128xf32, #tpu.memory_space<vmem>>, %arg19: memref<1x64x128xf32, #tpu.memory_space<vmem>>) attributes {dimension_semantics = [#tpu.dimension_semantics<parallel>, #tpu.dimension_semantics<parallel>], iteration_bounds = array<i64: 2, 2>, scalar_prefetch = 0 : i64, scratch_operands = 0 : i64, tpu.core_type = #tpu.core_type<tc>, window_params = [{transform_indices = @transform_0, window_bounds = array<i64: 1, 128, 128>}, {pipeline_mode = #tpu.pipeline_mode<synchronous>, transform_indices = @transform_1, window_bounds = array<i64: 128, 128>}, {pipeline_mode = #tpu.pipeline_mode<synchronous>, transform_indices = @transform_2, window_bounds = array<i64: 1, 128>}, {pipeline_mode = #tpu.pipeline_mode<synchronous>, transform_indices = @transform_3, window_bounds = array<i64: 128, 128>}, {pipeline_mode = #tpu.pipeline_mode<synchronous>, transform_indices = @transform_4, window_bounds = array<i64: 1, 128>}, {pipeline_mode = #tpu.pipeline_mode<synchronous>, transform_indices = @transform_5, window_bounds = array<i64: 128, 128>}, {pipeline_mode = #tpu.pipeline_mode<synchronous>, transform_indices = @transform_6, window_bounds = array<i64: 1, 128>}, {pipeline_mode = #tpu.pipeline_mode<synchronous>, transform_indices = @transform_7, window_bounds = array<i64: 128, 128>}, {pipeline_mode = #tpu.pipeline_mode<synchronous>, transform_indices = @transform_8, window_bounds = array<i64: 1, 128>}, {pipeline_mode = #tpu.pipeline_mode<synchronous>, transform_indices = @transform_9, window_bounds = array<i64: 1, 128>}, {pipeline_mode = #tpu.pipeline_mode<synchronous>, transform_indices = @transform_10, window_bounds = array<i64: 1, 128>}, {pipeline_mode = #tpu.pipeline_mode<synchronous>, transform_indices = @transform_11, window_bounds = array<i64: 1, 128>}, {pipeline_mode = #tpu.pipeline_mode<synchronous>, transform_indices = @transform_12, window_bounds = array<i64: 1, 128>}, {pipeline_mode = #tpu.pipeline_mode<synchronous>, transform_indices = @transform_13, window_bounds = array<i64: 128, 256>}, {pipeline_mode = #tpu.pipeline_mode<synchronous>, transform_indices = @transform_14, window_bounds = array<i64: 1, 256>}, {pipeline_mode = #tpu.pipeline_mode<synchronous>, transform_indices = @transform_15, window_bounds = array<i64: 256, 128>}, {pipeline_mode = #tpu.pipeline_mode<synchronous>, transform_indices = @transform_16, window_bounds = array<i64: 1, 128>}, {transform_indices = @transform_17, window_bounds = array<i64: 1, 64, 128>}]} {
    %c64_i32 = arith.constant 64 : i32
    %0 = arith.muli %arg1, %c64_i32 : i32
    %1 = tpu.assume_multiple %0, 64 : i32
    %c0 = arith.constant 0 : index
    %c0_0 = arith.constant 0 : index
    %2 = vector.load %arg11[%c0, %c0_0] : memref<1x128xf32, #tpu.memory_space<vmem>>, vector<1x128xf32>
    %3 = vector.shape_cast %2 : vector<1x128xf32> to vector<128xf32>
    %c0_1 = arith.constant 0 : index
    %c0_2 = arith.constant 0 : index
    %4 = vector.load %arg12[%c0_1, %c0_2] : memref<1x128xf32, #tpu.memory_space<vmem>>, vector<1x128xf32>
    %5 = vector.shape_cast %4 : vector<1x128xf32> to vector<128xf32>
    %c0_3 = arith.constant 0 : index
    %c0_4 = arith.constant 0 : index
    %c0_5 = arith.constant 0 : index
    %6 = vector.load %arg2[%c0_3, %c0_4, %c0_5] : memref<1x128x128xf32, #tpu.memory_space<vmem>>, vector<1x128x128xf32>
    %7 = vector.shape_cast %6 : vector<1x128x128xf32> to vector<128x128xf32>
    %cst = arith.constant dense<0.000000e+00> : vector<128xf32>
    %8 = vector.multi_reduction <add>, %7, %cst [1] : vector<128x128xf32> to vector<128xf32>
    %9 = vector.shape_cast %8 : vector<128xf32> to vector<128x1xf32>
    %cst_6 = arith.constant 1.280000e+02 : f32
    %10 = vector.broadcast %cst_6 : f32 to vector<128x1xf32>
    %11 = arith.divf %9, %10 : vector<128x1xf32>
    %12 = vector.broadcast %11 : vector<128x1xf32> to vector<128x128xf32>
    %13 = arith.subf %7, %12 : vector<128x128xf32>
    %14 = arith.mulf %13, %13 : vector<128x128xf32>
    %cst_7 = arith.constant dense<0.000000e+00> : vector<128xf32>
    %15 = vector.multi_reduction <add>, %14, %cst_7 [1] : vector<128x128xf32> to vector<128xf32>
    %16 = vector.shape_cast %15 : vector<128xf32> to vector<128x1xf32>
    %cst_8 = arith.constant 1.280000e+02 : f32
    %17 = vector.broadcast %cst_8 : f32 to vector<128x1xf32>
    %18 = arith.divf %16, %17 : vector<128x1xf32>
    %19 = vector.broadcast %11 : vector<128x1xf32> to vector<128x128xf32>
    %20 = arith.subf %7, %19 : vector<128x128xf32>
    %cst_9 = arith.constant 9.99999974E-6 : f32
    %21 = vector.broadcast %cst_9 : f32 to vector<128x1xf32>
    %22 = arith.addf %18, %21 : vector<128x1xf32>
    %23 = math.rsqrt %22 : vector<128x1xf32>
    %24 = vector.broadcast %23 : vector<128x1xf32> to vector<128x128xf32>
    %25 = arith.mulf %20, %24 : vector<128x128xf32>
    %26 = vector.shape_cast %3 : vector<128xf32> to vector<1x128xf32>
    %27 = vector.broadcast %26 : vector<1x128xf32> to vector<128x128xf32>
    %28 = arith.mulf %25, %27 : vector<128x128xf32>
    %29 = vector.shape_cast %5 : vector<128xf32> to vector<1x128xf32>
    %30 = vector.broadcast %29 : vector<1x128xf32> to vector<128x128xf32>
    %31 = arith.addf %28, %30 : vector<128x128xf32>
    %32 = arith.truncf %31 : vector<128x128xf32> to vector<128x128xbf16>
    %c0_10 = arith.constant 0 : index
    %33 = arith.index_cast %1 : i32 to index
    %c0_11 = arith.constant 0 : index
    %34 = vector.load %arg2[%c0_10, %33, %c0_11] : memref<1x128x128xf32, #tpu.memory_space<vmem>>, vector<1x64x128xf32>
    %35 = vector.shape_cast %34 : vector<1x64x128xf32> to vector<64x128xf32>
    %cst_12 = arith.constant dense<0.000000e+00> : vector<64xf32>
    %36 = vector.multi_reduction <add>, %35, %cst_12 [1] : vector<64x128xf32> to vector<64xf32>
    %37 = vector.shape_cast %36 : vector<64xf32> to vector<64x1xf32>
    %cst_13 = arith.constant 1.280000e+02 : f32
    %38 = vector.broadcast %cst_13 : f32 to vector<64x1xf32>
    %39 = arith.divf %37, %38 : vector<64x1xf32>
    %40 = vector.broadcast %39 : vector<64x1xf32> to vector<64x128xf32>
    %41 = arith.subf %35, %40 : vector<64x128xf32>
    %42 = arith.mulf %41, %41 : vector<64x128xf32>
    %cst_14 = arith.constant dense<0.000000e+00> : vector<64xf32>
    %43 = vector.multi_reduction <add>, %42, %cst_14 [1] : vector<64x128xf32> to vector<64xf32>
    %44 = vector.shape_cast %43 : vector<64xf32> to vector<64x1xf32>
    %cst_15 = arith.constant 1.280000e+02 : f32
    %45 = vector.broadcast %cst_15 : f32 to vector<64x1xf32>
    %46 = arith.divf %44, %45 : vector<64x1xf32>
    %47 = vector.broadcast %39 : vector<64x1xf32> to vector<64x128xf32>
    %48 = arith.subf %35, %47 : vector<64x128xf32>
    %cst_16 = arith.constant 9.99999974E-6 : f32
    %49 = vector.broadcast %cst_16 : f32 to vector<64x1xf32>
    %50 = arith.addf %46, %49 : vector<64x1xf32>
    %51 = math.rsqrt %50 : vector<64x1xf32>
    %52 = vector.broadcast %51 : vector<64x1xf32> to vector<64x128xf32>
    %53 = arith.mulf %48, %52 : vector<64x128xf32>
    %54 = vector.shape_cast %3 : vector<128xf32> to vector<1x128xf32>
    %55 = vector.broadcast %54 : vector<1x128xf32> to vector<64x128xf32>
    %56 = arith.mulf %53, %55 : vector<64x128xf32>
    %57 = vector.shape_cast %5 : vector<128xf32> to vector<1x128xf32>
    %58 = vector.broadcast %57 : vector<1x128xf32> to vector<64x128xf32>
    %59 = arith.addf %56, %58 : vector<64x128xf32>
    %60 = arith.truncf %59 : vector<64x128xf32> to vector<64x128xbf16>
    %c0_17 = arith.constant 0 : index
    %c0_18 = arith.constant 0 : index
    %61 = vector.load %arg3[%c0_17, %c0_18] : memref<128x128xbf16, #tpu.memory_space<vmem>>, vector<128x128xbf16>
    %cst_19 = arith.constant dense<0.000000e+00> : vector<64x128xf32>
    %62 = tpu.matmul %60, %61, %cst_19 {dimension_numbers = #tpu.dot_dimension_numbers<[1], [0], [0], [1], [0, 0, 1, 1], [], []>} : vector<64x128xbf16>, vector<128x128xbf16>, vector<64x128xf32> -> vector<64x128xf32>
    %c0_20 = arith.constant 0 : index
    %c0_21 = arith.constant 0 : index
    %63 = vector.load %arg4[%c0_20, %c0_21] : memref<1x128xf32, #tpu.memory_space<vmem>>, vector<1x128xf32>
    %64 = vector.shape_cast %63 : vector<1x128xf32> to vector<128xf32>
    %65 = vector.shape_cast %64 : vector<128xf32> to vector<1x128xf32>
    %66 = vector.broadcast %65 : vector<1x128xf32> to vector<64x128xf32>
    %67 = arith.addf %62, %66 : vector<64x128xf32>
    %cst_22 = arith.constant 0.176776692 : f32
    %68 = vector.broadcast %cst_22 : f32 to vector<64x128xf32>
    %69 = arith.mulf %67, %68 : vector<64x128xf32>
    %c0_23 = arith.constant 0 : index
    %c0_24 = arith.constant 0 : index
    %70 = vector.load %arg5[%c0_23, %c0_24] : memref<128x128xbf16, #tpu.memory_space<vmem>>, vector<128x128xbf16>
    %cst_25 = arith.constant dense<0.000000e+00> : vector<128x128xf32>
    %71 = tpu.matmul %32, %70, %cst_25 {dimension_numbers = #tpu.dot_dimension_numbers<[1], [0], [0], [1], [0, 0, 1, 1], [], []>} : vector<128x128xbf16>, vector<128x128xbf16>, vector<128x128xf32> -> vector<128x128xf32>
    %c0_26 = arith.constant 0 : index
    %c0_27 = arith.constant 0 : index
    %72 = vector.load %arg6[%c0_26, %c0_27] : memref<1x128xf32, #tpu.memory_space<vmem>>, vector<1x128xf32>
    %73 = vector.shape_cast %72 : vector<1x128xf32> to vector<128xf32>
    %74 = vector.shape_cast %73 : vector<128xf32> to vector<1x128xf32>
    %75 = vector.broadcast %74 : vector<1x128xf32> to vector<128x128xf32>
    %76 = arith.addf %71, %75 : vector<128x128xf32>
    %c0_28 = arith.constant 0 : index
    %c0_29 = arith.constant 0 : index
    %77 = vector.load %arg7[%c0_28, %c0_29] : memref<128x128xbf16, #tpu.memory_space<vmem>>, vector<128x128xbf16>
    %cst_30 = arith.constant dense<0.000000e+00> : vector<128x128xf32>
    %78 = tpu.matmul %32, %77, %cst_30 {dimension_numbers = #tpu.dot_dimension_numbers<[1], [0], [0], [1], [0, 0, 1, 1], [], []>} : vector<128x128xbf16>, vector<128x128xbf16>, vector<128x128xf32> -> vector<128x128xf32>
    %c0_31 = arith.constant 0 : index
    %c0_32 = arith.constant 0 : index
    %79 = vector.load %arg8[%c0_31, %c0_32] : memref<1x128xf32, #tpu.memory_space<vmem>>, vector<1x128xf32>
    %80 = vector.shape_cast %79 : vector<1x128xf32> to vector<128xf32>
    %81 = vector.shape_cast %80 : vector<128xf32> to vector<1x128xf32>
    %82 = vector.broadcast %81 : vector<1x128xf32> to vector<128x128xf32>
    %83 = arith.addf %78, %82 : vector<128x128xf32>
    %84 = arith.truncf %69 : vector<64x128xf32> to vector<64x128xbf16>
    %85 = vector.shape_cast %84 : vector<64x128xbf16> to vector<64x4x32xbf16>
    %86 = tpu.transpose %85, [1, 0, 2] : vector<64x4x32xbf16> -> vector<4x64x32xbf16>
    %87 = arith.truncf %76 : vector<128x128xf32> to vector<128x128xbf16>
    %88 = vector.shape_cast %87 : vector<128x128xbf16> to vector<128x4x32xbf16>
    %89 = tpu.transpose %88, [1, 0, 2] : vector<128x4x32xbf16> -> vector<4x128x32xbf16>
    %90 = arith.truncf %83 : vector<128x128xf32> to vector<128x128xbf16>
    %91 = vector.shape_cast %90 : vector<128x128xbf16> to vector<128x4x32xbf16>
    %92 = tpu.transpose %91, [1, 0, 2] : vector<128x4x32xbf16> -> vector<4x128x32xbf16>
    "tpu.trace_start"() <{level = 10 : i32, message = "hqd,hkd->hqk"}> : () -> ()
    %cst_33 = arith.constant dense<0.000000e+00> : vector<4x64x128xf32>
    %93 = tpu.matmul %86, %89, %cst_33 {dimension_numbers = #tpu.dot_dimension_numbers<[2], [2], [1], [1], [0, 0, 0, 1, 1, 1], [0], [0]>} : vector<4x64x32xbf16>, vector<4x128x32xbf16>, vector<4x64x128xf32> -> vector<4x64x128xf32>
    "tpu.trace_stop"() : () -> ()
    %94 = tpu.iota {dimensions = array<i32: 1>} : vector<4x64x128xi32>
    %95 = vector.broadcast %1 : i32 to vector<4x64x128xi32>
    %96 = arith.addi %95, %94 : vector<4x64x128xi32>
    %97 = tpu.iota {dimensions = array<i32: 2>} : vector<4x64x128xi32>
    %98 = arith.cmpi sle, %97, %96 : vector<4x64x128xi32>
    %cst_34 = arith.constant -1.000000e+09 : f32
    %99 = vector.broadcast %cst_34 : f32 to vector<4x64x128xf32>
    %100 = arith.select %98, %93, %99 : vector<4x64x128xi1>, vector<4x64x128xf32>
    %cst_35 = arith.constant dense<0xFF800000> : vector<4x64xf32>
    %101 = vector.multi_reduction <maximumf>, %100, %cst_35 [2] : vector<4x64x128xf32> to vector<4x64xf32>
    %102 = vector.shape_cast %101 : vector<4x64xf32> to vector<4x64x1xf32>
    %103 = vector.broadcast %102 : vector<4x64x1xf32> to vector<4x64x128xf32>
    %104 = arith.subf %100, %103 : vector<4x64x128xf32>
    %105 = math.exp %104 : vector<4x64x128xf32>
    %cst_36 = arith.constant dense<0.000000e+00> : vector<4x64xf32>
    %106 = vector.multi_reduction <add>, %105, %cst_36 [2] : vector<4x64x128xf32> to vector<4x64xf32>
    %107 = vector.shape_cast %106 : vector<4x64xf32> to vector<4x64x1xf32>
    %108 = tpu.reciprocal %107 {approx = true} : vector<4x64x1xf32> -> vector<4x64x1xf32>
    %109 = vector.broadcast %108 : vector<4x64x1xf32> to vector<4x64x128xf32>
    %110 = arith.mulf %105, %109 : vector<4x64x128xf32>
    %111 = arith.truncf %110 : vector<4x64x128xf32> to vector<4x64x128xbf16>
    "tpu.trace_start"() <{level = 10 : i32, message = "hqk,hkd->hqd"}> : () -> ()
    %cst_37 = arith.constant dense<0.000000e+00> : vector<4x64x32xf32>
    %112 = tpu.matmul %111, %92, %cst_37 {dimension_numbers = #tpu.dot_dimension_numbers<[2], [1], [1], [2], [0, 0, 0, 1, 1, 2], [0], [0]>} : vector<4x64x128xbf16>, vector<4x128x32xbf16>, vector<4x64x32xf32> -> vector<4x64x32xf32>
    "tpu.trace_stop"() : () -> ()
    %113 = arith.truncf %112 : vector<4x64x32xf32> to vector<4x64x32xbf16>
    %114 = tpu.transpose %113, [1, 0, 2] : vector<4x64x32xbf16> -> vector<64x4x32xbf16>
    %115 = vector.shape_cast %114 : vector<64x4x32xbf16> to vector<64x128xbf16>
    %c0_38 = arith.constant 0 : index
    %c0_39 = arith.constant 0 : index
    %116 = vector.load %arg9[%c0_38, %c0_39] : memref<128x128xbf16, #tpu.memory_space<vmem>>, vector<128x128xbf16>
    %cst_40 = arith.constant dense<0.000000e+00> : vector<64x128xf32>
    %117 = tpu.matmul %115, %116, %cst_40 {dimension_numbers = #tpu.dot_dimension_numbers<[1], [0], [0], [1], [0, 0, 1, 1], [], []>} : vector<64x128xbf16>, vector<128x128xbf16>, vector<64x128xf32> -> vector<64x128xf32>
    %c0_41 = arith.constant 0 : index
    %c0_42 = arith.constant 0 : index
    %118 = vector.load %arg10[%c0_41, %c0_42] : memref<1x128xf32, #tpu.memory_space<vmem>>, vector<1x128xf32>
    %119 = vector.shape_cast %118 : vector<1x128xf32> to vector<128xf32>
    %120 = vector.shape_cast %119 : vector<128xf32> to vector<1x128xf32>
    %121 = vector.broadcast %120 : vector<1x128xf32> to vector<64x128xf32>
    %122 = arith.addf %117, %121 : vector<64x128xf32>
    %123 = arith.addf %35, %122 : vector<64x128xf32>
    %c0_43 = arith.constant 0 : index
    %c0_44 = arith.constant 0 : index
    %124 = vector.load %arg13[%c0_43, %c0_44] : memref<1x128xf32, #tpu.memory_space<vmem>>, vector<1x128xf32>
    %125 = vector.shape_cast %124 : vector<1x128xf32> to vector<128xf32>
    %c0_45 = arith.constant 0 : index
    %c0_46 = arith.constant 0 : index
    %126 = vector.load %arg14[%c0_45, %c0_46] : memref<1x128xf32, #tpu.memory_space<vmem>>, vector<1x128xf32>
    %127 = vector.shape_cast %126 : vector<1x128xf32> to vector<128xf32>
    %cst_47 = arith.constant dense<0.000000e+00> : vector<64xf32>
    %128 = vector.multi_reduction <add>, %123, %cst_47 [1] : vector<64x128xf32> to vector<64xf32>
    %129 = vector.shape_cast %128 : vector<64xf32> to vector<64x1xf32>
    %cst_48 = arith.constant 1.280000e+02 : f32
    %130 = vector.broadcast %cst_48 : f32 to vector<64x1xf32>
    %131 = arith.divf %129, %130 : vector<64x1xf32>
    %132 = vector.broadcast %131 : vector<64x1xf32> to vector<64x128xf32>
    %133 = arith.subf %123, %132 : vector<64x128xf32>
    %134 = arith.mulf %133, %133 : vector<64x128xf32>
    %cst_49 = arith.constant dense<0.000000e+00> : vector<64xf32>
    %135 = vector.multi_reduction <add>, %134, %cst_49 [1] : vector<64x128xf32> to vector<64xf32>
    %136 = vector.shape_cast %135 : vector<64xf32> to vector<64x1xf32>
    %cst_50 = arith.constant 1.280000e+02 : f32
    %137 = vector.broadcast %cst_50 : f32 to vector<64x1xf32>
    %138 = arith.divf %136, %137 : vector<64x1xf32>
    %139 = vector.broadcast %131 : vector<64x1xf32> to vector<64x128xf32>
    %140 = arith.subf %123, %139 : vector<64x128xf32>
    %cst_51 = arith.constant 9.99999974E-6 : f32
    %141 = vector.broadcast %cst_51 : f32 to vector<64x1xf32>
    %142 = arith.addf %138, %141 : vector<64x1xf32>
    %143 = math.rsqrt %142 : vector<64x1xf32>
    %144 = vector.broadcast %143 : vector<64x1xf32> to vector<64x128xf32>
    %145 = arith.mulf %140, %144 : vector<64x128xf32>
    %146 = vector.shape_cast %125 : vector<128xf32> to vector<1x128xf32>
    %147 = vector.broadcast %146 : vector<1x128xf32> to vector<64x128xf32>
    %148 = arith.mulf %145, %147 : vector<64x128xf32>
    %149 = vector.shape_cast %127 : vector<128xf32> to vector<1x128xf32>
    %150 = vector.broadcast %149 : vector<1x128xf32> to vector<64x128xf32>
    %151 = arith.addf %148, %150 : vector<64x128xf32>
    %152 = arith.truncf %151 : vector<64x128xf32> to vector<64x128xbf16>
    %c0_52 = arith.constant 0 : index
    %c0_53 = arith.constant 0 : index
    %153 = vector.load %arg15[%c0_52, %c0_53] : memref<128x256xbf16, #tpu.memory_space<vmem>>, vector<128x256xbf16>
    %cst_54 = arith.constant dense<0.000000e+00> : vector<64x256xf32>
    %154 = tpu.matmul %152, %153, %cst_54 {dimension_numbers = #tpu.dot_dimension_numbers<[1], [0], [0], [1], [0, 0, 1, 1], [], []>} : vector<64x128xbf16>, vector<128x256xbf16>, vector<64x256xf32> -> vector<64x256xf32>
    %c0_55 = arith.constant 0 : index
    %c0_56 = arith.constant 0 : index
    %155 = vector.load %arg16[%c0_55, %c0_56] : memref<1x256xf32, #tpu.memory_space<vmem>>, vector<1x256xf32>
    %156 = vector.shape_cast %155 : vector<1x256xf32> to vector<256xf32>
    %157 = vector.shape_cast %156 : vector<256xf32> to vector<1x256xf32>
    %158 = vector.broadcast %157 : vector<1x256xf32> to vector<64x256xf32>
    %159 = arith.addf %154, %158 : vector<64x256xf32>
    %cst_57 = arith.constant 0.000000e+00 : f32
    %160 = vector.broadcast %cst_57 : f32 to vector<64x256xf32>
    %161 = arith.maximumf %159, %160 : vector<64x256xf32>
    %162 = arith.truncf %161 : vector<64x256xf32> to vector<64x256xbf16>
    %c0_58 = arith.constant 0 : index
    %c0_59 = arith.constant 0 : index
    %163 = vector.load %arg17[%c0_58, %c0_59] : memref<256x128xbf16, #tpu.memory_space<vmem>>, vector<256x128xbf16>
    %cst_60 = arith.constant dense<0.000000e+00> : vector<64x128xf32>
    %164 = tpu.matmul %162, %163, %cst_60 {dimension_numbers = #tpu.dot_dimension_numbers<[1], [0], [0], [1], [0, 0, 1, 1], [], []>} : vector<64x256xbf16>, vector<256x128xbf16>, vector<64x128xf32> -> vector<64x128xf32>
    %c0_61 = arith.constant 0 : index
    %c0_62 = arith.constant 0 : index
    %165 = vector.load %arg18[%c0_61, %c0_62] : memref<1x128xf32, #tpu.memory_space<vmem>>, vector<1x128xf32>
    %166 = vector.shape_cast %165 : vector<1x128xf32> to vector<128xf32>
    %167 = vector.shape_cast %166 : vector<128xf32> to vector<1x128xf32>
    %168 = vector.broadcast %167 : vector<1x128xf32> to vector<64x128xf32>
    %169 = arith.addf %164, %168 : vector<64x128xf32>
    %170 = arith.addf %123, %169 : vector<64x128xf32>
    %c0_63 = arith.constant 0 : index
    %c0_64 = arith.constant 0 : index
    %c0_65 = arith.constant 0 : index
    %171 = vector.load %arg19[%c0_63, %c0_64, %c0_65] : memref<1x64x128xf32, #tpu.memory_space<vmem>>, vector<1x64x128xf32>
    %172 = vector.shape_cast %171 : vector<1x64x128xf32> to vector<64x128xf32>
    %173 = vector.shape_cast %170 : vector<64x128xf32> to vector<1x64x128xf32>
    tpu.vector_store %arg19[%c0_63, %c0_64, %c0_65], %173 {strides = array<i32>} : memref<1x64x128xf32, #tpu.memory_space<vmem>>, vector<1x64x128xf32>,
    return
  }
  func.func @transform_0(%arg0: i32, %arg1: i32) -> (i32, i32, i32) {
    %c0_i32 = arith.constant 0 : i32
    %c0_i32_0 = arith.constant 0 : i32
    %c0_i32_1 = arith.constant 0 : i32
    return %arg0, %c0_i32, %c0_i32_0 : i32, i32, i32
  }
  func.func @transform_1(%arg0: i32, %arg1: i32) -> (i32, i32) {
    %c0_i32 = arith.constant 0 : i32
    %c0_i32_0 = arith.constant 0 : i32
    %c0_i32_1 = arith.constant 0 : i32
    return %c0_i32, %c0_i32_0 : i32, i32
  }
  func.func @transform_2(%arg0: i32, %arg1: i32) -> (i32, i32) {
    %c0_i32 = arith.constant 0 : i32
    %c0_i32_0 = arith.constant 0 : i32
    %c0_i32_1 = arith.constant 0 : i32
    return %c0_i32, %c0_i32_0 : i32, i32
  }
  func.func @transform_3(%arg0: i32, %arg1: i32) -> (i32, i32) {
    %c0_i32 = arith.constant 0 : i32
    %c0_i32_0 = arith.constant 0 : i32
    %c0_i32_1 = arith.constant 0 : i32
    return %c0_i32, %c0_i32_0 : i32, i32
  }
  func.func @transform_4(%arg0: i32, %arg1: i32) -> (i32, i32) {
    %c0_i32 = arith.constant 0 : i32
    %c0_i32_0 = arith.constant 0 : i32
    %c0_i32_1 = arith.constant 0 : i32
    return %c0_i32, %c0_i32_0 : i32, i32
  }
  func.func @transform_5(%arg0: i32, %arg1: i32) -> (i32, i32) {
    %c0_i32 = arith.constant 0 : i32
    %c0_i32_0 = arith.constant 0 : i32
    %c0_i32_1 = arith.constant 0 : i32
    return %c0_i32, %c0_i32_0 : i32, i32
  }
  func.func @transform_6(%arg0: i32, %arg1: i32) -> (i32, i32) {
    %c0_i32 = arith.constant 0 : i32
    %c0_i32_0 = arith.constant 0 : i32
    %c0_i32_1 = arith.constant 0 : i32
    return %c0_i32, %c0_i32_0 : i32, i32
  }
  func.func @transform_7(%arg0: i32, %arg1: i32) -> (i32, i32) {
    %c0_i32 = arith.constant 0 : i32
    %c0_i32_0 = arith.constant 0 : i32
    %c0_i32_1 = arith.constant 0 : i32
    return %c0_i32, %c0_i32_0 : i32, i32
  }
  func.func @transform_8(%arg0: i32, %arg1: i32) -> (i32, i32) {
    %c0_i32 = arith.constant 0 : i32
    %c0_i32_0 = arith.constant 0 : i32
    %c0_i32_1 = arith.constant 0 : i32
    return %c0_i32, %c0_i32_0 : i32, i32
  }
  func.func @transform_9(%arg0: i32, %arg1: i32) -> (i32, i32) {
    %c0_i32 = arith.constant 0 : i32
    %c0_i32_0 = arith.constant 0 : i32
    %c0_i32_1 = arith.constant 0 : i32
    return %c0_i32, %c0_i32_0 : i32, i32
  }
  func.func @transform_10(%arg0: i32, %arg1: i32) -> (i32, i32) {
    %c0_i32 = arith.constant 0 : i32
    %c0_i32_0 = arith.constant 0 : i32
    %c0_i32_1 = arith.constant 0 : i32
    return %c0_i32, %c0_i32_0 : i32, i32
  }
  func.func @transform_11(%arg0: i32, %arg1: i32) -> (i32, i32) {
    %c0_i32 = arith.constant 0 : i32
    %c0_i32_0 = arith.constant 0 : i32
    %c0_i32_1 = arith.constant 0 : i32
    return %c0_i32, %c0_i32_0 : i32, i32
  }
  func.func @transform_12(%arg0: i32, %arg1: i32) -> (i32, i32) {
    %c0_i32 = arith.constant 0 : i32
    %c0_i32_0 = arith.constant 0 : i32
    %c0_i32_1 = arith.constant 0 : i32
    return %c0_i32, %c0_i32_0 : i32, i32
  }
  func.func @transform_13(%arg0: i32, %arg1: i32) -> (i32, i32) {
    %c0_i32 = arith.constant 0 : i32
    %c0_i32_0 = arith.constant 0 : i32
    %c0_i32_1 = arith.constant 0 : i32
    return %c0_i32, %c0_i32_0 : i32, i32
  }
  func.func @transform_14(%arg0: i32, %arg1: i32) -> (i32, i32) {
    %c0_i32 = arith.constant 0 : i32
    %c0_i32_0 = arith.constant 0 : i32
    %c0_i32_1 = arith.constant 0 : i32
    return %c0_i32, %c0_i32_0 : i32, i32
  }
  func.func @transform_15(%arg0: i32, %arg1: i32) -> (i32, i32) {
    %c0_i32 = arith.constant 0 : i32
    %c0_i32_0 = arith.constant 0 : i32
    %c0_i32_1 = arith.constant 0 : i32
    return %c0_i32, %c0_i32_0 : i32, i32
  }
  func.func @transform_16(%arg0: i32, %arg1: i32) -> (i32, i32) {
    %c0_i32 = arith.constant 0 : i32
    %c0_i32_0 = arith.constant 0 : i32
    %c0_i32_1 = arith.constant 0 : i32
    return %c0_i32, %c0_i32_0 : i32, i32
  }
  func.func @transform_17(%arg0: i32, %arg1: i32) -> (i32, i32, i32) {
    %c0_i32 = arith.constant 0 : i32
    %c0_i32_0 = arith.constant 0 : i32
    return %arg0, %arg1, %c0_i32 : i32, i32, i32
  }
}

</mosaic_0001>

<llo_original>
// kernel: tpu_custom_call.1
$region0: #{tpu_custom_call.1}
  #allocation0 [shape = 'u32[]', space=smem, size = 0x4, offset = 0x4, fixed_abs, tag = 'smem constant byte address 0x4 - core index']
  #allocation1 [shape = 'u32[144,128]{1,0:T(1,128)}', space=vmem, size = 0x12000, scoped, tag = 'internal scratch']
  %s0 = inlined_call_operand.hbm [shape: f32[2,128,128], index: 0, kind: input, shape index: {}]
  %s1 = inlined_call_operand.hbm [shape: bf16[128,128], index: 1, kind: input, shape index: {}]
  %s2 = inlined_call_operand.vmem [shape: f32[1,128], index: 2, kind: input, shape index: {}]
  %s3 = inlined_call_operand.hbm [shape: bf16[128,128], index: 3, kind: input, shape index: {}]
  %s4 = inlined_call_operand.vmem [shape: f32[1,128], index: 4, kind: input, shape index: {}]
  %s5 = inlined_call_operand.hbm [shape: bf16[128,128], index: 5, kind: input, shape index: {}]
  %s6 = inlined_call_operand.vmem [shape: f32[1,128], index: 6, kind: input, shape index: {}]
  %s7 = inlined_call_operand.hbm [shape: bf16[128,128], index: 7, kind: input, shape index: {}]
  %s8 = inlined_call_operand.vmem [shape: f32[1,128], index: 8, kind: input, shape index: {}]
  %s9 = inlined_call_operand.vmem [shape: f32[1,128], index: 9, kind: input, shape index: {}]
  %s10 = inlined_call_operand.vmem [shape: f32[1,128], index: 10, kind: input, shape index: {}]
  %s11 = inlined_call_operand.vmem [shape: f32[1,128], index: 11, kind: input, shape index: {}]
  %s12 = inlined_call_operand.vmem [shape: f32[1,128], index: 12, kind: input, shape index: {}]
  %s13 = inlined_call_operand.hbm [shape: bf16[128,256], index: 13, kind: input, shape index: {}]
  %s14 = inlined_call_operand.vmem [shape: f32[1,256], index: 14, kind: input, shape index: {}]
  %s15 = inlined_call_operand.hbm [shape: bf16[256,128], index: 15, kind: input, shape index: {}]
  %s16 = inlined_call_operand.vmem [shape: f32[1,128], index: 16, kind: input, shape index: {}]
  %s17 = inlined_call_operand.hbm [shape: f32[2,128,128], index: 17, kind: output, shape index: {}]
  %s18 = sld [smem:[#allocation0]]
  $region129: #{tpu_custom_call.1} parent=0
    _
  %s20 = ssub.s32 1, %s18
  %s21 = scalar_select 0, %s20, %s18
  $region1: #{tpu_custom_call.1} parent=0
    #allocation2 [shape = 'u8[131072]{0}', space=vmem, size = 0x20000, scoped, tag = 'input window, operand 0']
    #allocation3 [shape = 's32[2]{0}', space=sflag, size = 0x8, scoped, tag = 'scoped memory for tpu_custom_call.1']
    #allocation4 [shape = 's32[2]{0}', space=sflag, size = 0x8, scoped, tag = 'scoped memory for tpu_custom_call.1']
    #allocation5 [shape = 'u8[32768]{0}', space=vmem, size = 0x8000, scoped, tag = 'input window, operand 1, single buffered']
    #allocation6 [shape = 's32[1]{0}', space=sflag, size = 0x4, scoped, tag = 'scoped memory for tpu_custom_call.1']
    #allocation7 [shape = 'u8[32768]{0}', space=vmem, size = 0x8000, scoped, tag = 'input window, operand 3, single buffered']
    #allocation8 [shape = 'u8[32768]{0}', space=vmem, size = 0x8000, scoped, tag = 'input window, operand 5, single buffered']
    #allocation9 [shape = 's32[1]{0}', space=sflag, size = 0x4, scoped, tag = 'scoped memory for tpu_custom_call.1']
    #allocation10 [shape = 'u8[32768]{0}', space=vmem, size = 0x8000, scoped, tag = 'input window, operand 7, single buffered']
    #allocation11 [shape = 'u8[65536]{0}', space=vmem, size = 0x10000, scoped, tag = 'input window, operand 13, single buffered']
    #allocation12 [shape = 's32[1]{0}', space=sflag, size = 0x4, scoped, tag = 'scoped memory for tpu_custom_call.1']
    #allocation13 [shape = 'u8[65536]{0}', space=vmem, size = 0x10000, scoped, tag = 'input window, operand 15, single buffered']
    #allocation14 [shape = 'u8[65536]{0}', space=vmem, size = 0x10000, scoped, tag = 'output window, operand 0']
    %22 = vsyncpa [#allocation3], 0
    %s23 = scalar_lea.sflag [#allocation3], 1
    %24 = vsyncpa %s23, 0
    %25 = vsyncpa [#allocation6], 0
    %26 = vsyncpa [#allocation9], 0
    %27 = vsyncpa [#allocation12], 0
    %28 = vsyncpa [#allocation4], 0
    %s29 = scalar_lea.sflag [#allocation4], 1
    %30 = vsyncpa %s29, 0
    loop: start=0, step=1, limit=6
    $region2: #{tpu_custom_call.1} parent=1 // loop_pre_header
      _
    $region3: #{tpu_custom_call.1} parent=1 // loop_header
      %s32 = sphi 0, %s36
      %p33 = scmp.ge.s32.totalorder %s32, 6
      %s39 = sphi 0, %s51
      %s40 = sphi 0, %s47
      %s41 = sphi 0, %s39
      %s42 = sphi 0, %s40
      %s43 = sphi 0, %s41
      %s44 = sphi 0, %s42
      %s54 = sphi 0, %s56
      %s57 = sphi 0, %s54
      %s58 = sphi 0, %s57
      %s74 = sphi 0, %s58
      %s78 = sphi 0, %s78
      %s80 = sphi 0, %s78
      %s81 = sphi 0, %s80
      %s95 = sphi 0, %s81
      %s99 = sphi 0, %s99
      %s101 = sphi 0, %s99
      %s102 = sphi 0, %s101
      %s116 = sphi 0, %s102
      %s120 = sphi 0, %s120
      %s122 = sphi 0, %s120
      %s123 = sphi 0, %s122
      %s137 = sphi 0, %s123
      %s141 = sphi 0, %s141
      %s143 = sphi 0, %s141
      %s144 = sphi 0, %s143
      %s158 = sphi 0, %s144
      %s162 = sphi 0, %s162
      %s164 = sphi 0, %s162
      %s165 = sphi 0, %s164
      %s179 = sphi 0, %s165
      %s183 = sphi 0, %s183
      %s185 = sphi 0, %s183
      %s186 = sphi 0, %s185
      %s200 = sphi 0, %s186
      %s204 = sphi 0, %s204
      %s206 = sphi 0, %s204
      %s207 = sphi 0, %s206
      %s221 = sphi 0, %s207
      %s225 = sphi 0, %s225
      %s227 = sphi 0, %s225
      %s228 = sphi 0, %s227
      %s242 = sphi 0, %s228
      %s246 = sphi 0, %s246
      %s248 = sphi 0, %s246
      %s249 = sphi 0, %s248
      %s263 = sphi 0, %s249
      %s267 = sphi 0, %s267
      %s269 = sphi 0, %s267
      %s270 = sphi 0, %s269
      %s284 = sphi 0, %s270
      %s288 = sphi 0, %s288
      %s290 = sphi 0, %s288
      %s291 = sphi 0, %s290
      %s305 = sphi 0, %s291
      %s309 = sphi 0, %s309
      %s311 = sphi 0, %s309
      %s312 = sphi 0, %s311
      %s326 = sphi 0, %s312
      %s330 = sphi 0, %s330
      %s332 = sphi 0, %s330
      %s333 = sphi 0, %s332
      %s347 = sphi 0, %s333
      %s351 = sphi 0, %s351
      %s353 = sphi 0, %s351
      %s354 = sphi 0, %s353
      %s368 = sphi 0, %s354
      %s372 = sphi 0, %s372
      %s374 = sphi 0, %s372
      %s375 = sphi 0, %s374
      %s389 = sphi 0, %s375
      %s393 = sphi 0, %s393
      %s395 = sphi 0, %s393
      %s396 = sphi 0, %s395
      %s410 = sphi 0, %s396
      %s418 = sphi 0, %s420
      %s421 = sphi 0, %s418
      %s422 = sphi 0, %s421
      %s438 = sphi 0, %s422
    $region4: #{tpu_custom_call.1} parent=1 // loop_header_branch
      %35 = sbr.rel (%p33) target = $region8
    $region5: #{tpu_custom_call.1} parent=1 // loop_body
      %s37 = ssub.s32 %s32, 1
      %s38 = ssub.s32 %s32, 2
      %s45 = sadd.s32 1, %s40
      %p46 = scmp.ge.s32.totalorder %s45, 2
      %s47 = scalar_select %p46, 0, %s45
      %s48 = sadd.s32 1, %s39
      %s49 = scalar_select %p46, %s48, %s39
      %p50 = scmp.ge.s32.totalorder %s49, 2
      %s51 = scalar_select %p50, 0, %s49
      %s52 = ssub.s32 %s39, %s51
      %p53 = scmp.eq.s32.totalorder %s52, 0
      %s55 = sadd.s32 %s54, 1
      %s56 = scalar_select %p53, %s54, %s55
      %p59 = pneg %p53
      %p60 = scmp.eq.s32.totalorder %s32, 3
      %p61 = por %p59, %p60
      %p62 = scmp.ne.s32.totalorder %s54, %s57
      %p63 = scmp.eq.s32.totalorder %s32, 0
      %p64 = por %p62, %p63
      %p65 = scmp.ne.s32.totalorder %s54, %s57
      %p66 = scmp.eq.s32.totalorder %s37, 3
      %p67 = por %p65, %p66
      %p68 = scmp.ne.s32.totalorder %s57, %s58
      %p69 = scmp.eq.s32.totalorder %s37, 0
      %p70 = por %p68, %p69
      %p71 = scmp.ne.s32.totalorder %s57, %s58
      %p72 = scmp.eq.s32.totalorder %s38, 3
      %p73 = por %p71, %p72
      %p75 = scmp.ne.s32.totalorder %s58, %s74
      %p76 = scmp.eq.s32.totalorder %s38, 0
      %p77 = por %p75, %p76
      %s79 = sadd.s32 %s78, 1
      %p82 = scmp.eq.s32.totalorder %s32, 3
      %p83 = scmp.ne.s32.totalorder %s78, %s80
      %p84 = scmp.eq.s32.totalorder %s32, 0
      %p85 = por %p83, %p84
      %p86 = scmp.ne.s32.totalorder %s78, %s80
      %p87 = scmp.eq.s32.totalorder %s37, 3
      %p88 = por %p86, %p87
      %p89 = scmp.ne.s32.totalorder %s80, %s81
      %p90 = scmp.eq.s32.totalorder %s37, 0
      %p91 = por %p89, %p90
      %p92 = scmp.ne.s32.totalorder %s80, %s81
      %p93 = scmp.eq.s32.totalorder %s38, 3
      %p94 = por %p92, %p93
      %p96 = scmp.ne.s32.totalorder %s81, %s95
      %p97 = scmp.eq.s32.totalorder %s38, 0
      %p98 = por %p96, %p97
      %s100 = sadd.s32 %s99, 1
      %p103 = scmp.eq.s32.totalorder %s32, 3
      %p104 = scmp.ne.s32.totalorder %s99, %s101
      %p105 = scmp.eq.s32.totalorder %s32, 0
      %p106 = por %p104, %p105
      %p107 = scmp.ne.s32.totalorder %s99, %s101
      %p108 = scmp.eq.s32.totalorder %s37, 3
      %p109 = por %p107, %p108
      %p110 = scmp.ne.s32.totalorder %s101, %s102
      %p111 = scmp.eq.s32.totalorder %s37, 0
      %p112 = por %p110, %p111
      %p113 = scmp.ne.s32.totalorder %s101, %s102
      %p114 = scmp.eq.s32.totalorder %s38, 3
      %p115 = por %p113, %p114
      %p117 = scmp.ne.s32.totalorder %s102, %s116
      %p118 = scmp.eq.s32.totalorder %s38, 0
      %p119 = por %p117, %p118
      %s121 = sadd.s32 %s120, 1
      %p124 = scmp.eq.s32.totalorder %s32, 3
      %p125 = scmp.ne.s32.totalorder %s120, %s122
      %p126 = scmp.eq.s32.totalorder %s32, 0
      %p127 = por %p125, %p126
      %p128 = scmp.ne.s32.totalorder %s120, %s122
      %p129 = scmp.eq.s32.totalorder %s37, 3
      %p130 = por %p128, %p129
      %p131 = scmp.ne.s32.totalorder %s122, %s123
      %p132 = scmp.eq.s32.totalorder %s37, 0
      %p133 = por %p131, %p132
      %p134 = scmp.ne.s32.totalorder %s122, %s123
      %p135 = scmp.eq.s32.totalorder %s38, 3
      %p136 = por %p134, %p135
      %p138 = scmp.ne.s32.totalorder %s123, %s137
      %p139 = scmp.eq.s32.totalorder %s38, 0
      %p140 = por %p138, %p139
      %s142 = sadd.s32 %s141, 1
      %p145 = scmp.eq.s32.totalorder %s32, 3
      %p146 = scmp.ne.s32.totalorder %s141, %s143
      %p147 = scmp.eq.s32.totalorder %s32, 0
      %p148 = por %p146, %p147
      %p149 = scmp.ne.s32.totalorder %s141, %s143
      %p150 = scmp.eq.s32.totalorder %s37, 3
      %p151 = por %p149, %p150
      %p152 = scmp.ne.s32.totalorder %s143, %s144
      %p153 = scmp.eq.s32.totalorder %s37, 0
      %p154 = por %p152, %p153
      %p155 = scmp.ne.s32.totalorder %s143, %s144
      %p156 = scmp.eq.s32.totalorder %s38, 3
      %p157 = por %p155, %p156
      %p159 = scmp.ne.s32.totalorder %s144, %s158
      %p160 = scmp.eq.s32.totalorder %s38, 0
      %p161 = por %p159, %p160
      %s163 = sadd.s32 %s162, 1
      %p166 = scmp.eq.s32.totalorder %s32, 3
      %p167 = scmp.ne.s32.totalorder %s162, %s164
      %p168 = scmp.eq.s32.totalorder %s32, 0
      %p169 = por %p167, %p168
      %p170 = scmp.ne.s32.totalorder %s162, %s164
      %p171 = scmp.eq.s32.totalorder %s37, 3
      %p172 = por %p170, %p171
      %p173 = scmp.ne.s32.totalorder %s164, %s165
      %p174 = scmp.eq.s32.totalorder %s37, 0
      %p175 = por %p173, %p174
      %p176 = scmp.ne.s32.totalorder %s164, %s165
      %p177 = scmp.eq.s32.totalorder %s38, 3
      %p178 = por %p176, %p177
      %p180 = scmp.ne.s32.totalorder %s165, %s179
      %p181 = scmp.eq.s32.totalorder %s38, 0
      %p182 = por %p180, %p181
      %s184 = sadd.s32 %s183, 1
      %p187 = scmp.eq.s32.totalorder %s32, 3
      %p188 = scmp.ne.s32.totalorder %s183, %s185
      %p189 = scmp.eq.s32.totalorder %s32, 0
      %p190 = por %p188, %p189
      %p191 = scmp.ne.s32.totalorder %s183, %s185
      %p192 = scmp.eq.s32.totalorder %s37, 3
      %p193 = por %p191, %p192
      %p194 = scmp.ne.s32.totalorder %s185, %s186
      %p195 = scmp.eq.s32.totalorder %s37, 0
      %p196 = por %p194, %p195
      %p197 = scmp.ne.s32.totalorder %s185, %s186
      %p198 = scmp.eq.s32.totalorder %s38, 3
      %p199 = por %p197, %p198
      %p201 = scmp.ne.s32.totalorder %s186, %s200
      %p202 = scmp.eq.s32.totalorder %s38, 0
      %p203 = por %p201, %p202
      %s205 = sadd.s32 %s204, 1
      %p208 = scmp.eq.s32.totalorder %s32, 3
      %p209 = scmp.ne.s32.totalorder %s204, %s206
      %p210 = scmp.eq.s32.totalorder %s32, 0
      %p211 = por %p209, %p210
      %p212 = scmp.ne.s32.totalorder %s204, %s206
      %p213 = scmp.eq.s32.totalorder %s37, 3
      %p214 = por %p212, %p213
      %p215 = scmp.ne.s32.totalorder %s206, %s207
      %p216 = scmp.eq.s32.totalorder %s37, 0
      %p217 = por %p215, %p216
      %p218 = scmp.ne.s32.totalorder %s206, %s207
      %p219 = scmp.eq.s32.totalorder %s38, 3
      %p220 = por %p218, %p219
      %p222 = scmp.ne.s32.totalorder %s207, %s221
      %p223 = scmp.eq.s32.totalorder %s38, 0
      %p224 = por %p222, %p223
      %s226 = sadd.s32 %s225, 1
      %p229 = scmp.eq.s32.totalorder %s32, 3
      %p230 = scmp.ne.s32.totalorder %s225, %s227
      %p231 = scmp.eq.s32.totalorder %s32, 0
      %p232 = por %p230, %p231
      %p233 = scmp.ne.s32.totalorder %s225, %s227
      %p234 = scmp.eq.s32.totalorder %s37, 3
      %p235 = por %p233, %p234
      %p236 = scmp.ne.s32.totalorder %s227, %s228
      %p237 = scmp.eq.s32.totalorder %s37, 0
      %p238 = por %p236, %p237
      %p239 = scmp.ne.s32.totalorder %s227, %s228
      %p240 = scmp.eq.s32.totalorder %s38, 3
      %p241 = por %p239, %p240
      %p243 = scmp.ne.s32.totalorder %s228, %s242
      %p244 = scmp.eq.s32.totalorder %s38, 0
      %p245 = por %p243, %p244
      %s247 = sadd.s32 %s246, 1
      %p250 = scmp.eq.s32.totalorder %s32, 3
      %p251 = scmp.ne.s32.totalorder %s246, %s248
      %p252 = scmp.eq.s32.totalorder %s32, 0
      %p253 = por %p251, %p252
      %p254 = scmp.ne.s32.totalorder %s246, %s248
      %p255 = scmp.eq.s32.totalorder %s37, 3
      %p256 = por %p254, %p255
      %p257 = scmp.ne.s32.totalorder %s248, %s249
      %p258 = scmp.eq.s32.totalorder %s37, 0
      %p259 = por %p257, %p258
      %p260 = scmp.ne.s32.totalorder %s248, %s249
      %p261 = scmp.eq.s32.totalorder %s38, 3
      %p262 = por %p260, %p261
      %p264 = scmp.ne.s32.totalorder %s249, %s263
      %p265 = scmp.eq.s32.totalorder %s38, 0
      %p266 = por %p264, %p265
      %s268 = sadd.s32 %s267, 1
      %p271 = scmp.eq.s32.totalorder %s32, 3
      %p272 = scmp.ne.s32.totalorder %s267, %s269
      %p273 = scmp.eq.s32.totalorder %s32, 0
      %p274 = por %p272, %p273
      %p275 = scmp.ne.s32.totalorder %s267, %s269
      %p276 = scmp.eq.s32.totalorder %s37, 3
      %p277 = por %p275, %p276
      %p278 = scmp.ne.s32.totalorder %s269, %s270
      %p279 = scmp.eq.s32.totalorder %s37, 0
      %p280 = por %p278, %p279
      %p281 = scmp.ne.s32.totalorder %s269, %s270
      %p282 = scmp.eq.s32.totalorder %s38, 3
      %p283 = por %p281, %p282
      %p285 = scmp.ne.s32.totalorder %s270, %s284
      %p286 = scmp.eq.s32.totalorder %s38, 0
      %p287 = por %p285, %p286
      %s289 = sadd.s32 %s288, 1
      %p292 = scmp.eq.s32.totalorder %s32, 3
      %p293 = scmp.ne.s32.totalorder %s288, %s290
      %p294 = scmp.eq.s32.totalorder %s32, 0
      %p295 = por %p293, %p294
      %p296 = scmp.ne.s32.totalorder %s288, %s290
      %p297 = scmp.eq.s32.totalorder %s37, 3
      %p298 = por %p296, %p297
      %p299 = scmp.ne.s32.totalorder %s290, %s291
      %p300 = scmp.eq.s32.totalorder %s37, 0
      %p301 = por %p299, %p300
      %p302 = scmp.ne.s32.totalorder %s290, %s291
      %p303 = scmp.eq.s32.totalorder %s38, 3
      %p304 = por %p302, %p303
      %p306 = scmp.ne.s32.totalorder %s291, %s305
      %p307 = scmp.eq.s32.totalorder %s38, 0
      %p308 = por %p306, %p307
      %s310 = sadd.s32 %s309, 1
      %p313 = scmp.eq.s32.totalorder %s32, 3
      %p314 = scmp.ne.s32.totalorder %s309, %s311
      %p315 = scmp.eq.s32.totalorder %s32, 0
      %p316 = por %p314, %p315
      %p317 = scmp.ne.s32.totalorder %s309, %s311
      %p318 = scmp.eq.s32.totalorder %s37, 3
      %p319 = por %p317, %p318
      %p320 = scmp.ne.s32.totalorder %s311, %s312
      %p321 = scmp.eq.s32.totalorder %s37, 0
      %p322 = por %p320, %p321
      %p323 = scmp.ne.s32.totalorder %s311, %s312
      %p324 = scmp.eq.s32.totalorder %s38, 3
      %p325 = por %p323, %p324
      %p327 = scmp.ne.s32.totalorder %s312, %s326
      %p328 = scmp.eq.s32.totalorder %s38, 0
      %p329 = por %p327, %p328
      %s331 = sadd.s32 %s330, 1
      %p334 = scmp.eq.s32.totalorder %s32, 3
      %p335 = scmp.ne.s32.totalorder %s330, %s332
      %p336 = scmp.eq.s32.totalorder %s32, 0
      %p337 = por %p335, %p336
      %p338 = scmp.ne.s32.totalorder %s330, %s332
      %p339 = scmp.eq.s32.totalorder %s37, 3
      %p340 = por %p338, %p339
      %p341 = scmp.ne.s32.totalorder %s332, %s333
      %p342 = scmp.eq.s32.totalorder %s37, 0
      %p343 = por %p341, %p342
      %p344 = scmp.ne.s32.totalorder %s332, %s333
      %p345 = scmp.eq.s32.totalorder %s38, 3
      %p346 = por %p344, %p345
      %p348 = scmp.ne.s32.totalorder %s333, %s347
      %p349 = scmp.eq.s32.totalorder %s38, 0
      %p350 = por %p348, %p349
      %s352 = sadd.s32 %s351, 1
      %p355 = scmp.eq.s32.totalorder %s32, 3
      %p356 = scmp.ne.s32.totalorder %s351, %s353
      %p357 = scmp.eq.s32.totalorder %s32, 0
      %p358 = por %p356, %p357
      %p359 = scmp.ne.s32.totalorder %s351, %s353
      %p360 = scmp.eq.s32.totalorder %s37, 3
      %p361 = por %p359, %p360
      %p362 = scmp.ne.s32.totalorder %s353, %s354
      %p363 = scmp.eq.s32.totalorder %s37, 0
      %p364 = por %p362, %p363
      %p365 = scmp.ne.s32.totalorder %s353, %s354
      %p366 = scmp.eq.s32.totalorder %s38, 3
      %p367 = por %p365, %p366
      %p369 = scmp.ne.s32.totalorder %s354, %s368
      %p370 = scmp.eq.s32.totalorder %s38, 0
      %p371 = por %p369, %p370
      %s373 = sadd.s32 %s372, 1
      %p376 = scmp.eq.s32.totalorder %s32, 3
      %p377 = scmp.ne.s32.totalorder %s372, %s374
      %p378 = scmp.eq.s32.totalorder %s32, 0
      %p379 = por %p377, %p378
      %p380 = scmp.ne.s32.totalorder %s372, %s374
      %p381 = scmp.eq.s32.totalorder %s37, 3
      %p382 = por %p380, %p381
      %p383 = scmp.ne.s32.totalorder %s374, %s375
      %p384 = scmp.eq.s32.totalorder %s37, 0
      %p385 = por %p383, %p384
      %p386 = scmp.ne.s32.totalorder %s374, %s375
      %p387 = scmp.eq.s32.totalorder %s38, 3
      %p388 = por %p386, %p387
      %p390 = scmp.ne.s32.totalorder %s375, %s389
      %p391 = scmp.eq.s32.totalorder %s38, 0
      %p392 = por %p390, %p391
      %s394 = sadd.s32 %s393, 1
      %p397 = scmp.eq.s32.totalorder %s32, 3
      %p398 = scmp.ne.s32.totalorder %s393, %s395
      %p399 = scmp.eq.s32.totalorder %s32, 0
      %p400 = por %p398, %p399
      %p401 = scmp.ne.s32.totalorder %s393, %s395
      %p402 = scmp.eq.s32.totalorder %s37, 3
      %p403 = por %p401, %p402
      %p404 = scmp.ne.s32.totalorder %s395, %s396
      %p405 = scmp.eq.s32.totalorder %s37, 0
      %p406 = por %p404, %p405
      %p407 = scmp.ne.s32.totalorder %s395, %s396
      %p408 = scmp.eq.s32.totalorder %s38, 3
      %p409 = por %p407, %p408
      %p411 = scmp.ne.s32.totalorder %s396, %s410
      %p412 = scmp.eq.s32.totalorder %s38, 0
      %p413 = por %p411, %p412
      %s414 = ssub.s32 %s39, %s51
      %s415 = ssub.s32 %s40, %s47
      %s416 = sor.u32 %s414, %s415
      %p417 = scmp.eq.s32.totalorder %s416, 0
      %s419 = sadd.s32 %s418, 1
      %s420 = scalar_select %p417, %s418, %s419
      %p423 = pneg %p417
      %p424 = scmp.eq.s32.totalorder %s32, 3
      %p425 = por %p423, %p424
      %p426 = scmp.ne.s32.totalorder %s418, %s421
      %p427 = scmp.eq.s32.totalorder %s32, 0
      %p428 = por %p426, %p427
      %p429 = scmp.ne.s32.totalorder %s418, %s421
      %p430 = scmp.eq.s32.totalorder %s37, 3
      %p431 = por %p429, %p430
      %p432 = scmp.ne.s32.totalorder %s421, %s422
      %p433 = scmp.eq.s32.totalorder %s37, 0
      %p434 = por %p432, %p433
      %p435 = scmp.ne.s32.totalorder %s421, %s422
      %p436 = scmp.eq.s32.totalorder %s38, 3
      %p437 = por %p435, %p436
      %p439 = scmp.ne.s32.totalorder %s422, %s438
      %p440 = scmp.eq.s32.totalorder %s38, 0
      %p441 = por %p439, %p440
      %p442 = scmp.le.s32.totalorder 1, %s32
      %p443 = scmp.lt.s32.totalorder %s32, 5
      %p444 = pnand %p442, %p443
      %p445 = pneg %p444
      // Predicated region
      $region9: #{tpu_custom_call.1} parent=5 // pred_check
        _
      $region10: #{tpu_custom_call.1} parent=5 // pred_check_branch
        %447 = sbr.rel (%p444) target = $region12
      $region11: #{tpu_custom_call.1} parent=5 // pred_region
        %s448 = ssub.s32 %s32, 1
        // Predicated region
        $region13: #{tpu_custom_call.1} parent=11 // pred_check
          %p449 = pneg %p91
        $region14: #{tpu_custom_call.1} parent=11 // pred_check_branch
          %451 = sbr.rel (%p449) target = $region16
        $region15: #{tpu_custom_call.1} parent=11 // pred_region
          %s453 = ssub.s32 1024, 1024
          %454 = vsyncadd [#allocation6], %s453
          %s455 = sshll.u32 [#allocation5], 4
          %s456 = int_to_ptr.vmem [resolvable:$true] %s455
          %461 = dma.hbm_to_vmem [thread:$0]  %s1, 1024, %s456, [#allocation6], 64, 64, 4
        $region16: #{tpu_custom_call.1} parent=11 // pred_fallthru
          _
        // Predicated region
        $region17: #{tpu_custom_call.1} parent=11 // pred_check
          %p462 = pneg %p112
        $region18: #{tpu_custom_call.1} parent=11 // pred_check_branch
          %464 = sbr.rel (%p462) target = $region20
        $region19: #{tpu_custom_call.1} parent=11 // pred_region
          _
        $region20: #{tpu_custom_call.1} parent=11 // pred_fallthru
          _
        // Predicated region
        $region21: #{tpu_custom_call.1} parent=11 // pred_check
          %p465 = pneg %p133
        $region22: #{tpu_custom_call.1} parent=11 // pred_check_branch
          %467 = sbr.rel (%p465) target = $region24
        $region23: #{tpu_custom_call.1} parent=11 // pred_region
          %s469 = ssub.s32 1024, 1024
          %470 = vsyncadd [#allocation6], %s469
          %s471 = sshll.u32 [#allocation7], 4
          %s472 = int_to_ptr.vmem [resolvable:$true] %s471
          %477 = dma.hbm_to_vmem [thread:$0]  %s3, 1024, %s472, [#allocation6], 64, 64, 4
        $region24: #{tpu_custom_call.1} parent=11 // pred_fallthru
          _
        // Predicated region
        $region25: #{tpu_custom_call.1} parent=11 // pred_check
          %p478 = pneg %p154
        $region26: #{tpu_custom_call.1} parent=11 // pred_check_branch
          %480 = sbr.rel (%p478) target = $region28
        $region27: #{tpu_custom_call.1} parent=11 // pred_region
          _
        $region28: #{tpu_custom_call.1} parent=11 // pred_fallthru
          _
        // Predicated region
        $region29: #{tpu_custom_call.1} parent=11 // pred_check
          %p481 = pneg %p175
        $region30: #{tpu_custom_call.1} parent=11 // pred_check_branch
          %483 = sbr.rel (%p481) target = $region32
        $region31: #{tpu_custom_call.1} parent=11 // pred_region
          %s485 = ssub.s32 1024, 1024
          %486 = vsyncadd [#allocation9], %s485
          %s487 = sshll.u32 [#allocation8], 4
          %s488 = int_to_ptr.vmem [resolvable:$true] %s487
          %493 = dma.hbm_to_vmem [thread:$0]  %s5, 1024, %s488, [#allocation9], 64, 64, 4
        $region32: #{tpu_custom_call.1} parent=11 // pred_fallthru
          _
        // Predicated region
        $region33: #{tpu_custom_call.1} parent=11 // pred_check
          %p494 = pneg %p196
        $region34: #{tpu_custom_call.1} parent=11 // pred_check_branch
          %496 = sbr.rel (%p494) target = $region36
        $region35: #{tpu_custom_call.1} parent=11 // pred_region
          _
        $region36: #{tpu_custom_call.1} parent=11 // pred_fallthru
          _
        // Predicated region
        $region37: #{tpu_custom_call.1} parent=11 // pred_check
          %p497 = pneg %p217
        $region38: #{tpu_custom_call.1} parent=11 // pred_check_branch
          %499 = sbr.rel (%p497) target = $region40
        $region39: #{tpu_custom_call.1} parent=11 // pred_region
          %s501 = ssub.s32 1024, 1024
          %502 = vsyncadd [#allocation9], %s501
          %s503 = sshll.u32 [#allocation10], 4
          %s504 = int_to_ptr.vmem [resolvable:$true] %s503
          %509 = dma.hbm_to_vmem [thread:$0]  %s7, 1024, %s504, [#allocation9], 64, 64, 4
        $region40: #{tpu_custom_call.1} parent=11 // pred_fallthru
          _
        // Predicated region
        $region41: #{tpu_custom_call.1} parent=11 // pred_check
          %p510 = pneg %p238
        $region42: #{tpu_custom_call.1} parent=11 // pred_check_branch
          %512 = sbr.rel (%p510) target = $region44
        $region43: #{tpu_custom_call.1} parent=11 // pred_region
          _
        $region44: #{tpu_custom_call.1} parent=11 // pred_fallthru
          _
        // Predicated region
        $region45: #{tpu_custom_call.1} parent=11 // pred_check
          %p513 = pneg %p259
        $region46: #{tpu_custom_call.1} parent=11 // pred_check_branch
          %515 = sbr.rel (%p513) target = $region48
        $region47: #{tpu_custom_call.1} parent=11 // pred_region
          _
        $region48: #{tpu_custom_call.1} parent=11 // pred_fallthru
          _
        // Predicated region
        $region49: #{tpu_custom_call.1} parent=11 // pred_check
          %p516 = pneg %p280
        $region50: #{tpu_custom_call.1} parent=11 // pred_check_branch
          %518 = sbr.rel (%p516) target = $region52
        $region51: #{tpu_custom_call.1} parent=11 // pred_region
          _
        $region52: #{tpu_custom_call.1} parent=11 // pred_fallthru
          _
        // Predicated region
        $region53: #{tpu_custom_call.1} parent=11 // pred_check
          %p519 = pneg %p301
        $region54: #{tpu_custom_call.1} parent=11 // pred_check_branch
          %521 = sbr.rel (%p519) target = $region56
        $region55: #{tpu_custom_call.1} parent=11 // pred_region
          _
        $region56: #{tpu_custom_call.1} parent=11 // pred_fallthru
          _
        // Predicated region
        $region57: #{tpu_custom_call.1} parent=11 // pred_check
          %p522 = pneg %p322
        $region58: #{tpu_custom_call.1} parent=11 // pred_check_branch
          %524 = sbr.rel (%p522) target = $region60
        $region59: #{tpu_custom_call.1} parent=11 // pred_region
          _
        $region60: #{tpu_custom_call.1} parent=11 // pred_fallthru
          _
        // Predicated region
        $region61: #{tpu_custom_call.1} parent=11 // pred_check
          %p525 = pneg %p343
        $region62: #{tpu_custom_call.1} parent=11 // pred_check_branch
          %527 = sbr.rel (%p525) target = $region64
        $region63: #{tpu_custom_call.1} parent=11 // pred_region
          %s529 = ssub.s32 2048, 2048
          %530 = vsyncadd [#allocation12], %s529
          %s531 = sshll.u32 [#allocation11], 4
          %s532 = int_to_ptr.vmem [resolvable:$true] %s531
          %537 = dma.hbm_to_vmem [thread:$0]  %s13, 2048, %s532, [#allocation12], 128, 128, 8
        $region64: #{tpu_custom_call.1} parent=11 // pred_fallthru
          _
        // Predicated region
        $region65: #{tpu_custom_call.1} parent=11 // pred_check
          %p538 = pneg %p364
        $region66: #{tpu_custom_call.1} parent=11 // pred_check_branch
          %540 = sbr.rel (%p538) target = $region68
        $region67: #{tpu_custom_call.1} parent=11 // pred_region
          _
        $region68: #{tpu_custom_call.1} parent=11 // pred_fallthru
          _
        // Predicated region
        $region69: #{tpu_custom_call.1} parent=11 // pred_check
          %p541 = pneg %p385
        $region70: #{tpu_custom_call.1} parent=11 // pred_check_branch
          %543 = sbr.rel (%p541) target = $region72
        $region71: #{tpu_custom_call.1} parent=11 // pred_region
          %s545 = ssub.s32 2048, 2048
          %546 = vsyncadd [#allocation12], %s545
          %s547 = sshll.u32 [#allocation13], 4
          %s548 = int_to_ptr.vmem [resolvable:$true] %s547
          %553 = dma.hbm_to_vmem [thread:$0]  %s15, 2048, %s548, [#allocation12], 64, 64, 4
        $region72: #{tpu_custom_call.1} parent=11 // pred_fallthru
          _
        // Predicated region
        $region73: #{tpu_custom_call.1} parent=11 // pred_check
          %p554 = pneg %p406
        $region74: #{tpu_custom_call.1} parent=11 // pred_check_branch
          %556 = sbr.rel (%p554) target = $region76
        $region75: #{tpu_custom_call.1} parent=11 // pred_region
          _
        $region76: #{tpu_custom_call.1} parent=11 // pred_fallthru
          _
      $region12: #{tpu_custom_call.1} parent=5 // pred_fallthru
        _
      %p557 = scmp.lt.s32.totalorder %s32, 4
      // Predicated region
      $region77: #{tpu_custom_call.1} parent=5 // pred_check
        %p558 = pneg %p557
      $region78: #{tpu_custom_call.1} parent=5 // pred_check_branch
        %560 = sbr.rel (%p558) target = $region80
      $region79: #{tpu_custom_call.1} parent=5 // pred_region
        // Predicated region
        $region81: #{tpu_custom_call.1} parent=79 // pred_check
          %p561 = pneg %p64
        $region82: #{tpu_custom_call.1} parent=79 // pred_check_branch
          %563 = sbr.rel (%p561) target = $region84
        $region83: #{tpu_custom_call.1} parent=79 // pred_region
          %s564 = sand.u32 %s54, 1
          %s565 = scalar_lea.sflag [#allocation3], %s564
          %s566 = sand.u32 %s54, 1
          %s567 = smul.addr %s566, 128
          %s568 = scalar_lea.vmem [#allocation2], %s567
          %s570 = ssub.s32 2048, 2048
          %571 = vsyncadd %s565, %s570
          %s572 = smul.addr %s39, 16
          %s573 = smul.addr %s572, 128
          %s574 = scalar_lea.hbm %s0, %s573
          %s575 = sshll.u32 %s568, 4
          %s576 = int_to_ptr.vmem [resolvable:$true] %s575
          %581 = dma.hbm_to_vmem [thread:$0]  %s574, 2048, %s576, %s565, 128, 128, 8
        $region84: #{tpu_custom_call.1} parent=79 // pred_fallthru
          _
      $region80: #{tpu_custom_call.1} parent=5 // pred_fallthru
        _
      %p582 = scmp.le.s32.totalorder 1, %s32
      %p583 = scmp.lt.s32.totalorder %s32, 5
      %p584 = pnand %p582, %p583
      %p585 = pneg %p584
      // Predicated region
      $region85: #{tpu_custom_call.1} parent=5 // pred_check
        _
      $region86: #{tpu_custom_call.1} parent=5 // pred_check_branch
        %587 = sbr.rel (%p584) target = $region88
      $region87: #{tpu_custom_call.1} parent=5 // pred_region
        %s588 = ssub.s32 %s32, 1
        %s589 = sand.u32 %s57, 1
        %s590 = scalar_lea.sflag [#allocation3], %s589
        %s591 = sand.u32 %s57, 1
        %s592 = smul.addr %s591, 128
        %s593 = scalar_lea.vmem [#allocation2], %s592
        // Predicated region
        $region89: #{tpu_custom_call.1} parent=87 // pred_check
          %p594 = pneg %p70
        $region90: #{tpu_custom_call.1} parent=87 // pred_check_branch
          %596 = sbr.rel (%p594) target = $region92
        $region91: #{tpu_custom_call.1} parent=87 // pred_region
          %597 = dma.done %s590, 2048
        $region92: #{tpu_custom_call.1} parent=87 // pred_fallthru
          _
        // Predicated region
        $region93: #{tpu_custom_call.1} parent=87 // pred_check
          %p598 = pneg %p91
        $region94: #{tpu_custom_call.1} parent=87 // pred_check_branch
          %600 = sbr.rel (%p598) target = $region96
        $region95: #{tpu_custom_call.1} parent=87 // pred_region
          %601 = dma.done [#allocation6], 1024
        $region96: #{tpu_custom_call.1} parent=87 // pred_fallthru
          _
        // Predicated region
        $region97: #{tpu_custom_call.1} parent=87 // pred_check
          %p602 = pneg %p133
        $region98: #{tpu_custom_call.1} parent=87 // pred_check_branch
          %604 = sbr.rel (%p602) target = $region100
        $region99: #{tpu_custom_call.1} parent=87 // pred_region
          %605 = dma.done [#allocation6], 1024
        $region100: #{tpu_custom_call.1} parent=87 // pred_fallthru
          _
        // Predicated region
        $region101: #{tpu_custom_call.1} parent=87 // pred_check
          %p606 = pneg %p175
        $region102: #{tpu_custom_call.1} parent=87 // pred_check_branch
          %608 = sbr.rel (%p606) target = $region104
        $region103: #{tpu_custom_call.1} parent=87 // pred_region
          %609 = dma.done [#allocation9], 1024
        $region104: #{tpu_custom_call.1} parent=87 // pred_fallthru
          _
        // Predicated region
        $region105: #{tpu_custom_call.1} parent=87 // pred_check
          %p610 = pneg %p217
        $region106: #{tpu_custom_call.1} parent=87 // pred_check_branch
          %612 = sbr.rel (%p610) target = $region108
        $region107: #{tpu_custom_call.1} parent=87 // pred_region
          %613 = dma.done [#allocation9], 1024
        $region108: #{tpu_custom_call.1} parent=87 // pred_fallthru
          _
        // Predicated region
        $region109: #{tpu_custom_call.1} parent=87 // pred_check
          %p614 = pneg %p343
        $region110: #{tpu_custom_call.1} parent=87 // pred_check_branch
          %616 = sbr.rel (%p614) target = $region112
        $region111: #{tpu_custom_call.1} parent=87 // pred_region
          %617 = dma.done [#allocation12], 2048
        $region112: #{tpu_custom_call.1} parent=87 // pred_fallthru
          _
        // Predicated region
        $region113: #{tpu_custom_call.1} parent=87 // pred_check
          %p618 = pneg %p385
        $region114: #{tpu_custom_call.1} parent=87 // pred_check_branch
          %620 = sbr.rel (%p618) target = $region116
        $region115: #{tpu_custom_call.1} parent=87 // pred_region
          %621 = dma.done [#allocation12], 2048
        $region116: #{tpu_custom_call.1} parent=87 // pred_fallthru
          _
        %s622 = sand.u32 %s57, 1
        %s623 = scalar_lea.sflag [#allocation3], %s622
        %s624 = sand.u32 %s57, 1
        %s625 = smul.addr %s624, 128
        %s626 = scalar_lea.vmem [#allocation2], %s625
        %p627 = pneg %p70
        %p628 = pneg %p67
        %p629 = pneg %p91
        %p630 = pneg %p88
        %p631 = pneg %p112
        %p632 = pneg %p109
        %p633 = pneg %p133
        %p634 = pneg %p130
        %p635 = pneg %p154
        %p636 = pneg %p151
        %p637 = pneg %p175
        %p638 = pneg %p172
        %p639 = pneg %p196
        %p640 = pneg %p193
        %p641 = pneg %p217
        %p642 = pneg %p214
        %p643 = pneg %p238
        %p644 = pneg %p235
        %p645 = pneg %p259
        %p646 = pneg %p256
        %p647 = pneg %p280
        %p648 = pneg %p277
        %p649 = pneg %p301
        %p650 = pneg %p298
        %p651 = pneg %p322
        %p652 = pneg %p319
        %p653 = pneg %p343
        %p654 = pneg %p340
        %p655 = pneg %p364
        %p656 = pneg %p361
        %p657 = pneg %p385
        %p658 = pneg %p382
        %p659 = pneg %p406
        %p660 = pneg %p403
        %p661 = pneg %p434
        %p662 = pneg %p431
        %s663 = sand.u32 %s421, 1
        %s664 = scalar_lea.sflag [#allocation4], %s663
        %s665 = sand.u32 %s421, 1
        %s666 = smul.addr %s665, 64
        %s667 = scalar_lea.vmem [#allocation14], %s666
        %s668 = smul.u32 8, %s42
        %s670 = smul.u32 %s42, 64
        %v671 = vld [vmem:[%s9] sm:$0x1]
        %v672 = vld [vmem:[%s10] sm:$0x1]
        %v673 = vld [vmem:[%s593] sm:$0xff]
        %v674 = vld [vmem:[%s593 + $0x8] sm:$0xff]
        %v675 = vld [vmem:[%s593 + $0x10] sm:$0xff]
        %v676 = vld [vmem:[%s593 + $0x18] sm:$0xff]
        %v677 = vld [vmem:[%s593 + $0x20] sm:$0xff]
        %v678 = vld [vmem:[%s593 + $0x28] sm:$0xff]
        %v679 = vld [vmem:[%s593 + $0x30] sm:$0xff]
        %v680 = vld [vmem:[%s593 + $0x38] sm:$0xff]
        %v681 = vld [vmem:[%s593 + $0x40] sm:$0xff]
        %v682 = vld [vmem:[%s593 + $0x48] sm:$0xff]
        %v683 = vld [vmem:[%s593 + $0x50] sm:$0xff]
        %v684 = vld [vmem:[%s593 + $0x58] sm:$0xff]
        %v685 = vld [vmem:[%s593 + $0x60] sm:$0xff]
        %v686 = vld [vmem:[%s593 + $0x68] sm:$0xff]
        %v687 = vld [vmem:[%s593 + $0x70] sm:$0xff]
        %v688 = vld [vmem:[%s593 + $0x78] sm:$0xff]
        %689 = vadd.xlane.f32.xlu0 %v673
        %v690 = vpop.xlane.xlu0 %689
        %691 = vadd.xlane.f32.xlu0 %v674
        %v692 = vpop.xlane.xlu0 %691
        %693 = vadd.xlane.f32.xlu0 %v675
        %v694 = vpop.xlane.xlu0 %693
        %695 = vadd.xlane.f32.xlu0 %v676
        %v696 = vpop.xlane.xlu0 %695
        %697 = vadd.xlane.f32.xlu0 %v677
        %v698 = vpop.xlane.xlu0 %697
        %699 = vadd.xlane.f32.xlu0 %v678
        %v700 = vpop.xlane.xlu0 %699
        %701 = vadd.xlane.f32.xlu0 %v679
        %v702 = vpop.xlane.xlu0 %701
        %703 = vadd.xlane.f32.xlu0 %v680
        %v704 = vpop.xlane.xlu0 %703
        %705 = vadd.xlane.f32.xlu0 %v681
        %v706 = vpop.xlane.xlu0 %705
        %707 = vadd.xlane.f32.xlu0 %v682
        %v708 = vpop.xlane.xlu0 %707
        %709 = vadd.xlane.f32.xlu0 %v683
        %v710 = vpop.xlane.xlu0 %709
        %711 = vadd.xlane.f32.xlu0 %v684
        %v712 = vpop.xlane.xlu0 %711
        %713 = vadd.xlane.f32.xlu0 %v685
        %v714 = vpop.xlane.xlu0 %713
        %715 = vadd.xlane.f32.xlu0 %v686
        %v716 = vpop.xlane.xlu0 %715
        %717 = vadd.xlane.f32.xlu0 %v687
        %v718 = vpop.xlane.xlu0 %717
        %719 = vadd.xlane.f32.xlu0 %v688
        %v720 = vpop.xlane.xlu0 %719
        %v721 = vrcp.pop 128.0
        %v722 = vmul.f32 %v690, %v721
        %v723 = vmul.f32 %v692, %v721
        %v724 = vmul.f32 %v694, %v721
        %v725 = vmul.f32 %v696, %v721
        %v726 = vmul.f32 %v698, %v721
        %v727 = vmul.f32 %v700, %v721
        %v728 = vmul.f32 %v702, %v721
        %v729 = vmul.f32 %v704, %v721
        %v730 = vmul.f32 %v706, %v721
        %v731 = vmul.f32 %v708, %v721
        %v732 = vmul.f32 %v710, %v721
        %v733 = vmul.f32 %v712, %v721
        %v734 = vmul.f32 %v714, %v721
        %v735 = vmul.f32 %v716, %v721
        %v736 = vmul.f32 %v718, %v721
        %v737 = vmul.f32 %v720, %v721
        %v738 = vsub.f32 %v673, %v722
        %v739 = vsub.f32 %v674, %v723
        %v740 = vsub.f32 %v675, %v724
        %v741 = vsub.f32 %v676, %v725
        %v742 = vsub.f32 %v677, %v726
        %v743 = vsub.f32 %v678, %v727
        %v744 = vsub.f32 %v679, %v728
        %v745 = vsub.f32 %v680, %v729
        %v746 = vsub.f32 %v681, %v730
        %v747 = vsub.f32 %v682, %v731
        %v748 = vsub.f32 %v683, %v732
        %v749 = vsub.f32 %v684, %v733
        %v750 = vsub.f32 %v685, %v734
        %v751 = vsub.f32 %v686, %v735
        %v752 = vsub.f32 %v687, %v736
        %v753 = vsub.f32 %v688, %v737
        %v754 = vmul.f32 %v738, %v738
        %v755 = vmul.f32 %v739, %v739
        %v756 = vmul.f32 %v740, %v740
        %v757 = vmul.f32 %v741, %v741
        %v758 = vmul.f32 %v742, %v742
        %v759 = vmul.f32 %v743, %v743
        %v760 = vmul.f32 %v744, %v744
        %v761 = vmul.f32 %v745, %v745
        %v762 = vmul.f32 %v746, %v746
        %v763 = vmul.f32 %v747, %v747
        %v764 = vmul.f32 %v748, %v748
        %v765 = vmul.f32 %v749, %v749
        %v766 = vmul.f32 %v750, %v750
        %v767 = vmul.f32 %v751, %v751
        %v768 = vmul.f32 %v752, %v752
        %v769 = vmul.f32 %v753, %v753
        %770 = vadd.xlane.f32.xlu0 %v754
        %v771 = vpop.xlane.xlu0 %770
        %772 = vadd.xlane.f32.xlu0 %v755
        %v773 = vpop.xlane.xlu0 %772
        %774 = vadd.xlane.f32.xlu0 %v756
        %v775 = vpop.xlane.xlu0 %774
        %776 = vadd.xlane.f32.xlu0 %v757
        %v777 = vpop.xlane.xlu0 %776
        %778 = vadd.xlane.f32.xlu0 %v758
        %v779 = vpop.xlane.xlu0 %778
        %780 = vadd.xlane.f32.xlu0 %v759
        %v781 = vpop.xlane.xlu0 %780
        %782 = vadd.xlane.f32.xlu0 %v760
        %v783 = vpop.xlane.xlu0 %782
        %784 = vadd.xlane.f32.xlu0 %v761
        %v785 = vpop.xlane.xlu0 %784
        %786 = vadd.xlane.f32.xlu0 %v762
        %v787 = vpop.xlane.xlu0 %786
        %788 = vadd.xlane.f32.xlu0 %v763
        %v789 = vpop.xlane.xlu0 %788
        %790 = vadd.xlane.f32.xlu0 %v764
        %v791 = vpop.xlane.xlu0 %790
        %792 = vadd.xlane.f32.xlu0 %v765
        %v793 = vpop.xlane.xlu0 %792
        %794 = vadd.xlane.f32.xlu0 %v766
        %v795 = vpop.xlane.xlu0 %794
        %796 = vadd.xlane.f32.xlu0 %v767
        %v797 = vpop.xlane.xlu0 %796
        %798 = vadd.xlane.f32.xlu0 %v768
        %v799 = vpop.xlane.xlu0 %798
        %800 = vadd.xlane.f32.xlu0 %v769
        %v801 = vpop.xlane.xlu0 %800
        %v802 = vmul.f32 %v771, %v721
        %v803 = vmul.f32 %v773, %v721
        %v804 = vmul.f32 %v775, %v721
        %v805 = vmul.f32 %v777, %v721
        %v806 = vmul.f32 %v779, %v721
        %v807 = vmul.f32 %v781, %v721
        %v808 = vmul.f32 %v783, %v721
        %v809 = vmul.f32 %v785, %v721
        %v810 = vmul.f32 %v787, %v721
        %v811 = vmul.f32 %v789, %v721
        %v812 = vmul.f32 %v791, %v721
        %v813 = vmul.f32 %v793, %v721
        %v814 = vmul.f32 %v795, %v721
        %v815 = vmul.f32 %v797, %v721
        %v816 = vmul.f32 %v799, %v721
        %v817 = vmul.f32 %v801, %v721
        %v818 = vadd.f32 %v802, 1e-05
        %v819 = vadd.f32 %v803, 1e-05
        %v820 = vadd.f32 %v804, 1e-05
        %v821 = vadd.f32 %v805, 1e-05
        %v822 = vadd.f32 %v806, 1e-05
        %v823 = vadd.f32 %v807, 1e-05
        %v824 = vadd.f32 %v808, 1e-05
        %v825 = vadd.f32 %v809, 1e-05
        %v826 = vadd.f32 %v810, 1e-05
        %v827 = vadd.f32 %v811, 1e-05
        %v828 = vadd.f32 %v812, 1e-05
        %v829 = vadd.f32 %v813, 1e-05
        %v830 = vadd.f32 %v814, 1e-05
        %v831 = vadd.f32 %v815, 1e-05
        %v832 = vadd.f32 %v816, 1e-05
        %v833 = vadd.f32 %v817, 1e-05
        %v834 = vrsqrt.pop %v818
        %v835 = vrsqrt.pop %v819
        %v836 = vrsqrt.pop %v820
        %v837 = vrsqrt.pop %v821
        %v838 = vrsqrt.pop %v822
        %v839 = vrsqrt.pop %v823
        %v840 = vrsqrt.pop %v824
        %v841 = vrsqrt.pop %v825
        %v842 = vrsqrt.pop %v826
        %v843 = vrsqrt.pop %v827
        %v844 = vrsqrt.pop %v828
        %v845 = vrsqrt.pop %v829
        %v846 = vrsqrt.pop %v830
        %v847 = vrsqrt.pop %v831
        %v848 = vrsqrt.pop %v832
        %v849 = vrsqrt.pop %v833
        %v850 = vmul.f32 %v738, %v834
        %v851 = vmul.f32 %v739, %v835
        %v852 = vmul.f32 %v740, %v836
        %v853 = vmul.f32 %v741, %v837
        %v854 = vmul.f32 %v742, %v838
        %v855 = vmul.f32 %v743, %v839
        %v856 = vmul.f32 %v744, %v840
        %v857 = vmul.f32 %v745, %v841
        %v858 = vmul.f32 %v746, %v842
        %v859 = vmul.f32 %v747, %v843
        %v860 = vmul.f32 %v748, %v844
        %v861 = vmul.f32 %v749, %v845
        %v862 = vmul.f32 %v750, %v846
        %v863 = vmul.f32 %v751, %v847
        %v864 = vmul.f32 %v752, %v848
        %v865 = vmul.f32 %v753, %v849
        %v867 = vlaneseq
        %v868 = vshrl.u32 %v867, 7
        %v869 = vsub.s32 0, %v868
        %v870 = vrot.slane %v671, %v869
        %v872 = vmul.f32 %v850, %v870
        %v873 = vmul.f32 %v851, %v870
        %v874 = vmul.f32 %v852, %v870
        %v875 = vmul.f32 %v853, %v870
        %v876 = vmul.f32 %v854, %v870
        %v877 = vmul.f32 %v855, %v870
        %v878 = vmul.f32 %v856, %v870
        %v879 = vmul.f32 %v857, %v870
        %v880 = vmul.f32 %v858, %v870
        %v881 = vmul.f32 %v859, %v870
        %v882 = vmul.f32 %v860, %v870
        %v883 = vmul.f32 %v861, %v870
        %v884 = vmul.f32 %v862, %v870
        %v885 = vmul.f32 %v863, %v870
        %v886 = vmul.f32 %v864, %v870
        %v887 = vmul.f32 %v865, %v870
        %v889 = vlaneseq
        %v890 = vshrl.u32 %v889, 7
        %v891 = vsub.s32 0, %v890
        %v892 = vrot.slane %v672, %v891
        %v894 = vadd.f32 %v872, %v892
        %v895 = vadd.f32 %v873, %v892
        %v896 = vadd.f32 %v874, %v892
        %v897 = vadd.f32 %v875, %v892
        %v898 = vadd.f32 %v876, %v892
        %v899 = vadd.f32 %v877, %v892
        %v900 = vadd.f32 %v878, %v892
        %v901 = vadd.f32 %v879, %v892
        %v902 = vadd.f32 %v880, %v892
        %v903 = vadd.f32 %v881, %v892
        %v904 = vadd.f32 %v882, %v892
        %v905 = vadd.f32 %v883, %v892
        %v906 = vadd.f32 %v884, %v892
        %v907 = vadd.f32 %v885, %v892
        %v908 = vadd.f32 %v886, %v892
        %v909 = vadd.f32 %v887, %v892
        %v910 = vpack.c.bf16 %v895, %v894
        %v911 = vpack.c.bf16 %v897, %v896
        %v912 = vpack.c.bf16 %v899, %v898
        %v913 = vpack.c.bf16 %v901, %v900
        %v914 = vpack.c.bf16 %v903, %v902
        %v915 = vpack.c.bf16 %v905, %v904
        %v916 = vpack.c.bf16 %v907, %v906
        %v917 = vpack.c.bf16 %v909, %v908
        %s918 = scalar_lea.vmem %s593, %s670 [#allocation2]
        %v919 = vld [vmem:[%s918] sm:$0xff]
        %v920 = vld [vmem:[%s918 + $0x8] sm:$0xff]
        %v921 = vld [vmem:[%s918 + $0x10] sm:$0xff]
        %v922 = vld [vmem:[%s918 + $0x18] sm:$0xff]
        %v923 = vld [vmem:[%s918 + $0x20] sm:$0xff]
        %v924 = vld [vmem:[%s918 + $0x28] sm:$0xff]
        %v925 = vld [vmem:[%s918 + $0x30] sm:$0xff]
        %v926 = vld [vmem:[%s918 + $0x38] sm:$0xff]
        %927 = vadd.xlane.f32.xlu0 %v919
        %v928 = vpop.xlane.xlu0 %927
        %929 = vadd.xlane.f32.xlu0 %v920
        %v930 = vpop.xlane.xlu0 %929
        %931 = vadd.xlane.f32.xlu0 %v921
        %v932 = vpop.xlane.xlu0 %931
        %933 = vadd.xlane.f32.xlu0 %v922
        %v934 = vpop.xlane.xlu0 %933
        %935 = vadd.xlane.f32.xlu0 %v923
        %v936 = vpop.xlane.xlu0 %935
        %937 = vadd.xlane.f32.xlu0 %v924
        %v938 = vpop.xlane.xlu0 %937
        %939 = vadd.xlane.f32.xlu0 %v925
        %v940 = vpop.xlane.xlu0 %939
        %941 = vadd.xlane.f32.xlu0 %v926
        %v942 = vpop.xlane.xlu0 %941
        %v943 = vmul.f32 %v928, %v721
        %v944 = vmul.f32 %v930, %v721
        %v945 = vmul.f32 %v932, %v721
        %v946 = vmul.f32 %v934, %v721
        %v947 = vmul.f32 %v936, %v721
        %v948 = vmul.f32 %v938, %v721
        %v949 = vmul.f32 %v940, %v721
        %v950 = vmul.f32 %v942, %v721
        %v951 = vsub.f32 %v919, %v943
        %v952 = vsub.f32 %v920, %v944
        %v953 = vsub.f32 %v921, %v945
        %v954 = vsub.f32 %v922, %v946
        %v955 = vsub.f32 %v923, %v947
        %v956 = vsub.f32 %v924, %v948
        %v957 = vsub.f32 %v925, %v949
        %v958 = vsub.f32 %v926, %v950
        %v959 = vmul.f32 %v951, %v951
        %v960 = vmul.f32 %v952, %v952
        %v961 = vmul.f32 %v953, %v953
        %v962 = vmul.f32 %v954, %v954
        %v963 = vmul.f32 %v955, %v955
        %v964 = vmul.f32 %v956, %v956
        %v965 = vmul.f32 %v957, %v957
        %v966 = vmul.f32 %v958, %v958
        %967 = vadd.xlane.f32.xlu0 %v959
        %v968 = vpop.xlane.xlu0 %967
        %969 = vadd.xlane.f32.xlu0 %v960
        %v970 = vpop.xlane.xlu0 %969
        %971 = vadd.xlane.f32.xlu0 %v961
        %v972 = vpop.xlane.xlu0 %971
        %973 = vadd.xlane.f32.xlu0 %v962
        %v974 = vpop.xlane.xlu0 %973
        %975 = vadd.xlane.f32.xlu0 %v963
        %v976 = vpop.xlane.xlu0 %975
        %977 = vadd.xlane.f32.xlu0 %v964
        %v978 = vpop.xlane.xlu0 %977
        %979 = vadd.xlane.f32.xlu0 %v965
        %v980 = vpop.xlane.xlu0 %979
        %981 = vadd.xlane.f32.xlu0 %v966
        %v982 = vpop.xlane.xlu0 %981
        %v983 = vmul.f32 %v968, %v721
        %v984 = vmul.f32 %v970, %v721
        %v985 = vmul.f32 %v972, %v721
        %v986 = vmul.f32 %v974, %v721
        %v987 = vmul.f32 %v976, %v721
        %v988 = vmul.f32 %v978, %v721
        %v989 = vmul.f32 %v980, %v721
        %v990 = vmul.f32 %v982, %v721
        %v991 = vadd.f32 %v983, 1e-05
        %v992 = vadd.f32 %v984, 1e-05
        %v993 = vadd.f32 %v985, 1e-05
        %v994 = vadd.f32 %v986, 1e-05
        %v995 = vadd.f32 %v987, 1e-05
        %v996 = vadd.f32 %v988, 1e-05
        %v997 = vadd.f32 %v989, 1e-05
        %v998 = vadd.f32 %v990, 1e-05
        %v999 = vrsqrt.pop %v991
        %v1000 = vrsqrt.pop %v992
        %v1001 = vrsqrt.pop %v993
        %v1002 = vrsqrt.pop %v994
        %v1003 = vrsqrt.pop %v995
        %v1004 = vrsqrt.pop %v996
        %v1005 = vrsqrt.pop %v997
        %v1006 = vrsqrt.pop %v998
        %v1007 = vmul.f32 %v951, %v999
        %v1008 = vmul.f32 %v952, %v1000
        %v1009 = vmul.f32 %v953, %v1001
        %v1010 = vmul.f32 %v954, %v1002
        %v1011 = vmul.f32 %v955, %v1003
        %v1012 = vmul.f32 %v956, %v1004
        %v1013 = vmul.f32 %v957, %v1005
        %v1014 = vmul.f32 %v958, %v1006
        %v1015 = vmul.f32 %v1007, %v870
        %v1016 = vmul.f32 %v1008, %v870
        %v1017 = vmul.f32 %v1009, %v870
        %v1018 = vmul.f32 %v1010, %v870
        %v1019 = vmul.f32 %v1011, %v870
        %v1020 = vmul.f32 %v1012, %v870
        %v1021 = vmul.f32 %v1013, %v870
        %v1022 = vmul.f32 %v1014, %v870
        %v1023 = vadd.f32 %v1015, %v892
        %v1024 = vadd.f32 %v1016, %v892
        %v1025 = vadd.f32 %v1017, %v892
        %v1026 = vadd.f32 %v1018, %v892
        %v1027 = vadd.f32 %v1019, %v892
        %v1028 = vadd.f32 %v1020, %v892
        %v1029 = vadd.f32 %v1021, %v892
        %v1030 = vadd.f32 %v1022, %v892
        %v1031 = vpack.c.bf16 %v1024, %v1023
        %v1032 = vpack.c.bf16 %v1026, %v1025
        %v1033 = vpack.c.bf16 %v1028, %v1027
        %v1034 = vpack.c.bf16 %v1030, %v1029
        %v1035 = vld [vmem:[#allocation5] sm:$0xf]
        %v1036 = vld [vmem:[#allocation5 + $0x4] sm:$0xf]
        %v1037 = vld [vmem:[#allocation5 + $0x8] sm:$0xf]
        %v1038 = vld [vmem:[#allocation5 + $0xc] sm:$0xf]
        %v1039 = vld [vmem:[#allocation5 + $0x10] sm:$0xf]
        %v1040 = vld [vmem:[#allocation5 + $0x14] sm:$0xf]
        %v1041 = vld [vmem:[#allocation5 + $0x18] sm:$0xf]
        %v1042 = vld [vmem:[#allocation5 + $0x1c] sm:$0xf]
        %v1043 = vld [vmem:[#allocation5 + $0x20] sm:$0xf]
        %v1044 = vld [vmem:[#allocation5 + $0x24] sm:$0xf]
        %v1045 = vld [vmem:[#allocation5 + $0x28] sm:$0xf]
        %v1046 = vld [vmem:[#allocation5 + $0x2c] sm:$0xf]
        %v1047 = vld [vmem:[#allocation5 + $0x30] sm:$0xf]
        %v1048 = vld [vmem:[#allocation5 + $0x34] sm:$0xf]
        %v1049 = vld [vmem:[#allocation5 + $0x38] sm:$0xf]
        %v1050 = vld [vmem:[#allocation5 + $0x3c] sm:$0xf]
        %v1051 = vld [vmem:[%s2] sm:$0x1]
        %v1053 = vlaneseq
        %v1054 = vshrl.u32 %v1053, 7
        %v1055 = vsub.s32 0, %v1054
        %v1056 = vrot.slane %v1051, %v1055
        %v1074 = vunpack.c.l.b16 %v1035
        %v1075 = vunpack.c.l.b16 %v1036
        %v1076 = vunpack.c.l.b16 %v1037
        %v1077 = vunpack.c.l.b16 %v1038
        %v1078 = vunpack.c.l.b16 %v1039
        %v1079 = vunpack.c.l.b16 %v1040
        %v1080 = vunpack.c.l.b16 %v1041
        %v1081 = vunpack.c.l.b16 %v1042
        %v1082 = vunpack.c.l.b16 %v1043
        %v1083 = vunpack.c.l.b16 %v1044
        %v1084 = vunpack.c.l.b16 %v1045
        %v1085 = vunpack.c.l.b16 %v1046
        %v1086 = vunpack.c.l.b16 %v1047
        %v1087 = vunpack.c.l.b16 %v1048
        %v1088 = vunpack.c.l.b16 %v1049
        %v1089 = vunpack.c.l.b16 %v1050
        %v1090 = vpack.c.b16 %v1075, %v1074
        %v1091 = vpack.c.b16 %v1077, %v1076
        %v1092 = vpack.c.b16 %v1079, %v1078
        %v1093 = vpack.c.b16 %v1081, %v1080
        %v1094 = vpack.c.b16 %v1083, %v1082
        %v1095 = vpack.c.b16 %v1085, %v1084
        %v1096 = vpack.c.b16 %v1087, %v1086
        %v1097 = vpack.c.b16 %v1089, %v1088
        %1106 = vmatprep.subr.bf16.mxu0 0
        %1107 = vmatpush1.bf16.msra.mxu0 %v1097
        %1108 = vmatprep.subr.bf16.mxu0 0
        %1109 = vmatpush1.bf16.msra.mxu0 %v1096
        %1110 = vmatprep.subr.bf16.mxu0 0
        %1111 = vmatpush1.bf16.msra.mxu0 %v1095
        %1112 = vmatprep.subr.bf16.mxu0 0
        %1113 = vmatpush1.bf16.msra.mxu0 %v1094
        %1114 = vmatprep.subr.bf16.mxu0 0
        %1115 = vmatpush1.bf16.msra.mxu0 %v1093
        %1116 = vmatprep.subr.bf16.mxu0 0
        %1117 = vmatpush1.bf16.msra.mxu0 %v1092
        %1118 = vmatprep.subr.bf16.mxu0 0
        %1119 = vmatpush1.bf16.msra.mxu0 %v1091
        %1120 = vmatprep.subr.bf16.mxu0 0
        %1121 = vmatpush1.bf16.msra.mxu0 %v1090
        %1122 = vmatprep.subr.bf16.mxu0 0
        %1123 = vmatpush2.bf16.msra.mxu0 0
        %1124 = vmatprep.subr.bf16.mxu0 0
        %1125 = vmatpush2.bf16.msra.mxu0 0
        %1126 = vmatprep.subr.bf16.mxu0 0
        %1127 = vmatpush2.bf16.msra.mxu0 0
        %1128 = vmatprep.subr.bf16.mxu0 0
        %1129 = vmatpush2.bf16.msra.mxu0 0
        %1130 = vmatprep.subr.bf16.mxu0 0
        %1131 = vmatpush2.bf16.msra.mxu0 0
        %1132 = vmatprep.subr.bf16.mxu0 0
        %1133 = vmatpush2.bf16.msra.mxu0 0
        %1134 = vmatprep.subr.bf16.mxu0 0
        %1135 = vmatpush2.bf16.msra.mxu0 0
        %1136 = vmatprep.subr.bf16.mxu0 0
        %1137 = vmatpush2.bf16.msra.mxu0 0
        %1138 = vmatprep.mubr.bf16.mxu0 0
        %1139 = vmatmul.mubr.bf16.gmra.mxu0 %v1031
        %v1140 = vpop.f32.mrf.mxu0
        %v1141 = vadd.f32 %v1056, %v1140
        %v1142 = vpop.f32.mrf.mxu0
        %v1143 = vpop.f32.mrf.mxu0
        %v1144 = vadd.f32 %v1056, %v1143
        %v1145 = vpop.f32.mrf.mxu0
        %1146 = vmatprep.mubr.bf16.mxu0 0
        %1147 = vmatmul.mubr.bf16.gmra.mxu0 %v1032
        %v1148 = vpop.f32.mrf.mxu0
        %v1149 = vadd.f32 %v1056, %v1148
        %v1150 = vpop.f32.mrf.mxu0
        %v1151 = vpop.f32.mrf.mxu0
        %v1152 = vadd.f32 %v1056, %v1151
        %v1153 = vpop.f32.mrf.mxu0
        %1154 = vmatprep.mubr.bf16.mxu0 0
        %1155 = vmatmul.mubr.bf16.gmra.mxu0 %v1033
        %v1156 = vpop.f32.mrf.mxu0
        %v1157 = vadd.f32 %v1056, %v1156
        %v1158 = vpop.f32.mrf.mxu0
        %v1159 = vpop.f32.mrf.mxu0
        %v1160 = vadd.f32 %v1056, %v1159
        %v1161 = vpop.f32.mrf.mxu0
        %1162 = vmatprep.mubr.bf16.mxu0 0
        %1163 = vmatmul.mubr.bf16.gmra.mxu0 %v1034
        %v1164 = vpop.f32.mrf.mxu0
        %v1165 = vadd.f32 %v1056, %v1164
        %v1166 = vpop.f32.mrf.mxu0
        %v1167 = vpop.f32.mrf.mxu0
        %v1168 = vadd.f32 %v1056, %v1167
        %v1169 = vpop.f32.mrf.mxu0
        %1170 = vdwg.mxu0
        %v1171 = vmul.f32 %v1141, 0.17677669
        %v1172 = vmul.f32 %v1144, 0.17677669
        %v1173 = vmul.f32 %v1149, 0.17677669
        %v1174 = vmul.f32 %v1152, 0.17677669
        %v1175 = vmul.f32 %v1157, 0.17677669
        %v1176 = vmul.f32 %v1160, 0.17677669
        %v1177 = vmul.f32 %v1165, 0.17677669
        %v1178 = vmul.f32 %v1168, 0.17677669
        %v1179 = vld [vmem:[#allocation7] sm:$0xf]
        %v1180 = vld [vmem:[#allocation7 + $0x4] sm:$0xf]
        %v1181 = vld [vmem:[#allocation7 + $0x8] sm:$0xf]
        %v1182 = vld [vmem:[#allocation7 + $0xc] sm:$0xf]
        %v1183 = vld [vmem:[#allocation7 + $0x10] sm:$0xf]
        %v1184 = vld [vmem:[#allocation7 + $0x14] sm:$0xf]
        %v1185 = vld [vmem:[#allocation7 + $0x18] sm:$0xf]
        %v1186 = vld [vmem:[#allocation7 + $0x1c] sm:$0xf]
        %v1187 = vld [vmem:[#allocation7 + $0x20] sm:$0xf]
        %v1188 = vld [vmem:[#allocation7 + $0x24] sm:$0xf]
        %v1189 = vld [vmem:[#allocation7 + $0x28] sm:$0xf]
        %v1190 = vld [vmem:[#allocation7 + $0x2c] sm:$0xf]
        %v1191 = vld [vmem:[#allocation7 + $0x30] sm:$0xf]
        %v1192 = vld [vmem:[#allocation7 + $0x34] sm:$0xf]
        %v1193 = vld [vmem:[#allocation7 + $0x38] sm:$0xf]
        %v1194 = vld [vmem:[#allocation7 + $0x3c] sm:$0xf]
        %v1195 = vld [vmem:[%s4] sm:$0x1]
        %v1197 = vlaneseq
        %v1198 = vshrl.u32 %v1197, 7
        %v1199 = vsub.s32 0, %v1198
        %v1200 = vrot.slane %v1195, %v1199
        %v1218 = vunpack.c.l.b16 %v1179
        %v1219 = vunpack.c.l.b16 %v1180
        %v1220 = vunpack.c.l.b16 %v1181
        %v1221 = vunpack.c.l.b16 %v1182
        %v1222 = vunpack.c.l.b16 %v1183
        %v1223 = vunpack.c.l.b16 %v1184
        %v1224 = vunpack.c.l.b16 %v1185
        %v1225 = vunpack.c.l.b16 %v1186
        %v1226 = vunpack.c.l.b16 %v1187
        %v1227 = vunpack.c.l.b16 %v1188
        %v1228 = vunpack.c.l.b16 %v1189
        %v1229 = vunpack.c.l.b16 %v1190
        %v1230 = vunpack.c.l.b16 %v1191
        %v1231 = vunpack.c.l.b16 %v1192
        %v1232 = vunpack.c.l.b16 %v1193
        %v1233 = vunpack.c.l.b16 %v1194
        %v1234 = vpack.c.b16 %v1219, %v1218
        %v1235 = vpack.c.b16 %v1221, %v1220
        %v1236 = vpack.c.b16 %v1223, %v1222
        %v1237 = vpack.c.b16 %v1225, %v1224
        %v1238 = vpack.c.b16 %v1227, %v1226
        %v1239 = vpack.c.b16 %v1229, %v1228
        %v1240 = vpack.c.b16 %v1231, %v1230
        %v1241 = vpack.c.b16 %v1233, %v1232
        %1250 = vmatprep.subr.bf16.mxu0 0
        %1251 = vmatpush1.bf16.msra.mxu0 %v1241
        %1252 = vmatprep.subr.bf16.mxu0 0
        %1253 = vmatpush1.bf16.msra.mxu0 %v1240
        %1254 = vmatprep.subr.bf16.mxu0 0
        %1255 = vmatpush1.bf16.msra.mxu0 %v1239
        %1256 = vmatprep.subr.bf16.mxu0 0
        %1257 = vmatpush1.bf16.msra.mxu0 %v1238
        %1258 = vmatprep.subr.bf16.mxu0 0
        %1259 = vmatpush1.bf16.msra.mxu0 %v1237
        %1260 = vmatprep.subr.bf16.mxu0 0
        %1261 = vmatpush1.bf16.msra.mxu0 %v1236
        %1262 = vmatprep.subr.bf16.mxu0 0
        %1263 = vmatpush1.bf16.msra.mxu0 %v1235
        %1264 = vmatprep.subr.bf16.mxu0 0
        %1265 = vmatpush1.bf16.msra.mxu0 %v1234
        %1266 = vmatprep.subr.bf16.mxu0 0
        %1267 = vmatpush2.bf16.msra.mxu0 0
        %1268 = vmatprep.subr.bf16.mxu0 0
        %1269 = vmatpush2.bf16.msra.mxu0 0
        %1270 = vmatprep.subr.bf16.mxu0 0
        %1271 = vmatpush2.bf16.msra.mxu0 0
        %1272 = vmatprep.subr.bf16.mxu0 0
        %1273 = vmatpush2.bf16.msra.mxu0 0
        %1274 = vmatprep.subr.bf16.mxu0 0
        %1275 = vmatpush2.bf16.msra.mxu0 0
        %1276 = vmatprep.subr.bf16.mxu0 0
        %1277 = vmatpush2.bf16.msra.mxu0 0
        %1278 = vmatprep.subr.bf16.mxu0 0
        %1279 = vmatpush2.bf16.msra.mxu0 0
        %1280 = vmatprep.subr.bf16.mxu0 0
        %1281 = vmatpush2.bf16.msra.mxu0 0
        %1282 = vmatprep.mubr.bf16.mxu0 0
        %1283 = vmatmul.mubr.bf16.gmra.mxu0 %v910
        %v1284 = vpop.f32.mrf.mxu0
        %v1285 = vadd.f32 %v1200, %v1284
        %v1286 = vpop.f32.mrf.mxu0
        %v1287 = vpop.f32.mrf.mxu0
        %v1288 = vadd.f32 %v1200, %v1287
        %v1289 = vpop.f32.mrf.mxu0
        %1290 = vmatprep.mubr.bf16.mxu0 0
        %1291 = vmatmul.mubr.bf16.gmra.mxu0 %v911
        %v1292 = vpop.f32.mrf.mxu0
        %v1293 = vadd.f32 %v1200, %v1292
        %v1294 = vpop.f32.mrf.mxu0
        %v1295 = vpop.f32.mrf.mxu0
        %v1296 = vadd.f32 %v1200, %v1295
        %v1297 = vpop.f32.mrf.mxu0
        %1298 = vmatprep.mubr.bf16.mxu0 0
        %1299 = vmatmul.mubr.bf16.gmra.mxu0 %v912
        %v1300 = vpop.f32.mrf.mxu0
        %v1301 = vadd.f32 %v1200, %v1300
        %v1302 = vpop.f32.mrf.mxu0
        %v1303 = vpop.f32.mrf.mxu0
        %v1304 = vadd.f32 %v1200, %v1303
        %v1305 = vpop.f32.mrf.mxu0
        %1306 = vmatprep.mubr.bf16.mxu0 0
        %1307 = vmatmul.mubr.bf16.gmra.mxu0 %v913
        %v1308 = vpop.f32.mrf.mxu0
        %v1309 = vadd.f32 %v1200, %v1308
        %v1310 = vpop.f32.mrf.mxu0
        %v1311 = vpop.f32.mrf.mxu0
        %v1312 = vadd.f32 %v1200, %v1311
        %v1313 = vpop.f32.mrf.mxu0
        %1314 = vmatprep.mubr.bf16.mxu0 0
        %1315 = vmatmul.mubr.bf16.gmra.mxu0 %v914
        %v1316 = vpop.f32.mrf.mxu0
        %v1317 = vadd.f32 %v1200, %v1316
        %v1318 = vpop.f32.mrf.mxu0
        %v1319 = vpop.f32.mrf.mxu0
        %v1320 = vadd.f32 %v1200, %v1319
        %v1321 = vpop.f32.mrf.mxu0
        %1322 = vmatprep.mubr.bf16.mxu0 0
        %1323 = vmatmul.mubr.bf16.gmra.mxu0 %v915
        %v1324 = vpop.f32.mrf.mxu0
        %v1325 = vadd.f32 %v1200, %v1324
        %v1326 = vpop.f32.mrf.mxu0
        %v1327 = vpop.f32.mrf.mxu0
        %v1328 = vadd.f32 %v1200, %v1327
        %v1329 = vpop.f32.mrf.mxu0
        %1330 = vmatprep.mubr.bf16.mxu0 0
        %1331 = vmatmul.mubr.bf16.gmra.mxu0 %v916
        %v1332 = vpop.f32.mrf.mxu0
        %v1333 = vadd.f32 %v1200, %v1332
        %v1334 = vpop.f32.mrf.mxu0
        %v1335 = vpop.f32.mrf.mxu0
        %v1336 = vadd.f32 %v1200, %v1335
        %v1337 = vpop.f32.mrf.mxu0
        %1338 = vmatprep.mubr.bf16.mxu0 0
        %1339 = vmatmul.mubr.bf16.gmra.mxu0 %v917
        %v1340 = vpop.f32.mrf.mxu0
        %v1341 = vadd.f32 %v1200, %v1340
        %v1342 = vpop.f32.mrf.mxu0
        %v1343 = vpop.f32.mrf.mxu0
        %v1344 = vadd.f32 %v1200, %v1343
        %v1345 = vpop.f32.mrf.mxu0
        %1346 = vdwg.mxu0
        %v1347 = vld [vmem:[#allocation8] sm:$0xf]
        %v1348 = vld [vmem:[#allocation8 + $0x4] sm:$0xf]
        %v1349 = vld [vmem:[#allocation8 + $0x8] sm:$0xf]
        %v1350 = vld [vmem:[#allocation8 + $0xc] sm:$0xf]
        %v1351 = vld [vmem:[#allocation8 + $0x10] sm:$0xf]
        %v1352 = vld [vmem:[#allocation8 + $0x14] sm:$0xf]
        %v1353 = vld [vmem:[#allocation8 + $0x18] sm:$0xf]
        %v1354 = vld [vmem:[#allocation8 + $0x1c] sm:$0xf]
        %v1355 = vld [vmem:[#allocation8 + $0x20] sm:$0xf]
        %v1356 = vld [vmem:[#allocation8 + $0x24] sm:$0xf]
        %v1357 = vld [vmem:[#allocation8 + $0x28] sm:$0xf]
        %v1358 = vld [vmem:[#allocation8 + $0x2c] sm:$0xf]
        %v1359 = vld [vmem:[#allocation8 + $0x30] sm:$0xf]
        %v1360 = vld [vmem:[#allocation8 + $0x34] sm:$0xf]
        %v1361 = vld [vmem:[#allocation8 + $0x38] sm:$0xf]
        %v1362 = vld [vmem:[#allocation8 + $0x3c] sm:$0xf]
        %v1363 = vld [vmem:[%s6] sm:$0x1]
        %v1365 = vlaneseq
        %v1366 = vshrl.u32 %v1365, 7
        %v1367 = vsub.s32 0, %v1366
        %v1368 = vrot.slane %v1363, %v1367
        %v1386 = vunpack.c.l.b16 %v1347
        %v1387 = vunpack.c.l.b16 %v1348
        %v1388 = vunpack.c.l.b16 %v1349
        %v1389 = vunpack.c.l.b16 %v1350
        %v1390 = vunpack.c.l.b16 %v1351
        %v1391 = vunpack.c.l.b16 %v1352
        %v1392 = vunpack.c.l.b16 %v1353
        %v1393 = vunpack.c.l.b16 %v1354
        %v1394 = vunpack.c.l.b16 %v1355
        %v1395 = vunpack.c.l.b16 %v1356
        %v1396 = vunpack.c.l.b16 %v1357
        %v1397 = vunpack.c.l.b16 %v1358
        %v1398 = vunpack.c.l.b16 %v1359
        %v1399 = vunpack.c.l.b16 %v1360
        %v1400 = vunpack.c.l.b16 %v1361
        %v1401 = vunpack.c.l.b16 %v1362
        %v1402 = vpack.c.b16 %v1387, %v1386
        %v1403 = vpack.c.b16 %v1389, %v1388
        %v1404 = vpack.c.b16 %v1391, %v1390
        %v1405 = vpack.c.b16 %v1393, %v1392
        %v1406 = vpack.c.b16 %v1395, %v1394
        %v1407 = vpack.c.b16 %v1397, %v1396
        %v1408 = vpack.c.b16 %v1399, %v1398
        %v1409 = vpack.c.b16 %v1401, %v1400
        %1418 = vmatprep.subr.bf16.mxu0 0
        %1419 = vmatpush1.bf16.msra.mxu0 %v1409
        %1420 = vmatprep.subr.bf16.mxu0 0
        %1421 = vmatpush1.bf16.msra.mxu0 %v1408
        %1422 = vmatprep.subr.bf16.mxu0 0
        %1423 = vmatpush1.bf16.msra.mxu0 %v1407
        %1424 = vmatprep.subr.bf16.mxu0 0
        %1425 = vmatpush1.bf16.msra.mxu0 %v1406
        %1426 = vmatprep.subr.bf16.mxu0 0
        %1427 = vmatpush1.bf16.msra.mxu0 %v1405
        %1428 = vmatprep.subr.bf16.mxu0 0
        %1429 = vmatpush1.bf16.msra.mxu0 %v1404
        %1430 = vmatprep.subr.bf16.mxu0 0
        %1431 = vmatpush1.bf16.msra.mxu0 %v1403
        %1432 = vmatprep.subr.bf16.mxu0 0
        %1433 = vmatpush1.bf16.msra.mxu0 %v1402
        %1434 = vmatprep.subr.bf16.mxu0 0
        %1435 = vmatpush2.bf16.msra.mxu0 0
        %1436 = vmatprep.subr.bf16.mxu0 0
        %1437 = vmatpush2.bf16.msra.mxu0 0
        %1438 = vmatprep.subr.bf16.mxu0 0
        %1439 = vmatpush2.bf16.msra.mxu0 0
        %1440 = vmatprep.subr.bf16.mxu0 0
        %1441 = vmatpush2.bf16.msra.mxu0 0
        %1442 = vmatprep.subr.bf16.mxu0 0
        %1443 = vmatpush2.bf16.msra.mxu0 0
        %1444 = vmatprep.subr.bf16.mxu0 0
        %1445 = vmatpush2.bf16.msra.mxu0 0
        %1446 = vmatprep.subr.bf16.mxu0 0
        %1447 = vmatpush2.bf16.msra.mxu0 0
        %1448 = vmatprep.subr.bf16.mxu0 0
        %1449 = vmatpush2.bf16.msra.mxu0 0
        %1450 = vmatprep.mubr.bf16.mxu0 0
        %1451 = vmatmul.mubr.bf16.gmra.mxu0 %v910
        %v1452 = vpop.f32.mrf.mxu0
        %v1453 = vadd.f32 %v1368, %v1452
        %v1454 = vpop.f32.mrf.mxu0
        %v1455 = vpop.f32.mrf.mxu0
        %v1456 = vadd.f32 %v1368, %v1455
        %v1457 = vpop.f32.mrf.mxu0
        %1458 = vmatprep.mubr.bf16.mxu0 0
        %1459 = vmatmul.mubr.bf16.gmra.mxu0 %v911
        %v1460 = vpop.f32.mrf.mxu0
        %v1461 = vadd.f32 %v1368, %v1460
        %v1462 = vpop.f32.mrf.mxu0
        %v1463 = vpop.f32.mrf.mxu0
        %v1464 = vadd.f32 %v1368, %v1463
        %v1465 = vpop.f32.mrf.mxu0
        %1466 = vmatprep.mubr.bf16.mxu0 0
        %1467 = vmatmul.mubr.bf16.gmra.mxu0 %v912
        %v1468 = vpop.f32.mrf.mxu0
        %v1469 = vadd.f32 %v1368, %v1468
        %v1470 = vpop.f32.mrf.mxu0
        %v1471 = vpop.f32.mrf.mxu0
        %v1472 = vadd.f32 %v1368, %v1471
        %v1473 = vpop.f32.mrf.mxu0
        %1474 = vmatprep.mubr.bf16.mxu0 0
        %1475 = vmatmul.mubr.bf16.gmra.mxu0 %v913
        %v1476 = vpop.f32.mrf.mxu0
        %v1477 = vadd.f32 %v1368, %v1476
        %v1478 = vpop.f32.mrf.mxu0
        %v1479 = vpop.f32.mrf.mxu0
        %v1480 = vadd.f32 %v1368, %v1479
        %v1481 = vpop.f32.mrf.mxu0
        %1482 = vmatprep.mubr.bf16.mxu0 0
        %1483 = vmatmul.mubr.bf16.gmra.mxu0 %v914
        %v1484 = vpop.f32.mrf.mxu0
        %v1485 = vadd.f32 %v1368, %v1484
        %v1486 = vpop.f32.mrf.mxu0
        %v1487 = vpop.f32.mrf.mxu0
        %v1488 = vadd.f32 %v1368, %v1487
        %v1489 = vpop.f32.mrf.mxu0
        %1490 = vmatprep.mubr.bf16.mxu0 0
        %1491 = vmatmul.mubr.bf16.gmra.mxu0 %v915
        %v1492 = vpop.f32.mrf.mxu0
        %v1493 = vadd.f32 %v1368, %v1492
        %v1494 = vpop.f32.mrf.mxu0
        %v1495 = vpop.f32.mrf.mxu0
        %v1496 = vadd.f32 %v1368, %v1495
        %v1497 = vpop.f32.mrf.mxu0
        %1498 = vmatprep.mubr.bf16.mxu0 0
        %1499 = vmatmul.mubr.bf16.gmra.mxu0 %v916
        %v1500 = vpop.f32.mrf.mxu0
        %v1501 = vadd.f32 %v1368, %v1500
        %v1502 = vpop.f32.mrf.mxu0
        %v1503 = vpop.f32.mrf.mxu0
        %v1504 = vadd.f32 %v1368, %v1503
        %v1505 = vpop.f32.mrf.mxu0
        %1506 = vmatprep.mubr.bf16.mxu0 0
        %1507 = vmatmul.mubr.bf16.gmra.mxu0 %v917
        %v1508 = vpop.f32.mrf.mxu0
        %v1509 = vadd.f32 %v1368, %v1508
        %v1510 = vpop.f32.mrf.mxu0
        %v1511 = vpop.f32.mrf.mxu0
        %v1512 = vadd.f32 %v1368, %v1511
        %v1513 = vpop.f32.mrf.mxu0
        %1514 = vdwg.mxu0
        %v1515 = vpack.c.bf16 %v1172, %v1171
        %v1516 = vpack.c.bf16 %v1174, %v1173
        %v1517 = vpack.c.bf16 %v1176, %v1175
        %v1518 = vpack.c.bf16 %v1178, %v1177
        %1523 = vrot.lane.b32.xlu0 %v1515, 96
        %v1524 = vpop.permute.xlu0 %1523
        %1525 = vrot.lane.b32.xlu0 %v1516, 96
        %v1526 = vpop.permute.xlu0 %1525
        %1527 = vrot.lane.b32.xlu0 %v1517, 96
        %v1528 = vpop.permute.xlu0 %1527
        %1529 = vrot.lane.b32.xlu0 %v1518, 96
        %v1530 = vpop.permute.xlu0 %1529
        %1531 = vrot.lane.b32.xlu0 %v1515, 64
        %v1532 = vpop.permute.xlu0 %1531
        %1533 = vrot.lane.b32.xlu0 %v1516, 64
        %v1534 = vpop.permute.xlu0 %1533
        %1535 = vrot.lane.b32.xlu0 %v1517, 64
        %v1536 = vpop.permute.xlu0 %1535
        %1537 = vrot.lane.b32.xlu0 %v1518, 64
        %v1538 = vpop.permute.xlu0 %1537
        %1539 = vrot.lane.b32.xlu0 %v1515, 32
        %v1540 = vpop.permute.xlu0 %1539
        %1541 = vrot.lane.b32.xlu0 %v1516, 32
        %v1542 = vpop.permute.xlu0 %1541
        %1543 = vrot.lane.b32.xlu0 %v1517, 32
        %v1544 = vpop.permute.xlu0 %1543
        %1545 = vrot.lane.b32.xlu0 %v1518, 32
        %v1546 = vpop.permute.xlu0 %1545
        %v1549 = vpack.i.b16 %v1524, %v1515
        %v1551 = vshrl.u32 %v1515, 16
        %v1552 = vshrl.u32 %v1524, 16
        %v1553 = vpack.i.b16 %v1552, %v1551
        %v1557 = vpack.i.b16 %v1540, %v1532
        %v1559 = vshrl.u32 %v1532, 16
        %v1560 = vshrl.u32 %v1540, 16
        %v1561 = vpack.i.b16 %v1560, %v1559
        %v1564 = vpack.i.b16 0, 0
        %v1566 = vshrl.u32 0, 16
        %v1567 = vpack.i.b16 %v1566, %v1566
        %v1571 = vpack.i.b16 %v1526, %v1516
        %v1573 = vshrl.u32 %v1516, 16
        %v1574 = vshrl.u32 %v1526, 16
        %v1575 = vpack.i.b16 %v1574, %v1573
        %v1579 = vpack.i.b16 %v1542, %v1534
        %v1581 = vshrl.u32 %v1534, 16
        %v1582 = vshrl.u32 %v1542, 16
        %v1583 = vpack.i.b16 %v1582, %v1581
        %v1587 = vpack.i.b16 %v1528, %v1517
        %v1589 = vshrl.u32 %v1517, 16
        %v1590 = vshrl.u32 %v1528, 16
        %v1591 = vpack.i.b16 %v1590, %v1589
        %v1595 = vpack.i.b16 %v1544, %v1536
        %v1597 = vshrl.u32 %v1536, 16
        %v1598 = vshrl.u32 %v1544, 16
        %v1599 = vpack.i.b16 %v1598, %v1597
        %v1603 = vpack.i.b16 %v1530, %v1518
        %v1605 = vshrl.u32 %v1518, 16
        %v1606 = vshrl.u32 %v1530, 16
        %v1607 = vpack.i.b16 %v1606, %v1605
        %v1611 = vpack.i.b16 %v1546, %v1538
        %v1613 = vshrl.u32 %v1538, 16
        %v1614 = vshrl.u32 %v1546, 16
        %v1615 = vpack.i.b16 %v1614, %v1613
        %v1617 = vcombine.high %v1549, %v1564
        %v1619 = vunpack.c.l.s4 1983009808
        %v1620 = vunpack.c.0.s8 %v1619
        %v1621 = vlaneseq
        %v1622 = vshrl.u32 %v1621, 7
        %v1623 = vsub.s32 %v1620, %v1622
        %v1624 = vrot.slane %v1549, %v1623
        %v1626 = vunpack.c.l.s4 1983009808
        %v1627 = vunpack.c.0.s8 %v1626
        %v1628 = vlaneseq
        %v1629 = vshrl.u32 %v1628, 7
        %v1630 = vsub.s32 %v1627, %v1629
        %v1631 = vrot.slane %v1617, %v1630
        %v1632 = vcombine.high %v1557, %v1564
        %v1634 = vunpack.c.l.s4 1983009808
        %v1635 = vunpack.c.0.s8 %v1634
        %v1636 = vlaneseq
        %v1637 = vshrl.u32 %v1636, 7
        %v1638 = vsub.s32 %v1635, %v1637
        %v1639 = vrot.slane %v1557, %v1638
        %v1641 = vunpack.c.l.s4 1983009808
        %v1642 = vunpack.c.0.s8 %v1641
        %v1643 = vlaneseq
        %v1644 = vshrl.u32 %v1643, 7
        %v1645 = vsub.s32 %v1642, %v1644
        %v1646 = vrot.slane %v1632, %v1645
        %v1647 = vcombine.low %v1624, %v1639
        %v1648 = vcombine.high %v1624, %v1639
        %v1650 = vunpack.c.l.s4 1934713408
        %v1651 = vunpack.c.0.s8 %v1650
        %v1652 = vlaneseq
        %v1653 = vshrl.u32 %v1652, 7
        %v1654 = vsub.s32 %v1651, %v1653
        %v1655 = vrot.slane %v1647, %v1654
        %v1657 = vunpack.c.l.s4 1934713408
        %v1658 = vunpack.c.0.s8 %v1657
        %v1659 = vlaneseq
        %v1660 = vshrl.u32 %v1659, 7
        %v1661 = vsub.s32 %v1658, %v1660
        %v1662 = vrot.slane %v1648, %v1661
        %v1663 = vcombine.low %v1631, %v1646
        %v1664 = vcombine.high %v1631, %v1646
        %v1666 = vunpack.c.l.s4 1934713408
        %v1667 = vunpack.c.0.s8 %v1666
        %v1668 = vlaneseq
        %v1669 = vshrl.u32 %v1668, 7
        %v1670 = vsub.s32 %v1667, %v1669
        %v1671 = vrot.slane %v1663, %v1670
        %v1673 = vunpack.c.l.s4 1934713408
        %v1674 = vunpack.c.0.s8 %v1673
        %v1675 = vlaneseq
        %v1676 = vshrl.u32 %v1675, 7
        %v1677 = vsub.s32 %v1674, %v1676
        %v1678 = vrot.slane %v1664, %v1677
        %v1679 = vcombine.high %v1655, 0
        %v1680 = vcombine.high %v1662, 0
        %v1681 = vcombine.high %v1671, 0
        %v1682 = vcombine.high %v1678, 0
        %v1683 = vcombine.high %v1553, %v1567
        %v1685 = vunpack.c.l.s4 1983009808
        %v1686 = vunpack.c.0.s8 %v1685
        %v1687 = vlaneseq
        %v1688 = vshrl.u32 %v1687, 7
        %v1689 = vsub.s32 %v1686, %v1688
        %v1690 = vrot.slane %v1553, %v1689
        %v1692 = vunpack.c.l.s4 1983009808
        %v1693 = vunpack.c.0.s8 %v1692
        %v1694 = vlaneseq
        %v1695 = vshrl.u32 %v1694, 7
        %v1696 = vsub.s32 %v1693, %v1695
        %v1697 = vrot.slane %v1683, %v1696
        %v1698 = vcombine.high %v1561, %v1567
        %v1700 = vunpack.c.l.s4 1983009808
        %v1701 = vunpack.c.0.s8 %v1700
        %v1702 = vlaneseq
        %v1703 = vshrl.u32 %v1702, 7
        %v1704 = vsub.s32 %v1701, %v1703
        %v1705 = vrot.slane %v1561, %v1704
        %v1707 = vunpack.c.l.s4 1983009808
        %v1708 = vunpack.c.0.s8 %v1707
        %v1709 = vlaneseq
        %v1710 = vshrl.u32 %v1709, 7
        %v1711 = vsub.s32 %v1708, %v1710
        %v1712 = vrot.slane %v1698, %v1711
        %v1713 = vcombine.low %v1690, %v1705
        %v1714 = vcombine.high %v1690, %v1705
        %v1716 = vunpack.c.l.s4 1934713408
        %v1717 = vunpack.c.0.s8 %v1716
        %v1718 = vlaneseq
        %v1719 = vshrl.u32 %v1718, 7
        %v1720 = vsub.s32 %v1717, %v1719
        %v1721 = vrot.slane %v1713, %v1720
        %v1723 = vunpack.c.l.s4 1934713408
        %v1724 = vunpack.c.0.s8 %v1723
        %v1725 = vlaneseq
        %v1726 = vshrl.u32 %v1725, 7
        %v1727 = vsub.s32 %v1724, %v1726
        %v1728 = vrot.slane %v1714, %v1727
        %v1729 = vcombine.low %v1697, %v1712
        %v1730 = vcombine.high %v1697, %v1712
        %v1732 = vunpack.c.l.s4 1934713408
        %v1733 = vunpack.c.0.s8 %v1732
        %v1734 = vlaneseq
        %v1735 = vshrl.u32 %v1734, 7
        %v1736 = vsub.s32 %v1733, %v1735
        %v1737 = vrot.slane %v1729, %v1736
        %v1739 = vunpack.c.l.s4 1934713408
        %v1740 = vunpack.c.0.s8 %v1739
        %v1741 = vlaneseq
        %v1742 = vshrl.u32 %v1741, 7
        %v1743 = vsub.s32 %v1740, %v1742
        %v1744 = vrot.slane %v1730, %v1743
        %v1745 = vcombine.high %v1721, 0
        %v1746 = vcombine.high %v1728, 0
        %v1747 = vcombine.high %v1737, 0
        %v1748 = vcombine.high %v1744, 0
        %v1749 = vcombine.high %v1571, %v1564
        %v1751 = vunpack.c.l.s4 1983009808
        %v1752 = vunpack.c.0.s8 %v1751
        %v1753 = vlaneseq
        %v1754 = vshrl.u32 %v1753, 7
        %v1755 = vsub.s32 %v1752, %v1754
        %v1756 = vrot.slane %v1571, %v1755
        %v1758 = vunpack.c.l.s4 1983009808
        %v1759 = vunpack.c.0.s8 %v1758
        %v1760 = vlaneseq
        %v1761 = vshrl.u32 %v1760, 7
        %v1762 = vsub.s32 %v1759, %v1761
        %v1763 = vrot.slane %v1749, %v1762
        %v1764 = vcombine.high %v1579, %v1564
        %v1766 = vunpack.c.l.s4 1983009808
        %v1767 = vunpack.c.0.s8 %v1766
        %v1768 = vlaneseq
        %v1769 = vshrl.u32 %v1768, 7
        %v1770 = vsub.s32 %v1767, %v1769
        %v1771 = vrot.slane %v1579, %v1770
        %v1773 = vunpack.c.l.s4 1983009808
        %v1774 = vunpack.c.0.s8 %v1773
        %v1775 = vlaneseq
        %v1776 = vshrl.u32 %v1775, 7
        %v1777 = vsub.s32 %v1774, %v1776
        %v1778 = vrot.slane %v1764, %v1777
        %v1779 = vcombine.low %v1756, %v1771
        %v1780 = vcombine.high %v1756, %v1771
        %v1782 = vunpack.c.l.s4 1934713408
        %v1783 = vunpack.c.0.s8 %v1782
        %v1784 = vlaneseq
        %v1785 = vshrl.u32 %v1784, 7
        %v1786 = vsub.s32 %v1783, %v1785
        %v1787 = vrot.slane %v1779, %v1786
        %v1789 = vunpack.c.l.s4 1934713408
        %v1790 = vunpack.c.0.s8 %v1789
        %v1791 = vlaneseq
        %v1792 = vshrl.u32 %v1791, 7
        %v1793 = vsub.s32 %v1790, %v1792
        %v1794 = vrot.slane %v1780, %v1793
        %v1795 = vcombine.low %v1763, %v1778
        %v1796 = vcombine.high %v1763, %v1778
        %v1798 = vunpack.c.l.s4 1934713408
        %v1799 = vunpack.c.0.s8 %v1798
        %v1800 = vlaneseq
        %v1801 = vshrl.u32 %v1800, 7
        %v1802 = vsub.s32 %v1799, %v1801
        %v1803 = vrot.slane %v1795, %v1802
        %v1805 = vunpack.c.l.s4 1934713408
        %v1806 = vunpack.c.0.s8 %v1805
        %v1807 = vlaneseq
        %v1808 = vshrl.u32 %v1807, 7
        %v1809 = vsub.s32 %v1806, %v1808
        %v1810 = vrot.slane %v1796, %v1809
        %v1811 = vcombine.high %v1787, 0
        %v1812 = vcombine.high %v1794, 0
        %v1813 = vcombine.high %v1803, 0
        %v1814 = vcombine.high %v1810, 0
        %v1815 = vcombine.high %v1575, %v1567
        %v1817 = vunpack.c.l.s4 1983009808
        %v1818 = vunpack.c.0.s8 %v1817
        %v1819 = vlaneseq
        %v1820 = vshrl.u32 %v1819, 7
        %v1821 = vsub.s32 %v1818, %v1820
        %v1822 = vrot.slane %v1575, %v1821
        %v1824 = vunpack.c.l.s4 1983009808
        %v1825 = vunpack.c.0.s8 %v1824
        %v1826 = vlaneseq
        %v1827 = vshrl.u32 %v1826, 7
        %v1828 = vsub.s32 %v1825, %v1827
        %v1829 = vrot.slane %v1815, %v1828
        %v1830 = vcombine.high %v1583, %v1567
        %v1832 = vunpack.c.l.s4 1983009808
        %v1833 = vunpack.c.0.s8 %v1832
        %v1834 = vlaneseq
        %v1835 = vshrl.u32 %v1834, 7
        %v1836 = vsub.s32 %v1833, %v1835
        %v1837 = vrot.slane %v1583, %v1836
        %v1839 = vunpack.c.l.s4 1983009808
        %v1840 = vunpack.c.0.s8 %v1839
        %v1841 = vlaneseq
        %v1842 = vshrl.u32 %v1841, 7
        %v1843 = vsub.s32 %v1840, %v1842
        %v1844 = vrot.slane %v1830, %v1843
        %v1845 = vcombine.low %v1822, %v1837
        %v1846 = vcombine.high %v1822, %v1837
        %v1848 = vunpack.c.l.s4 1934713408
        %v1849 = vunpack.c.0.s8 %v1848
        %v1850 = vlaneseq
        %v1851 = vshrl.u32 %v1850, 7
        %v1852 = vsub.s32 %v1849, %v1851
        %v1853 = vrot.slane %v1845, %v1852
        %v1855 = vunpack.c.l.s4 1934713408
        %v1856 = vunpack.c.0.s8 %v1855
        %v1857 = vlaneseq
        %v1858 = vshrl.u32 %v1857, 7
        %v1859 = vsub.s32 %v1856, %v1858
        %v1860 = vrot.slane %v1846, %v1859
        %v1861 = vcombine.low %v1829, %v1844
        %v1862 = vcombine.high %v1829, %v1844
        %v1864 = vunpack.c.l.s4 1934713408
        %v1865 = vunpack.c.0.s8 %v1864
        %v1866 = vlaneseq
        %v1867 = vshrl.u32 %v1866, 7
        %v1868 = vsub.s32 %v1865, %v1867
        %v1869 = vrot.slane %v1861, %v1868
        %v1871 = vunpack.c.l.s4 1934713408
        %v1872 = vunpack.c.0.s8 %v1871
        %v1873 = vlaneseq
        %v1874 = vshrl.u32 %v1873, 7
        %v1875 = vsub.s32 %v1872, %v1874
        %v1876 = vrot.slane %v1862, %v1875
        %v1877 = vcombine.high %v1853, 0
        %v1878 = vcombine.high %v1860, 0
        %v1879 = vcombine.high %v1869, 0
        %v1880 = vcombine.high %v1876, 0
        %v1881 = vcombine.high %v1587, %v1564
        %v1883 = vunpack.c.l.s4 1983009808
        %v1884 = vunpack.c.0.s8 %v1883
        %v1885 = vlaneseq
        %v1886 = vshrl.u32 %v1885, 7
        %v1887 = vsub.s32 %v1884, %v1886
        %v1888 = vrot.slane %v1587, %v1887
        %v1890 = vunpack.c.l.s4 1983009808
        %v1891 = vunpack.c.0.s8 %v1890
        %v1892 = vlaneseq
        %v1893 = vshrl.u32 %v1892, 7
        %v1894 = vsub.s32 %v1891, %v1893
        %v1895 = vrot.slane %v1881, %v1894
        %v1896 = vcombine.high %v1595, %v1564
        %v1898 = vunpack.c.l.s4 1983009808
        %v1899 = vunpack.c.0.s8 %v1898
        %v1900 = vlaneseq
        %v1901 = vshrl.u32 %v1900, 7
        %v1902 = vsub.s32 %v1899, %v1901
        %v1903 = vrot.slane %v1595, %v1902
        %v1905 = vunpack.c.l.s4 1983009808
        %v1906 = vunpack.c.0.s8 %v1905
        %v1907 = vlaneseq
        %v1908 = vshrl.u32 %v1907, 7
        %v1909 = vsub.s32 %v1906, %v1908
        %v1910 = vrot.slane %v1896, %v1909
        %v1911 = vcombine.low %v1888, %v1903
        %v1912 = vcombine.high %v1888, %v1903
        %v1914 = vunpack.c.l.s4 1934713408
        %v1915 = vunpack.c.0.s8 %v1914
        %v1916 = vlaneseq
        %v1917 = vshrl.u32 %v1916, 7
        %v1918 = vsub.s32 %v1915, %v1917
        %v1919 = vrot.slane %v1911, %v1918
        %v1921 = vunpack.c.l.s4 1934713408
        %v1922 = vunpack.c.0.s8 %v1921
        %v1923 = vlaneseq
        %v1924 = vshrl.u32 %v1923, 7
        %v1925 = vsub.s32 %v1922, %v1924
        %v1926 = vrot.slane %v1912, %v1925
        %v1927 = vcombine.low %v1895, %v1910
        %v1928 = vcombine.high %v1895, %v1910
        %v1930 = vunpack.c.l.s4 1934713408
        %v1931 = vunpack.c.0.s8 %v1930
        %v1932 = vlaneseq
        %v1933 = vshrl.u32 %v1932, 7
        %v1934 = vsub.s32 %v1931, %v1933
        %v1935 = vrot.slane %v1927, %v1934
        %v1937 = vunpack.c.l.s4 1934713408
        %v1938 = vunpack.c.0.s8 %v1937
        %v1939 = vlaneseq
        %v1940 = vshrl.u32 %v1939, 7
        %v1941 = vsub.s32 %v1938, %v1940
        %v1942 = vrot.slane %v1928, %v1941
        %v1943 = vcombine.high %v1919, 0
        %v1944 = vcombine.high %v1926, 0
        %v1945 = vcombine.high %v1935, 0
        %v1946 = vcombine.high %v1942, 0
        %v1947 = vcombine.high %v1591, %v1567
        %v1949 = vunpack.c.l.s4 1983009808
        %v1950 = vunpack.c.0.s8 %v1949
        %v1951 = vlaneseq
        %v1952 = vshrl.u32 %v1951, 7
        %v1953 = vsub.s32 %v1950, %v1952
        %v1954 = vrot.slane %v1591, %v1953
        %v1956 = vunpack.c.l.s4 1983009808
        %v1957 = vunpack.c.0.s8 %v1956
        %v1958 = vlaneseq
        %v1959 = vshrl.u32 %v1958, 7
        %v1960 = vsub.s32 %v1957, %v1959
        %v1961 = vrot.slane %v1947, %v1960
        %v1962 = vcombine.high %v1599, %v1567
        %v1964 = vunpack.c.l.s4 1983009808
        %v1965 = vunpack.c.0.s8 %v1964
        %v1966 = vlaneseq
        %v1967 = vshrl.u32 %v1966, 7
        %v1968 = vsub.s32 %v1965, %v1967
        %v1969 = vrot.slane %v1599, %v1968
        %v1971 = vunpack.c.l.s4 1983009808
        %v1972 = vunpack.c.0.s8 %v1971
        %v1973 = vlaneseq
        %v1974 = vshrl.u32 %v1973, 7
        %v1975 = vsub.s32 %v1972, %v1974
        %v1976 = vrot.slane %v1962, %v1975
        %v1977 = vcombine.low %v1954, %v1969
        %v1978 = vcombine.high %v1954, %v1969
        %v1980 = vunpack.c.l.s4 1934713408
        %v1981 = vunpack.c.0.s8 %v1980
        %v1982 = vlaneseq
        %v1983 = vshrl.u32 %v1982, 7
        %v1984 = vsub.s32 %v1981, %v1983
        %v1985 = vrot.slane %v1977, %v1984
        %v1987 = vunpack.c.l.s4 1934713408
        %v1988 = vunpack.c.0.s8 %v1987
        %v1989 = vlaneseq
        %v1990 = vshrl.u32 %v1989, 7
        %v1991 = vsub.s32 %v1988, %v1990
        %v1992 = vrot.slane %v1978, %v1991
        %v1993 = vcombine.low %v1961, %v1976
        %v1994 = vcombine.high %v1961, %v1976
        %v1996 = vunpack.c.l.s4 1934713408
        %v1997 = vunpack.c.0.s8 %v1996
        %v1998 = vlaneseq
        %v1999 = vshrl.u32 %v1998, 7
        %v2000 = vsub.s32 %v1997, %v1999
        %v2001 = vrot.slane %v1993, %v2000
        %v2003 = vunpack.c.l.s4 1934713408
        %v2004 = vunpack.c.0.s8 %v2003
        %v2005 = vlaneseq
        %v2006 = vshrl.u32 %v2005, 7
        %v2007 = vsub.s32 %v2004, %v2006
        %v2008 = vrot.slane %v1994, %v2007
        %v2009 = vcombine.high %v1985, 0
        %v2010 = vcombine.high %v1992, 0
        %v2011 = vcombine.high %v2001, 0
        %v2012 = vcombine.high %v2008, 0
        %v2013 = vcombine.high %v1603, %v1564
        %v2015 = vunpack.c.l.s4 1983009808
        %v2016 = vunpack.c.0.s8 %v2015
        %v2017 = vlaneseq
        %v2018 = vshrl.u32 %v2017, 7
        %v2019 = vsub.s32 %v2016, %v2018
        %v2020 = vrot.slane %v1603, %v2019
        %v2022 = vunpack.c.l.s4 1983009808
        %v2023 = vunpack.c.0.s8 %v2022
        %v2024 = vlaneseq
        %v2025 = vshrl.u32 %v2024, 7
        %v2026 = vsub.s32 %v2023, %v2025
        %v2027 = vrot.slane %v2013, %v2026
        %v2028 = vcombine.high %v1611, %v1564
        %v2030 = vunpack.c.l.s4 1983009808
        %v2031 = vunpack.c.0.s8 %v2030
        %v2032 = vlaneseq
        %v2033 = vshrl.u32 %v2032, 7
        %v2034 = vsub.s32 %v2031, %v2033
        %v2035 = vrot.slane %v1611, %v2034
        %v2037 = vunpack.c.l.s4 1983009808
        %v2038 = vunpack.c.0.s8 %v2037
        %v2039 = vlaneseq
        %v2040 = vshrl.u32 %v2039, 7
        %v2041 = vsub.s32 %v2038, %v2040
        %v2042 = vrot.slane %v2028, %v2041
        %v2043 = vcombine.low %v2020, %v2035
        %v2044 = vcombine.high %v2020, %v2035
        %v2046 = vunpack.c.l.s4 1934713408
        %v2047 = vunpack.c.0.s8 %v2046
        %v2048 = vlaneseq
        %v2049 = vshrl.u32 %v2048, 7
        %v2050 = vsub.s32 %v2047, %v2049
        %v2051 = vrot.slane %v2043, %v2050
        %v2053 = vunpack.c.l.s4 1934713408
        %v2054 = vunpack.c.0.s8 %v2053
        %v2055 = vlaneseq
        %v2056 = vshrl.u32 %v2055, 7
        %v2057 = vsub.s32 %v2054, %v2056
        %v2058 = vrot.slane %v2044, %v2057
        %v2059 = vcombine.low %v2027, %v2042
        %v2060 = vcombine.high %v2027, %v2042
        %v2062 = vunpack.c.l.s4 1934713408
        %v2063 = vunpack.c.0.s8 %v2062
        %v2064 = vlaneseq
        %v2065 = vshrl.u32 %v2064, 7
        %v2066 = vsub.s32 %v2063, %v2065
        %v2067 = vrot.slane %v2059, %v2066
        %v2069 = vunpack.c.l.s4 1934713408
        %v2070 = vunpack.c.0.s8 %v2069
        %v2071 = vlaneseq
        %v2072 = vshrl.u32 %v2071, 7
        %v2073 = vsub.s32 %v2070, %v2072
        %v2074 = vrot.slane %v2060, %v2073
        %v2075 = vcombine.high %v2051, 0
        %v2076 = vcombine.high %v2058, 0
        %v2077 = vcombine.high %v2067, 0
        %v2078 = vcombine.high %v2074, 0
        %v2079 = vcombine.high %v1607, %v1567
        %v2081 = vunpack.c.l.s4 1983009808
        %v2082 = vunpack.c.0.s8 %v2081
        %v2083 = vlaneseq
        %v2084 = vshrl.u32 %v2083, 7
        %v2085 = vsub.s32 %v2082, %v2084
        %v2086 = vrot.slane %v1607, %v2085
        %v2088 = vunpack.c.l.s4 1983009808
        %v2089 = vunpack.c.0.s8 %v2088
        %v2090 = vlaneseq
        %v2091 = vshrl.u32 %v2090, 7
        %v2092 = vsub.s32 %v2089, %v2091
        %v2093 = vrot.slane %v2079, %v2092
        %v2094 = vcombine.high %v1615, %v1567
        %v2096 = vunpack.c.l.s4 1983009808
        %v2097 = vunpack.c.0.s8 %v2096
        %v2098 = vlaneseq
        %v2099 = vshrl.u32 %v2098, 7
        %v2100 = vsub.s32 %v2097, %v2099
        %v2101 = vrot.slane %v1615, %v2100
        %v2103 = vunpack.c.l.s4 1983009808
        %v2104 = vunpack.c.0.s8 %v2103
        %v2105 = vlaneseq
        %v2106 = vshrl.u32 %v2105, 7
        %v2107 = vsub.s32 %v2104, %v2106
        %v2108 = vrot.slane %v2094, %v2107
        %v2109 = vcombine.low %v2086, %v2101
        %v2110 = vcombine.high %v2086, %v2101
        %v2112 = vunpack.c.l.s4 1934713408
        %v2113 = vunpack.c.0.s8 %v2112
        %v2114 = vlaneseq
        %v2115 = vshrl.u32 %v2114, 7
        %v2116 = vsub.s32 %v2113, %v2115
        %v2117 = vrot.slane %v2109, %v2116
        %v2119 = vunpack.c.l.s4 1934713408
        %v2120 = vunpack.c.0.s8 %v2119
        %v2121 = vlaneseq
        %v2122 = vshrl.u32 %v2121, 7
        %v2123 = vsub.s32 %v2120, %v2122
        %v2124 = vrot.slane %v2110, %v2123
        %v2125 = vcombine.low %v2093, %v2108
        %v2126 = vcombine.high %v2093, %v2108
        %v2128 = vunpack.c.l.s4 1934713408
        %v2129 = vunpack.c.0.s8 %v2128
        %v2130 = vlaneseq
        %v2131 = vshrl.u32 %v2130, 7
        %v2132 = vsub.s32 %v2129, %v2131
        %v2133 = vrot.slane %v2125, %v2132
        %v2135 = vunpack.c.l.s4 1934713408
        %v2136 = vunpack.c.0.s8 %v2135
        %v2137 = vlaneseq
        %v2138 = vshrl.u32 %v2137, 7
        %v2139 = vsub.s32 %v2136, %v2138
        %v2140 = vrot.slane %v2126, %v2139
        %v2141 = vcombine.high %v2117, 0
        %v2142 = vcombine.high %v2124, 0
        %v2143 = vcombine.high %v2133, 0
        %v2144 = vcombine.high %v2140, 0
        %v2145 = vcombine.low %v1655, %v1662
        %v2147 = vunpack.c.l.s4 1983009808
        %v2148 = vunpack.c.0.s8 %v2147
        %v2149 = vlaneseq
        %v2150 = vshrl.u32 %v2149, 7
        %v2151 = vsub.s32 %v2148, %v2150
        %v2152 = vrot.slane %v2145, %v2151
        %v2153 = vcombine.low %v1679, %v1680
        %v2155 = vunpack.c.l.s4 1983009808
        %v2156 = vunpack.c.0.s8 %v2155
        %v2157 = vlaneseq
        %v2158 = vshrl.u32 %v2157, 7
        %v2159 = vsub.s32 %v2156, %v2158
        %v2160 = vrot.slane %v2153, %v2159
        %v2161 = vcombine.low %v1671, %v1678
        %v2163 = vunpack.c.l.s4 1983009808
        %v2164 = vunpack.c.0.s8 %v2163
        %v2165 = vlaneseq
        %v2166 = vshrl.u32 %v2165, 7
        %v2167 = vsub.s32 %v2164, %v2166
        %v2168 = vrot.slane %v2161, %v2167
        %v2169 = vcombine.low %v1681, %v1682
        %v2171 = vunpack.c.l.s4 1983009808
        %v2172 = vunpack.c.0.s8 %v2171
        %v2173 = vlaneseq
        %v2174 = vshrl.u32 %v2173, 7
        %v2175 = vsub.s32 %v2172, %v2174
        %v2176 = vrot.slane %v2169, %v2175
        %v2177 = vcombine.low %v2152, %v2160
        %v2179 = vunpack.c.l.s4 1934713408
        %v2180 = vunpack.c.0.s8 %v2179
        %v2181 = vlaneseq
        %v2182 = vshrl.u32 %v2181, 7
        %v2183 = vsub.s32 %v2180, %v2182
        %v2184 = vrot.slane %v2177, %v2183
        %v2185 = vcombine.low %v2168, %v2176
        %v2187 = vunpack.c.l.s4 1934713408
        %v2188 = vunpack.c.0.s8 %v2187
        %v2189 = vlaneseq
        %v2190 = vshrl.u32 %v2189, 7
        %v2191 = vsub.s32 %v2188, %v2190
        %v2192 = vrot.slane %v2185, %v2191
        %v2193 = vcombine.low %v2184, %v2192
        %v2194 = vcombine.high %v2184, %v2192
        %v2195 = vcombine.low %v1721, %v1728
        %v2197 = vunpack.c.l.s4 1983009808
        %v2198 = vunpack.c.0.s8 %v2197
        %v2199 = vlaneseq
        %v2200 = vshrl.u32 %v2199, 7
        %v2201 = vsub.s32 %v2198, %v2200
        %v2202 = vrot.slane %v2195, %v2201
        %v2203 = vcombine.low %v1745, %v1746
        %v2205 = vunpack.c.l.s4 1983009808
        %v2206 = vunpack.c.0.s8 %v2205
        %v2207 = vlaneseq
        %v2208 = vshrl.u32 %v2207, 7
        %v2209 = vsub.s32 %v2206, %v2208
        %v2210 = vrot.slane %v2203, %v2209
        %v2211 = vcombine.low %v1737, %v1744
        %v2213 = vunpack.c.l.s4 1983009808
        %v2214 = vunpack.c.0.s8 %v2213
        %v2215 = vlaneseq
        %v2216 = vshrl.u32 %v2215, 7
        %v2217 = vsub.s32 %v2214, %v2216
        %v2218 = vrot.slane %v2211, %v2217
        %v2219 = vcombine.low %v1747, %v1748
        %v2221 = vunpack.c.l.s4 1983009808
        %v2222 = vunpack.c.0.s8 %v2221
        %v2223 = vlaneseq
        %v2224 = vshrl.u32 %v2223, 7
        %v2225 = vsub.s32 %v2222, %v2224
        %v2226 = vrot.slane %v2219, %v2225
        %v2227 = vcombine.low %v2202, %v2210
        %v2229 = vunpack.c.l.s4 1934713408
        %v2230 = vunpack.c.0.s8 %v2229
        %v2231 = vlaneseq
        %v2232 = vshrl.u32 %v2231, 7
        %v2233 = vsub.s32 %v2230, %v2232
        %v2234 = vrot.slane %v2227, %v2233
        %v2235 = vcombine.low %v2218, %v2226
        %v2237 = vunpack.c.l.s4 1934713408
        %v2238 = vunpack.c.0.s8 %v2237
        %v2239 = vlaneseq
        %v2240 = vshrl.u32 %v2239, 7
        %v2241 = vsub.s32 %v2238, %v2240
        %v2242 = vrot.slane %v2235, %v2241
        %v2243 = vcombine.low %v2234, %v2242
        %v2244 = vcombine.high %v2234, %v2242
        %v2245 = vcombine.low %v1787, %v1794
        %v2247 = vunpack.c.l.s4 1983009808
        %v2248 = vunpack.c.0.s8 %v2247
        %v2249 = vlaneseq
        %v2250 = vshrl.u32 %v2249, 7
        %v2251 = vsub.s32 %v2248, %v2250
        %v2252 = vrot.slane %v2245, %v2251
        %v2253 = vcombine.low %v1811, %v1812
        %v2255 = vunpack.c.l.s4 1983009808
        %v2256 = vunpack.c.0.s8 %v2255
        %v2257 = vlaneseq
        %v2258 = vshrl.u32 %v2257, 7
        %v2259 = vsub.s32 %v2256, %v2258
        %v2260 = vrot.slane %v2253, %v2259
        %v2261 = vcombine.low %v1803, %v1810
        %v2263 = vunpack.c.l.s4 1983009808
        %v2264 = vunpack.c.0.s8 %v2263
        %v2265 = vlaneseq
        %v2266 = vshrl.u32 %v2265, 7
        %v2267 = vsub.s32 %v2264, %v2266
        %v2268 = vrot.slane %v2261, %v2267
        %v2269 = vcombine.low %v1813, %v1814
        %v2271 = vunpack.c.l.s4 1983009808
        %v2272 = vunpack.c.0.s8 %v2271
        %v2273 = vlaneseq
        %v2274 = vshrl.u32 %v2273, 7
        %v2275 = vsub.s32 %v2272, %v2274
        %v2276 = vrot.slane %v2269, %v2275
        %v2277 = vcombine.low %v2252, %v2260
        %v2279 = vunpack.c.l.s4 1934713408
        %v2280 = vunpack.c.0.s8 %v2279
        %v2281 = vlaneseq
        %v2282 = vshrl.u32 %v2281, 7
        %v2283 = vsub.s32 %v2280, %v2282
        %v2284 = vrot.slane %v2277, %v2283
        %v2285 = vcombine.low %v2268, %v2276
        %v2287 = vunpack.c.l.s4 1934713408
        %v2288 = vunpack.c.0.s8 %v2287
        %v2289 = vlaneseq
        %v2290 = vshrl.u32 %v2289, 7
        %v2291 = vsub.s32 %v2288, %v2290
        %v2292 = vrot.slane %v2285, %v2291
        %v2293 = vcombine.low %v2284, %v2292
        %v2294 = vcombine.high %v2284, %v2292
        %v2295 = vcombine.low %v1853, %v1860
        %v2297 = vunpack.c.l.s4 1983009808
        %v2298 = vunpack.c.0.s8 %v2297
        %v2299 = vlaneseq
        %v2300 = vshrl.u32 %v2299, 7
        %v2301 = vsub.s32 %v2298, %v2300
        %v2302 = vrot.slane %v2295, %v2301
        %v2303 = vcombine.low %v1877, %v1878
        %v2305 = vunpack.c.l.s4 1983009808
        %v2306 = vunpack.c.0.s8 %v2305
        %v2307 = vlaneseq
        %v2308 = vshrl.u32 %v2307, 7
        %v2309 = vsub.s32 %v2306, %v2308
        %v2310 = vrot.slane %v2303, %v2309
        %v2311 = vcombine.low %v1869, %v1876
        %v2313 = vunpack.c.l.s4 1983009808
        %v2314 = vunpack.c.0.s8 %v2313
        %v2315 = vlaneseq
        %v2316 = vshrl.u32 %v2315, 7
        %v2317 = vsub.s32 %v2314, %v2316
        %v2318 = vrot.slane %v2311, %v2317
        %v2319 = vcombine.low %v1879, %v1880
        %v2321 = vunpack.c.l.s4 1983009808
        %v2322 = vunpack.c.0.s8 %v2321
        %v2323 = vlaneseq
        %v2324 = vshrl.u32 %v2323, 7
        %v2325 = vsub.s32 %v2322, %v2324
        %v2326 = vrot.slane %v2319, %v2325
        %v2327 = vcombine.low %v2302, %v2310
        %v2329 = vunpack.c.l.s4 1934713408
        %v2330 = vunpack.c.0.s8 %v2329
        %v2331 = vlaneseq
        %v2332 = vshrl.u32 %v2331, 7
        %v2333 = vsub.s32 %v2330, %v2332
        %v2334 = vrot.slane %v2327, %v2333
        %v2335 = vcombine.low %v2318, %v2326
        %v2337 = vunpack.c.l.s4 1934713408
        %v2338 = vunpack.c.0.s8 %v2337
        %v2339 = vlaneseq
        %v2340 = vshrl.u32 %v2339, 7
        %v2341 = vsub.s32 %v2338, %v2340
        %v2342 = vrot.slane %v2335, %v2341
        %v2343 = vcombine.low %v2334, %v2342
        %v2344 = vcombine.high %v2334, %v2342
        %v2345 = vcombine.low %v1919, %v1926
        %v2347 = vunpack.c.l.s4 1983009808
        %v2348 = vunpack.c.0.s8 %v2347
        %v2349 = vlaneseq
        %v2350 = vshrl.u32 %v2349, 7
        %v2351 = vsub.s32 %v2348, %v2350
        %v2352 = vrot.slane %v2345, %v2351
        %v2353 = vcombine.low %v1943, %v1944
        %v2355 = vunpack.c.l.s4 1983009808
        %v2356 = vunpack.c.0.s8 %v2355
        %v2357 = vlaneseq
        %v2358 = vshrl.u32 %v2357, 7
        %v2359 = vsub.s32 %v2356, %v2358
        %v2360 = vrot.slane %v2353, %v2359
        %v2361 = vcombine.low %v1935, %v1942
        %v2363 = vunpack.c.l.s4 1983009808
        %v2364 = vunpack.c.0.s8 %v2363
        %v2365 = vlaneseq
        %v2366 = vshrl.u32 %v2365, 7
        %v2367 = vsub.s32 %v2364, %v2366
        %v2368 = vrot.slane %v2361, %v2367
        %v2369 = vcombine.low %v1945, %v1946
        %v2371 = vunpack.c.l.s4 1983009808
        %v2372 = vunpack.c.0.s8 %v2371
        %v2373 = vlaneseq
        %v2374 = vshrl.u32 %v2373, 7
        %v2375 = vsub.s32 %v2372, %v2374
        %v2376 = vrot.slane %v2369, %v2375
        %v2377 = vcombine.low %v2352, %v2360
        %v2379 = vunpack.c.l.s4 1934713408
        %v2380 = vunpack.c.0.s8 %v2379
        %v2381 = vlaneseq
        %v2382 = vshrl.u32 %v2381, 7
        %v2383 = vsub.s32 %v2380, %v2382
        %v2384 = vrot.slane %v2377, %v2383
        %v2385 = vcombine.low %v2368, %v2376
        %v2387 = vunpack.c.l.s4 1934713408
        %v2388 = vunpack.c.0.s8 %v2387
        %v2389 = vlaneseq
        %v2390 = vshrl.u32 %v2389, 7
        %v2391 = vsub.s32 %v2388, %v2390
        %v2392 = vrot.slane %v2385, %v2391
        %v2393 = vcombine.low %v2384, %v2392
        %v2394 = vcombine.high %v2384, %v2392
        %v2395 = vcombine.low %v1985, %v1992
        %v2397 = vunpack.c.l.s4 1983009808
        %v2398 = vunpack.c.0.s8 %v2397
        %v2399 = vlaneseq
        %v2400 = vshrl.u32 %v2399, 7
        %v2401 = vsub.s32 %v2398, %v2400
        %v2402 = vrot.slane %v2395, %v2401
        %v2403 = vcombine.low %v2009, %v2010
        %v2405 = vunpack.c.l.s4 1983009808
        %v2406 = vunpack.c.0.s8 %v2405
        %v2407 = vlaneseq
        %v2408 = vshrl.u32 %v2407, 7
        %v2409 = vsub.s32 %v2406, %v2408
        %v2410 = vrot.slane %v2403, %v2409
        %v2411 = vcombine.low %v2001, %v2008
        %v2413 = vunpack.c.l.s4 1983009808
        %v2414 = vunpack.c.0.s8 %v2413
        %v2415 = vlaneseq
        %v2416 = vshrl.u32 %v2415, 7
        %v2417 = vsub.s32 %v2414, %v2416
        %v2418 = vrot.slane %v2411, %v2417
        %v2419 = vcombine.low %v2011, %v2012
        %v2421 = vunpack.c.l.s4 1983009808
        %v2422 = vunpack.c.0.s8 %v2421
        %v2423 = vlaneseq
        %v2424 = vshrl.u32 %v2423, 7
        %v2425 = vsub.s32 %v2422, %v2424
        %v2426 = vrot.slane %v2419, %v2425
        %v2427 = vcombine.low %v2402, %v2410
        %v2429 = vunpack.c.l.s4 1934713408
        %v2430 = vunpack.c.0.s8 %v2429
        %v2431 = vlaneseq
        %v2432 = vshrl.u32 %v2431, 7
        %v2433 = vsub.s32 %v2430, %v2432
        %v2434 = vrot.slane %v2427, %v2433
        %v2435 = vcombine.low %v2418, %v2426
        %v2437 = vunpack.c.l.s4 1934713408
        %v2438 = vunpack.c.0.s8 %v2437
        %v2439 = vlaneseq
        %v2440 = vshrl.u32 %v2439, 7
        %v2441 = vsub.s32 %v2438, %v2440
        %v2442 = vrot.slane %v2435, %v2441
        %v2443 = vcombine.low %v2434, %v2442
        %v2444 = vcombine.high %v2434, %v2442
        %v2445 = vcombine.low %v2051, %v2058
        %v2447 = vunpack.c.l.s4 1983009808
        %v2448 = vunpack.c.0.s8 %v2447
        %v2449 = vlaneseq
        %v2450 = vshrl.u32 %v2449, 7
        %v2451 = vsub.s32 %v2448, %v2450
        %v2452 = vrot.slane %v2445, %v2451
        %v2453 = vcombine.low %v2075, %v2076
        %v2455 = vunpack.c.l.s4 1983009808
        %v2456 = vunpack.c.0.s8 %v2455
        %v2457 = vlaneseq
        %v2458 = vshrl.u32 %v2457, 7
        %v2459 = vsub.s32 %v2456, %v2458
        %v2460 = vrot.slane %v2453, %v2459
        %v2461 = vcombine.low %v2067, %v2074
        %v2463 = vunpack.c.l.s4 1983009808
        %v2464 = vunpack.c.0.s8 %v2463
        %v2465 = vlaneseq
        %v2466 = vshrl.u32 %v2465, 7
        %v2467 = vsub.s32 %v2464, %v2466
        %v2468 = vrot.slane %v2461, %v2467
        %v2469 = vcombine.low %v2077, %v2078
        %v2471 = vunpack.c.l.s4 1983009808
        %v2472 = vunpack.c.0.s8 %v2471
        %v2473 = vlaneseq
        %v2474 = vshrl.u32 %v2473, 7
        %v2475 = vsub.s32 %v2472, %v2474
        %v2476 = vrot.slane %v2469, %v2475
        %v2477 = vcombine.low %v2452, %v2460
        %v2479 = vunpack.c.l.s4 1934713408
        %v2480 = vunpack.c.0.s8 %v2479
        %v2481 = vlaneseq
        %v2482 = vshrl.u32 %v2481, 7
        %v2483 = vsub.s32 %v2480, %v2482
        %v2484 = vrot.slane %v2477, %v2483
        %v2485 = vcombine.low %v2468, %v2476
        %v2487 = vunpack.c.l.s4 1934713408
        %v2488 = vunpack.c.0.s8 %v2487
        %v2489 = vlaneseq
        %v2490 = vshrl.u32 %v2489, 7
        %v2491 = vsub.s32 %v2488, %v2490
        %v2492 = vrot.slane %v2485, %v2491
        %v2493 = vcombine.low %v2484, %v2492
        %v2494 = vcombine.high %v2484, %v2492
        %v2495 = vcombine.low %v2117, %v2124
        %v2497 = vunpack.c.l.s4 1983009808
        %v2498 = vunpack.c.0.s8 %v2497
        %v2499 = vlaneseq
        %v2500 = vshrl.u32 %v2499, 7
        %v2501 = vsub.s32 %v2498, %v2500
        %v2502 = vrot.slane %v2495, %v2501
        %v2503 = vcombine.low %v2141, %v2142
        %v2505 = vunpack.c.l.s4 1983009808
        %v2506 = vunpack.c.0.s8 %v2505
        %v2507 = vlaneseq
        %v2508 = vshrl.u32 %v2507, 7
        %v2509 = vsub.s32 %v2506, %v2508
        %v2510 = vrot.slane %v2503, %v2509
        %v2511 = vcombine.low %v2133, %v2140
        %v2513 = vunpack.c.l.s4 1983009808
        %v2514 = vunpack.c.0.s8 %v2513
        %v2515 = vlaneseq
        %v2516 = vshrl.u32 %v2515, 7
        %v2517 = vsub.s32 %v2514, %v2516
        %v2518 = vrot.slane %v2511, %v2517
        %v2519 = vcombine.low %v2143, %v2144
        %v2521 = vunpack.c.l.s4 1983009808
        %v2522 = vunpack.c.0.s8 %v2521
        %v2523 = vlaneseq
        %v2524 = vshrl.u32 %v2523, 7
        %v2525 = vsub.s32 %v2522, %v2524
        %v2526 = vrot.slane %v2519, %v2525
        %v2527 = vcombine.low %v2502, %v2510
        %v2529 = vunpack.c.l.s4 1934713408
        %v2530 = vunpack.c.0.s8 %v2529
        %v2531 = vlaneseq
        %v2532 = vshrl.u32 %v2531, 7
        %v2533 = vsub.s32 %v2530, %v2532
        %v2534 = vrot.slane %v2527, %v2533
        %v2535 = vcombine.low %v2518, %v2526
        %v2537 = vunpack.c.l.s4 1934713408
        %v2538 = vunpack.c.0.s8 %v2537
        %v2539 = vlaneseq
        %v2540 = vshrl.u32 %v2539, 7
        %v2541 = vsub.s32 %v2538, %v2540
        %v2542 = vrot.slane %v2535, %v2541
        %v2543 = vcombine.low %v2534, %v2542
        %v2544 = vcombine.high %v2534, %v2542
        %v2547 = vpack.i.b16 %v2243, %v2193
        %v2548 = vshrl.u32 %v2193, 16
        %v2549 = vshrl.u32 %v2243, 16
        %v2550 = vpack.i.b16 %v2549, %v2548
        %v2553 = vpack.i.b16 %v2244, %v2194
        %v2554 = vshrl.u32 %v2194, 16
        %v2555 = vshrl.u32 %v2244, 16
        %v2556 = vpack.i.b16 %v2555, %v2554
        %v2559 = vpack.i.b16 %v2343, %v2293
        %v2560 = vshrl.u32 %v2293, 16
        %v2561 = vshrl.u32 %v2343, 16
        %v2562 = vpack.i.b16 %v2561, %v2560
        %v2565 = vpack.i.b16 %v2344, %v2294
        %v2566 = vshrl.u32 %v2294, 16
        %v2567 = vshrl.u32 %v2344, 16
        %v2568 = vpack.i.b16 %v2567, %v2566
        %v2571 = vpack.i.b16 %v2443, %v2393
        %v2572 = vshrl.u32 %v2393, 16
        %v2573 = vshrl.u32 %v2443, 16
        %v2574 = vpack.i.b16 %v2573, %v2572
        %v2577 = vpack.i.b16 %v2444, %v2394
        %v2578 = vshrl.u32 %v2394, 16
        %v2579 = vshrl.u32 %v2444, 16
        %v2580 = vpack.i.b16 %v2579, %v2578
        %v2583 = vpack.i.b16 %v2543, %v2493
        %v2584 = vshrl.u32 %v2493, 16
        %v2585 = vshrl.u32 %v2543, 16
        %v2586 = vpack.i.b16 %v2585, %v2584
        %v2589 = vpack.i.b16 %v2544, %v2494
        %v2590 = vshrl.u32 %v2494, 16
        %v2591 = vshrl.u32 %v2544, 16
        %v2592 = vpack.i.b16 %v2591, %v2590
        %v2593 = vpack.c.bf16 %v1288, %v1285
        %v2594 = vpack.c.bf16 %v1296, %v1293
        %v2595 = vpack.c.bf16 %v1304, %v1301
        %v2596 = vpack.c.bf16 %v1312, %v1309
        %v2597 = vpack.c.bf16 %v1320, %v1317
        %v2598 = vpack.c.bf16 %v1328, %v1325
        %v2599 = vpack.c.bf16 %v1336, %v1333
        %v2600 = vpack.c.bf16 %v1344, %v1341
        %2609 = vrot.lane.b32.xlu0 %v2593, 96
        %v2610 = vpop.permute.xlu0 %2609
        %2611 = vrot.lane.b32.xlu0 %v2594, 96
        %v2612 = vpop.permute.xlu0 %2611
        %2613 = vrot.lane.b32.xlu0 %v2595, 96
        %v2614 = vpop.permute.xlu0 %2613
        %2615 = vrot.lane.b32.xlu0 %v2596, 96
        %v2616 = vpop.permute.xlu0 %2615
        %2617 = vrot.lane.b32.xlu0 %v2597, 96
        %v2618 = vpop.permute.xlu0 %2617
        %2619 = vrot.lane.b32.xlu0 %v2598, 96
        %v2620 = vpop.permute.xlu0 %2619
        %2621 = vrot.lane.b32.xlu0 %v2599, 96
        %v2622 = vpop.permute.xlu0 %2621
        %2623 = vrot.lane.b32.xlu0 %v2600, 96
        %v2624 = vpop.permute.xlu0 %2623
        %2625 = vrot.lane.b32.xlu0 %v2593, 64
        %v2626 = vpop.permute.xlu0 %2625
        %2627 = vrot.lane.b32.xlu0 %v2594, 64
        %v2628 = vpop.permute.xlu0 %2627
        %2629 = vrot.lane.b32.xlu0 %v2595, 64
        %v2630 = vpop.permute.xlu0 %2629
        %2631 = vrot.lane.b32.xlu0 %v2596, 64
        %v2632 = vpop.permute.xlu0 %2631
        %2633 = vrot.lane.b32.xlu0 %v2597, 64
        %v2634 = vpop.permute.xlu0 %2633
        %2635 = vrot.lane.b32.xlu0 %v2598, 64
        %v2636 = vpop.permute.xlu0 %2635
        %2637 = vrot.lane.b32.xlu0 %v2599, 64
        %v2638 = vpop.permute.xlu0 %2637
        %2639 = vrot.lane.b32.xlu0 %v2600, 64
        %v2640 = vpop.permute.xlu0 %2639
        %2641 = vrot.lane.b32.xlu0 %v2593, 32
        %v2642 = vpop.permute.xlu0 %2641
        %2643 = vrot.lane.b32.xlu0 %v2594, 32
        %v2644 = vpop.permute.xlu0 %2643
        %2645 = vrot.lane.b32.xlu0 %v2595, 32
        %v2646 = vpop.permute.xlu0 %2645
        %2647 = vrot.lane.b32.xlu0 %v2596, 32
        %v2648 = vpop.permute.xlu0 %2647
        %2649 = vrot.lane.b32.xlu0 %v2597, 32
        %v2650 = vpop.permute.xlu0 %2649
        %2651 = vrot.lane.b32.xlu0 %v2598, 32
        %v2652 = vpop.permute.xlu0 %2651
        %2653 = vrot.lane.b32.xlu0 %v2599, 32
        %v2654 = vpop.permute.xlu0 %2653
        %2655 = vrot.lane.b32.xlu0 %v2600, 32
        %v2656 = vpop.permute.xlu0 %2655
        %v2659 = vpack.i.b16 %v2610, %v2593
        %v2661 = vshrl.u32 %v2593, 16
        %v2662 = vshrl.u32 %v2610, 16
        %v2663 = vpack.i.b16 %v2662, %v2661
        %v2667 = vpack.i.b16 %v2642, %v2626
        %v2669 = vshrl.u32 %v2626, 16
        %v2670 = vshrl.u32 %v2642, 16
        %v2671 = vpack.i.b16 %v2670, %v2669
        %v2675 = vpack.i.b16 %v2612, %v2594
        %v2677 = vshrl.u32 %v2594, 16
        %v2678 = vshrl.u32 %v2612, 16
        %v2679 = vpack.i.b16 %v2678, %v2677
        %v2683 = vpack.i.b16 %v2644, %v2628
        %v2685 = vshrl.u32 %v2628, 16
        %v2686 = vshrl.u32 %v2644, 16
        %v2687 = vpack.i.b16 %v2686, %v2685
        %v2691 = vpack.i.b16 %v2614, %v2595
        %v2693 = vshrl.u32 %v2595, 16
        %v2694 = vshrl.u32 %v2614, 16
        %v2695 = vpack.i.b16 %v2694, %v2693
        %v2699 = vpack.i.b16 %v2646, %v2630
        %v2701 = vshrl.u32 %v2630, 16
        %v2702 = vshrl.u32 %v2646, 16
        %v2703 = vpack.i.b16 %v2702, %v2701
        %v2707 = vpack.i.b16 %v2616, %v2596
        %v2709 = vshrl.u32 %v2596, 16
        %v2710 = vshrl.u32 %v2616, 16
        %v2711 = vpack.i.b16 %v2710, %v2709
        %v2715 = vpack.i.b16 %v2648, %v2632
        %v2717 = vshrl.u32 %v2632, 16
        %v2718 = vshrl.u32 %v2648, 16
        %v2719 = vpack.i.b16 %v2718, %v2717
        %v2723 = vpack.i.b16 %v2618, %v2597
        %v2725 = vshrl.u32 %v2597, 16
        %v2726 = vshrl.u32 %v2618, 16
        %v2727 = vpack.i.b16 %v2726, %v2725
        %v2731 = vpack.i.b16 %v2650, %v2634
        %v2733 = vshrl.u32 %v2634, 16
        %v2734 = vshrl.u32 %v2650, 16
        %v2735 = vpack.i.b16 %v2734, %v2733
        %v2739 = vpack.i.b16 %v2620, %v2598
        %v2741 = vshrl.u32 %v2598, 16
        %v2742 = vshrl.u32 %v2620, 16
        %v2743 = vpack.i.b16 %v2742, %v2741
        %v2747 = vpack.i.b16 %v2652, %v2636
        %v2749 = vshrl.u32 %v2636, 16
        %v2750 = vshrl.u32 %v2652, 16
        %v2751 = vpack.i.b16 %v2750, %v2749
        %v2755 = vpack.i.b16 %v2622, %v2599
        %v2757 = vshrl.u32 %v2599, 16
        %v2758 = vshrl.u32 %v2622, 16
        %v2759 = vpack.i.b16 %v2758, %v2757
        %v2763 = vpack.i.b16 %v2654, %v2638
        %v2765 = vshrl.u32 %v2638, 16
        %v2766 = vshrl.u32 %v2654, 16
        %v2767 = vpack.i.b16 %v2766, %v2765
        %v2771 = vpack.i.b16 %v2624, %v2600
        %v2773 = vshrl.u32 %v2600, 16
        %v2774 = vshrl.u32 %v2624, 16
        %v2775 = vpack.i.b16 %v2774, %v2773
        %v2779 = vpack.i.b16 %v2656, %v2640
        %v2781 = vshrl.u32 %v2640, 16
        %v2782 = vshrl.u32 %v2656, 16
        %v2783 = vpack.i.b16 %v2782, %v2781
        %v2785 = vcombine.high %v2659, %v1564
        %v2787 = vunpack.c.l.s4 1983009808
        %v2788 = vunpack.c.0.s8 %v2787
        %v2789 = vlaneseq
        %v2790 = vshrl.u32 %v2789, 7
        %v2791 = vsub.s32 %v2788, %v2790
        %v2792 = vrot.slane %v2659, %v2791
        %v2794 = vunpack.c.l.s4 1983009808
        %v2795 = vunpack.c.0.s8 %v2794
        %v2796 = vlaneseq
        %v2797 = vshrl.u32 %v2796, 7
        %v2798 = vsub.s32 %v2795, %v2797
        %v2799 = vrot.slane %v2785, %v2798
        %v2800 = vcombine.high %v2667, %v1564
        %v2802 = vunpack.c.l.s4 1983009808
        %v2803 = vunpack.c.0.s8 %v2802
        %v2804 = vlaneseq
        %v2805 = vshrl.u32 %v2804, 7
        %v2806 = vsub.s32 %v2803, %v2805
        %v2807 = vrot.slane %v2667, %v2806
        %v2809 = vunpack.c.l.s4 1983009808
        %v2810 = vunpack.c.0.s8 %v2809
        %v2811 = vlaneseq
        %v2812 = vshrl.u32 %v2811, 7
        %v2813 = vsub.s32 %v2810, %v2812
        %v2814 = vrot.slane %v2800, %v2813
        %v2815 = vcombine.low %v2792, %v2807
        %v2816 = vcombine.high %v2792, %v2807
        %v2818 = vunpack.c.l.s4 1934713408
        %v2819 = vunpack.c.0.s8 %v2818
        %v2820 = vlaneseq
        %v2821 = vshrl.u32 %v2820, 7
        %v2822 = vsub.s32 %v2819, %v2821
        %v2823 = vrot.slane %v2815, %v2822
        %v2825 = vunpack.c.l.s4 1934713408
        %v2826 = vunpack.c.0.s8 %v2825
        %v2827 = vlaneseq
        %v2828 = vshrl.u32 %v2827, 7
        %v2829 = vsub.s32 %v2826, %v2828
        %v2830 = vrot.slane %v2816, %v2829
        %v2831 = vcombine.low %v2799, %v2814
        %v2832 = vcombine.high %v2799, %v2814
        %v2834 = vunpack.c.l.s4 1934713408
        %v2835 = vunpack.c.0.s8 %v2834
        %v2836 = vlaneseq
        %v2837 = vshrl.u32 %v2836, 7
        %v2838 = vsub.s32 %v2835, %v2837
        %v2839 = vrot.slane %v2831, %v2838
        %v2841 = vunpack.c.l.s4 1934713408
        %v2842 = vunpack.c.0.s8 %v2841
        %v2843 = vlaneseq
        %v2844 = vshrl.u32 %v2843, 7
        %v2845 = vsub.s32 %v2842, %v2844
        %v2846 = vrot.slane %v2832, %v2845
        %v2847 = vcombine.high %v2823, 0
        %v2848 = vcombine.high %v2830, 0
        %v2849 = vcombine.high %v2839, 0
        %v2850 = vcombine.high %v2846, 0
        %v2851 = vcombine.high %v2663, %v1567
        %v2853 = vunpack.c.l.s4 1983009808
        %v2854 = vunpack.c.0.s8 %v2853
        %v2855 = vlaneseq
        %v2856 = vshrl.u32 %v2855, 7
        %v2857 = vsub.s32 %v2854, %v2856
        %v2858 = vrot.slane %v2663, %v2857
        %v2860 = vunpack.c.l.s4 1983009808
        %v2861 = vunpack.c.0.s8 %v2860
        %v2862 = vlaneseq
        %v2863 = vshrl.u32 %v2862, 7
        %v2864 = vsub.s32 %v2861, %v2863
        %v2865 = vrot.slane %v2851, %v2864
        %v2866 = vcombine.high %v2671, %v1567
        %v2868 = vunpack.c.l.s4 1983009808
        %v2869 = vunpack.c.0.s8 %v2868
        %v2870 = vlaneseq
        %v2871 = vshrl.u32 %v2870, 7
        %v2872 = vsub.s32 %v2869, %v2871
        %v2873 = vrot.slane %v2671, %v2872
        %v2875 = vunpack.c.l.s4 1983009808
        %v2876 = vunpack.c.0.s8 %v2875
        %v2877 = vlaneseq
        %v2878 = vshrl.u32 %v2877, 7
        %v2879 = vsub.s32 %v2876, %v2878
        %v2880 = vrot.slane %v2866, %v2879
        %v2881 = vcombine.low %v2858, %v2873
        %v2882 = vcombine.high %v2858, %v2873
        %v2884 = vunpack.c.l.s4 1934713408
        %v2885 = vunpack.c.0.s8 %v2884
        %v2886 = vlaneseq
        %v2887 = vshrl.u32 %v2886, 7
        %v2888 = vsub.s32 %v2885, %v2887
        %v2889 = vrot.slane %v2881, %v2888
        %v2891 = vunpack.c.l.s4 1934713408
        %v2892 = vunpack.c.0.s8 %v2891
        %v2893 = vlaneseq
        %v2894 = vshrl.u32 %v2893, 7
        %v2895 = vsub.s32 %v2892, %v2894
        %v2896 = vrot.slane %v2882, %v2895
        %v2897 = vcombine.low %v2865, %v2880
        %v2898 = vcombine.high %v2865, %v2880
        %v2900 = vunpack.c.l.s4 1934713408
        %v2901 = vunpack.c.0.s8 %v2900
        %v2902 = vlaneseq
        %v2903 = vshrl.u32 %v2902, 7
        %v2904 = vsub.s32 %v2901, %v2903
        %v2905 = vrot.slane %v2897, %v2904
        %v2907 = vunpack.c.l.s4 1934713408
        %v2908 = vunpack.c.0.s8 %v2907
        %v2909 = vlaneseq
        %v2910 = vshrl.u32 %v2909, 7
        %v2911 = vsub.s32 %v2908, %v2910
        %v2912 = vrot.slane %v2898, %v2911
        %v2913 = vcombine.high %v2889, 0
        %v2914 = vcombine.high %v2896, 0
        %v2915 = vcombine.high %v2905, 0
        %v2916 = vcombine.high %v2912, 0
        %v2917 = vcombine.high %v2675, %v1564
        %v2919 = vunpack.c.l.s4 1983009808
        %v2920 = vunpack.c.0.s8 %v2919
        %v2921 = vlaneseq
        %v2922 = vshrl.u32 %v2921, 7
        %v2923 = vsub.s32 %v2920, %v2922
        %v2924 = vrot.slane %v2675, %v2923
        %v2926 = vunpack.c.l.s4 1983009808
        %v2927 = vunpack.c.0.s8 %v2926
        %v2928 = vlaneseq
        %v2929 = vshrl.u32 %v2928, 7
        %v2930 = vsub.s32 %v2927, %v2929
        %v2931 = vrot.slane %v2917, %v2930
        %v2932 = vcombine.high %v2683, %v1564
        %v2934 = vunpack.c.l.s4 1983009808
        %v2935 = vunpack.c.0.s8 %v2934
        %v2936 = vlaneseq
        %v2937 = vshrl.u32 %v2936, 7
        %v2938 = vsub.s32 %v2935, %v2937
        %v2939 = vrot.slane %v2683, %v2938
        %v2941 = vunpack.c.l.s4 1983009808
        %v2942 = vunpack.c.0.s8 %v2941
        %v2943 = vlaneseq
        %v2944 = vshrl.u32 %v2943, 7
        %v2945 = vsub.s32 %v2942, %v2944
        %v2946 = vrot.slane %v2932, %v2945
        %v2947 = vcombine.low %v2924, %v2939
        %v2948 = vcombine.high %v2924, %v2939
        %v2950 = vunpack.c.l.s4 1934713408
        %v2951 = vunpack.c.0.s8 %v2950
        %v2952 = vlaneseq
        %v2953 = vshrl.u32 %v2952, 7
        %v2954 = vsub.s32 %v2951, %v2953
        %v2955 = vrot.slane %v2947, %v2954
        %v2957 = vunpack.c.l.s4 1934713408
        %v2958 = vunpack.c.0.s8 %v2957
        %v2959 = vlaneseq
        %v2960 = vshrl.u32 %v2959, 7
        %v2961 = vsub.s32 %v2958, %v2960
        %v2962 = vrot.slane %v2948, %v2961
        %v2963 = vcombine.low %v2931, %v2946
        %v2964 = vcombine.high %v2931, %v2946
        %v2966 = vunpack.c.l.s4 1934713408
        %v2967 = vunpack.c.0.s8 %v2966
        %v2968 = vlaneseq
        %v2969 = vshrl.u32 %v2968, 7
        %v2970 = vsub.s32 %v2967, %v2969
        %v2971 = vrot.slane %v2963, %v2970
        %v2973 = vunpack.c.l.s4 1934713408
        %v2974 = vunpack.c.0.s8 %v2973
        %v2975 = vlaneseq
        %v2976 = vshrl.u32 %v2975, 7
        %v2977 = vsub.s32 %v2974, %v2976
        %v2978 = vrot.slane %v2964, %v2977
        %v2979 = vcombine.high %v2955, 0
        %v2980 = vcombine.high %v2962, 0
        %v2981 = vcombine.high %v2971, 0
        %v2982 = vcombine.high %v2978, 0
        %v2983 = vcombine.high %v2679, %v1567
        %v2985 = vunpack.c.l.s4 1983009808
        %v2986 = vunpack.c.0.s8 %v2985
        %v2987 = vlaneseq
        %v2988 = vshrl.u32 %v2987, 7
        %v2989 = vsub.s32 %v2986, %v2988
        %v2990 = vrot.slane %v2679, %v2989
        %v2992 = vunpack.c.l.s4 1983009808
        %v2993 = vunpack.c.0.s8 %v2992
        %v2994 = vlaneseq
        %v2995 = vshrl.u32 %v2994, 7
        %v2996 = vsub.s32 %v2993, %v2995
        %v2997 = vrot.slane %v2983, %v2996
        %v2998 = vcombine.high %v2687, %v1567
        %v3000 = vunpack.c.l.s4 1983009808
        %v3001 = vunpack.c.0.s8 %v3000
        %v3002 = vlaneseq
        %v3003 = vshrl.u32 %v3002, 7
        %v3004 = vsub.s32 %v3001, %v3003
        %v3005 = vrot.slane %v2687, %v3004
        %v3007 = vunpack.c.l.s4 1983009808
        %v3008 = vunpack.c.0.s8 %v3007
        %v3009 = vlaneseq
        %v3010 = vshrl.u32 %v3009, 7
        %v3011 = vsub.s32 %v3008, %v3010
        %v3012 = vrot.slane %v2998, %v3011
        %v3013 = vcombine.low %v2990, %v3005
        %v3014 = vcombine.high %v2990, %v3005
        %v3016 = vunpack.c.l.s4 1934713408
        %v3017 = vunpack.c.0.s8 %v3016
        %v3018 = vlaneseq
        %v3019 = vshrl.u32 %v3018, 7
        %v3020 = vsub.s32 %v3017, %v3019
        %v3021 = vrot.slane %v3013, %v3020
        %v3023 = vunpack.c.l.s4 1934713408
        %v3024 = vunpack.c.0.s8 %v3023
        %v3025 = vlaneseq
        %v3026 = vshrl.u32 %v3025, 7
        %v3027 = vsub.s32 %v3024, %v3026
        %v3028 = vrot.slane %v3014, %v3027
        %v3029 = vcombine.low %v2997, %v3012
        %v3030 = vcombine.high %v2997, %v3012
        %v3032 = vunpack.c.l.s4 1934713408
        %v3033 = vunpack.c.0.s8 %v3032
        %v3034 = vlaneseq
        %v3035 = vshrl.u32 %v3034, 7
        %v3036 = vsub.s32 %v3033, %v3035
        %v3037 = vrot.slane %v3029, %v3036
        %v3039 = vunpack.c.l.s4 1934713408
        %v3040 = vunpack.c.0.s8 %v3039
        %v3041 = vlaneseq
        %v3042 = vshrl.u32 %v3041, 7
        %v3043 = vsub.s32 %v3040, %v3042
        %v3044 = vrot.slane %v3030, %v3043
        %v3045 = vcombine.high %v3021, 0
        %v3046 = vcombine.high %v3028, 0
        %v3047 = vcombine.high %v3037, 0
        %v3048 = vcombine.high %v3044, 0
        %v3049 = vcombine.high %v2691, %v1564
        %v3051 = vunpack.c.l.s4 1983009808
        %v3052 = vunpack.c.0.s8 %v3051
        %v3053 = vlaneseq
        %v3054 = vshrl.u32 %v3053, 7
        %v3055 = vsub.s32 %v3052, %v3054
        %v3056 = vrot.slane %v2691, %v3055
        %v3058 = vunpack.c.l.s4 1983009808
        %v3059 = vunpack.c.0.s8 %v3058
        %v3060 = vlaneseq
        %v3061 = vshrl.u32 %v3060, 7
        %v3062 = vsub.s32 %v3059, %v3061
        %v3063 = vrot.slane %v3049, %v3062
        %v3064 = vcombine.high %v2699, %v1564
        %v3066 = vunpack.c.l.s4 1983009808
        %v3067 = vunpack.c.0.s8 %v3066
        %v3068 = vlaneseq
        %v3069 = vshrl.u32 %v3068, 7
        %v3070 = vsub.s32 %v3067, %v3069
        %v3071 = vrot.slane %v2699, %v3070
        %v3073 = vunpack.c.l.s4 1983009808
        %v3074 = vunpack.c.0.s8 %v3073
        %v3075 = vlaneseq
        %v3076 = vshrl.u32 %v3075, 7
        %v3077 = vsub.s32 %v3074, %v3076
        %v3078 = vrot.slane %v3064, %v3077
        %v3079 = vcombine.low %v3056, %v3071
        %v3080 = vcombine.high %v3056, %v3071
        %v3082 = vunpack.c.l.s4 1934713408
        %v3083 = vunpack.c.0.s8 %v3082
        %v3084 = vlaneseq
        %v3085 = vshrl.u32 %v3084, 7
        %v3086 = vsub.s32 %v3083, %v3085
        %v3087 = vrot.slane %v3079, %v3086
        %v3089 = vunpack.c.l.s4 1934713408
        %v3090 = vunpack.c.0.s8 %v3089
        %v3091 = vlaneseq
        %v3092 = vshrl.u32 %v3091, 7
        %v3093 = vsub.s32 %v3090, %v3092
        %v3094 = vrot.slane %v3080, %v3093
        %v3095 = vcombine.low %v3063, %v3078
        %v3096 = vcombine.high %v3063, %v3078
        %v3098 = vunpack.c.l.s4 1934713408
        %v3099 = vunpack.c.0.s8 %v3098
        %v3100 = vlaneseq
        %v3101 = vshrl.u32 %v3100, 7
        %v3102 = vsub.s32 %v3099, %v3101
        %v3103 = vrot.slane %v3095, %v3102
        %v3105 = vunpack.c.l.s4 1934713408
        %v3106 = vunpack.c.0.s8 %v3105
        %v3107 = vlaneseq
        %v3108 = vshrl.u32 %v3107, 7
        %v3109 = vsub.s32 %v3106, %v3108
        %v3110 = vrot.slane %v3096, %v3109
        %v3111 = vcombine.high %v3087, 0
        %v3112 = vcombine.high %v3094, 0
        %v3113 = vcombine.high %v3103, 0
        %v3114 = vcombine.high %v3110, 0
        %v3115 = vcombine.high %v2695, %v1567
        %v3117 = vunpack.c.l.s4 1983009808
        %v3118 = vunpack.c.0.s8 %v3117
        %v3119 = vlaneseq
        %v3120 = vshrl.u32 %v3119, 7
        %v3121 = vsub.s32 %v3118, %v3120
        %v3122 = vrot.slane %v2695, %v3121
        %v3124 = vunpack.c.l.s4 1983009808
        %v3125 = vunpack.c.0.s8 %v3124
        %v3126 = vlaneseq
        %v3127 = vshrl.u32 %v3126, 7
        %v3128 = vsub.s32 %v3125, %v3127
        %v3129 = vrot.slane %v3115, %v3128
        %v3130 = vcombine.high %v2703, %v1567
        %v3132 = vunpack.c.l.s4 1983009808
        %v3133 = vunpack.c.0.s8 %v3132
        %v3134 = vlaneseq
        %v3135 = vshrl.u32 %v3134, 7
        %v3136 = vsub.s32 %v3133, %v3135
        %v3137 = vrot.slane %v2703, %v3136
        %v3139 = vunpack.c.l.s4 1983009808
        %v3140 = vunpack.c.0.s8 %v3139
        %v3141 = vlaneseq
        %v3142 = vshrl.u32 %v3141, 7
        %v3143 = vsub.s32 %v3140, %v3142
        %v3144 = vrot.slane %v3130, %v3143
        %v3145 = vcombine.low %v3122, %v3137
        %v3146 = vcombine.high %v3122, %v3137
        %v3148 = vunpack.c.l.s4 1934713408
        %v3149 = vunpack.c.0.s8 %v3148
        %v3150 = vlaneseq
        %v3151 = vshrl.u32 %v3150, 7
        %v3152 = vsub.s32 %v3149, %v3151
        %v3153 = vrot.slane %v3145, %v3152
        %v3155 = vunpack.c.l.s4 1934713408
        %v3156 = vunpack.c.0.s8 %v3155
        %v3157 = vlaneseq
        %v3158 = vshrl.u32 %v3157, 7
        %v3159 = vsub.s32 %v3156, %v3158
        %v3160 = vrot.slane %v3146, %v3159
        %v3161 = vcombine.low %v3129, %v3144
        %v3162 = vcombine.high %v3129, %v3144
        %v3164 = vunpack.c.l.s4 1934713408
        %v3165 = vunpack.c.0.s8 %v3164
        %v3166 = vlaneseq
        %v3167 = vshrl.u32 %v3166, 7
        %v3168 = vsub.s32 %v3165, %v3167
        %v3169 = vrot.slane %v3161, %v3168
        %v3171 = vunpack.c.l.s4 1934713408
        %v3172 = vunpack.c.0.s8 %v3171
        %v3173 = vlaneseq
        %v3174 = vshrl.u32 %v3173, 7
        %v3175 = vsub.s32 %v3172, %v3174
        %v3176 = vrot.slane %v3162, %v3175
        %v3177 = vcombine.high %v3153, 0
        %v3178 = vcombine.high %v3160, 0
        %v3179 = vcombine.high %v3169, 0
        %v3180 = vcombine.high %v3176, 0
        %v3181 = vcombine.high %v2707, %v1564
        %v3183 = vunpack.c.l.s4 1983009808
        %v3184 = vunpack.c.0.s8 %v3183
        %v3185 = vlaneseq
        %v3186 = vshrl.u32 %v3185, 7
        %v3187 = vsub.s32 %v3184, %v3186
        %v3188 = vrot.slane %v2707, %v3187
        %v3190 = vunpack.c.l.s4 1983009808
        %v3191 = vunpack.c.0.s8 %v3190
        %v3192 = vlaneseq
        %v3193 = vshrl.u32 %v3192, 7
        %v3194 = vsub.s32 %v3191, %v3193
        %v3195 = vrot.slane %v3181, %v3194
        %v3196 = vcombine.high %v2715, %v1564
        %v3198 = vunpack.c.l.s4 1983009808
        %v3199 = vunpack.c.0.s8 %v3198
        %v3200 = vlaneseq
        %v3201 = vshrl.u32 %v3200, 7
        %v3202 = vsub.s32 %v3199, %v3201
        %v3203 = vrot.slane %v2715, %v3202
        %v3205 = vunpack.c.l.s4 1983009808
        %v3206 = vunpack.c.0.s8 %v3205
        %v3207 = vlaneseq
        %v3208 = vshrl.u32 %v3207, 7
        %v3209 = vsub.s32 %v3206, %v3208
        %v3210 = vrot.slane %v3196, %v3209
        %v3211 = vcombine.low %v3188, %v3203
        %v3212 = vcombine.high %v3188, %v3203
        %v3214 = vunpack.c.l.s4 1934713408
        %v3215 = vunpack.c.0.s8 %v3214
        %v3216 = vlaneseq
        %v3217 = vshrl.u32 %v3216, 7
        %v3218 = vsub.s32 %v3215, %v3217
        %v3219 = vrot.slane %v3211, %v3218
        %v3221 = vunpack.c.l.s4 1934713408
        %v3222 = vunpack.c.0.s8 %v3221
        %v3223 = vlaneseq
        %v3224 = vshrl.u32 %v3223, 7
        %v3225 = vsub.s32 %v3222, %v3224
        %v3226 = vrot.slane %v3212, %v3225
        %v3227 = vcombine.low %v3195, %v3210
        %v3228 = vcombine.high %v3195, %v3210
        %v3230 = vunpack.c.l.s4 1934713408
        %v3231 = vunpack.c.0.s8 %v3230
        %v3232 = vlaneseq
        %v3233 = vshrl.u32 %v3232, 7
        %v3234 = vsub.s32 %v3231, %v3233
        %v3235 = vrot.slane %v3227, %v3234
        %v3237 = vunpack.c.l.s4 1934713408
        %v3238 = vunpack.c.0.s8 %v3237
        %v3239 = vlaneseq
        %v3240 = vshrl.u32 %v3239, 7
        %v3241 = vsub.s32 %v3238, %v3240
        %v3242 = vrot.slane %v3228, %v3241
        %v3243 = vcombine.high %v3219, 0
        %v3244 = vcombine.high %v3226, 0
        %v3245 = vcombine.high %v3235, 0
        %v3246 = vcombine.high %v3242, 0
        %v3247 = vcombine.high %v2711, %v1567
        %v3249 = vunpack.c.l.s4 1983009808
        %v3250 = vunpack.c.0.s8 %v3249
        %v3251 = vlaneseq
        %v3252 = vshrl.u32 %v3251, 7
        %v3253 = vsub.s32 %v3250, %v3252
        %v3254 = vrot.slane %v2711, %v3253
        %v3256 = vunpack.c.l.s4 1983009808
        %v3257 = vunpack.c.0.s8 %v3256
        %v3258 = vlaneseq
        %v3259 = vshrl.u32 %v3258, 7
        %v3260 = vsub.s32 %v3257, %v3259
        %v3261 = vrot.slane %v3247, %v3260
        %v3262 = vcombine.high %v2719, %v1567
        %v3264 = vunpack.c.l.s4 1983009808
        %v3265 = vunpack.c.0.s8 %v3264
        %v3266 = vlaneseq
        %v3267 = vshrl.u32 %v3266, 7
        %v3268 = vsub.s32 %v3265, %v3267
        %v3269 = vrot.slane %v2719, %v3268
        %v3271 = vunpack.c.l.s4 1983009808
        %v3272 = vunpack.c.0.s8 %v3271
        %v3273 = vlaneseq
        %v3274 = vshrl.u32 %v3273, 7
        %v3275 = vsub.s32 %v3272, %v3274
        %v3276 = vrot.slane %v3262, %v3275
        %v3277 = vcombine.low %v3254, %v3269
        %v3278 = vcombine.high %v3254, %v3269
        %v3280 = vunpack.c.l.s4 1934713408
        %v3281 = vunpack.c.0.s8 %v3280
        %v3282 = vlaneseq
        %v3283 = vshrl.u32 %v3282, 7
        %v3284 = vsub.s32 %v3281, %v3283
        %v3285 = vrot.slane %v3277, %v3284
        %v3287 = vunpack.c.l.s4 1934713408
        %v3288 = vunpack.c.0.s8 %v3287
        %v3289 = vlaneseq
        %v3290 = vshrl.u32 %v3289, 7
        %v3291 = vsub.s32 %v3288, %v3290
        %v3292 = vrot.slane %v3278, %v3291
        %v3293 = vcombine.low %v3261, %v3276
        %v3294 = vcombine.high %v3261, %v3276
        %v3296 = vunpack.c.l.s4 1934713408
        %v3297 = vunpack.c.0.s8 %v3296
        %v3298 = vlaneseq
        %v3299 = vshrl.u32 %v3298, 7
        %v3300 = vsub.s32 %v3297, %v3299
        %v3301 = vrot.slane %v3293, %v3300
        %v3303 = vunpack.c.l.s4 1934713408
        %v3304 = vunpack.c.0.s8 %v3303
        %v3305 = vlaneseq
        %v3306 = vshrl.u32 %v3305, 7
        %v3307 = vsub.s32 %v3304, %v3306
        %v3308 = vrot.slane %v3294, %v3307
        %v3309 = vcombine.high %v3285, 0
        %v3310 = vcombine.high %v3292, 0
        %v3311 = vcombine.high %v3301, 0
        %v3312 = vcombine.high %v3308, 0
        %v3313 = vcombine.high %v2723, %v1564
        %v3315 = vunpack.c.l.s4 1983009808
        %v3316 = vunpack.c.0.s8 %v3315
        %v3317 = vlaneseq
        %v3318 = vshrl.u32 %v3317, 7
        %v3319 = vsub.s32 %v3316, %v3318
        %v3320 = vrot.slane %v2723, %v3319
        %v3322 = vunpack.c.l.s4 1983009808
        %v3323 = vunpack.c.0.s8 %v3322
        %v3324 = vlaneseq
        %v3325 = vshrl.u32 %v3324, 7
        %v3326 = vsub.s32 %v3323, %v3325
        %v3327 = vrot.slane %v3313, %v3326
        %v3328 = vcombine.high %v2731, %v1564
        %v3330 = vunpack.c.l.s4 1983009808
        %v3331 = vunpack.c.0.s8 %v3330
        %v3332 = vlaneseq
        %v3333 = vshrl.u32 %v3332, 7
        %v3334 = vsub.s32 %v3331, %v3333
        %v3335 = vrot.slane %v2731, %v3334
        %v3337 = vunpack.c.l.s4 1983009808
        %v3338 = vunpack.c.0.s8 %v3337
        %v3339 = vlaneseq
        %v3340 = vshrl.u32 %v3339, 7
        %v3341 = vsub.s32 %v3338, %v3340
        %v3342 = vrot.slane %v3328, %v3341
        %v3343 = vcombine.low %v3320, %v3335
        %v3344 = vcombine.high %v3320, %v3335
        %v3346 = vunpack.c.l.s4 1934713408
        %v3347 = vunpack.c.0.s8 %v3346
        %v3348 = vlaneseq
        %v3349 = vshrl.u32 %v3348, 7
        %v3350 = vsub.s32 %v3347, %v3349
        %v3351 = vrot.slane %v3343, %v3350
        %v3353 = vunpack.c.l.s4 1934713408
        %v3354 = vunpack.c.0.s8 %v3353
        %v3355 = vlaneseq
        %v3356 = vshrl.u32 %v3355, 7
        %v3357 = vsub.s32 %v3354, %v3356
        %v3358 = vrot.slane %v3344, %v3357
        %v3359 = vcombine.low %v3327, %v3342
        %v3360 = vcombine.high %v3327, %v3342
        %v3362 = vunpack.c.l.s4 1934713408
        %v3363 = vunpack.c.0.s8 %v3362
        %v3364 = vlaneseq
        %v3365 = vshrl.u32 %v3364, 7
        %v3366 = vsub.s32 %v3363, %v3365
        %v3367 = vrot.slane %v3359, %v3366
        %v3369 = vunpack.c.l.s4 1934713408
        %v3370 = vunpack.c.0.s8 %v3369
        %v3371 = vlaneseq
        %v3372 = vshrl.u32 %v3371, 7
        %v3373 = vsub.s32 %v3370, %v3372
        %v3374 = vrot.slane %v3360, %v3373
        %v3375 = vcombine.high %v3351, 0
        %v3376 = vcombine.high %v3358, 0
        %v3377 = vcombine.high %v3367, 0
        %v3378 = vcombine.high %v3374, 0
        %v3379 = vcombine.high %v2727, %v1567
        %v3381 = vunpack.c.l.s4 1983009808
        %v3382 = vunpack.c.0.s8 %v3381
        %v3383 = vlaneseq
        %v3384 = vshrl.u32 %v3383, 7
        %v3385 = vsub.s32 %v3382, %v3384
        %v3386 = vrot.slane %v2727, %v3385
        %v3388 = vunpack.c.l.s4 1983009808
        %v3389 = vunpack.c.0.s8 %v3388
        %v3390 = vlaneseq
        %v3391 = vshrl.u32 %v3390, 7
        %v3392 = vsub.s32 %v3389, %v3391
        %v3393 = vrot.slane %v3379, %v3392
        %v3394 = vcombine.high %v2735, %v1567
        %v3396 = vunpack.c.l.s4 1983009808
        %v3397 = vunpack.c.0.s8 %v3396
        %v3398 = vlaneseq
        %v3399 = vshrl.u32 %v3398, 7
        %v3400 = vsub.s32 %v3397, %v3399
        %v3401 = vrot.slane %v2735, %v3400
        %v3403 = vunpack.c.l.s4 1983009808
        %v3404 = vunpack.c.0.s8 %v3403
        %v3405 = vlaneseq
        %v3406 = vshrl.u32 %v3405, 7
        %v3407 = vsub.s32 %v3404, %v3406
        %v3408 = vrot.slane %v3394, %v3407
        %v3409 = vcombine.low %v3386, %v3401
        %v3410 = vcombine.high %v3386, %v3401
        %v3412 = vunpack.c.l.s4 1934713408
        %v3413 = vunpack.c.0.s8 %v3412
        %v3414 = vlaneseq
        %v3415 = vshrl.u32 %v3414, 7
        %v3416 = vsub.s32 %v3413, %v3415
        %v3417 = vrot.slane %v3409, %v3416
        %v3419 = vunpack.c.l.s4 1934713408
        %v3420 = vunpack.c.0.s8 %v3419
        %v3421 = vlaneseq
        %v3422 = vshrl.u32 %v3421, 7
        %v3423 = vsub.s32 %v3420, %v3422
        %v3424 = vrot.slane %v3410, %v3423
        %v3425 = vcombine.low %v3393, %v3408
        %v3426 = vcombine.high %v3393, %v3408
        %v3428 = vunpack.c.l.s4 1934713408
        %v3429 = vunpack.c.0.s8 %v3428
        %v3430 = vlaneseq
        %v3431 = vshrl.u32 %v3430, 7
        %v3432 = vsub.s32 %v3429, %v3431
        %v3433 = vrot.slane %v3425, %v3432
        %v3435 = vunpack.c.l.s4 1934713408
        %v3436 = vunpack.c.0.s8 %v3435
        %v3437 = vlaneseq
        %v3438 = vshrl.u32 %v3437, 7
        %v3439 = vsub.s32 %v3436, %v3438
        %v3440 = vrot.slane %v3426, %v3439
        %v3441 = vcombine.high %v3417, 0
        %v3442 = vcombine.high %v3424, 0
        %v3443 = vcombine.high %v3433, 0
        %v3444 = vcombine.high %v3440, 0
        %v3445 = vcombine.high %v2739, %v1564
        %v3447 = vunpack.c.l.s4 1983009808
        %v3448 = vunpack.c.0.s8 %v3447
        %v3449 = vlaneseq
        %v3450 = vshrl.u32 %v3449, 7
        %v3451 = vsub.s32 %v3448, %v3450
        %v3452 = vrot.slane %v2739, %v3451
        %v3454 = vunpack.c.l.s4 1983009808
        %v3455 = vunpack.c.0.s8 %v3454
        %v3456 = vlaneseq
        %v3457 = vshrl.u32 %v3456, 7
        %v3458 = vsub.s32 %v3455, %v3457
        %v3459 = vrot.slane %v3445, %v3458
        %v3460 = vcombine.high %v2747, %v1564
        %v3462 = vunpack.c.l.s4 1983009808
        %v3463 = vunpack.c.0.s8 %v3462
        %v3464 = vlaneseq
        %v3465 = vshrl.u32 %v3464, 7
        %v3466 = vsub.s32 %v3463, %v3465
        %v3467 = vrot.slane %v2747, %v3466
        %v3469 = vunpack.c.l.s4 1983009808
        %v3470 = vunpack.c.0.s8 %v3469
        %v3471 = vlaneseq
        %v3472 = vshrl.u32 %v3471, 7
        %v3473 = vsub.s32 %v3470, %v3472
        %v3474 = vrot.slane %v3460, %v3473
        %v3475 = vcombine.low %v3452, %v3467
        %v3476 = vcombine.high %v3452, %v3467
        %v3478 = vunpack.c.l.s4 1934713408
        %v3479 = vunpack.c.0.s8 %v3478
        %v3480 = vlaneseq
        %v3481 = vshrl.u32 %v3480, 7
        %v3482 = vsub.s32 %v3479, %v3481
        %v3483 = vrot.slane %v3475, %v3482
        %v3485 = vunpack.c.l.s4 1934713408
        %v3486 = vunpack.c.0.s8 %v3485
        %v3487 = vlaneseq
        %v3488 = vshrl.u32 %v3487, 7
        %v3489 = vsub.s32 %v3486, %v3488
        %v3490 = vrot.slane %v3476, %v3489
        %v3491 = vcombine.low %v3459, %v3474
        %v3492 = vcombine.high %v3459, %v3474
        %v3494 = vunpack.c.l.s4 1934713408
        %v3495 = vunpack.c.0.s8 %v3494
        %v3496 = vlaneseq
        %v3497 = vshrl.u32 %v3496, 7
        %v3498 = vsub.s32 %v3495, %v3497
        %v3499 = vrot.slane %v3491, %v3498
        %v3501 = vunpack.c.l.s4 1934713408
        %v3502 = vunpack.c.0.s8 %v3501
        %v3503 = vlaneseq
        %v3504 = vshrl.u32 %v3503, 7
        %v3505 = vsub.s32 %v3502, %v3504
        %v3506 = vrot.slane %v3492, %v3505
        %v3507 = vcombine.high %v3483, 0
        %v3508 = vcombine.high %v3490, 0
        %v3509 = vcombine.high %v3499, 0
        %v3510 = vcombine.high %v3506, 0
        %v3511 = vcombine.high %v2743, %v1567
        %v3513 = vunpack.c.l.s4 1983009808
        %v3514 = vunpack.c.0.s8 %v3513
        %v3515 = vlaneseq
        %v3516 = vshrl.u32 %v3515, 7
        %v3517 = vsub.s32 %v3514, %v3516
        %v3518 = vrot.slane %v2743, %v3517
        %v3520 = vunpack.c.l.s4 1983009808
        %v3521 = vunpack.c.0.s8 %v3520
        %v3522 = vlaneseq
        %v3523 = vshrl.u32 %v3522, 7
        %v3524 = vsub.s32 %v3521, %v3523
        %v3525 = vrot.slane %v3511, %v3524
        %v3526 = vcombine.high %v2751, %v1567
        %v3528 = vunpack.c.l.s4 1983009808
        %v3529 = vunpack.c.0.s8 %v3528
        %v3530 = vlaneseq
        %v3531 = vshrl.u32 %v3530, 7
        %v3532 = vsub.s32 %v3529, %v3531
        %v3533 = vrot.slane %v2751, %v3532
        %v3535 = vunpack.c.l.s4 1983009808
        %v3536 = vunpack.c.0.s8 %v3535
        %v3537 = vlaneseq
        %v3538 = vshrl.u32 %v3537, 7
        %v3539 = vsub.s32 %v3536, %v3538
        %v3540 = vrot.slane %v3526, %v3539
        %v3541 = vcombine.low %v3518, %v3533
        %v3542 = vcombine.high %v3518, %v3533
        %v3544 = vunpack.c.l.s4 1934713408
        %v3545 = vunpack.c.0.s8 %v3544
        %v3546 = vlaneseq
        %v3547 = vshrl.u32 %v3546, 7
        %v3548 = vsub.s32 %v3545, %v3547
        %v3549 = vrot.slane %v3541, %v3548
        %v3551 = vunpack.c.l.s4 1934713408
        %v3552 = vunpack.c.0.s8 %v3551
        %v3553 = vlaneseq
        %v3554 = vshrl.u32 %v3553, 7
        %v3555 = vsub.s32 %v3552, %v3554
        %v3556 = vrot.slane %v3542, %v3555
        %v3557 = vcombine.low %v3525, %v3540
        %v3558 = vcombine.high %v3525, %v3540
        %v3560 = vunpack.c.l.s4 1934713408
        %v3561 = vunpack.c.0.s8 %v3560
        %v3562 = vlaneseq
        %v3563 = vshrl.u32 %v3562, 7
        %v3564 = vsub.s32 %v3561, %v3563
        %v3565 = vrot.slane %v3557, %v3564
        %v3567 = vunpack.c.l.s4 1934713408
        %v3568 = vunpack.c.0.s8 %v3567
        %v3569 = vlaneseq
        %v3570 = vshrl.u32 %v3569, 7
        %v3571 = vsub.s32 %v3568, %v3570
        %v3572 = vrot.slane %v3558, %v3571
        %v3573 = vcombine.high %v3549, 0
        %v3574 = vcombine.high %v3556, 0
        %v3575 = vcombine.high %v3565, 0
        %v3576 = vcombine.high %v3572, 0
        %v3577 = vcombine.high %v2755, %v1564
        %v3579 = vunpack.c.l.s4 1983009808
        %v3580 = vunpack.c.0.s8 %v3579
        %v3581 = vlaneseq
        %v3582 = vshrl.u32 %v3581, 7
        %v3583 = vsub.s32 %v3580, %v3582
        %v3584 = vrot.slane %v2755, %v3583
        %v3586 = vunpack.c.l.s4 1983009808
        %v3587 = vunpack.c.0.s8 %v3586
        %v3588 = vlaneseq
        %v3589 = vshrl.u32 %v3588, 7
        %v3590 = vsub.s32 %v3587, %v3589
        %v3591 = vrot.slane %v3577, %v3590
        %v3592 = vcombine.high %v2763, %v1564
        %v3594 = vunpack.c.l.s4 1983009808
        %v3595 = vunpack.c.0.s8 %v3594
        %v3596 = vlaneseq
        %v3597 = vshrl.u32 %v3596, 7
        %v3598 = vsub.s32 %v3595, %v3597
        %v3599 = vrot.slane %v2763, %v3598
        %v3601 = vunpack.c.l.s4 1983009808
        %v3602 = vunpack.c.0.s8 %v3601
        %v3603 = vlaneseq
        %v3604 = vshrl.u32 %v3603, 7
        %v3605 = vsub.s32 %v3602, %v3604
        %v3606 = vrot.slane %v3592, %v3605
        %v3607 = vcombine.low %v3584, %v3599
        %v3608 = vcombine.high %v3584, %v3599
        %v3610 = vunpack.c.l.s4 1934713408
        %v3611 = vunpack.c.0.s8 %v3610
        %v3612 = vlaneseq
        %v3613 = vshrl.u32 %v3612, 7
        %v3614 = vsub.s32 %v3611, %v3613
        %v3615 = vrot.slane %v3607, %v3614
        %v3617 = vunpack.c.l.s4 1934713408
        %v3618 = vunpack.c.0.s8 %v3617
        %v3619 = vlaneseq
        %v3620 = vshrl.u32 %v3619, 7
        %v3621 = vsub.s32 %v3618, %v3620
        %v3622 = vrot.slane %v3608, %v3621
        %v3623 = vcombine.low %v3591, %v3606
        %v3624 = vcombine.high %v3591, %v3606
        %v3626 = vunpack.c.l.s4 1934713408
        %v3627 = vunpack.c.0.s8 %v3626
        %v3628 = vlaneseq
        %v3629 = vshrl.u32 %v3628, 7
        %v3630 = vsub.s32 %v3627, %v3629
        %v3631 = vrot.slane %v3623, %v3630
        %v3633 = vunpack.c.l.s4 1934713408
        %v3634 = vunpack.c.0.s8 %v3633
        %v3635 = vlaneseq
        %v3636 = vshrl.u32 %v3635, 7
        %v3637 = vsub.s32 %v3634, %v3636
        %v3638 = vrot.slane %v3624, %v3637
        %v3639 = vcombine.high %v3615, 0
        %v3640 = vcombine.high %v3622, 0
        %v3641 = vcombine.high %v3631, 0
        %v3642 = vcombine.high %v3638, 0
        %v3643 = vcombine.high %v2759, %v1567
        %v3645 = vunpack.c.l.s4 1983009808
        %v3646 = vunpack.c.0.s8 %v3645
        %v3647 = vlaneseq
        %v3648 = vshrl.u32 %v3647, 7
        %v3649 = vsub.s32 %v3646, %v3648
        %v3650 = vrot.slane %v2759, %v3649
        %v3652 = vunpack.c.l.s4 1983009808
        %v3653 = vunpack.c.0.s8 %v3652
        %v3654 = vlaneseq
        %v3655 = vshrl.u32 %v3654, 7
        %v3656 = vsub.s32 %v3653, %v3655
        %v3657 = vrot.slane %v3643, %v3656
        %v3658 = vcombine.high %v2767, %v1567
        %v3660 = vunpack.c.l.s4 1983009808
        %v3661 = vunpack.c.0.s8 %v3660
        %v3662 = vlaneseq
        %v3663 = vshrl.u32 %v3662, 7
        %v3664 = vsub.s32 %v3661, %v3663
        %v3665 = vrot.slane %v2767, %v3664
        %v3667 = vunpack.c.l.s4 1983009808
        %v3668 = vunpack.c.0.s8 %v3667
        %v3669 = vlaneseq
        %v3670 = vshrl.u32 %v3669, 7
        %v3671 = vsub.s32 %v3668, %v3670
        %v3672 = vrot.slane %v3658, %v3671
        %v3673 = vcombine.low %v3650, %v3665
        %v3674 = vcombine.high %v3650, %v3665
        %v3676 = vunpack.c.l.s4 1934713408
        %v3677 = vunpack.c.0.s8 %v3676
        %v3678 = vlaneseq
        %v3679 = vshrl.u32 %v3678, 7
        %v3680 = vsub.s32 %v3677, %v3679
        %v3681 = vrot.slane %v3673, %v3680
        %v3683 = vunpack.c.l.s4 1934713408
        %v3684 = vunpack.c.0.s8 %v3683
        %v3685 = vlaneseq
        %v3686 = vshrl.u32 %v3685, 7
        %v3687 = vsub.s32 %v3684, %v3686
        %v3688 = vrot.slane %v3674, %v3687
        %v3689 = vcombine.low %v3657, %v3672
        %v3690 = vcombine.high %v3657, %v3672
        %v3692 = vunpack.c.l.s4 1934713408
        %v3693 = vunpack.c.0.s8 %v3692
        %v3694 = vlaneseq
        %v3695 = vshrl.u32 %v3694, 7
        %v3696 = vsub.s32 %v3693, %v3695
        %v3697 = vrot.slane %v3689, %v3696
        %v3699 = vunpack.c.l.s4 1934713408
        %v3700 = vunpack.c.0.s8 %v3699
        %v3701 = vlaneseq
        %v3702 = vshrl.u32 %v3701, 7
        %v3703 = vsub.s32 %v3700, %v3702
        %v3704 = vrot.slane %v3690, %v3703
        %v3705 = vcombine.high %v3681, 0
        %v3706 = vcombine.high %v3688, 0
        %v3707 = vcombine.high %v3697, 0
        %v3708 = vcombine.high %v3704, 0
        %v3709 = vcombine.high %v2771, %v1564
        %v3711 = vunpack.c.l.s4 1983009808
        %v3712 = vunpack.c.0.s8 %v3711
        %v3713 = vlaneseq
        %v3714 = vshrl.u32 %v3713, 7
        %v3715 = vsub.s32 %v3712, %v3714
        %v3716 = vrot.slane %v2771, %v3715
        %v3718 = vunpack.c.l.s4 1983009808
        %v3719 = vunpack.c.0.s8 %v3718
        %v3720 = vlaneseq
        %v3721 = vshrl.u32 %v3720, 7
        %v3722 = vsub.s32 %v3719, %v3721
        %v3723 = vrot.slane %v3709, %v3722
        %v3724 = vcombine.high %v2779, %v1564
        %v3726 = vunpack.c.l.s4 1983009808
        %v3727 = vunpack.c.0.s8 %v3726
        %v3728 = vlaneseq
        %v3729 = vshrl.u32 %v3728, 7
        %v3730 = vsub.s32 %v3727, %v3729
        %v3731 = vrot.slane %v2779, %v3730
        %v3733 = vunpack.c.l.s4 1983009808
        %v3734 = vunpack.c.0.s8 %v3733
        %v3735 = vlaneseq
        %v3736 = vshrl.u32 %v3735, 7
        %v3737 = vsub.s32 %v3734, %v3736
        %v3738 = vrot.slane %v3724, %v3737
        %v3739 = vcombine.low %v3716, %v3731
        %v3740 = vcombine.high %v3716, %v3731
        %v3742 = vunpack.c.l.s4 1934713408
        %v3743 = vunpack.c.0.s8 %v3742
        %v3744 = vlaneseq
        %v3745 = vshrl.u32 %v3744, 7
        %v3746 = vsub.s32 %v3743, %v3745
        %v3747 = vrot.slane %v3739, %v3746
        %v3749 = vunpack.c.l.s4 1934713408
        %v3750 = vunpack.c.0.s8 %v3749
        %v3751 = vlaneseq
        %v3752 = vshrl.u32 %v3751, 7
        %v3753 = vsub.s32 %v3750, %v3752
        %v3754 = vrot.slane %v3740, %v3753
        %v3755 = vcombine.low %v3723, %v3738
        %v3756 = vcombine.high %v3723, %v3738
        %v3758 = vunpack.c.l.s4 1934713408
        %v3759 = vunpack.c.0.s8 %v3758
        %v3760 = vlaneseq
        %v3761 = vshrl.u32 %v3760, 7
        %v3762 = vsub.s32 %v3759, %v3761
        %v3763 = vrot.slane %v3755, %v3762
        %v3765 = vunpack.c.l.s4 1934713408
        %v3766 = vunpack.c.0.s8 %v3765
        %v3767 = vlaneseq
        %v3768 = vshrl.u32 %v3767, 7
        %v3769 = vsub.s32 %v3766, %v3768
        %v3770 = vrot.slane %v3756, %v3769
        %v3771 = vcombine.high %v3747, 0
        %v3772 = vcombine.high %v3754, 0
        %v3773 = vcombine.high %v3763, 0
        %v3774 = vcombine.high %v3770, 0
        %v3775 = vcombine.high %v2775, %v1567
        %v3777 = vunpack.c.l.s4 1983009808
        %v3778 = vunpack.c.0.s8 %v3777
        %v3779 = vlaneseq
        %v3780 = vshrl.u32 %v3779, 7
        %v3781 = vsub.s32 %v3778, %v3780
        %v3782 = vrot.slane %v2775, %v3781
        %v3784 = vunpack.c.l.s4 1983009808
        %v3785 = vunpack.c.0.s8 %v3784
        %v3786 = vlaneseq
        %v3787 = vshrl.u32 %v3786, 7
        %v3788 = vsub.s32 %v3785, %v3787
        %v3789 = vrot.slane %v3775, %v3788
        %v3790 = vcombine.high %v2783, %v1567
        %v3792 = vunpack.c.l.s4 1983009808
        %v3793 = vunpack.c.0.s8 %v3792
        %v3794 = vlaneseq
        %v3795 = vshrl.u32 %v3794, 7
        %v3796 = vsub.s32 %v3793, %v3795
        %v3797 = vrot.slane %v2783, %v3796
        %v3799 = vunpack.c.l.s4 1983009808
        %v3800 = vunpack.c.0.s8 %v3799
        %v3801 = vlaneseq
        %v3802 = vshrl.u32 %v3801, 7
        %v3803 = vsub.s32 %v3800, %v3802
        %v3804 = vrot.slane %v3790, %v3803
        %v3805 = vcombine.low %v3782, %v3797
        %v3806 = vcombine.high %v3782, %v3797
        %v3808 = vunpack.c.l.s4 1934713408
        %v3809 = vunpack.c.0.s8 %v3808
        %v3810 = vlaneseq
        %v3811 = vshrl.u32 %v3810, 7
        %v3812 = vsub.s32 %v3809, %v3811
        %v3813 = vrot.slane %v3805, %v3812
        %v3815 = vunpack.c.l.s4 1934713408
        %v3816 = vunpack.c.0.s8 %v3815
        %v3817 = vlaneseq
        %v3818 = vshrl.u32 %v3817, 7
        %v3819 = vsub.s32 %v3816, %v3818
        %v3820 = vrot.slane %v3806, %v3819
        %v3821 = vcombine.low %v3789, %v3804
        %v3822 = vcombine.high %v3789, %v3804
        %v3824 = vunpack.c.l.s4 1934713408
        %v3825 = vunpack.c.0.s8 %v3824
        %v3826 = vlaneseq
        %v3827 = vshrl.u32 %v3826, 7
        %v3828 = vsub.s32 %v3825, %v3827
        %v3829 = vrot.slane %v3821, %v3828
        %v3831 = vunpack.c.l.s4 1934713408
        %v3832 = vunpack.c.0.s8 %v3831
        %v3833 = vlaneseq
        %v3834 = vshrl.u32 %v3833, 7
        %v3835 = vsub.s32 %v3832, %v3834
        %v3836 = vrot.slane %v3822, %v3835
        %v3837 = vcombine.high %v3813, 0
        %v3838 = vcombine.high %v3820, 0
        %v3839 = vcombine.high %v3829, 0
        %v3840 = vcombine.high %v3836, 0
        %v3841 = vcombine.low %v2823, %v2830
        %v3843 = vunpack.c.l.s4 1983009808
        %v3844 = vunpack.c.0.s8 %v3843
        %v3845 = vlaneseq
        %v3846 = vshrl.u32 %v3845, 7
        %v3847 = vsub.s32 %v3844, %v3846
        %v3848 = vrot.slane %v3841, %v3847
        %v3849 = vcombine.low %v2847, %v2848
        %v3851 = vunpack.c.l.s4 1983009808
        %v3852 = vunpack.c.0.s8 %v3851
        %v3853 = vlaneseq
        %v3854 = vshrl.u32 %v3853, 7
        %v3855 = vsub.s32 %v3852, %v3854
        %v3856 = vrot.slane %v3849, %v3855
        %v3857 = vcombine.low %v2839, %v2846
        %v3859 = vunpack.c.l.s4 1983009808
        %v3860 = vunpack.c.0.s8 %v3859
        %v3861 = vlaneseq
        %v3862 = vshrl.u32 %v3861, 7
        %v3863 = vsub.s32 %v3860, %v3862
        %v3864 = vrot.slane %v3857, %v3863
        %v3865 = vcombine.low %v2849, %v2850
        %v3867 = vunpack.c.l.s4 1983009808
        %v3868 = vunpack.c.0.s8 %v3867
        %v3869 = vlaneseq
        %v3870 = vshrl.u32 %v3869, 7
        %v3871 = vsub.s32 %v3868, %v3870
        %v3872 = vrot.slane %v3865, %v3871
        %v3873 = vcombine.low %v3848, %v3856
        %v3875 = vunpack.c.l.s4 1934713408
        %v3876 = vunpack.c.0.s8 %v3875
        %v3877 = vlaneseq
        %v3878 = vshrl.u32 %v3877, 7
        %v3879 = vsub.s32 %v3876, %v3878
        %v3880 = vrot.slane %v3873, %v3879
        %v3881 = vcombine.low %v3864, %v3872
        %v3883 = vunpack.c.l.s4 1934713408
        %v3884 = vunpack.c.0.s8 %v3883
        %v3885 = vlaneseq
        %v3886 = vshrl.u32 %v3885, 7
        %v3887 = vsub.s32 %v3884, %v3886
        %v3888 = vrot.slane %v3881, %v3887
        %v3889 = vcombine.low %v3880, %v3888
        %v3890 = vcombine.high %v3880, %v3888
        %v3891 = vcombine.low %v2889, %v2896
        %v3893 = vunpack.c.l.s4 1983009808
        %v3894 = vunpack.c.0.s8 %v3893
        %v3895 = vlaneseq
        %v3896 = vshrl.u32 %v3895, 7
        %v3897 = vsub.s32 %v3894, %v3896
        %v3898 = vrot.slane %v3891, %v3897
        %v3899 = vcombine.low %v2913, %v2914
        %v3901 = vunpack.c.l.s4 1983009808
        %v3902 = vunpack.c.0.s8 %v3901
        %v3903 = vlaneseq
        %v3904 = vshrl.u32 %v3903, 7
        %v3905 = vsub.s32 %v3902, %v3904
        %v3906 = vrot.slane %v3899, %v3905
        %v3907 = vcombine.low %v2905, %v2912
        %v3909 = vunpack.c.l.s4 1983009808
        %v3910 = vunpack.c.0.s8 %v3909
        %v3911 = vlaneseq
        %v3912 = vshrl.u32 %v3911, 7
        %v3913 = vsub.s32 %v3910, %v3912
        %v3914 = vrot.slane %v3907, %v3913
        %v3915 = vcombine.low %v2915, %v2916
        %v3917 = vunpack.c.l.s4 1983009808
        %v3918 = vunpack.c.0.s8 %v3917
        %v3919 = vlaneseq
        %v3920 = vshrl.u32 %v3919, 7
        %v3921 = vsub.s32 %v3918, %v3920
        %v3922 = vrot.slane %v3915, %v3921
        %v3923 = vcombine.low %v3898, %v3906
        %v3925 = vunpack.c.l.s4 1934713408
        %v3926 = vunpack.c.0.s8 %v3925
        %v3927 = vlaneseq
        %v3928 = vshrl.u32 %v3927, 7
        %v3929 = vsub.s32 %v3926, %v3928
        %v3930 = vrot.slane %v3923, %v3929
        %v3931 = vcombine.low %v3914, %v3922
        %v3933 = vunpack.c.l.s4 1934713408
        %v3934 = vunpack.c.0.s8 %v3933
        %v3935 = vlaneseq
        %v3936 = vshrl.u32 %v3935, 7
        %v3937 = vsub.s32 %v3934, %v3936
        %v3938 = vrot.slane %v3931, %v3937
        %v3939 = vcombine.low %v3930, %v3938
        %v3940 = vcombine.high %v3930, %v3938
        %v3941 = vcombine.low %v2955, %v2962
        %v3943 = vunpack.c.l.s4 1983009808
        %v3944 = vunpack.c.0.s8 %v3943
        %v3945 = vlaneseq
        %v3946 = vshrl.u32 %v3945, 7
        %v3947 = vsub.s32 %v3944, %v3946
        %v3948 = vrot.slane %v3941, %v3947
        %v3949 = vcombine.low %v2979, %v2980
        %v3951 = vunpack.c.l.s4 1983009808
        %v3952 = vunpack.c.0.s8 %v3951
        %v3953 = vlaneseq
        %v3954 = vshrl.u32 %v3953, 7
        %v3955 = vsub.s32 %v3952, %v3954
        %v3956 = vrot.slane %v3949, %v3955
        %v3957 = vcombine.low %v2971, %v2978
        %v3959 = vunpack.c.l.s4 1983009808
        %v3960 = vunpack.c.0.s8 %v3959
        %v3961 = vlaneseq
        %v3962 = vshrl.u32 %v3961, 7
        %v3963 = vsub.s32 %v3960, %v3962
        %v3964 = vrot.slane %v3957, %v3963
        %v3965 = vcombine.low %v2981, %v2982
        %v3967 = vunpack.c.l.s4 1983009808
        %v3968 = vunpack.c.0.s8 %v3967
        %v3969 = vlaneseq
        %v3970 = vshrl.u32 %v3969, 7
        %v3971 = vsub.s32 %v3968, %v3970
        %v3972 = vrot.slane %v3965, %v3971
        %v3973 = vcombine.low %v3948, %v3956
        %v3975 = vunpack.c.l.s4 1934713408
        %v3976 = vunpack.c.0.s8 %v3975
        %v3977 = vlaneseq
        %v3978 = vshrl.u32 %v3977, 7
        %v3979 = vsub.s32 %v3976, %v3978
        %v3980 = vrot.slane %v3973, %v3979
        %v3981 = vcombine.low %v3964, %v3972
        %v3983 = vunpack.c.l.s4 1934713408
        %v3984 = vunpack.c.0.s8 %v3983
        %v3985 = vlaneseq
        %v3986 = vshrl.u32 %v3985, 7
        %v3987 = vsub.s32 %v3984, %v3986
        %v3988 = vrot.slane %v3981, %v3987
        %v3989 = vcombine.low %v3980, %v3988
        %v3990 = vcombine.high %v3980, %v3988
        %v3991 = vcombine.low %v3021, %v3028
        %v3993 = vunpack.c.l.s4 1983009808
        %v3994 = vunpack.c.0.s8 %v3993
        %v3995 = vlaneseq
        %v3996 = vshrl.u32 %v3995, 7
        %v3997 = vsub.s32 %v3994, %v3996
        %v3998 = vrot.slane %v3991, %v3997
        %v3999 = vcombine.low %v3045, %v3046
        %v4001 = vunpack.c.l.s4 1983009808
        %v4002 = vunpack.c.0.s8 %v4001
        %v4003 = vlaneseq
        %v4004 = vshrl.u32 %v4003, 7
        %v4005 = vsub.s32 %v4002, %v4004
        %v4006 = vrot.slane %v3999, %v4005
        %v4007 = vcombine.low %v3037, %v3044
        %v4009 = vunpack.c.l.s4 1983009808
        %v4010 = vunpack.c.0.s8 %v4009
        %v4011 = vlaneseq
        %v4012 = vshrl.u32 %v4011, 7
        %v4013 = vsub.s32 %v4010, %v4012
        %v4014 = vrot.slane %v4007, %v4013
        %v4015 = vcombine.low %v3047, %v3048
        %v4017 = vunpack.c.l.s4 1983009808
        %v4018 = vunpack.c.0.s8 %v4017
        %v4019 = vlaneseq
        %v4020 = vshrl.u32 %v4019, 7
        %v4021 = vsub.s32 %v4018, %v4020
        %v4022 = vrot.slane %v4015, %v4021
        %v4023 = vcombine.low %v3998, %v4006
        %v4025 = vunpack.c.l.s4 1934713408
        %v4026 = vunpack.c.0.s8 %v4025
        %v4027 = vlaneseq
        %v4028 = vshrl.u32 %v4027, 7
        %v4029 = vsub.s32 %v4026, %v4028
        %v4030 = vrot.slane %v4023, %v4029
        %v4031 = vcombine.low %v4014, %v4022
        %v4033 = vunpack.c.l.s4 1934713408
        %v4034 = vunpack.c.0.s8 %v4033
        %v4035 = vlaneseq
        %v4036 = vshrl.u32 %v4035, 7
        %v4037 = vsub.s32 %v4034, %v4036
        %v4038 = vrot.slane %v4031, %v4037
        %v4039 = vcombine.low %v4030, %v4038
        %v4040 = vcombine.high %v4030, %v4038
        %v4041 = vcombine.low %v3087, %v3094
        %v4043 = vunpack.c.l.s4 1983009808
        %v4044 = vunpack.c.0.s8 %v4043
        %v4045 = vlaneseq
        %v4046 = vshrl.u32 %v4045, 7
        %v4047 = vsub.s32 %v4044, %v4046
        %v4048 = vrot.slane %v4041, %v4047
        %v4049 = vcombine.low %v3111, %v3112
        %v4051 = vunpack.c.l.s4 1983009808
        %v4052 = vunpack.c.0.s8 %v4051
        %v4053 = vlaneseq
        %v4054 = vshrl.u32 %v4053, 7
        %v4055 = vsub.s32 %v4052, %v4054
        %v4056 = vrot.slane %v4049, %v4055
        %v4057 = vcombine.low %v3103, %v3110
        %v4059 = vunpack.c.l.s4 1983009808
        %v4060 = vunpack.c.0.s8 %v4059
        %v4061 = vlaneseq
        %v4062 = vshrl.u32 %v4061, 7
        %v4063 = vsub.s32 %v4060, %v4062
        %v4064 = vrot.slane %v4057, %v4063
        %v4065 = vcombine.low %v3113, %v3114
        %v4067 = vunpack.c.l.s4 1983009808
        %v4068 = vunpack.c.0.s8 %v4067
        %v4069 = vlaneseq
        %v4070 = vshrl.u32 %v4069, 7
        %v4071 = vsub.s32 %v4068, %v4070
        %v4072 = vrot.slane %v4065, %v4071
        %v4073 = vcombine.low %v4048, %v4056
        %v4075 = vunpack.c.l.s4 1934713408
        %v4076 = vunpack.c.0.s8 %v4075
        %v4077 = vlaneseq
        %v4078 = vshrl.u32 %v4077, 7
        %v4079 = vsub.s32 %v4076, %v4078
        %v4080 = vrot.slane %v4073, %v4079
        %v4081 = vcombine.low %v4064, %v4072
        %v4083 = vunpack.c.l.s4 1934713408
        %v4084 = vunpack.c.0.s8 %v4083
        %v4085 = vlaneseq
        %v4086 = vshrl.u32 %v4085, 7
        %v4087 = vsub.s32 %v4084, %v4086
        %v4088 = vrot.slane %v4081, %v4087
        %v4089 = vcombine.low %v4080, %v4088
        %v4090 = vcombine.high %v4080, %v4088
        %v4091 = vcombine.low %v3153, %v3160
        %v4093 = vunpack.c.l.s4 1983009808
        %v4094 = vunpack.c.0.s8 %v4093
        %v4095 = vlaneseq
        %v4096 = vshrl.u32 %v4095, 7
        %v4097 = vsub.s32 %v4094, %v4096
        %v4098 = vrot.slane %v4091, %v4097
        %v4099 = vcombine.low %v3177, %v3178
        %v4101 = vunpack.c.l.s4 1983009808
        %v4102 = vunpack.c.0.s8 %v4101
        %v4103 = vlaneseq
        %v4104 = vshrl.u32 %v4103, 7
        %v4105 = vsub.s32 %v4102, %v4104
        %v4106 = vrot.slane %v4099, %v4105
        %v4107 = vcombine.low %v3169, %v3176
        %v4109 = vunpack.c.l.s4 1983009808
        %v4110 = vunpack.c.0.s8 %v4109
        %v4111 = vlaneseq
        %v4112 = vshrl.u32 %v4111, 7
        %v4113 = vsub.s32 %v4110, %v4112
        %v4114 = vrot.slane %v4107, %v4113
        %v4115 = vcombine.low %v3179, %v3180
        %v4117 = vunpack.c.l.s4 1983009808
        %v4118 = vunpack.c.0.s8 %v4117
        %v4119 = vlaneseq
        %v4120 = vshrl.u32 %v4119, 7
        %v4121 = vsub.s32 %v4118, %v4120
        %v4122 = vrot.slane %v4115, %v4121
        %v4123 = vcombine.low %v4098, %v4106
        %v4125 = vunpack.c.l.s4 1934713408
        %v4126 = vunpack.c.0.s8 %v4125
        %v4127 = vlaneseq
        %v4128 = vshrl.u32 %v4127, 7
        %v4129 = vsub.s32 %v4126, %v4128
        %v4130 = vrot.slane %v4123, %v4129
        %v4131 = vcombine.low %v4114, %v4122
        %v4133 = vunpack.c.l.s4 1934713408
        %v4134 = vunpack.c.0.s8 %v4133
        %v4135 = vlaneseq
        %v4136 = vshrl.u32 %v4135, 7
        %v4137 = vsub.s32 %v4134, %v4136
        %v4138 = vrot.slane %v4131, %v4137
        %v4139 = vcombine.low %v4130, %v4138
        %v4140 = vcombine.high %v4130, %v4138
        %v4141 = vcombine.low %v3219, %v3226
        %v4143 = vunpack.c.l.s4 1983009808
        %v4144 = vunpack.c.0.s8 %v4143
        %v4145 = vlaneseq
        %v4146 = vshrl.u32 %v4145, 7
        %v4147 = vsub.s32 %v4144, %v4146
        %v4148 = vrot.slane %v4141, %v4147
        %v4149 = vcombine.low %v3243, %v3244
        %v4151 = vunpack.c.l.s4 1983009808
        %v4152 = vunpack.c.0.s8 %v4151
        %v4153 = vlaneseq
        %v4154 = vshrl.u32 %v4153, 7
        %v4155 = vsub.s32 %v4152, %v4154
        %v4156 = vrot.slane %v4149, %v4155
        %v4157 = vcombine.low %v3235, %v3242
        %v4159 = vunpack.c.l.s4 1983009808
        %v4160 = vunpack.c.0.s8 %v4159
        %v4161 = vlaneseq
        %v4162 = vshrl.u32 %v4161, 7
        %v4163 = vsub.s32 %v4160, %v4162
        %v4164 = vrot.slane %v4157, %v4163
        %v4165 = vcombine.low %v3245, %v3246
        %v4167 = vunpack.c.l.s4 1983009808
        %v4168 = vunpack.c.0.s8 %v4167
        %v4169 = vlaneseq
        %v4170 = vshrl.u32 %v4169, 7
        %v4171 = vsub.s32 %v4168, %v4170
        %v4172 = vrot.slane %v4165, %v4171
        %v4173 = vcombine.low %v4148, %v4156
        %v4175 = vunpack.c.l.s4 1934713408
        %v4176 = vunpack.c.0.s8 %v4175
        %v4177 = vlaneseq
        %v4178 = vshrl.u32 %v4177, 7
        %v4179 = vsub.s32 %v4176, %v4178
        %v4180 = vrot.slane %v4173, %v4179
        %v4181 = vcombine.low %v4164, %v4172
        %v4183 = vunpack.c.l.s4 1934713408
        %v4184 = vunpack.c.0.s8 %v4183
        %v4185 = vlaneseq
        %v4186 = vshrl.u32 %v4185, 7
        %v4187 = vsub.s32 %v4184, %v4186
        %v4188 = vrot.slane %v4181, %v4187
        %v4189 = vcombine.low %v4180, %v4188
        %v4190 = vcombine.high %v4180, %v4188
        %v4191 = vcombine.low %v3285, %v3292
        %v4193 = vunpack.c.l.s4 1983009808
        %v4194 = vunpack.c.0.s8 %v4193
        %v4195 = vlaneseq
        %v4196 = vshrl.u32 %v4195, 7
        %v4197 = vsub.s32 %v4194, %v4196
        %v4198 = vrot.slane %v4191, %v4197
        %v4199 = vcombine.low %v3309, %v3310
        %v4201 = vunpack.c.l.s4 1983009808
        %v4202 = vunpack.c.0.s8 %v4201
        %v4203 = vlaneseq
        %v4204 = vshrl.u32 %v4203, 7
        %v4205 = vsub.s32 %v4202, %v4204
        %v4206 = vrot.slane %v4199, %v4205
        %v4207 = vcombine.low %v3301, %v3308
        %v4209 = vunpack.c.l.s4 1983009808
        %v4210 = vunpack.c.0.s8 %v4209
        %v4211 = vlaneseq
        %v4212 = vshrl.u32 %v4211, 7
        %v4213 = vsub.s32 %v4210, %v4212
        %v4214 = vrot.slane %v4207, %v4213
        %v4215 = vcombine.low %v3311, %v3312
        %v4217 = vunpack.c.l.s4 1983009808
        %v4218 = vunpack.c.0.s8 %v4217
        %v4219 = vlaneseq
        %v4220 = vshrl.u32 %v4219, 7
        %v4221 = vsub.s32 %v4218, %v4220
        %v4222 = vrot.slane %v4215, %v4221
        %v4223 = vcombine.low %v4198, %v4206
        %v4225 = vunpack.c.l.s4 1934713408
        %v4226 = vunpack.c.0.s8 %v4225
        %v4227 = vlaneseq
        %v4228 = vshrl.u32 %v4227, 7
        %v4229 = vsub.s32 %v4226, %v4228
        %v4230 = vrot.slane %v4223, %v4229
        %v4231 = vcombine.low %v4214, %v4222
        %v4233 = vunpack.c.l.s4 1934713408
        %v4234 = vunpack.c.0.s8 %v4233
        %v4235 = vlaneseq
        %v4236 = vshrl.u32 %v4235, 7
        %v4237 = vsub.s32 %v4234, %v4236
        %v4238 = vrot.slane %v4231, %v4237
        %v4239 = vcombine.low %v4230, %v4238
        %v4240 = vcombine.high %v4230, %v4238
        %v4241 = vcombine.low %v3351, %v3358
        %v4243 = vunpack.c.l.s4 1983009808
        %v4244 = vunpack.c.0.s8 %v4243
        %v4245 = vlaneseq
        %v4246 = vshrl.u32 %v4245, 7
        %v4247 = vsub.s32 %v4244, %v4246
        %v4248 = vrot.slane %v4241, %v4247
        %v4249 = vcombine.low %v3375, %v3376
        %v4251 = vunpack.c.l.s4 1983009808
        %v4252 = vunpack.c.0.s8 %v4251
        %v4253 = vlaneseq
        %v4254 = vshrl.u32 %v4253, 7
        %v4255 = vsub.s32 %v4252, %v4254
        %v4256 = vrot.slane %v4249, %v4255
        %v4257 = vcombine.low %v3367, %v3374
        %v4259 = vunpack.c.l.s4 1983009808
        %v4260 = vunpack.c.0.s8 %v4259
        %v4261 = vlaneseq
        %v4262 = vshrl.u32 %v4261, 7
        %v4263 = vsub.s32 %v4260, %v4262
        %v4264 = vrot.slane %v4257, %v4263
        %v4265 = vcombine.low %v3377, %v3378
        %v4267 = vunpack.c.l.s4 1983009808
        %v4268 = vunpack.c.0.s8 %v4267
        %v4269 = vlaneseq
        %v4270 = vshrl.u32 %v4269, 7
        %v4271 = vsub.s32 %v4268, %v4270
        %v4272 = vrot.slane %v4265, %v4271
        %v4273 = vcombine.low %v4248, %v4256
        %v4275 = vunpack.c.l.s4 1934713408
        %v4276 = vunpack.c.0.s8 %v4275
        %v4277 = vlaneseq
        %v4278 = vshrl.u32 %v4277, 7
        %v4279 = vsub.s32 %v4276, %v4278
        %v4280 = vrot.slane %v4273, %v4279
        %v4281 = vcombine.low %v4264, %v4272
        %v4283 = vunpack.c.l.s4 1934713408
        %v4284 = vunpack.c.0.s8 %v4283
        %v4285 = vlaneseq
        %v4286 = vshrl.u32 %v4285, 7
        %v4287 = vsub.s32 %v4284, %v4286
        %v4288 = vrot.slane %v4281, %v4287
        %v4289 = vcombine.low %v4280, %v4288
        %v4290 = vcombine.high %v4280, %v4288
        %v4291 = vcombine.low %v3417, %v3424
        %v4293 = vunpack.c.l.s4 1983009808
        %v4294 = vunpack.c.0.s8 %v4293
        %v4295 = vlaneseq
        %v4296 = vshrl.u32 %v4295, 7
        %v4297 = vsub.s32 %v4294, %v4296
        %v4298 = vrot.slane %v4291, %v4297
        %v4299 = vcombine.low %v3441, %v3442
        %v4301 = vunpack.c.l.s4 1983009808
        %v4302 = vunpack.c.0.s8 %v4301
        %v4303 = vlaneseq
        %v4304 = vshrl.u32 %v4303, 7
        %v4305 = vsub.s32 %v4302, %v4304
        %v4306 = vrot.slane %v4299, %v4305
        %v4307 = vcombine.low %v3433, %v3440
        %v4309 = vunpack.c.l.s4 1983009808
        %v4310 = vunpack.c.0.s8 %v4309
        %v4311 = vlaneseq
        %v4312 = vshrl.u32 %v4311, 7
        %v4313 = vsub.s32 %v4310, %v4312
        %v4314 = vrot.slane %v4307, %v4313
        %v4315 = vcombine.low %v3443, %v3444
        %v4317 = vunpack.c.l.s4 1983009808
        %v4318 = vunpack.c.0.s8 %v4317
        %v4319 = vlaneseq
        %v4320 = vshrl.u32 %v4319, 7
        %v4321 = vsub.s32 %v4318, %v4320
        %v4322 = vrot.slane %v4315, %v4321
        %v4323 = vcombine.low %v4298, %v4306
        %v4325 = vunpack.c.l.s4 1934713408
        %v4326 = vunpack.c.0.s8 %v4325
        %v4327 = vlaneseq
        %v4328 = vshrl.u32 %v4327, 7
        %v4329 = vsub.s32 %v4326, %v4328
        %v4330 = vrot.slane %v4323, %v4329
        %v4331 = vcombine.low %v4314, %v4322
        %v4333 = vunpack.c.l.s4 1934713408
        %v4334 = vunpack.c.0.s8 %v4333
        %v4335 = vlaneseq
        %v4336 = vshrl.u32 %v4335, 7
        %v4337 = vsub.s32 %v4334, %v4336
        %v4338 = vrot.slane %v4331, %v4337
        %v4339 = vcombine.low %v4330, %v4338
        %v4340 = vcombine.high %v4330, %v4338
        %v4341 = vcombine.low %v3483, %v3490
        %v4343 = vunpack.c.l.s4 1983009808
        %v4344 = vunpack.c.0.s8 %v4343
        %v4345 = vlaneseq
        %v4346 = vshrl.u32 %v4345, 7
        %v4347 = vsub.s32 %v4344, %v4346
        %v4348 = vrot.slane %v4341, %v4347
        %v4349 = vcombine.low %v3507, %v3508
        %v4351 = vunpack.c.l.s4 1983009808
        %v4352 = vunpack.c.0.s8 %v4351
        %v4353 = vlaneseq
        %v4354 = vshrl.u32 %v4353, 7
        %v4355 = vsub.s32 %v4352, %v4354
        %v4356 = vrot.slane %v4349, %v4355
        %v4357 = vcombine.low %v3499, %v3506
        %v4359 = vunpack.c.l.s4 1983009808
        %v4360 = vunpack.c.0.s8 %v4359
        %v4361 = vlaneseq
        %v4362 = vshrl.u32 %v4361, 7
        %v4363 = vsub.s32 %v4360, %v4362
        %v4364 = vrot.slane %v4357, %v4363
        %v4365 = vcombine.low %v3509, %v3510
        %v4367 = vunpack.c.l.s4 1983009808
        %v4368 = vunpack.c.0.s8 %v4367
        %v4369 = vlaneseq
        %v4370 = vshrl.u32 %v4369, 7
        %v4371 = vsub.s32 %v4368, %v4370
        %v4372 = vrot.slane %v4365, %v4371
        %v4373 = vcombine.low %v4348, %v4356
        %v4375 = vunpack.c.l.s4 1934713408
        %v4376 = vunpack.c.0.s8 %v4375
        %v4377 = vlaneseq
        %v4378 = vshrl.u32 %v4377, 7
        %v4379 = vsub.s32 %v4376, %v4378
        %v4380 = vrot.slane %v4373, %v4379
        %v4381 = vcombine.low %v4364, %v4372
        %v4383 = vunpack.c.l.s4 1934713408
        %v4384 = vunpack.c.0.s8 %v4383
        %v4385 = vlaneseq
        %v4386 = vshrl.u32 %v4385, 7
        %v4387 = vsub.s32 %v4384, %v4386
        %v4388 = vrot.slane %v4381, %v4387
        %v4389 = vcombine.low %v4380, %v4388
        %v4390 = vcombine.high %v4380, %v4388
        %v4391 = vcombine.low %v3549, %v3556
        %v4393 = vunpack.c.l.s4 1983009808
        %v4394 = vunpack.c.0.s8 %v4393
        %v4395 = vlaneseq
        %v4396 = vshrl.u32 %v4395, 7
        %v4397 = vsub.s32 %v4394, %v4396
        %v4398 = vrot.slane %v4391, %v4397
        %v4399 = vcombine.low %v3573, %v3574
        %v4401 = vunpack.c.l.s4 1983009808
        %v4402 = vunpack.c.0.s8 %v4401
        %v4403 = vlaneseq
        %v4404 = vshrl.u32 %v4403, 7
        %v4405 = vsub.s32 %v4402, %v4404
        %v4406 = vrot.slane %v4399, %v4405
        %v4407 = vcombine.low %v3565, %v3572
        %v4409 = vunpack.c.l.s4 1983009808
        %v4410 = vunpack.c.0.s8 %v4409
        %v4411 = vlaneseq
        %v4412 = vshrl.u32 %v4411, 7
        %v4413 = vsub.s32 %v4410, %v4412
        %v4414 = vrot.slane %v4407, %v4413
        %v4415 = vcombine.low %v3575, %v3576
        %v4417 = vunpack.c.l.s4 1983009808
        %v4418 = vunpack.c.0.s8 %v4417
        %v4419 = vlaneseq
        %v4420 = vshrl.u32 %v4419, 7
        %v4421 = vsub.s32 %v4418, %v4420
        %v4422 = vrot.slane %v4415, %v4421
        %v4423 = vcombine.low %v4398, %v4406
        %v4425 = vunpack.c.l.s4 1934713408
        %v4426 = vunpack.c.0.s8 %v4425
        %v4427 = vlaneseq
        %v4428 = vshrl.u32 %v4427, 7
        %v4429 = vsub.s32 %v4426, %v4428
        %v4430 = vrot.slane %v4423, %v4429
        %v4431 = vcombine.low %v4414, %v4422
        %v4433 = vunpack.c.l.s4 1934713408
        %v4434 = vunpack.c.0.s8 %v4433
        %v4435 = vlaneseq
        %v4436 = vshrl.u32 %v4435, 7
        %v4437 = vsub.s32 %v4434, %v4436
        %v4438 = vrot.slane %v4431, %v4437
        %v4439 = vcombine.low %v4430, %v4438
        %v4440 = vcombine.high %v4430, %v4438
        %v4441 = vcombine.low %v3615, %v3622
        %v4443 = vunpack.c.l.s4 1983009808
        %v4444 = vunpack.c.0.s8 %v4443
        %v4445 = vlaneseq
        %v4446 = vshrl.u32 %v4445, 7
        %v4447 = vsub.s32 %v4444, %v4446
        %v4448 = vrot.slane %v4441, %v4447
        %v4449 = vcombine.low %v3639, %v3640
        %v4451 = vunpack.c.l.s4 1983009808
        %v4452 = vunpack.c.0.s8 %v4451
        %v4453 = vlaneseq
        %v4454 = vshrl.u32 %v4453, 7
        %v4455 = vsub.s32 %v4452, %v4454
        %v4456 = vrot.slane %v4449, %v4455
        %v4457 = vcombine.low %v3631, %v3638
        %v4459 = vunpack.c.l.s4 1983009808
        %v4460 = vunpack.c.0.s8 %v4459
        %v4461 = vlaneseq
        %v4462 = vshrl.u32 %v4461, 7
        %v4463 = vsub.s32 %v4460, %v4462
        %v4464 = vrot.slane %v4457, %v4463
        %v4465 = vcombine.low %v3641, %v3642
        %v4467 = vunpack.c.l.s4 1983009808
        %v4468 = vunpack.c.0.s8 %v4467
        %v4469 = vlaneseq
        %v4470 = vshrl.u32 %v4469, 7
        %v4471 = vsub.s32 %v4468, %v4470
        %v4472 = vrot.slane %v4465, %v4471
        %v4473 = vcombine.low %v4448, %v4456
        %v4475 = vunpack.c.l.s4 1934713408
        %v4476 = vunpack.c.0.s8 %v4475
        %v4477 = vlaneseq
        %v4478 = vshrl.u32 %v4477, 7
        %v4479 = vsub.s32 %v4476, %v4478
        %v4480 = vrot.slane %v4473, %v4479
        %v4481 = vcombine.low %v4464, %v4472
        %v4483 = vunpack.c.l.s4 1934713408
        %v4484 = vunpack.c.0.s8 %v4483
        %v4485 = vlaneseq
        %v4486 = vshrl.u32 %v4485, 7
        %v4487 = vsub.s32 %v4484, %v4486
        %v4488 = vrot.slane %v4481, %v4487
        %v4489 = vcombine.low %v4480, %v4488
        %v4490 = vcombine.high %v4480, %v4488
        %v4491 = vcombine.low %v3681, %v3688
        %v4493 = vunpack.c.l.s4 1983009808
        %v4494 = vunpack.c.0.s8 %v4493
        %v4495 = vlaneseq
        %v4496 = vshrl.u32 %v4495, 7
        %v4497 = vsub.s32 %v4494, %v4496
        %v4498 = vrot.slane %v4491, %v4497
        %v4499 = vcombine.low %v3705, %v3706
        %v4501 = vunpack.c.l.s4 1983009808
        %v4502 = vunpack.c.0.s8 %v4501
        %v4503 = vlaneseq
        %v4504 = vshrl.u32 %v4503, 7
        %v4505 = vsub.s32 %v4502, %v4504
        %v4506 = vrot.slane %v4499, %v4505
        %v4507 = vcombine.low %v3697, %v3704
        %v4509 = vunpack.c.l.s4 1983009808
        %v4510 = vunpack.c.0.s8 %v4509
        %v4511 = vlaneseq
        %v4512 = vshrl.u32 %v4511, 7
        %v4513 = vsub.s32 %v4510, %v4512
        %v4514 = vrot.slane %v4507, %v4513
        %v4515 = vcombine.low %v3707, %v3708
        %v4517 = vunpack.c.l.s4 1983009808
        %v4518 = vunpack.c.0.s8 %v4517
        %v4519 = vlaneseq
        %v4520 = vshrl.u32 %v4519, 7
        %v4521 = vsub.s32 %v4518, %v4520
        %v4522 = vrot.slane %v4515, %v4521
        %v4523 = vcombine.low %v4498, %v4506
        %v4525 = vunpack.c.l.s4 1934713408
        %v4526 = vunpack.c.0.s8 %v4525
        %v4527 = vlaneseq
        %v4528 = vshrl.u32 %v4527, 7
        %v4529 = vsub.s32 %v4526, %v4528
        %v4530 = vrot.slane %v4523, %v4529
        %v4531 = vcombine.low %v4514, %v4522
        %v4533 = vunpack.c.l.s4 1934713408
        %v4534 = vunpack.c.0.s8 %v4533
        %v4535 = vlaneseq
        %v4536 = vshrl.u32 %v4535, 7
        %v4537 = vsub.s32 %v4534, %v4536
        %v4538 = vrot.slane %v4531, %v4537
        %v4539 = vcombine.low %v4530, %v4538
        %v4540 = vcombine.high %v4530, %v4538
        %v4541 = vcombine.low %v3747, %v3754
        %v4543 = vunpack.c.l.s4 1983009808
        %v4544 = vunpack.c.0.s8 %v4543
        %v4545 = vlaneseq
        %v4546 = vshrl.u32 %v4545, 7
        %v4547 = vsub.s32 %v4544, %v4546
        %v4548 = vrot.slane %v4541, %v4547
        %v4549 = vcombine.low %v3771, %v3772
        %v4551 = vunpack.c.l.s4 1983009808
        %v4552 = vunpack.c.0.s8 %v4551
        %v4553 = vlaneseq
        %v4554 = vshrl.u32 %v4553, 7
        %v4555 = vsub.s32 %v4552, %v4554
        %v4556 = vrot.slane %v4549, %v4555
        %v4557 = vcombine.low %v3763, %v3770
        %v4559 = vunpack.c.l.s4 1983009808
        %v4560 = vunpack.c.0.s8 %v4559
        %v4561 = vlaneseq
        %v4562 = vshrl.u32 %v4561, 7
        %v4563 = vsub.s32 %v4560, %v4562
        %v4564 = vrot.slane %v4557, %v4563
        %v4565 = vcombine.low %v3773, %v3774
        %v4567 = vunpack.c.l.s4 1983009808
        %v4568 = vunpack.c.0.s8 %v4567
        %v4569 = vlaneseq
        %v4570 = vshrl.u32 %v4569, 7
        %v4571 = vsub.s32 %v4568, %v4570
        %v4572 = vrot.slane %v4565, %v4571
        %v4573 = vcombine.low %v4548, %v4556
        %v4575 = vunpack.c.l.s4 1934713408
        %v4576 = vunpack.c.0.s8 %v4575
        %v4577 = vlaneseq
        %v4578 = vshrl.u32 %v4577, 7
        %v4579 = vsub.s32 %v4576, %v4578
        %v4580 = vrot.slane %v4573, %v4579
        %v4581 = vcombine.low %v4564, %v4572
        %v4583 = vunpack.c.l.s4 1934713408
        %v4584 = vunpack.c.0.s8 %v4583
        %v4585 = vlaneseq
        %v4586 = vshrl.u32 %v4585, 7
        %v4587 = vsub.s32 %v4584, %v4586
        %v4588 = vrot.slane %v4581, %v4587
        %v4589 = vcombine.low %v4580, %v4588
        %v4590 = vcombine.high %v4580, %v4588
        %v4591 = vcombine.low %v3813, %v3820
        %v4593 = vunpack.c.l.s4 1983009808
        %v4594 = vunpack.c.0.s8 %v4593
        %v4595 = vlaneseq
        %v4596 = vshrl.u32 %v4595, 7
        %v4597 = vsub.s32 %v4594, %v4596
        %v4598 = vrot.slane %v4591, %v4597
        %v4599 = vcombine.low %v3837, %v3838
        %v4601 = vunpack.c.l.s4 1983009808
        %v4602 = vunpack.c.0.s8 %v4601
        %v4603 = vlaneseq
        %v4604 = vshrl.u32 %v4603, 7
        %v4605 = vsub.s32 %v4602, %v4604
        %v4606 = vrot.slane %v4599, %v4605
        %v4607 = vcombine.low %v3829, %v3836
        %v4609 = vunpack.c.l.s4 1983009808
        %v4610 = vunpack.c.0.s8 %v4609
        %v4611 = vlaneseq
        %v4612 = vshrl.u32 %v4611, 7
        %v4613 = vsub.s32 %v4610, %v4612
        %v4614 = vrot.slane %v4607, %v4613
        %v4615 = vcombine.low %v3839, %v3840
        %v4617 = vunpack.c.l.s4 1983009808
        %v4618 = vunpack.c.0.s8 %v4617
        %v4619 = vlaneseq
        %v4620 = vshrl.u32 %v4619, 7
        %v4621 = vsub.s32 %v4618, %v4620
        %v4622 = vrot.slane %v4615, %v4621
        %v4623 = vcombine.low %v4598, %v4606
        %v4625 = vunpack.c.l.s4 1934713408
        %v4626 = vunpack.c.0.s8 %v4625
        %v4627 = vlaneseq
        %v4628 = vshrl.u32 %v4627, 7
        %v4629 = vsub.s32 %v4626, %v4628
        %v4630 = vrot.slane %v4623, %v4629
        %v4631 = vcombine.low %v4614, %v4622
        %v4633 = vunpack.c.l.s4 1934713408
        %v4634 = vunpack.c.0.s8 %v4633
        %v4635 = vlaneseq
        %v4636 = vshrl.u32 %v4635, 7
        %v4637 = vsub.s32 %v4634, %v4636
        %v4638 = vrot.slane %v4631, %v4637
        %v4639 = vcombine.low %v4630, %v4638
        %v4640 = vcombine.high %v4630, %v4638
        %v4643 = vpack.i.b16 %v3939, %v3889
        %v4644 = vshrl.u32 %v3889, 16
        %v4645 = vshrl.u32 %v3939, 16
        %v4646 = vpack.i.b16 %v4645, %v4644
        %v4649 = vpack.i.b16 %v3940, %v3890
        %v4650 = vshrl.u32 %v3890, 16
        %v4651 = vshrl.u32 %v3940, 16
        %v4652 = vpack.i.b16 %v4651, %v4650
        %v4655 = vpack.i.b16 %v4039, %v3989
        %v4656 = vshrl.u32 %v3989, 16
        %v4657 = vshrl.u32 %v4039, 16
        %v4658 = vpack.i.b16 %v4657, %v4656
        %v4661 = vpack.i.b16 %v4040, %v3990
        %v4662 = vshrl.u32 %v3990, 16
        %v4663 = vshrl.u32 %v4040, 16
        %v4664 = vpack.i.b16 %v4663, %v4662
        %v4667 = vpack.i.b16 %v4139, %v4089
        %v4668 = vshrl.u32 %v4089, 16
        %v4669 = vshrl.u32 %v4139, 16
        %v4670 = vpack.i.b16 %v4669, %v4668
        %v4673 = vpack.i.b16 %v4140, %v4090
        %v4674 = vshrl.u32 %v4090, 16
        %v4675 = vshrl.u32 %v4140, 16
        %v4676 = vpack.i.b16 %v4675, %v4674
        %v4679 = vpack.i.b16 %v4239, %v4189
        %v4680 = vshrl.u32 %v4189, 16
        %v4681 = vshrl.u32 %v4239, 16
        %v4682 = vpack.i.b16 %v4681, %v4680
        %v4685 = vpack.i.b16 %v4240, %v4190
        %v4686 = vshrl.u32 %v4190, 16
        %v4687 = vshrl.u32 %v4240, 16
        %v4688 = vpack.i.b16 %v4687, %v4686
        %v4691 = vpack.i.b16 %v4339, %v4289
        %v4692 = vshrl.u32 %v4289, 16
        %v4693 = vshrl.u32 %v4339, 16
        %v4694 = vpack.i.b16 %v4693, %v4692
        %v4697 = vpack.i.b16 %v4340, %v4290
        %v4698 = vshrl.u32 %v4290, 16
        %v4699 = vshrl.u32 %v4340, 16
        %v4700 = vpack.i.b16 %v4699, %v4698
        %v4703 = vpack.i.b16 %v4439, %v4389
        %v4704 = vshrl.u32 %v4389, 16
        %v4705 = vshrl.u32 %v4439, 16
        %v4706 = vpack.i.b16 %v4705, %v4704
        %v4709 = vpack.i.b16 %v4440, %v4390
        %v4710 = vshrl.u32 %v4390, 16
        %v4711 = vshrl.u32 %v4440, 16
        %v4712 = vpack.i.b16 %v4711, %v4710
        %v4715 = vpack.i.b16 %v4539, %v4489
        %v4716 = vshrl.u32 %v4489, 16
        %v4717 = vshrl.u32 %v4539, 16
        %v4718 = vpack.i.b16 %v4717, %v4716
        %v4721 = vpack.i.b16 %v4540, %v4490
        %v4722 = vshrl.u32 %v4490, 16
        %v4723 = vshrl.u32 %v4540, 16
        %v4724 = vpack.i.b16 %v4723, %v4722
        %v4727 = vpack.i.b16 %v4639, %v4589
        %v4728 = vshrl.u32 %v4589, 16
        %v4729 = vshrl.u32 %v4639, 16
        %v4730 = vpack.i.b16 %v4729, %v4728
        %v4733 = vpack.i.b16 %v4640, %v4590
        %v4734 = vshrl.u32 %v4590, 16
        %v4735 = vshrl.u32 %v4640, 16
        %v4736 = vpack.i.b16 %v4735, %v4734
        %v4737 = vpack.c.bf16 %v1456, %v1453
        %v4738 = vpack.c.bf16 %v1464, %v1461
        %v4739 = vpack.c.bf16 %v1472, %v1469
        %v4740 = vpack.c.bf16 %v1480, %v1477
        %v4741 = vpack.c.bf16 %v1488, %v1485
        %v4742 = vpack.c.bf16 %v1496, %v1493
        %v4743 = vpack.c.bf16 %v1504, %v1501
        %v4744 = vpack.c.bf16 %v1512, %v1509
        %4753 = vrot.lane.b32.xlu0 %v4737, 96
        %v4754 = vpop.permute.xlu0 %4753
        %4755 = vrot.lane.b32.xlu0 %v4738, 96
        %v4756 = vpop.permute.xlu0 %4755
        %4757 = vrot.lane.b32.xlu0 %v4739, 96
        %v4758 = vpop.permute.xlu0 %4757
        %4759 = vrot.lane.b32.xlu0 %v4740, 96
        %v4760 = vpop.permute.xlu0 %4759
        %4761 = vrot.lane.b32.xlu0 %v4741, 96
        %v4762 = vpop.permute.xlu0 %4761
        %4763 = vrot.lane.b32.xlu0 %v4742, 96
        %v4764 = vpop.permute.xlu0 %4763
        %4765 = vrot.lane.b32.xlu0 %v4743, 96
        %v4766 = vpop.permute.xlu0 %4765
        %4767 = vrot.lane.b32.xlu0 %v4744, 96
        %v4768 = vpop.permute.xlu0 %4767
        %4769 = vrot.lane.b32.xlu0 %v4737, 64
        %v4770 = vpop.permute.xlu0 %4769
        %4771 = vrot.lane.b32.xlu0 %v4738, 64
        %v4772 = vpop.permute.xlu0 %4771
        %4773 = vrot.lane.b32.xlu0 %v4739, 64
        %v4774 = vpop.permute.xlu0 %4773
        %4775 = vrot.lane.b32.xlu0 %v4740, 64
        %v4776 = vpop.permute.xlu0 %4775
        %4777 = vrot.lane.b32.xlu0 %v4741, 64
        %v4778 = vpop.permute.xlu0 %4777
        %4779 = vrot.lane.b32.xlu0 %v4742, 64
        %v4780 = vpop.permute.xlu0 %4779
        %4781 = vrot.lane.b32.xlu0 %v4743, 64
        %v4782 = vpop.permute.xlu0 %4781
        %4783 = vrot.lane.b32.xlu0 %v4744, 64
        %v4784 = vpop.permute.xlu0 %4783
        %4785 = vrot.lane.b32.xlu0 %v4737, 32
        %v4786 = vpop.permute.xlu0 %4785
        %4787 = vrot.lane.b32.xlu0 %v4738, 32
        %v4788 = vpop.permute.xlu0 %4787
        %4789 = vrot.lane.b32.xlu0 %v4739, 32
        %v4790 = vpop.permute.xlu0 %4789
        %4791 = vrot.lane.b32.xlu0 %v4740, 32
        %v4792 = vpop.permute.xlu0 %4791
        %4793 = vrot.lane.b32.xlu0 %v4741, 32
        %v4794 = vpop.permute.xlu0 %4793
        %4795 = vrot.lane.b32.xlu0 %v4742, 32
        %v4796 = vpop.permute.xlu0 %4795
        %4797 = vrot.lane.b32.xlu0 %v4743, 32
        %v4798 = vpop.permute.xlu0 %4797
        %4799 = vrot.lane.b32.xlu0 %v4744, 32
        %v4800 = vpop.permute.xlu0 %4799
        %v4803 = vpack.i.b16 %v4754, %v4737
        %v4805 = vshrl.u32 %v4737, 16
        %v4806 = vshrl.u32 %v4754, 16
        %v4807 = vpack.i.b16 %v4806, %v4805
        %v4811 = vpack.i.b16 %v4786, %v4770
        %v4813 = vshrl.u32 %v4770, 16
        %v4814 = vshrl.u32 %v4786, 16
        %v4815 = vpack.i.b16 %v4814, %v4813
        %v4819 = vpack.i.b16 %v4756, %v4738
        %v4821 = vshrl.u32 %v4738, 16
        %v4822 = vshrl.u32 %v4756, 16
        %v4823 = vpack.i.b16 %v4822, %v4821
        %v4827 = vpack.i.b16 %v4788, %v4772
        %v4829 = vshrl.u32 %v4772, 16
        %v4830 = vshrl.u32 %v4788, 16
        %v4831 = vpack.i.b16 %v4830, %v4829
        %v4835 = vpack.i.b16 %v4758, %v4739
        %v4837 = vshrl.u32 %v4739, 16
        %v4838 = vshrl.u32 %v4758, 16
        %v4839 = vpack.i.b16 %v4838, %v4837
        %v4843 = vpack.i.b16 %v4790, %v4774
        %v4845 = vshrl.u32 %v4774, 16
        %v4846 = vshrl.u32 %v4790, 16
        %v4847 = vpack.i.b16 %v4846, %v4845
        %v4851 = vpack.i.b16 %v4760, %v4740
        %v4853 = vshrl.u32 %v4740, 16
        %v4854 = vshrl.u32 %v4760, 16
        %v4855 = vpack.i.b16 %v4854, %v4853
        %v4859 = vpack.i.b16 %v4792, %v4776
        %v4861 = vshrl.u32 %v4776, 16
        %v4862 = vshrl.u32 %v4792, 16
        %v4863 = vpack.i.b16 %v4862, %v4861
        %v4867 = vpack.i.b16 %v4762, %v4741
        %v4869 = vshrl.u32 %v4741, 16
        %v4870 = vshrl.u32 %v4762, 16
        %v4871 = vpack.i.b16 %v4870, %v4869
        %v4875 = vpack.i.b16 %v4794, %v4778
        %v4877 = vshrl.u32 %v4778, 16
        %v4878 = vshrl.u32 %v4794, 16
        %v4879 = vpack.i.b16 %v4878, %v4877
        %v4883 = vpack.i.b16 %v4764, %v4742
        %v4885 = vshrl.u32 %v4742, 16
        %v4886 = vshrl.u32 %v4764, 16
        %v4887 = vpack.i.b16 %v4886, %v4885
        %v4891 = vpack.i.b16 %v4796, %v4780
        %v4893 = vshrl.u32 %v4780, 16
        %v4894 = vshrl.u32 %v4796, 16
        %v4895 = vpack.i.b16 %v4894, %v4893
        %v4899 = vpack.i.b16 %v4766, %v4743
        %v4901 = vshrl.u32 %v4743, 16
        %v4902 = vshrl.u32 %v4766, 16
        %v4903 = vpack.i.b16 %v4902, %v4901
        %v4907 = vpack.i.b16 %v4798, %v4782
        %v4909 = vshrl.u32 %v4782, 16
        %v4910 = vshrl.u32 %v4798, 16
        %v4911 = vpack.i.b16 %v4910, %v4909
        %v4915 = vpack.i.b16 %v4768, %v4744
        %v4917 = vshrl.u32 %v4744, 16
        %v4918 = vshrl.u32 %v4768, 16
        %v4919 = vpack.i.b16 %v4918, %v4917
        %v4923 = vpack.i.b16 %v4800, %v4784
        %v4925 = vshrl.u32 %v4784, 16
        %v4926 = vshrl.u32 %v4800, 16
        %v4927 = vpack.i.b16 %v4926, %v4925
        %v4929 = vcombine.high %v4803, %v1564
        %v4931 = vunpack.c.l.s4 1983009808
        %v4932 = vunpack.c.0.s8 %v4931
        %v4933 = vlaneseq
        %v4934 = vshrl.u32 %v4933, 7
        %v4935 = vsub.s32 %v4932, %v4934
        %v4936 = vrot.slane %v4803, %v4935
        %v4938 = vunpack.c.l.s4 1983009808
        %v4939 = vunpack.c.0.s8 %v4938
        %v4940 = vlaneseq
        %v4941 = vshrl.u32 %v4940, 7
        %v4942 = vsub.s32 %v4939, %v4941
        %v4943 = vrot.slane %v4929, %v4942
        %v4944 = vcombine.high %v4811, %v1564
        %v4946 = vunpack.c.l.s4 1983009808
        %v4947 = vunpack.c.0.s8 %v4946
        %v4948 = vlaneseq
        %v4949 = vshrl.u32 %v4948, 7
        %v4950 = vsub.s32 %v4947, %v4949
        %v4951 = vrot.slane %v4811, %v4950
        %v4953 = vunpack.c.l.s4 1983009808
        %v4954 = vunpack.c.0.s8 %v4953
        %v4955 = vlaneseq
        %v4956 = vshrl.u32 %v4955, 7
        %v4957 = vsub.s32 %v4954, %v4956
        %v4958 = vrot.slane %v4944, %v4957
        %v4959 = vcombine.low %v4936, %v4951
        %v4960 = vcombine.high %v4936, %v4951
        %v4962 = vunpack.c.l.s4 1934713408
        %v4963 = vunpack.c.0.s8 %v4962
        %v4964 = vlaneseq
        %v4965 = vshrl.u32 %v4964, 7
        %v4966 = vsub.s32 %v4963, %v4965
        %v4967 = vrot.slane %v4959, %v4966
        %v4969 = vunpack.c.l.s4 1934713408
        %v4970 = vunpack.c.0.s8 %v4969
        %v4971 = vlaneseq
        %v4972 = vshrl.u32 %v4971, 7
        %v4973 = vsub.s32 %v4970, %v4972
        %v4974 = vrot.slane %v4960, %v4973
        %v4975 = vcombine.low %v4943, %v4958
        %v4976 = vcombine.high %v4943, %v4958
        %v4978 = vunpack.c.l.s4 1934713408
        %v4979 = vunpack.c.0.s8 %v4978
        %v4980 = vlaneseq
        %v4981 = vshrl.u32 %v4980, 7
        %v4982 = vsub.s32 %v4979, %v4981
        %v4983 = vrot.slane %v4975, %v4982
        %v4985 = vunpack.c.l.s4 1934713408
        %v4986 = vunpack.c.0.s8 %v4985
        %v4987 = vlaneseq
        %v4988 = vshrl.u32 %v4987, 7
        %v4989 = vsub.s32 %v4986, %v4988
        %v4990 = vrot.slane %v4976, %v4989
        %v4991 = vcombine.high %v4967, 0
        %v4992 = vcombine.high %v4974, 0
        %v4993 = vcombine.high %v4983, 0
        %v4994 = vcombine.high %v4990, 0
        %v4995 = vcombine.high %v4807, %v1567
        %v4997 = vunpack.c.l.s4 1983009808
        %v4998 = vunpack.c.0.s8 %v4997
        %v4999 = vlaneseq
        %v5000 = vshrl.u32 %v4999, 7
        %v5001 = vsub.s32 %v4998, %v5000
        %v5002 = vrot.slane %v4807, %v5001
        %v5004 = vunpack.c.l.s4 1983009808
        %v5005 = vunpack.c.0.s8 %v5004
        %v5006 = vlaneseq
        %v5007 = vshrl.u32 %v5006, 7
        %v5008 = vsub.s32 %v5005, %v5007
        %v5009 = vrot.slane %v4995, %v5008
        %v5010 = vcombine.high %v4815, %v1567
        %v5012 = vunpack.c.l.s4 1983009808
        %v5013 = vunpack.c.0.s8 %v5012
        %v5014 = vlaneseq
        %v5015 = vshrl.u32 %v5014, 7
        %v5016 = vsub.s32 %v5013, %v5015
        %v5017 = vrot.slane %v4815, %v5016
        %v5019 = vunpack.c.l.s4 1983009808
        %v5020 = vunpack.c.0.s8 %v5019
        %v5021 = vlaneseq
        %v5022 = vshrl.u32 %v5021, 7
        %v5023 = vsub.s32 %v5020, %v5022
        %v5024 = vrot.slane %v5010, %v5023
        %v5025 = vcombine.low %v5002, %v5017
        %v5026 = vcombine.high %v5002, %v5017
        %v5028 = vunpack.c.l.s4 1934713408
        %v5029 = vunpack.c.0.s8 %v5028
        %v5030 = vlaneseq
        %v5031 = vshrl.u32 %v5030, 7
        %v5032 = vsub.s32 %v5029, %v5031
        %v5033 = vrot.slane %v5025, %v5032
        %v5035 = vunpack.c.l.s4 1934713408
        %v5036 = vunpack.c.0.s8 %v5035
        %v5037 = vlaneseq
        %v5038 = vshrl.u32 %v5037, 7
        %v5039 = vsub.s32 %v5036, %v5038
        %v5040 = vrot.slane %v5026, %v5039
        %v5041 = vcombine.low %v5009, %v5024
        %v5042 = vcombine.high %v5009, %v5024
        %v5044 = vunpack.c.l.s4 1934713408
        %v5045 = vunpack.c.0.s8 %v5044
        %v5046 = vlaneseq
        %v5047 = vshrl.u32 %v5046, 7
        %v5048 = vsub.s32 %v5045, %v5047
        %v5049 = vrot.slane %v5041, %v5048
        %v5051 = vunpack.c.l.s4 1934713408
        %v5052 = vunpack.c.0.s8 %v5051
        %v5053 = vlaneseq
        %v5054 = vshrl.u32 %v5053, 7
        %v5055 = vsub.s32 %v5052, %v5054
        %v5056 = vrot.slane %v5042, %v5055
        %v5057 = vcombine.high %v5033, 0
        %v5058 = vcombine.high %v5040, 0
        %v5059 = vcombine.high %v5049, 0
        %v5060 = vcombine.high %v5056, 0
        %v5061 = vcombine.high %v4819, %v1564
        %v5063 = vunpack.c.l.s4 1983009808
        %v5064 = vunpack.c.0.s8 %v5063
        %v5065 = vlaneseq
        %v5066 = vshrl.u32 %v5065, 7
        %v5067 = vsub.s32 %v5064, %v5066
        %v5068 = vrot.slane %v4819, %v5067
        %v5070 = vunpack.c.l.s4 1983009808
        %v5071 = vunpack.c.0.s8 %v5070
        %v5072 = vlaneseq
        %v5073 = vshrl.u32 %v5072, 7
        %v5074 = vsub.s32 %v5071, %v5073
        %v5075 = vrot.slane %v5061, %v5074
        %v5076 = vcombine.high %v4827, %v1564
        %v5078 = vunpack.c.l.s4 1983009808
        %v5079 = vunpack.c.0.s8 %v5078
        %v5080 = vlaneseq
        %v5081 = vshrl.u32 %v5080, 7
        %v5082 = vsub.s32 %v5079, %v5081
        %v5083 = vrot.slane %v4827, %v5082
        %v5085 = vunpack.c.l.s4 1983009808
        %v5086 = vunpack.c.0.s8 %v5085
        %v5087 = vlaneseq
        %v5088 = vshrl.u32 %v5087, 7
        %v5089 = vsub.s32 %v5086, %v5088
        %v5090 = vrot.slane %v5076, %v5089
        %v5091 = vcombine.low %v5068, %v5083
        %v5092 = vcombine.high %v5068, %v5083
        %v5094 = vunpack.c.l.s4 1934713408
        %v5095 = vunpack.c.0.s8 %v5094
        %v5096 = vlaneseq
        %v5097 = vshrl.u32 %v5096, 7
        %v5098 = vsub.s32 %v5095, %v5097
        %v5099 = vrot.slane %v5091, %v5098
        %v5101 = vunpack.c.l.s4 1934713408
        %v5102 = vunpack.c.0.s8 %v5101
        %v5103 = vlaneseq
        %v5104 = vshrl.u32 %v5103, 7
        %v5105 = vsub.s32 %v5102, %v5104
        %v5106 = vrot.slane %v5092, %v5105
        %v5107 = vcombine.low %v5075, %v5090
        %v5108 = vcombine.high %v5075, %v5090
        %v5110 = vunpack.c.l.s4 1934713408
        %v5111 = vunpack.c.0.s8 %v5110
        %v5112 = vlaneseq
        %v5113 = vshrl.u32 %v5112, 7
        %v5114 = vsub.s32 %v5111, %v5113
        %v5115 = vrot.slane %v5107, %v5114
        %v5117 = vunpack.c.l.s4 1934713408
        %v5118 = vunpack.c.0.s8 %v5117
        %v5119 = vlaneseq
        %v5120 = vshrl.u32 %v5119, 7
        %v5121 = vsub.s32 %v5118, %v5120
        %v5122 = vrot.slane %v5108, %v5121
        %v5123 = vcombine.high %v5099, 0
        %v5124 = vcombine.high %v5106, 0
        %v5125 = vcombine.high %v5115, 0
        %v5126 = vcombine.high %v5122, 0
        %v5127 = vcombine.high %v4823, %v1567
        %v5129 = vunpack.c.l.s4 1983009808
        %v5130 = vunpack.c.0.s8 %v5129
        %v5131 = vlaneseq
        %v5132 = vshrl.u32 %v5131, 7
        %v5133 = vsub.s32 %v5130, %v5132
        %v5134 = vrot.slane %v4823, %v5133
        %v5136 = vunpack.c.l.s4 1983009808
        %v5137 = vunpack.c.0.s8 %v5136
        %v5138 = vlaneseq
        %v5139 = vshrl.u32 %v5138, 7
        %v5140 = vsub.s32 %v5137, %v5139
        %v5141 = vrot.slane %v5127, %v5140
        %v5142 = vcombine.high %v4831, %v1567
        %v5144 = vunpack.c.l.s4 1983009808
        %v5145 = vunpack.c.0.s8 %v5144
        %v5146 = vlaneseq
        %v5147 = vshrl.u32 %v5146, 7
        %v5148 = vsub.s32 %v5145, %v5147
        %v5149 = vrot.slane %v4831, %v5148
        %v5151 = vunpack.c.l.s4 1983009808
        %v5152 = vunpack.c.0.s8 %v5151
        %v5153 = vlaneseq
        %v5154 = vshrl.u32 %v5153, 7
        %v5155 = vsub.s32 %v5152, %v5154
        %v5156 = vrot.slane %v5142, %v5155
        %v5157 = vcombine.low %v5134, %v5149
        %v5158 = vcombine.high %v5134, %v5149
        %v5160 = vunpack.c.l.s4 1934713408
        %v5161 = vunpack.c.0.s8 %v5160
        %v5162 = vlaneseq
        %v5163 = vshrl.u32 %v5162, 7
        %v5164 = vsub.s32 %v5161, %v5163
        %v5165 = vrot.slane %v5157, %v5164
        %v5167 = vunpack.c.l.s4 1934713408
        %v5168 = vunpack.c.0.s8 %v5167
        %v5169 = vlaneseq
        %v5170 = vshrl.u32 %v5169, 7
        %v5171 = vsub.s32 %v5168, %v5170
        %v5172 = vrot.slane %v5158, %v5171
        %v5173 = vcombine.low %v5141, %v5156
        %v5174 = vcombine.high %v5141, %v5156
        %v5176 = vunpack.c.l.s4 1934713408
        %v5177 = vunpack.c.0.s8 %v5176
        %v5178 = vlaneseq
        %v5179 = vshrl.u32 %v5178, 7
        %v5180 = vsub.s32 %v5177, %v5179
        %v5181 = vrot.slane %v5173, %v5180
        %v5183 = vunpack.c.l.s4 1934713408
        %v5184 = vunpack.c.0.s8 %v5183
        %v5185 = vlaneseq
        %v5186 = vshrl.u32 %v5185, 7
        %v5187 = vsub.s32 %v5184, %v5186
        %v5188 = vrot.slane %v5174, %v5187
        %v5189 = vcombine.high %v5165, 0
        %v5190 = vcombine.high %v5172, 0
        %v5191 = vcombine.high %v5181, 0
        %v5192 = vcombine.high %v5188, 0
        %v5193 = vcombine.high %v4835, %v1564
        %v5195 = vunpack.c.l.s4 1983009808
        %v5196 = vunpack.c.0.s8 %v5195
        %v5197 = vlaneseq
        %v5198 = vshrl.u32 %v5197, 7
        %v5199 = vsub.s32 %v5196, %v5198
        %v5200 = vrot.slane %v4835, %v5199
        %v5202 = vunpack.c.l.s4 1983009808
        %v5203 = vunpack.c.0.s8 %v5202
        %v5204 = vlaneseq
        %v5205 = vshrl.u32 %v5204, 7
        %v5206 = vsub.s32 %v5203, %v5205
        %v5207 = vrot.slane %v5193, %v5206
        %v5208 = vcombine.high %v4843, %v1564
        %v5210 = vunpack.c.l.s4 1983009808
        %v5211 = vunpack.c.0.s8 %v5210
        %v5212 = vlaneseq
        %v5213 = vshrl.u32 %v5212, 7
        %v5214 = vsub.s32 %v5211, %v5213
        %v5215 = vrot.slane %v4843, %v5214
        %v5217 = vunpack.c.l.s4 1983009808
        %v5218 = vunpack.c.0.s8 %v5217
        %v5219 = vlaneseq
        %v5220 = vshrl.u32 %v5219, 7
        %v5221 = vsub.s32 %v5218, %v5220
        %v5222 = vrot.slane %v5208, %v5221
        %v5223 = vcombine.low %v5200, %v5215
        %v5224 = vcombine.high %v5200, %v5215
        %v5226 = vunpack.c.l.s4 1934713408
        %v5227 = vunpack.c.0.s8 %v5226
        %v5228 = vlaneseq
        %v5229 = vshrl.u32 %v5228, 7
        %v5230 = vsub.s32 %v5227, %v5229
        %v5231 = vrot.slane %v5223, %v5230
        %v5233 = vunpack.c.l.s4 1934713408
        %v5234 = vunpack.c.0.s8 %v5233
        %v5235 = vlaneseq
        %v5236 = vshrl.u32 %v5235, 7
        %v5237 = vsub.s32 %v5234, %v5236
        %v5238 = vrot.slane %v5224, %v5237
        %v5239 = vcombine.low %v5207, %v5222
        %v5240 = vcombine.high %v5207, %v5222
        %v5242 = vunpack.c.l.s4 1934713408
        %v5243 = vunpack.c.0.s8 %v5242
        %v5244 = vlaneseq
        %v5245 = vshrl.u32 %v5244, 7
        %v5246 = vsub.s32 %v5243, %v5245
        %v5247 = vrot.slane %v5239, %v5246
        %v5249 = vunpack.c.l.s4 1934713408
        %v5250 = vunpack.c.0.s8 %v5249
        %v5251 = vlaneseq
        %v5252 = vshrl.u32 %v5251, 7
        %v5253 = vsub.s32 %v5250, %v5252
        %v5254 = vrot.slane %v5240, %v5253
        %v5255 = vcombine.high %v5231, 0
        %v5256 = vcombine.high %v5238, 0
        %v5257 = vcombine.high %v5247, 0
        %v5258 = vcombine.high %v5254, 0
        %v5259 = vcombine.high %v4839, %v1567
        %v5261 = vunpack.c.l.s4 1983009808
        %v5262 = vunpack.c.0.s8 %v5261
        %v5263 = vlaneseq
        %v5264 = vshrl.u32 %v5263, 7
        %v5265 = vsub.s32 %v5262, %v5264
        %v5266 = vrot.slane %v4839, %v5265
        %v5268 = vunpack.c.l.s4 1983009808
        %v5269 = vunpack.c.0.s8 %v5268
        %v5270 = vlaneseq
        %v5271 = vshrl.u32 %v5270, 7
        %v5272 = vsub.s32 %v5269, %v5271
        %v5273 = vrot.slane %v5259, %v5272
        %v5274 = vcombine.high %v4847, %v1567
        %v5276 = vunpack.c.l.s4 1983009808
        %v5277 = vunpack.c.0.s8 %v5276
        %v5278 = vlaneseq
        %v5279 = vshrl.u32 %v5278, 7
        %v5280 = vsub.s32 %v5277, %v5279
        %v5281 = vrot.slane %v4847, %v5280
        %v5283 = vunpack.c.l.s4 1983009808
        %v5284 = vunpack.c.0.s8 %v5283
        %v5285 = vlaneseq
        %v5286 = vshrl.u32 %v5285, 7
        %v5287 = vsub.s32 %v5284, %v5286
        %v5288 = vrot.slane %v5274, %v5287
        %v5289 = vcombine.low %v5266, %v5281
        %v5290 = vcombine.high %v5266, %v5281
        %v5292 = vunpack.c.l.s4 1934713408
        %v5293 = vunpack.c.0.s8 %v5292
        %v5294 = vlaneseq
        %v5295 = vshrl.u32 %v5294, 7
        %v5296 = vsub.s32 %v5293, %v5295
        %v5297 = vrot.slane %v5289, %v5296
        %v5299 = vunpack.c.l.s4 1934713408
        %v5300 = vunpack.c.0.s8 %v5299
        %v5301 = vlaneseq
        %v5302 = vshrl.u32 %v5301, 7
        %v5303 = vsub.s32 %v5300, %v5302
        %v5304 = vrot.slane %v5290, %v5303
        %v5305 = vcombine.low %v5273, %v5288
        %v5306 = vcombine.high %v5273, %v5288
        %v5308 = vunpack.c.l.s4 1934713408
        %v5309 = vunpack.c.0.s8 %v5308
        %v5310 = vlaneseq
        %v5311 = vshrl.u32 %v5310, 7
        %v5312 = vsub.s32 %v5309, %v5311
        %v5313 = vrot.slane %v5305, %v5312
        %v5315 = vunpack.c.l.s4 1934713408
        %v5316 = vunpack.c.0.s8 %v5315
        %v5317 = vlaneseq
        %v5318 = vshrl.u32 %v5317, 7
        %v5319 = vsub.s32 %v5316, %v5318
        %v5320 = vrot.slane %v5306, %v5319
        %v5321 = vcombine.high %v5297, 0
        %v5322 = vcombine.high %v5304, 0
        %v5323 = vcombine.high %v5313, 0
        %v5324 = vcombine.high %v5320, 0
        %v5325 = vcombine.high %v4851, %v1564
        %v5327 = vunpack.c.l.s4 1983009808
        %v5328 = vunpack.c.0.s8 %v5327
        %v5329 = vlaneseq
        %v5330 = vshrl.u32 %v5329, 7
        %v5331 = vsub.s32 %v5328, %v5330
        %v5332 = vrot.slane %v4851, %v5331
        %v5334 = vunpack.c.l.s4 1983009808
        %v5335 = vunpack.c.0.s8 %v5334
        %v5336 = vlaneseq
        %v5337 = vshrl.u32 %v5336, 7
        %v5338 = vsub.s32 %v5335, %v5337
        %v5339 = vrot.slane %v5325, %v5338
        %v5340 = vcombine.high %v4859, %v1564
        %v5342 = vunpack.c.l.s4 1983009808
        %v5343 = vunpack.c.0.s8 %v5342
        %v5344 = vlaneseq
        %v5345 = vshrl.u32 %v5344, 7
        %v5346 = vsub.s32 %v5343, %v5345
        %v5347 = vrot.slane %v4859, %v5346
        %v5349 = vunpack.c.l.s4 1983009808
        %v5350 = vunpack.c.0.s8 %v5349
        %v5351 = vlaneseq
        %v5352 = vshrl.u32 %v5351, 7
        %v5353 = vsub.s32 %v5350, %v5352
        %v5354 = vrot.slane %v5340, %v5353
        %v5355 = vcombine.low %v5332, %v5347
        %v5356 = vcombine.high %v5332, %v5347
        %v5358 = vunpack.c.l.s4 1934713408
        %v5359 = vunpack.c.0.s8 %v5358
        %v5360 = vlaneseq
        %v5361 = vshrl.u32 %v5360, 7
        %v5362 = vsub.s32 %v5359, %v5361
        %v5363 = vrot.slane %v5355, %v5362
        %v5365 = vunpack.c.l.s4 1934713408
        %v5366 = vunpack.c.0.s8 %v5365
        %v5367 = vlaneseq
        %v5368 = vshrl.u32 %v5367, 7
        %v5369 = vsub.s32 %v5366, %v5368
        %v5370 = vrot.slane %v5356, %v5369
        %v5371 = vcombine.low %v5339, %v5354
        %v5372 = vcombine.high %v5339, %v5354
        %v5374 = vunpack.c.l.s4 1934713408
        %v5375 = vunpack.c.0.s8 %v5374
        %v5376 = vlaneseq
        %v5377 = vshrl.u32 %v5376, 7
        %v5378 = vsub.s32 %v5375, %v5377
        %v5379 = vrot.slane %v5371, %v5378
        %v5381 = vunpack.c.l.s4 1934713408
        %v5382 = vunpack.c.0.s8 %v5381
        %v5383 = vlaneseq
        %v5384 = vshrl.u32 %v5383, 7
        %v5385 = vsub.s32 %v5382, %v5384
        %v5386 = vrot.slane %v5372, %v5385
        %v5387 = vcombine.high %v5363, 0
        %v5388 = vcombine.high %v5370, 0
        %v5389 = vcombine.high %v5379, 0
        %v5390 = vcombine.high %v5386, 0
        %v5391 = vcombine.high %v4855, %v1567
        %v5393 = vunpack.c.l.s4 1983009808
        %v5394 = vunpack.c.0.s8 %v5393
        %v5395 = vlaneseq
        %v5396 = vshrl.u32 %v5395, 7
        %v5397 = vsub.s32 %v5394, %v5396
        %v5398 = vrot.slane %v4855, %v5397
        %v5400 = vunpack.c.l.s4 1983009808
        %v5401 = vunpack.c.0.s8 %v5400
        %v5402 = vlaneseq
        %v5403 = vshrl.u32 %v5402, 7
        %v5404 = vsub.s32 %v5401, %v5403
        %v5405 = vrot.slane %v5391, %v5404
        %v5406 = vcombine.high %v4863, %v1567
        %v5408 = vunpack.c.l.s4 1983009808
        %v5409 = vunpack.c.0.s8 %v5408
        %v5410 = vlaneseq
        %v5411 = vshrl.u32 %v5410, 7
        %v5412 = vsub.s32 %v5409, %v5411
        %v5413 = vrot.slane %v4863, %v5412
        %v5415 = vunpack.c.l.s4 1983009808
        %v5416 = vunpack.c.0.s8 %v5415
        %v5417 = vlaneseq
        %v5418 = vshrl.u32 %v5417, 7
        %v5419 = vsub.s32 %v5416, %v5418
        %v5420 = vrot.slane %v5406, %v5419
        %v5421 = vcombine.low %v5398, %v5413
        %v5422 = vcombine.high %v5398, %v5413
        %v5424 = vunpack.c.l.s4 1934713408
        %v5425 = vunpack.c.0.s8 %v5424
        %v5426 = vlaneseq
        %v5427 = vshrl.u32 %v5426, 7
        %v5428 = vsub.s32 %v5425, %v5427
        %v5429 = vrot.slane %v5421, %v5428
        %v5431 = vunpack.c.l.s4 1934713408
        %v5432 = vunpack.c.0.s8 %v5431
        %v5433 = vlaneseq
        %v5434 = vshrl.u32 %v5433, 7
        %v5435 = vsub.s32 %v5432, %v5434
        %v5436 = vrot.slane %v5422, %v5435
        %v5437 = vcombine.low %v5405, %v5420
        %v5438 = vcombine.high %v5405, %v5420
        %v5440 = vunpack.c.l.s4 1934713408
        %v5441 = vunpack.c.0.s8 %v5440
        %v5442 = vlaneseq
        %v5443 = vshrl.u32 %v5442, 7
        %v5444 = vsub.s32 %v5441, %v5443
        %v5445 = vrot.slane %v5437, %v5444
        %v5447 = vunpack.c.l.s4 1934713408
        %v5448 = vunpack.c.0.s8 %v5447
        %v5449 = vlaneseq
        %v5450 = vshrl.u32 %v5449, 7
        %v5451 = vsub.s32 %v5448, %v5450
        %v5452 = vrot.slane %v5438, %v5451
        %v5453 = vcombine.high %v5429, 0
        %v5454 = vcombine.high %v5436, 0
        %v5455 = vcombine.high %v5445, 0
        %v5456 = vcombine.high %v5452, 0
        %v5457 = vcombine.high %v4867, %v1564
        %v5459 = vunpack.c.l.s4 1983009808
        %v5460 = vunpack.c.0.s8 %v5459
        %v5461 = vlaneseq
        %v5462 = vshrl.u32 %v5461, 7
        %v5463 = vsub.s32 %v5460, %v5462
        %v5464 = vrot.slane %v4867, %v5463
        %v5466 = vunpack.c.l.s4 1983009808
        %v5467 = vunpack.c.0.s8 %v5466
        %v5468 = vlaneseq
        %v5469 = vshrl.u32 %v5468, 7
        %v5470 = vsub.s32 %v5467, %v5469
        %v5471 = vrot.slane %v5457, %v5470
        %v5472 = vcombine.high %v4875, %v1564
        %v5474 = vunpack.c.l.s4 1983009808
        %v5475 = vunpack.c.0.s8 %v5474
        %v5476 = vlaneseq
        %v5477 = vshrl.u32 %v5476, 7
        %v5478 = vsub.s32 %v5475, %v5477
        %v5479 = vrot.slane %v4875, %v5478
        %v5481 = vunpack.c.l.s4 1983009808
        %v5482 = vunpack.c.0.s8 %v5481
        %v5483 = vlaneseq
        %v5484 = vshrl.u32 %v5483, 7
        %v5485 = vsub.s32 %v5482, %v5484
        %v5486 = vrot.slane %v5472, %v5485
        %v5487 = vcombine.low %v5464, %v5479
        %v5488 = vcombine.high %v5464, %v5479
        %v5490 = vunpack.c.l.s4 1934713408
        %v5491 = vunpack.c.0.s8 %v5490
        %v5492 = vlaneseq
        %v5493 = vshrl.u32 %v5492, 7
        %v5494 = vsub.s32 %v5491, %v5493
        %v5495 = vrot.slane %v5487, %v5494
        %v5497 = vunpack.c.l.s4 1934713408
        %v5498 = vunpack.c.0.s8 %v5497
        %v5499 = vlaneseq
        %v5500 = vshrl.u32 %v5499, 7
        %v5501 = vsub.s32 %v5498, %v5500
        %v5502 = vrot.slane %v5488, %v5501
        %v5503 = vcombine.low %v5471, %v5486
        %v5504 = vcombine.high %v5471, %v5486
        %v5506 = vunpack.c.l.s4 1934713408
        %v5507 = vunpack.c.0.s8 %v5506
        %v5508 = vlaneseq
        %v5509 = vshrl.u32 %v5508, 7
        %v5510 = vsub.s32 %v5507, %v5509
        %v5511 = vrot.slane %v5503, %v5510
        %v5513 = vunpack.c.l.s4 1934713408
        %v5514 = vunpack.c.0.s8 %v5513
        %v5515 = vlaneseq
        %v5516 = vshrl.u32 %v5515, 7
        %v5517 = vsub.s32 %v5514, %v5516
        %v5518 = vrot.slane %v5504, %v5517
        %v5519 = vcombine.high %v5495, 0
        %v5520 = vcombine.high %v5502, 0
        %v5521 = vcombine.high %v5511, 0
        %v5522 = vcombine.high %v5518, 0
        %v5523 = vcombine.high %v4871, %v1567
        %v5525 = vunpack.c.l.s4 1983009808
        %v5526 = vunpack.c.0.s8 %v5525
        %v5527 = vlaneseq
        %v5528 = vshrl.u32 %v5527, 7
        %v5529 = vsub.s32 %v5526, %v5528
        %v5530 = vrot.slane %v4871, %v5529
        %v5532 = vunpack.c.l.s4 1983009808
        %v5533 = vunpack.c.0.s8 %v5532
        %v5534 = vlaneseq
        %v5535 = vshrl.u32 %v5534, 7
        %v5536 = vsub.s32 %v5533, %v5535
        %v5537 = vrot.slane %v5523, %v5536
        %v5538 = vcombine.high %v4879, %v1567
        %v5540 = vunpack.c.l.s4 1983009808
        %v5541 = vunpack.c.0.s8 %v5540
        %v5542 = vlaneseq
        %v5543 = vshrl.u32 %v5542, 7
        %v5544 = vsub.s32 %v5541, %v5543
        %v5545 = vrot.slane %v4879, %v5544
        %v5547 = vunpack.c.l.s4 1983009808
        %v5548 = vunpack.c.0.s8 %v5547
        %v5549 = vlaneseq
        %v5550 = vshrl.u32 %v5549, 7
        %v5551 = vsub.s32 %v5548, %v5550
        %v5552 = vrot.slane %v5538, %v5551
        %v5553 = vcombine.low %v5530, %v5545
        %v5554 = vcombine.high %v5530, %v5545
        %v5556 = vunpack.c.l.s4 1934713408
        %v5557 = vunpack.c.0.s8 %v5556
        %v5558 = vlaneseq
        %v5559 = vshrl.u32 %v5558, 7
        %v5560 = vsub.s32 %v5557, %v5559
        %v5561 = vrot.slane %v5553, %v5560
        %v5563 = vunpack.c.l.s4 1934713408
        %v5564 = vunpack.c.0.s8 %v5563
        %v5565 = vlaneseq
        %v5566 = vshrl.u32 %v5565, 7
        %v5567 = vsub.s32 %v5564, %v5566
        %v5568 = vrot.slane %v5554, %v5567
        %v5569 = vcombine.low %v5537, %v5552
        %v5570 = vcombine.high %v5537, %v5552
        %v5572 = vunpack.c.l.s4 1934713408
        %v5573 = vunpack.c.0.s8 %v5572
        %v5574 = vlaneseq
        %v5575 = vshrl.u32 %v5574, 7
        %v5576 = vsub.s32 %v5573, %v5575
        %v5577 = vrot.slane %v5569, %v5576
        %v5579 = vunpack.c.l.s4 1934713408
        %v5580 = vunpack.c.0.s8 %v5579
        %v5581 = vlaneseq
        %v5582 = vshrl.u32 %v5581, 7
        %v5583 = vsub.s32 %v5580, %v5582
        %v5584 = vrot.slane %v5570, %v5583
        %v5585 = vcombine.high %v5561, 0
        %v5586 = vcombine.high %v5568, 0
        %v5587 = vcombine.high %v5577, 0
        %v5588 = vcombine.high %v5584, 0
        %v5589 = vcombine.high %v4883, %v1564
        %v5591 = vunpack.c.l.s4 1983009808
        %v5592 = vunpack.c.0.s8 %v5591
        %v5593 = vlaneseq
        %v5594 = vshrl.u32 %v5593, 7
        %v5595 = vsub.s32 %v5592, %v5594
        %v5596 = vrot.slane %v4883, %v5595
        %v5598 = vunpack.c.l.s4 1983009808
        %v5599 = vunpack.c.0.s8 %v5598
        %v5600 = vlaneseq
        %v5601 = vshrl.u32 %v5600, 7
        %v5602 = vsub.s32 %v5599, %v5601
        %v5603 = vrot.slane %v5589, %v5602
        %v5604 = vcombine.high %v4891, %v1564
        %v5606 = vunpack.c.l.s4 1983009808
        %v5607 = vunpack.c.0.s8 %v5606
        %v5608 = vlaneseq
        %v5609 = vshrl.u32 %v5608, 7
        %v5610 = vsub.s32 %v5607, %v5609
        %v5611 = vrot.slane %v4891, %v5610
        %v5613 = vunpack.c.l.s4 1983009808
        %v5614 = vunpack.c.0.s8 %v5613
        %v5615 = vlaneseq
        %v5616 = vshrl.u32 %v5615, 7
        %v5617 = vsub.s32 %v5614, %v5616
        %v5618 = vrot.slane %v5604, %v5617
        %v5619 = vcombine.low %v5596, %v5611
        %v5620 = vcombine.high %v5596, %v5611
        %v5622 = vunpack.c.l.s4 1934713408
        %v5623 = vunpack.c.0.s8 %v5622
        %v5624 = vlaneseq
        %v5625 = vshrl.u32 %v5624, 7
        %v5626 = vsub.s32 %v5623, %v5625
        %v5627 = vrot.slane %v5619, %v5626
        %v5629 = vunpack.c.l.s4 1934713408
        %v5630 = vunpack.c.0.s8 %v5629
        %v5631 = vlaneseq
        %v5632 = vshrl.u32 %v5631, 7
        %v5633 = vsub.s32 %v5630, %v5632
        %v5634 = vrot.slane %v5620, %v5633
        %v5635 = vcombine.low %v5603, %v5618
        %v5636 = vcombine.high %v5603, %v5618
        %v5638 = vunpack.c.l.s4 1934713408
        %v5639 = vunpack.c.0.s8 %v5638
        %v5640 = vlaneseq
        %v5641 = vshrl.u32 %v5640, 7
        %v5642 = vsub.s32 %v5639, %v5641
        %v5643 = vrot.slane %v5635, %v5642
        %v5645 = vunpack.c.l.s4 1934713408
        %v5646 = vunpack.c.0.s8 %v5645
        %v5647 = vlaneseq
        %v5648 = vshrl.u32 %v5647, 7
        %v5649 = vsub.s32 %v5646, %v5648
        %v5650 = vrot.slane %v5636, %v5649
        %v5651 = vcombine.high %v5627, 0
        %v5652 = vcombine.high %v5634, 0
        %v5653 = vcombine.high %v5643, 0
        %v5654 = vcombine.high %v5650, 0
        %v5655 = vcombine.high %v4887, %v1567
        %v5657 = vunpack.c.l.s4 1983009808
        %v5658 = vunpack.c.0.s8 %v5657
        %v5659 = vlaneseq
        %v5660 = vshrl.u32 %v5659, 7
        %v5661 = vsub.s32 %v5658, %v5660
        %v5662 = vrot.slane %v4887, %v5661
        %v5664 = vunpack.c.l.s4 1983009808
        %v5665 = vunpack.c.0.s8 %v5664
        %v5666 = vlaneseq
        %v5667 = vshrl.u32 %v5666, 7
        %v5668 = vsub.s32 %v5665, %v5667
        %v5669 = vrot.slane %v5655, %v5668
        %v5670 = vcombine.high %v4895, %v1567
        %v5672 = vunpack.c.l.s4 1983009808
        %v5673 = vunpack.c.0.s8 %v5672
        %v5674 = vlaneseq
        %v5675 = vshrl.u32 %v5674, 7
        %v5676 = vsub.s32 %v5673, %v5675
        %v5677 = vrot.slane %v4895, %v5676
        %v5679 = vunpack.c.l.s4 1983009808
        %v5680 = vunpack.c.0.s8 %v5679
        %v5681 = vlaneseq
        %v5682 = vshrl.u32 %v5681, 7
        %v5683 = vsub.s32 %v5680, %v5682
        %v5684 = vrot.slane %v5670, %v5683
        %v5685 = vcombine.low %v5662, %v5677
        %v5686 = vcombine.high %v5662, %v5677
        %v5688 = vunpack.c.l.s4 1934713408
        %v5689 = vunpack.c.0.s8 %v5688
        %v5690 = vlaneseq
        %v5691 = vshrl.u32 %v5690, 7
        %v5692 = vsub.s32 %v5689, %v5691
        %v5693 = vrot.slane %v5685, %v5692
        %v5695 = vunpack.c.l.s4 1934713408
        %v5696 = vunpack.c.0.s8 %v5695
        %v5697 = vlaneseq
        %v5698 = vshrl.u32 %v5697, 7
        %v5699 = vsub.s32 %v5696, %v5698
        %v5700 = vrot.slane %v5686, %v5699
        %v5701 = vcombine.low %v5669, %v5684
        %v5702 = vcombine.high %v5669, %v5684
        %v5704 = vunpack.c.l.s4 1934713408
        %v5705 = vunpack.c.0.s8 %v5704
        %v5706 = vlaneseq
        %v5707 = vshrl.u32 %v5706, 7
        %v5708 = vsub.s32 %v5705, %v5707
        %v5709 = vrot.slane %v5701, %v5708
        %v5711 = vunpack.c.l.s4 1934713408
        %v5712 = vunpack.c.0.s8 %v5711
        %v5713 = vlaneseq
        %v5714 = vshrl.u32 %v5713, 7
        %v5715 = vsub.s32 %v5712, %v5714
        %v5716 = vrot.slane %v5702, %v5715
        %v5717 = vcombine.high %v5693, 0
        %v5718 = vcombine.high %v5700, 0
        %v5719 = vcombine.high %v5709, 0
        %v5720 = vcombine.high %v5716, 0
        %v5721 = vcombine.high %v4899, %v1564
        %v5723 = vunpack.c.l.s4 1983009808
        %v5724 = vunpack.c.0.s8 %v5723
        %v5725 = vlaneseq
        %v5726 = vshrl.u32 %v5725, 7
        %v5727 = vsub.s32 %v5724, %v5726
        %v5728 = vrot.slane %v4899, %v5727
        %v5730 = vunpack.c.l.s4 1983009808
        %v5731 = vunpack.c.0.s8 %v5730
        %v5732 = vlaneseq
        %v5733 = vshrl.u32 %v5732, 7
        %v5734 = vsub.s32 %v5731, %v5733
        %v5735 = vrot.slane %v5721, %v5734
        %v5736 = vcombine.high %v4907, %v1564
        %v5738 = vunpack.c.l.s4 1983009808
        %v5739 = vunpack.c.0.s8 %v5738
        %v5740 = vlaneseq
        %v5741 = vshrl.u32 %v5740, 7
        %v5742 = vsub.s32 %v5739, %v5741
        %v5743 = vrot.slane %v4907, %v5742
        %v5745 = vunpack.c.l.s4 1983009808
        %v5746 = vunpack.c.0.s8 %v5745
        %v5747 = vlaneseq
        %v5748 = vshrl.u32 %v5747, 7
        %v5749 = vsub.s32 %v5746, %v5748
        %v5750 = vrot.slane %v5736, %v5749
        %v5751 = vcombine.low %v5728, %v5743
        %v5752 = vcombine.high %v5728, %v5743
        %v5754 = vunpack.c.l.s4 1934713408
        %v5755 = vunpack.c.0.s8 %v5754
        %v5756 = vlaneseq
        %v5757 = vshrl.u32 %v5756, 7
        %v5758 = vsub.s32 %v5755, %v5757
        %v5759 = vrot.slane %v5751, %v5758
        %v5761 = vunpack.c.l.s4 1934713408
        %v5762 = vunpack.c.0.s8 %v5761
        %v5763 = vlaneseq
        %v5764 = vshrl.u32 %v5763, 7
        %v5765 = vsub.s32 %v5762, %v5764
        %v5766 = vrot.slane %v5752, %v5765
        %v5767 = vcombine.low %v5735, %v5750
        %v5768 = vcombine.high %v5735, %v5750
        %v5770 = vunpack.c.l.s4 1934713408
        %v5771 = vunpack.c.0.s8 %v5770
        %v5772 = vlaneseq
        %v5773 = vshrl.u32 %v5772, 7
        %v5774 = vsub.s32 %v5771, %v5773
        %v5775 = vrot.slane %v5767, %v5774
        %v5777 = vunpack.c.l.s4 1934713408
        %v5778 = vunpack.c.0.s8 %v5777
        %v5779 = vlaneseq
        %v5780 = vshrl.u32 %v5779, 7
        %v5781 = vsub.s32 %v5778, %v5780
        %v5782 = vrot.slane %v5768, %v5781
        %v5783 = vcombine.high %v5759, 0
        %v5784 = vcombine.high %v5766, 0
        %v5785 = vcombine.high %v5775, 0
        %v5786 = vcombine.high %v5782, 0
        %v5787 = vcombine.high %v4903, %v1567
        %v5789 = vunpack.c.l.s4 1983009808
        %v5790 = vunpack.c.0.s8 %v5789
        %v5791 = vlaneseq
        %v5792 = vshrl.u32 %v5791, 7
        %v5793 = vsub.s32 %v5790, %v5792
        %v5794 = vrot.slane %v4903, %v5793
        %v5796 = vunpack.c.l.s4 1983009808
        %v5797 = vunpack.c.0.s8 %v5796
        %v5798 = vlaneseq
        %v5799 = vshrl.u32 %v5798, 7
        %v5800 = vsub.s32 %v5797, %v5799
        %v5801 = vrot.slane %v5787, %v5800
        %v5802 = vcombine.high %v4911, %v1567
        %v5804 = vunpack.c.l.s4 1983009808
        %v5805 = vunpack.c.0.s8 %v5804
        %v5806 = vlaneseq
        %v5807 = vshrl.u32 %v5806, 7
        %v5808 = vsub.s32 %v5805, %v5807
        %v5809 = vrot.slane %v4911, %v5808
        %v5811 = vunpack.c.l.s4 1983009808
        %v5812 = vunpack.c.0.s8 %v5811
        %v5813 = vlaneseq
        %v5814 = vshrl.u32 %v5813, 7
        %v5815 = vsub.s32 %v5812, %v5814
        %v5816 = vrot.slane %v5802, %v5815
        %v5817 = vcombine.low %v5794, %v5809
        %v5818 = vcombine.high %v5794, %v5809
        %v5820 = vunpack.c.l.s4 1934713408
        %v5821 = vunpack.c.0.s8 %v5820
        %v5822 = vlaneseq
        %v5823 = vshrl.u32 %v5822, 7
        %v5824 = vsub.s32 %v5821, %v5823
        %v5825 = vrot.slane %v5817, %v5824
        %v5827 = vunpack.c.l.s4 1934713408
        %v5828 = vunpack.c.0.s8 %v5827
        %v5829 = vlaneseq
        %v5830 = vshrl.u32 %v5829, 7
        %v5831 = vsub.s32 %v5828, %v5830
        %v5832 = vrot.slane %v5818, %v5831
        %v5833 = vcombine.low %v5801, %v5816
        %v5834 = vcombine.high %v5801, %v5816
        %v5836 = vunpack.c.l.s4 1934713408
        %v5837 = vunpack.c.0.s8 %v5836
        %v5838 = vlaneseq
        %v5839 = vshrl.u32 %v5838, 7
        %v5840 = vsub.s32 %v5837, %v5839
        %v5841 = vrot.slane %v5833, %v5840
        %v5843 = vunpack.c.l.s4 1934713408
        %v5844 = vunpack.c.0.s8 %v5843
        %v5845 = vlaneseq
        %v5846 = vshrl.u32 %v5845, 7
        %v5847 = vsub.s32 %v5844, %v5846
        %v5848 = vrot.slane %v5834, %v5847
        %v5849 = vcombine.high %v5825, 0
        %v5850 = vcombine.high %v5832, 0
        %v5851 = vcombine.high %v5841, 0
        %v5852 = vcombine.high %v5848, 0
        %v5853 = vcombine.high %v4915, %v1564
        %v5855 = vunpack.c.l.s4 1983009808
        %v5856 = vunpack.c.0.s8 %v5855
        %v5857 = vlaneseq
        %v5858 = vshrl.u32 %v5857, 7
        %v5859 = vsub.s32 %v5856, %v5858
        %v5860 = vrot.slane %v4915, %v5859
        %v5862 = vunpack.c.l.s4 1983009808
        %v5863 = vunpack.c.0.s8 %v5862
        %v5864 = vlaneseq
        %v5865 = vshrl.u32 %v5864, 7
        %v5866 = vsub.s32 %v5863, %v5865
        %v5867 = vrot.slane %v5853, %v5866
        %v5868 = vcombine.high %v4923, %v1564
        %v5870 = vunpack.c.l.s4 1983009808
        %v5871 = vunpack.c.0.s8 %v5870
        %v5872 = vlaneseq
        %v5873 = vshrl.u32 %v5872, 7
        %v5874 = vsub.s32 %v5871, %v5873
        %v5875 = vrot.slane %v4923, %v5874
        %v5877 = vunpack.c.l.s4 1983009808
        %v5878 = vunpack.c.0.s8 %v5877
        %v5879 = vlaneseq
        %v5880 = vshrl.u32 %v5879, 7
        %v5881 = vsub.s32 %v5878, %v5880
        %v5882 = vrot.slane %v5868, %v5881
        %v5883 = vcombine.low %v5860, %v5875
        %v5884 = vcombine.high %v5860, %v5875
        %v5886 = vunpack.c.l.s4 1934713408
        %v5887 = vunpack.c.0.s8 %v5886
        %v5888 = vlaneseq
        %v5889 = vshrl.u32 %v5888, 7
        %v5890 = vsub.s32 %v5887, %v5889
        %v5891 = vrot.slane %v5883, %v5890
        %v5893 = vunpack.c.l.s4 1934713408
        %v5894 = vunpack.c.0.s8 %v5893
        %v5895 = vlaneseq
        %v5896 = vshrl.u32 %v5895, 7
        %v5897 = vsub.s32 %v5894, %v5896
        %v5898 = vrot.slane %v5884, %v5897
        %v5899 = vcombine.low %v5867, %v5882
        %v5900 = vcombine.high %v5867, %v5882
        %v5902 = vunpack.c.l.s4 1934713408
        %v5903 = vunpack.c.0.s8 %v5902
        %v5904 = vlaneseq
        %v5905 = vshrl.u32 %v5904, 7
        %v5906 = vsub.s32 %v5903, %v5905
        %v5907 = vrot.slane %v5899, %v5906
        %v5909 = vunpack.c.l.s4 1934713408
        %v5910 = vunpack.c.0.s8 %v5909
        %v5911 = vlaneseq
        %v5912 = vshrl.u32 %v5911, 7
        %v5913 = vsub.s32 %v5910, %v5912
        %v5914 = vrot.slane %v5900, %v5913
        %v5915 = vcombine.high %v5891, 0
        %v5916 = vcombine.high %v5898, 0
        %v5917 = vcombine.high %v5907, 0
        %v5918 = vcombine.high %v5914, 0
        %v5919 = vcombine.high %v4919, %v1567
        %v5921 = vunpack.c.l.s4 1983009808
        %v5922 = vunpack.c.0.s8 %v5921
        %v5923 = vlaneseq
        %v5924 = vshrl.u32 %v5923, 7
        %v5925 = vsub.s32 %v5922, %v5924
        %v5926 = vrot.slane %v4919, %v5925
        %v5928 = vunpack.c.l.s4 1983009808
        %v5929 = vunpack.c.0.s8 %v5928
        %v5930 = vlaneseq
        %v5931 = vshrl.u32 %v5930, 7
        %v5932 = vsub.s32 %v5929, %v5931
        %v5933 = vrot.slane %v5919, %v5932
        %v5934 = vcombine.high %v4927, %v1567
        %v5936 = vunpack.c.l.s4 1983009808
        %v5937 = vunpack.c.0.s8 %v5936
        %v5938 = vlaneseq
        %v5939 = vshrl.u32 %v5938, 7
        %v5940 = vsub.s32 %v5937, %v5939
        %v5941 = vrot.slane %v4927, %v5940
        %v5943 = vunpack.c.l.s4 1983009808
        %v5944 = vunpack.c.0.s8 %v5943
        %v5945 = vlaneseq
        %v5946 = vshrl.u32 %v5945, 7
        %v5947 = vsub.s32 %v5944, %v5946
        %v5948 = vrot.slane %v5934, %v5947
        %v5949 = vcombine.low %v5926, %v5941
        %v5950 = vcombine.high %v5926, %v5941
        %v5952 = vunpack.c.l.s4 1934713408
        %v5953 = vunpack.c.0.s8 %v5952
        %v5954 = vlaneseq
        %v5955 = vshrl.u32 %v5954, 7
        %v5956 = vsub.s32 %v5953, %v5955
        %v5957 = vrot.slane %v5949, %v5956
        %v5959 = vunpack.c.l.s4 1934713408
        %v5960 = vunpack.c.0.s8 %v5959
        %v5961 = vlaneseq
        %v5962 = vshrl.u32 %v5961, 7
        %v5963 = vsub.s32 %v5960, %v5962
        %v5964 = vrot.slane %v5950, %v5963
        %v5965 = vcombine.low %v5933, %v5948
        %v5966 = vcombine.high %v5933, %v5948
        %v5968 = vunpack.c.l.s4 1934713408
        %v5969 = vunpack.c.0.s8 %v5968
        %v5970 = vlaneseq
        %v5971 = vshrl.u32 %v5970, 7
        %v5972 = vsub.s32 %v5969, %v5971
        %v5973 = vrot.slane %v5965, %v5972
        %v5975 = vunpack.c.l.s4 1934713408
        %v5976 = vunpack.c.0.s8 %v5975
        %v5977 = vlaneseq
        %v5978 = vshrl.u32 %v5977, 7
        %v5979 = vsub.s32 %v5976, %v5978
        %v5980 = vrot.slane %v5966, %v5979
        %v5981 = vcombine.high %v5957, 0
        %v5982 = vcombine.high %v5964, 0
        %v5983 = vcombine.high %v5973, 0
        %v5984 = vcombine.high %v5980, 0
        %v5985 = vcombine.low %v4967, %v4974
        %v5987 = vunpack.c.l.s4 1983009808
        %v5988 = vunpack.c.0.s8 %v5987
        %v5989 = vlaneseq
        %v5990 = vshrl.u32 %v5989, 7
        %v5991 = vsub.s32 %v5988, %v5990
        %v5992 = vrot.slane %v5985, %v5991
        %v5993 = vcombine.low %v4991, %v4992
        %v5995 = vunpack.c.l.s4 1983009808
        %v5996 = vunpack.c.0.s8 %v5995
        %v5997 = vlaneseq
        %v5998 = vshrl.u32 %v5997, 7
        %v5999 = vsub.s32 %v5996, %v5998
        %v6000 = vrot.slane %v5993, %v5999
        %v6001 = vcombine.low %v4983, %v4990
        %v6003 = vunpack.c.l.s4 1983009808
        %v6004 = vunpack.c.0.s8 %v6003
        %v6005 = vlaneseq
        %v6006 = vshrl.u32 %v6005, 7
        %v6007 = vsub.s32 %v6004, %v6006
        %v6008 = vrot.slane %v6001, %v6007
        %v6009 = vcombine.low %v4993, %v4994
        %v6011 = vunpack.c.l.s4 1983009808
        %v6012 = vunpack.c.0.s8 %v6011
        %v6013 = vlaneseq
        %v6014 = vshrl.u32 %v6013, 7
        %v6015 = vsub.s32 %v6012, %v6014
        %v6016 = vrot.slane %v6009, %v6015
        %v6017 = vcombine.low %v5992, %v6000
        %v6019 = vunpack.c.l.s4 1934713408
        %v6020 = vunpack.c.0.s8 %v6019
        %v6021 = vlaneseq
        %v6022 = vshrl.u32 %v6021, 7
        %v6023 = vsub.s32 %v6020, %v6022
        %v6024 = vrot.slane %v6017, %v6023
        %v6025 = vcombine.low %v6008, %v6016
        %v6027 = vunpack.c.l.s4 1934713408
        %v6028 = vunpack.c.0.s8 %v6027
        %v6029 = vlaneseq
        %v6030 = vshrl.u32 %v6029, 7
        %v6031 = vsub.s32 %v6028, %v6030
        %v6032 = vrot.slane %v6025, %v6031
        %v6033 = vcombine.low %v6024, %v6032
        %v6034 = vcombine.high %v6024, %v6032
        %v6035 = vcombine.low %v5033, %v5040
        %v6037 = vunpack.c.l.s4 1983009808
        %v6038 = vunpack.c.0.s8 %v6037
        %v6039 = vlaneseq
        %v6040 = vshrl.u32 %v6039, 7
        %v6041 = vsub.s32 %v6038, %v6040
        %v6042 = vrot.slane %v6035, %v6041
        %v6043 = vcombine.low %v5057, %v5058
        %v6045 = vunpack.c.l.s4 1983009808
        %v6046 = vunpack.c.0.s8 %v6045
        %v6047 = vlaneseq
        %v6048 = vshrl.u32 %v6047, 7
        %v6049 = vsub.s32 %v6046, %v6048
        %v6050 = vrot.slane %v6043, %v6049
        %v6051 = vcombine.low %v5049, %v5056
        %v6053 = vunpack.c.l.s4 1983009808
        %v6054 = vunpack.c.0.s8 %v6053
        %v6055 = vlaneseq
        %v6056 = vshrl.u32 %v6055, 7
        %v6057 = vsub.s32 %v6054, %v6056
        %v6058 = vrot.slane %v6051, %v6057
        %v6059 = vcombine.low %v5059, %v5060
        %v6061 = vunpack.c.l.s4 1983009808
        %v6062 = vunpack.c.0.s8 %v6061
        %v6063 = vlaneseq
        %v6064 = vshrl.u32 %v6063, 7
        %v6065 = vsub.s32 %v6062, %v6064
        %v6066 = vrot.slane %v6059, %v6065
        %v6067 = vcombine.low %v6042, %v6050
        %v6069 = vunpack.c.l.s4 1934713408
        %v6070 = vunpack.c.0.s8 %v6069
        %v6071 = vlaneseq
        %v6072 = vshrl.u32 %v6071, 7
        %v6073 = vsub.s32 %v6070, %v6072
        %v6074 = vrot.slane %v6067, %v6073
        %v6075 = vcombine.low %v6058, %v6066
        %v6077 = vunpack.c.l.s4 1934713408
        %v6078 = vunpack.c.0.s8 %v6077
        %v6079 = vlaneseq
        %v6080 = vshrl.u32 %v6079, 7
        %v6081 = vsub.s32 %v6078, %v6080
        %v6082 = vrot.slane %v6075, %v6081
        %v6083 = vcombine.low %v6074, %v6082
        %v6084 = vcombine.high %v6074, %v6082
        %v6085 = vcombine.low %v5099, %v5106
        %v6087 = vunpack.c.l.s4 1983009808
        %v6088 = vunpack.c.0.s8 %v6087
        %v6089 = vlaneseq
        %v6090 = vshrl.u32 %v6089, 7
        %v6091 = vsub.s32 %v6088, %v6090
        %v6092 = vrot.slane %v6085, %v6091
        %v6093 = vcombine.low %v5123, %v5124
        %v6095 = vunpack.c.l.s4 1983009808
        %v6096 = vunpack.c.0.s8 %v6095
        %v6097 = vlaneseq
        %v6098 = vshrl.u32 %v6097, 7
        %v6099 = vsub.s32 %v6096, %v6098
        %v6100 = vrot.slane %v6093, %v6099
        %v6101 = vcombine.low %v5115, %v5122
        %v6103 = vunpack.c.l.s4 1983009808
        %v6104 = vunpack.c.0.s8 %v6103
        %v6105 = vlaneseq
        %v6106 = vshrl.u32 %v6105, 7
        %v6107 = vsub.s32 %v6104, %v6106
        %v6108 = vrot.slane %v6101, %v6107
        %v6109 = vcombine.low %v5125, %v5126
        %v6111 = vunpack.c.l.s4 1983009808
        %v6112 = vunpack.c.0.s8 %v6111
        %v6113 = vlaneseq
        %v6114 = vshrl.u32 %v6113, 7
        %v6115 = vsub.s32 %v6112, %v6114
        %v6116 = vrot.slane %v6109, %v6115
        %v6117 = vcombine.low %v6092, %v6100
        %v6119 = vunpack.c.l.s4 1934713408
        %v6120 = vunpack.c.0.s8 %v6119
        %v6121 = vlaneseq
        %v6122 = vshrl.u32 %v6121, 7
        %v6123 = vsub.s32 %v6120, %v6122
        %v6124 = vrot.slane %v6117, %v6123
        %v6125 = vcombine.low %v6108, %v6116
        %v6127 = vunpack.c.l.s4 1934713408
        %v6128 = vunpack.c.0.s8 %v6127
        %v6129 = vlaneseq
        %v6130 = vshrl.u32 %v6129, 7
        %v6131 = vsub.s32 %v6128, %v6130
        %v6132 = vrot.slane %v6125, %v6131
        %v6133 = vcombine.low %v6124, %v6132
        %v6134 = vcombine.high %v6124, %v6132
        %v6135 = vcombine.low %v5165, %v5172
        %v6137 = vunpack.c.l.s4 1983009808
        %v6138 = vunpack.c.0.s8 %v6137
        %v6139 = vlaneseq
        %v6140 = vshrl.u32 %v6139, 7
        %v6141 = vsub.s32 %v6138, %v6140
        %v6142 = vrot.slane %v6135, %v6141
        %v6143 = vcombine.low %v5189, %v5190
        %v6145 = vunpack.c.l.s4 1983009808
        %v6146 = vunpack.c.0.s8 %v6145
        %v6147 = vlaneseq
        %v6148 = vshrl.u32 %v6147, 7
        %v6149 = vsub.s32 %v6146, %v6148
        %v6150 = vrot.slane %v6143, %v6149
        %v6151 = vcombine.low %v5181, %v5188
        %v6153 = vunpack.c.l.s4 1983009808
        %v6154 = vunpack.c.0.s8 %v6153
        %v6155 = vlaneseq
        %v6156 = vshrl.u32 %v6155, 7
        %v6157 = vsub.s32 %v6154, %v6156
        %v6158 = vrot.slane %v6151, %v6157
        %v6159 = vcombine.low %v5191, %v5192
        %v6161 = vunpack.c.l.s4 1983009808
        %v6162 = vunpack.c.0.s8 %v6161
        %v6163 = vlaneseq
        %v6164 = vshrl.u32 %v6163, 7
        %v6165 = vsub.s32 %v6162, %v6164
        %v6166 = vrot.slane %v6159, %v6165
        %v6167 = vcombine.low %v6142, %v6150
        %v6169 = vunpack.c.l.s4 1934713408
        %v6170 = vunpack.c.0.s8 %v6169
        %v6171 = vlaneseq
        %v6172 = vshrl.u32 %v6171, 7
        %v6173 = vsub.s32 %v6170, %v6172
        %v6174 = vrot.slane %v6167, %v6173
        %v6175 = vcombine.low %v6158, %v6166
        %v6177 = vunpack.c.l.s4 1934713408
        %v6178 = vunpack.c.0.s8 %v6177
        %v6179 = vlaneseq
        %v6180 = vshrl.u32 %v6179, 7
        %v6181 = vsub.s32 %v6178, %v6180
        %v6182 = vrot.slane %v6175, %v6181
        %v6183 = vcombine.low %v6174, %v6182
        %v6184 = vcombine.high %v6174, %v6182
        %v6185 = vcombine.low %v5231, %v5238
        %v6187 = vunpack.c.l.s4 1983009808
        %v6188 = vunpack.c.0.s8 %v6187
        %v6189 = vlaneseq
        %v6190 = vshrl.u32 %v6189, 7
        %v6191 = vsub.s32 %v6188, %v6190
        %v6192 = vrot.slane %v6185, %v6191
        %v6193 = vcombine.low %v5255, %v5256
        %v6195 = vunpack.c.l.s4 1983009808
        %v6196 = vunpack.c.0.s8 %v6195
        %v6197 = vlaneseq
        %v6198 = vshrl.u32 %v6197, 7
        %v6199 = vsub.s32 %v6196, %v6198
        %v6200 = vrot.slane %v6193, %v6199
        %v6201 = vcombine.low %v5247, %v5254
        %v6203 = vunpack.c.l.s4 1983009808
        %v6204 = vunpack.c.0.s8 %v6203
        %v6205 = vlaneseq
        %v6206 = vshrl.u32 %v6205, 7
        %v6207 = vsub.s32 %v6204, %v6206
        %v6208 = vrot.slane %v6201, %v6207
        %v6209 = vcombine.low %v5257, %v5258
        %v6211 = vunpack.c.l.s4 1983009808
        %v6212 = vunpack.c.0.s8 %v6211
        %v6213 = vlaneseq
        %v6214 = vshrl.u32 %v6213, 7
        %v6215 = vsub.s32 %v6212, %v6214
        %v6216 = vrot.slane %v6209, %v6215
        %v6217 = vcombine.low %v6192, %v6200
        %v6219 = vunpack.c.l.s4 1934713408
        %v6220 = vunpack.c.0.s8 %v6219
        %v6221 = vlaneseq
        %v6222 = vshrl.u32 %v6221, 7
        %v6223 = vsub.s32 %v6220, %v6222
        %v6224 = vrot.slane %v6217, %v6223
        %v6225 = vcombine.low %v6208, %v6216
        %v6227 = vunpack.c.l.s4 1934713408
        %v6228 = vunpack.c.0.s8 %v6227
        %v6229 = vlaneseq
        %v6230 = vshrl.u32 %v6229, 7
        %v6231 = vsub.s32 %v6228, %v6230
        %v6232 = vrot.slane %v6225, %v6231
        %v6233 = vcombine.low %v6224, %v6232
        %v6234 = vcombine.high %v6224, %v6232
        %v6235 = vcombine.low %v5297, %v5304
        %v6237 = vunpack.c.l.s4 1983009808
        %v6238 = vunpack.c.0.s8 %v6237
        %v6239 = vlaneseq
        %v6240 = vshrl.u32 %v6239, 7
        %v6241 = vsub.s32 %v6238, %v6240
        %v6242 = vrot.slane %v6235, %v6241
        %v6243 = vcombine.low %v5321, %v5322
        %v6245 = vunpack.c.l.s4 1983009808
        %v6246 = vunpack.c.0.s8 %v6245
        %v6247 = vlaneseq
        %v6248 = vshrl.u32 %v6247, 7
        %v6249 = vsub.s32 %v6246, %v6248
        %v6250 = vrot.slane %v6243, %v6249
        %v6251 = vcombine.low %v5313, %v5320
        %v6253 = vunpack.c.l.s4 1983009808
        %v6254 = vunpack.c.0.s8 %v6253
        %v6255 = vlaneseq
        %v6256 = vshrl.u32 %v6255, 7
        %v6257 = vsub.s32 %v6254, %v6256
        %v6258 = vrot.slane %v6251, %v6257
        %v6259 = vcombine.low %v5323, %v5324
        %v6261 = vunpack.c.l.s4 1983009808
        %v6262 = vunpack.c.0.s8 %v6261
        %v6263 = vlaneseq
        %v6264 = vshrl.u32 %v6263, 7
        %v6265 = vsub.s32 %v6262, %v6264
        %v6266 = vrot.slane %v6259, %v6265
        %v6267 = vcombine.low %v6242, %v6250
        %v6269 = vunpack.c.l.s4 1934713408
        %v6270 = vunpack.c.0.s8 %v6269
        %v6271 = vlaneseq
        %v6272 = vshrl.u32 %v6271, 7
        %v6273 = vsub.s32 %v6270, %v6272
        %v6274 = vrot.slane %v6267, %v6273
        %v6275 = vcombine.low %v6258, %v6266
        %v6277 = vunpack.c.l.s4 1934713408
        %v6278 = vunpack.c.0.s8 %v6277
        %v6279 = vlaneseq
        %v6280 = vshrl.u32 %v6279, 7
        %v6281 = vsub.s32 %v6278, %v6280
        %v6282 = vrot.slane %v6275, %v6281
        %v6283 = vcombine.low %v6274, %v6282
        %v6284 = vcombine.high %v6274, %v6282
        %v6285 = vcombine.low %v5363, %v5370
        %v6287 = vunpack.c.l.s4 1983009808
        %v6288 = vunpack.c.0.s8 %v6287
        %v6289 = vlaneseq
        %v6290 = vshrl.u32 %v6289, 7
        %v6291 = vsub.s32 %v6288, %v6290
        %v6292 = vrot.slane %v6285, %v6291
        %v6293 = vcombine.low %v5387, %v5388
        %v6295 = vunpack.c.l.s4 1983009808
        %v6296 = vunpack.c.0.s8 %v6295
        %v6297 = vlaneseq
        %v6298 = vshrl.u32 %v6297, 7
        %v6299 = vsub.s32 %v6296, %v6298
        %v6300 = vrot.slane %v6293, %v6299
        %v6301 = vcombine.low %v5379, %v5386
        %v6303 = vunpack.c.l.s4 1983009808
        %v6304 = vunpack.c.0.s8 %v6303
        %v6305 = vlaneseq
        %v6306 = vshrl.u32 %v6305, 7
        %v6307 = vsub.s32 %v6304, %v6306
        %v6308 = vrot.slane %v6301, %v6307
        %v6309 = vcombine.low %v5389, %v5390
        %v6311 = vunpack.c.l.s4 1983009808
        %v6312 = vunpack.c.0.s8 %v6311
        %v6313 = vlaneseq
        %v6314 = vshrl.u32 %v6313, 7
        %v6315 = vsub.s32 %v6312, %v6314
        %v6316 = vrot.slane %v6309, %v6315
        %v6317 = vcombine.low %v6292, %v6300
        %v6319 = vunpack.c.l.s4 1934713408
        %v6320 = vunpack.c.0.s8 %v6319
        %v6321 = vlaneseq
        %v6322 = vshrl.u32 %v6321, 7
        %v6323 = vsub.s32 %v6320, %v6322
        %v6324 = vrot.slane %v6317, %v6323
        %v6325 = vcombine.low %v6308, %v6316
        %v6327 = vunpack.c.l.s4 1934713408
        %v6328 = vunpack.c.0.s8 %v6327
        %v6329 = vlaneseq
        %v6330 = vshrl.u32 %v6329, 7
        %v6331 = vsub.s32 %v6328, %v6330
        %v6332 = vrot.slane %v6325, %v6331
        %v6333 = vcombine.low %v6324, %v6332
        %v6334 = vcombine.high %v6324, %v6332
        %v6335 = vcombine.low %v5429, %v5436
        %v6337 = vunpack.c.l.s4 1983009808
        %v6338 = vunpack.c.0.s8 %v6337
        %v6339 = vlaneseq
        %v6340 = vshrl.u32 %v6339, 7
        %v6341 = vsub.s32 %v6338, %v6340
        %v6342 = vrot.slane %v6335, %v6341
        %v6343 = vcombine.low %v5453, %v5454
        %v6345 = vunpack.c.l.s4 1983009808
        %v6346 = vunpack.c.0.s8 %v6345
        %v6347 = vlaneseq
        %v6348 = vshrl.u32 %v6347, 7
        %v6349 = vsub.s32 %v6346, %v6348
        %v6350 = vrot.slane %v6343, %v6349
        %v6351 = vcombine.low %v5445, %v5452
        %v6353 = vunpack.c.l.s4 1983009808
        %v6354 = vunpack.c.0.s8 %v6353
        %v6355 = vlaneseq
        %v6356 = vshrl.u32 %v6355, 7
        %v6357 = vsub.s32 %v6354, %v6356
        %v6358 = vrot.slane %v6351, %v6357
        %v6359 = vcombine.low %v5455, %v5456
        %v6361 = vunpack.c.l.s4 1983009808
        %v6362 = vunpack.c.0.s8 %v6361
        %v6363 = vlaneseq
        %v6364 = vshrl.u32 %v6363, 7
        %v6365 = vsub.s32 %v6362, %v6364
        %v6366 = vrot.slane %v6359, %v6365
        %v6367 = vcombine.low %v6342, %v6350
        %v6369 = vunpack.c.l.s4 1934713408
        %v6370 = vunpack.c.0.s8 %v6369
        %v6371 = vlaneseq
        %v6372 = vshrl.u32 %v6371, 7
        %v6373 = vsub.s32 %v6370, %v6372
        %v6374 = vrot.slane %v6367, %v6373
        %v6375 = vcombine.low %v6358, %v6366
        %v6377 = vunpack.c.l.s4 1934713408
        %v6378 = vunpack.c.0.s8 %v6377
        %v6379 = vlaneseq
        %v6380 = vshrl.u32 %v6379, 7
        %v6381 = vsub.s32 %v6378, %v6380
        %v6382 = vrot.slane %v6375, %v6381
        %v6383 = vcombine.low %v6374, %v6382
        %v6384 = vcombine.high %v6374, %v6382
        %v6385 = vcombine.low %v5495, %v5502
        %v6387 = vunpack.c.l.s4 1983009808
        %v6388 = vunpack.c.0.s8 %v6387
        %v6389 = vlaneseq
        %v6390 = vshrl.u32 %v6389, 7
        %v6391 = vsub.s32 %v6388, %v6390
        %v6392 = vrot.slane %v6385, %v6391
        %v6393 = vcombine.low %v5519, %v5520
        %v6395 = vunpack.c.l.s4 1983009808
        %v6396 = vunpack.c.0.s8 %v6395
        %v6397 = vlaneseq
        %v6398 = vshrl.u32 %v6397, 7
        %v6399 = vsub.s32 %v6396, %v6398
        %v6400 = vrot.slane %v6393, %v6399
        %v6401 = vcombine.low %v5511, %v5518
        %v6403 = vunpack.c.l.s4 1983009808
        %v6404 = vunpack.c.0.s8 %v6403
        %v6405 = vlaneseq
        %v6406 = vshrl.u32 %v6405, 7
        %v6407 = vsub.s32 %v6404, %v6406
        %v6408 = vrot.slane %v6401, %v6407
        %v6409 = vcombine.low %v5521, %v5522
        %v6411 = vunpack.c.l.s4 1983009808
        %v6412 = vunpack.c.0.s8 %v6411
        %v6413 = vlaneseq
        %v6414 = vshrl.u32 %v6413, 7
        %v6415 = vsub.s32 %v6412, %v6414
        %v6416 = vrot.slane %v6409, %v6415
        %v6417 = vcombine.low %v6392, %v6400
        %v6419 = vunpack.c.l.s4 1934713408
        %v6420 = vunpack.c.0.s8 %v6419
        %v6421 = vlaneseq
        %v6422 = vshrl.u32 %v6421, 7
        %v6423 = vsub.s32 %v6420, %v6422
        %v6424 = vrot.slane %v6417, %v6423
        %v6425 = vcombine.low %v6408, %v6416
        %v6427 = vunpack.c.l.s4 1934713408
        %v6428 = vunpack.c.0.s8 %v6427
        %v6429 = vlaneseq
        %v6430 = vshrl.u32 %v6429, 7
        %v6431 = vsub.s32 %v6428, %v6430
        %v6432 = vrot.slane %v6425, %v6431
        %v6433 = vcombine.low %v6424, %v6432
        %v6434 = vcombine.high %v6424, %v6432
        %v6435 = vcombine.low %v5561, %v5568
        %v6437 = vunpack.c.l.s4 1983009808
        %v6438 = vunpack.c.0.s8 %v6437
        %v6439 = vlaneseq
        %v6440 = vshrl.u32 %v6439, 7
        %v6441 = vsub.s32 %v6438, %v6440
        %v6442 = vrot.slane %v6435, %v6441
        %v6443 = vcombine.low %v5585, %v5586
        %v6445 = vunpack.c.l.s4 1983009808
        %v6446 = vunpack.c.0.s8 %v6445
        %v6447 = vlaneseq
        %v6448 = vshrl.u32 %v6447, 7
        %v6449 = vsub.s32 %v6446, %v6448
        %v6450 = vrot.slane %v6443, %v6449
        %v6451 = vcombine.low %v5577, %v5584
        %v6453 = vunpack.c.l.s4 1983009808
        %v6454 = vunpack.c.0.s8 %v6453
        %v6455 = vlaneseq
        %v6456 = vshrl.u32 %v6455, 7
        %v6457 = vsub.s32 %v6454, %v6456
        %v6458 = vrot.slane %v6451, %v6457
        %v6459 = vcombine.low %v5587, %v5588
        %v6461 = vunpack.c.l.s4 1983009808
        %v6462 = vunpack.c.0.s8 %v6461
        %v6463 = vlaneseq
        %v6464 = vshrl.u32 %v6463, 7
        %v6465 = vsub.s32 %v6462, %v6464
        %v6466 = vrot.slane %v6459, %v6465
        %v6467 = vcombine.low %v6442, %v6450
        %v6469 = vunpack.c.l.s4 1934713408
        %v6470 = vunpack.c.0.s8 %v6469
        %v6471 = vlaneseq
        %v6472 = vshrl.u32 %v6471, 7
        %v6473 = vsub.s32 %v6470, %v6472
        %v6474 = vrot.slane %v6467, %v6473
        %v6475 = vcombine.low %v6458, %v6466
        %v6477 = vunpack.c.l.s4 1934713408
        %v6478 = vunpack.c.0.s8 %v6477
        %v6479 = vlaneseq
        %v6480 = vshrl.u32 %v6479, 7
        %v6481 = vsub.s32 %v6478, %v6480
        %v6482 = vrot.slane %v6475, %v6481
        %v6483 = vcombine.low %v6474, %v6482
        %v6484 = vcombine.high %v6474, %v6482
        %v6485 = vcombine.low %v5627, %v5634
        %v6487 = vunpack.c.l.s4 1983009808
        %v6488 = vunpack.c.0.s8 %v6487
        %v6489 = vlaneseq
        %v6490 = vshrl.u32 %v6489, 7
        %v6491 = vsub.s32 %v6488, %v6490
        %v6492 = vrot.slane %v6485, %v6491
        %v6493 = vcombine.low %v5651, %v5652
        %v6495 = vunpack.c.l.s4 1983009808
        %v6496 = vunpack.c.0.s8 %v6495
        %v6497 = vlaneseq
        %v6498 = vshrl.u32 %v6497, 7
        %v6499 = vsub.s32 %v6496, %v6498
        %v6500 = vrot.slane %v6493, %v6499
        %v6501 = vcombine.low %v5643, %v5650
        %v6503 = vunpack.c.l.s4 1983009808
        %v6504 = vunpack.c.0.s8 %v6503
        %v6505 = vlaneseq
        %v6506 = vshrl.u32 %v6505, 7
        %v6507 = vsub.s32 %v6504, %v6506
        %v6508 = vrot.slane %v6501, %v6507
        %v6509 = vcombine.low %v5653, %v5654
        %v6511 = vunpack.c.l.s4 1983009808
        %v6512 = vunpack.c.0.s8 %v6511
        %v6513 = vlaneseq
        %v6514 = vshrl.u32 %v6513, 7
        %v6515 = vsub.s32 %v6512, %v6514
        %v6516 = vrot.slane %v6509, %v6515
        %v6517 = vcombine.low %v6492, %v6500
        %v6519 = vunpack.c.l.s4 1934713408
        %v6520 = vunpack.c.0.s8 %v6519
        %v6521 = vlaneseq
        %v6522 = vshrl.u32 %v6521, 7
        %v6523 = vsub.s32 %v6520, %v6522
        %v6524 = vrot.slane %v6517, %v6523
        %v6525 = vcombine.low %v6508, %v6516
        %v6527 = vunpack.c.l.s4 1934713408
        %v6528 = vunpack.c.0.s8 %v6527
        %v6529 = vlaneseq
        %v6530 = vshrl.u32 %v6529, 7
        %v6531 = vsub.s32 %v6528, %v6530
        %v6532 = vrot.slane %v6525, %v6531
        %v6533 = vcombine.low %v6524, %v6532
        %v6534 = vcombine.high %v6524, %v6532
        %v6535 = vcombine.low %v5693, %v5700
        %v6537 = vunpack.c.l.s4 1983009808
        %v6538 = vunpack.c.0.s8 %v6537
        %v6539 = vlaneseq
        %v6540 = vshrl.u32 %v6539, 7
        %v6541 = vsub.s32 %v6538, %v6540
        %v6542 = vrot.slane %v6535, %v6541
        %v6543 = vcombine.low %v5717, %v5718
        %v6545 = vunpack.c.l.s4 1983009808
        %v6546 = vunpack.c.0.s8 %v6545
        %v6547 = vlaneseq
        %v6548 = vshrl.u32 %v6547, 7
        %v6549 = vsub.s32 %v6546, %v6548
        %v6550 = vrot.slane %v6543, %v6549
        %v6551 = vcombine.low %v5709, %v5716
        %v6553 = vunpack.c.l.s4 1983009808
        %v6554 = vunpack.c.0.s8 %v6553
        %v6555 = vlaneseq
        %v6556 = vshrl.u32 %v6555, 7
        %v6557 = vsub.s32 %v6554, %v6556
        %v6558 = vrot.slane %v6551, %v6557
        %v6559 = vcombine.low %v5719, %v5720
        %v6561 = vunpack.c.l.s4 1983009808
        %v6562 = vunpack.c.0.s8 %v6561
        %v6563 = vlaneseq
        %v6564 = vshrl.u32 %v6563, 7
        %v6565 = vsub.s32 %v6562, %v6564
        %v6566 = vrot.slane %v6559, %v6565
        %v6567 = vcombine.low %v6542, %v6550
        %v6569 = vunpack.c.l.s4 1934713408
        %v6570 = vunpack.c.0.s8 %v6569
        %v6571 = vlaneseq
        %v6572 = vshrl.u32 %v6571, 7
        %v6573 = vsub.s32 %v6570, %v6572
        %v6574 = vrot.slane %v6567, %v6573
        %v6575 = vcombine.low %v6558, %v6566
        %v6577 = vunpack.c.l.s4 1934713408
        %v6578 = vunpack.c.0.s8 %v6577
        %v6579 = vlaneseq
        %v6580 = vshrl.u32 %v6579, 7
        %v6581 = vsub.s32 %v6578, %v6580
        %v6582 = vrot.slane %v6575, %v6581
        %v6583 = vcombine.low %v6574, %v6582
        %v6584 = vcombine.high %v6574, %v6582
        %v6585 = vcombine.low %v5759, %v5766
        %v6587 = vunpack.c.l.s4 1983009808
        %v6588 = vunpack.c.0.s8 %v6587
        %v6589 = vlaneseq
        %v6590 = vshrl.u32 %v6589, 7
        %v6591 = vsub.s32 %v6588, %v6590
        %v6592 = vrot.slane %v6585, %v6591
        %v6593 = vcombine.low %v5783, %v5784
        %v6595 = vunpack.c.l.s4 1983009808
        %v6596 = vunpack.c.0.s8 %v6595
        %v6597 = vlaneseq
        %v6598 = vshrl.u32 %v6597, 7
        %v6599 = vsub.s32 %v6596, %v6598
        %v6600 = vrot.slane %v6593, %v6599
        %v6601 = vcombine.low %v5775, %v5782
        %v6603 = vunpack.c.l.s4 1983009808
        %v6604 = vunpack.c.0.s8 %v6603
        %v6605 = vlaneseq
        %v6606 = vshrl.u32 %v6605, 7
        %v6607 = vsub.s32 %v6604, %v6606
        %v6608 = vrot.slane %v6601, %v6607
        %v6609 = vcombine.low %v5785, %v5786
        %v6611 = vunpack.c.l.s4 1983009808
        %v6612 = vunpack.c.0.s8 %v6611
        %v6613 = vlaneseq
        %v6614 = vshrl.u32 %v6613, 7
        %v6615 = vsub.s32 %v6612, %v6614
        %v6616 = vrot.slane %v6609, %v6615
        %v6617 = vcombine.low %v6592, %v6600
        %v6619 = vunpack.c.l.s4 1934713408
        %v6620 = vunpack.c.0.s8 %v6619
        %v6621 = vlaneseq
        %v6622 = vshrl.u32 %v6621, 7
        %v6623 = vsub.s32 %v6620, %v6622
        %v6624 = vrot.slane %v6617, %v6623
        %v6625 = vcombine.low %v6608, %v6616
        %v6627 = vunpack.c.l.s4 1934713408
        %v6628 = vunpack.c.0.s8 %v6627
        %v6629 = vlaneseq
        %v6630 = vshrl.u32 %v6629, 7
        %v6631 = vsub.s32 %v6628, %v6630
        %v6632 = vrot.slane %v6625, %v6631
        %v6633 = vcombine.low %v6624, %v6632
        %v6634 = vcombine.high %v6624, %v6632
        %v6635 = vcombine.low %v5825, %v5832
        %v6637 = vunpack.c.l.s4 1983009808
        %v6638 = vunpack.c.0.s8 %v6637
        %v6639 = vlaneseq
        %v6640 = vshrl.u32 %v6639, 7
        %v6641 = vsub.s32 %v6638, %v6640
        %v6642 = vrot.slane %v6635, %v6641
        %v6643 = vcombine.low %v5849, %v5850
        %v6645 = vunpack.c.l.s4 1983009808
        %v6646 = vunpack.c.0.s8 %v6645
        %v6647 = vlaneseq
        %v6648 = vshrl.u32 %v6647, 7
        %v6649 = vsub.s32 %v6646, %v6648
        %v6650 = vrot.slane %v6643, %v6649
        %v6651 = vcombine.low %v5841, %v5848
        %v6653 = vunpack.c.l.s4 1983009808
        %v6654 = vunpack.c.0.s8 %v6653
        %v6655 = vlaneseq
        %v6656 = vshrl.u32 %v6655, 7
        %v6657 = vsub.s32 %v6654, %v6656
        %v6658 = vrot.slane %v6651, %v6657
        %v6659 = vcombine.low %v5851, %v5852
        %v6661 = vunpack.c.l.s4 1983009808
        %v6662 = vunpack.c.0.s8 %v6661
        %v6663 = vlaneseq
        %v6664 = vshrl.u32 %v6663, 7
        %v6665 = vsub.s32 %v6662, %v6664
        %v6666 = vrot.slane %v6659, %v6665
        %v6667 = vcombine.low %v6642, %v6650
        %v6669 = vunpack.c.l.s4 1934713408
        %v6670 = vunpack.c.0.s8 %v6669
        %v6671 = vlaneseq
        %v6672 = vshrl.u32 %v6671, 7
        %v6673 = vsub.s32 %v6670, %v6672
        %v6674 = vrot.slane %v6667, %v6673
        %v6675 = vcombine.low %v6658, %v6666
        %v6677 = vunpack.c.l.s4 1934713408
        %v6678 = vunpack.c.0.s8 %v6677
        %v6679 = vlaneseq
        %v6680 = vshrl.u32 %v6679, 7
        %v6681 = vsub.s32 %v6678, %v6680
        %v6682 = vrot.slane %v6675, %v6681
        %v6683 = vcombine.low %v6674, %v6682
        %v6684 = vcombine.high %v6674, %v6682
        %v6685 = vcombine.low %v5891, %v5898
        %v6687 = vunpack.c.l.s4 1983009808
        %v6688 = vunpack.c.0.s8 %v6687
        %v6689 = vlaneseq
        %v6690 = vshrl.u32 %v6689, 7
        %v6691 = vsub.s32 %v6688, %v6690
        %v6692 = vrot.slane %v6685, %v6691
        %v6693 = vcombine.low %v5915, %v5916
        %v6695 = vunpack.c.l.s4 1983009808
        %v6696 = vunpack.c.0.s8 %v6695
        %v6697 = vlaneseq
        %v6698 = vshrl.u32 %v6697, 7
        %v6699 = vsub.s32 %v6696, %v6698
        %v6700 = vrot.slane %v6693, %v6699
        %v6701 = vcombine.low %v5907, %v5914
        %v6703 = vunpack.c.l.s4 1983009808
        %v6704 = vunpack.c.0.s8 %v6703
        %v6705 = vlaneseq
        %v6706 = vshrl.u32 %v6705, 7
        %v6707 = vsub.s32 %v6704, %v6706
        %v6708 = vrot.slane %v6701, %v6707
        %v6709 = vcombine.low %v5917, %v5918
        %v6711 = vunpack.c.l.s4 1983009808
        %v6712 = vunpack.c.0.s8 %v6711
        %v6713 = vlaneseq
        %v6714 = vshrl.u32 %v6713, 7
        %v6715 = vsub.s32 %v6712, %v6714
        %v6716 = vrot.slane %v6709, %v6715
        %v6717 = vcombine.low %v6692, %v6700
        %v6719 = vunpack.c.l.s4 1934713408
        %v6720 = vunpack.c.0.s8 %v6719
        %v6721 = vlaneseq
        %v6722 = vshrl.u32 %v6721, 7
        %v6723 = vsub.s32 %v6720, %v6722
        %v6724 = vrot.slane %v6717, %v6723
        %v6725 = vcombine.low %v6708, %v6716
        %v6727 = vunpack.c.l.s4 1934713408
        %v6728 = vunpack.c.0.s8 %v6727
        %v6729 = vlaneseq
        %v6730 = vshrl.u32 %v6729, 7
        %v6731 = vsub.s32 %v6728, %v6730
        %v6732 = vrot.slane %v6725, %v6731
        %v6733 = vcombine.low %v6724, %v6732
        %v6734 = vcombine.high %v6724, %v6732
        %v6735 = vcombine.low %v5957, %v5964
        %v6737 = vunpack.c.l.s4 1983009808
        %v6738 = vunpack.c.0.s8 %v6737
        %v6739 = vlaneseq
        %v6740 = vshrl.u32 %v6739, 7
        %v6741 = vsub.s32 %v6738, %v6740
        %v6742 = vrot.slane %v6735, %v6741
        %v6743 = vcombine.low %v5981, %v5982
        %v6745 = vunpack.c.l.s4 1983009808
        %v6746 = vunpack.c.0.s8 %v6745
        %v6747 = vlaneseq
        %v6748 = vshrl.u32 %v6747, 7
        %v6749 = vsub.s32 %v6746, %v6748
        %v6750 = vrot.slane %v6743, %v6749
        %v6751 = vcombine.low %v5973, %v5980
        %v6753 = vunpack.c.l.s4 1983009808
        %v6754 = vunpack.c.0.s8 %v6753
        %v6755 = vlaneseq
        %v6756 = vshrl.u32 %v6755, 7
        %v6757 = vsub.s32 %v6754, %v6756
        %v6758 = vrot.slane %v6751, %v6757
        %v6759 = vcombine.low %v5983, %v5984
        %v6761 = vunpack.c.l.s4 1983009808
        %v6762 = vunpack.c.0.s8 %v6761
        %v6763 = vlaneseq
        %v6764 = vshrl.u32 %v6763, 7
        %v6765 = vsub.s32 %v6762, %v6764
        %v6766 = vrot.slane %v6759, %v6765
        %v6767 = vcombine.low %v6742, %v6750
        %v6769 = vunpack.c.l.s4 1934713408
        %v6770 = vunpack.c.0.s8 %v6769
        %v6771 = vlaneseq
        %v6772 = vshrl.u32 %v6771, 7
        %v6773 = vsub.s32 %v6770, %v6772
        %v6774 = vrot.slane %v6767, %v6773
        %v6775 = vcombine.low %v6758, %v6766
        %v6777 = vunpack.c.l.s4 1934713408
        %v6778 = vunpack.c.0.s8 %v6777
        %v6779 = vlaneseq
        %v6780 = vshrl.u32 %v6779, 7
        %v6781 = vsub.s32 %v6778, %v6780
        %v6782 = vrot.slane %v6775, %v6781
        %v6783 = vcombine.low %v6774, %v6782
        %v6784 = vcombine.high %v6774, %v6782
        %v6787 = vpack.i.b16 %v6083, %v6033
        %v6789 = vshrl.u32 %v6033, 16
        %v6790 = vshrl.u32 %v6083, 16
        %v6791 = vpack.i.b16 %v6790, %v6789
        %v6795 = vpack.i.b16 %v6084, %v6034
        %v6797 = vshrl.u32 %v6034, 16
        %v6798 = vshrl.u32 %v6084, 16
        %v6799 = vpack.i.b16 %v6798, %v6797
        %v6803 = vpack.i.b16 %v6183, %v6133
        %v6805 = vshrl.u32 %v6133, 16
        %v6806 = vshrl.u32 %v6183, 16
        %v6807 = vpack.i.b16 %v6806, %v6805
        %v6811 = vpack.i.b16 %v6184, %v6134
        %v6813 = vshrl.u32 %v6134, 16
        %v6814 = vshrl.u32 %v6184, 16
        %v6815 = vpack.i.b16 %v6814, %v6813
        %v6819 = vpack.i.b16 %v6283, %v6233
        %v6821 = vshrl.u32 %v6233, 16
        %v6822 = vshrl.u32 %v6283, 16
        %v6823 = vpack.i.b16 %v6822, %v6821
        %v6827 = vpack.i.b16 %v6284, %v6234
        %v6829 = vshrl.u32 %v6234, 16
        %v6830 = vshrl.u32 %v6284, 16
        %v6831 = vpack.i.b16 %v6830, %v6829
        %v6835 = vpack.i.b16 %v6383, %v6333
        %v6837 = vshrl.u32 %v6333, 16
        %v6838 = vshrl.u32 %v6383, 16
        %v6839 = vpack.i.b16 %v6838, %v6837
        %v6843 = vpack.i.b16 %v6384, %v6334
        %v6845 = vshrl.u32 %v6334, 16
        %v6846 = vshrl.u32 %v6384, 16
        %v6847 = vpack.i.b16 %v6846, %v6845
        %v6851 = vpack.i.b16 %v6483, %v6433
        %v6853 = vshrl.u32 %v6433, 16
        %v6854 = vshrl.u32 %v6483, 16
        %v6855 = vpack.i.b16 %v6854, %v6853
        %v6859 = vpack.i.b16 %v6484, %v6434
        %v6861 = vshrl.u32 %v6434, 16
        %v6862 = vshrl.u32 %v6484, 16
        %v6863 = vpack.i.b16 %v6862, %v6861
        %v6867 = vpack.i.b16 %v6583, %v6533
        %v6869 = vshrl.u32 %v6533, 16
        %v6870 = vshrl.u32 %v6583, 16
        %v6871 = vpack.i.b16 %v6870, %v6869
        %v6875 = vpack.i.b16 %v6584, %v6534
        %v6877 = vshrl.u32 %v6534, 16
        %v6878 = vshrl.u32 %v6584, 16
        %v6879 = vpack.i.b16 %v6878, %v6877
        %v6883 = vpack.i.b16 %v6683, %v6633
        %v6885 = vshrl.u32 %v6633, 16
        %v6886 = vshrl.u32 %v6683, 16
        %v6887 = vpack.i.b16 %v6886, %v6885
        %v6891 = vpack.i.b16 %v6684, %v6634
        %v6893 = vshrl.u32 %v6634, 16
        %v6894 = vshrl.u32 %v6684, 16
        %v6895 = vpack.i.b16 %v6894, %v6893
        %v6899 = vpack.i.b16 %v6783, %v6733
        %v6901 = vshrl.u32 %v6733, 16
        %v6902 = vshrl.u32 %v6783, 16
        %v6903 = vpack.i.b16 %v6902, %v6901
        %v6907 = vpack.i.b16 %v6784, %v6734
        %v6909 = vshrl.u32 %v6734, 16
        %v6910 = vshrl.u32 %v6784, 16
        %v6911 = vpack.i.b16 %v6910, %v6909
        %vm6913 = vcmask 261120
        %v6915 = vsel %vm6913, %v2547, 0
        %v6918 = vsel %vm6913, %v2559, 0
        %v6921 = vsel %vm6913, %v2571, 0
        %v6924 = vsel %vm6913, %v2583, 0
        %v6927 = vsel %vm6913, %v4643, 0
        %v6930 = vsel %vm6913, %v4655, 0
        %v6933 = vsel %vm6913, %v4667, 0
        %v6936 = vsel %vm6913, %v4679, 0
        %v6939 = vsel %vm6913, %v4691, 0
        %v6942 = vsel %vm6913, %v4703, 0
        %v6945 = vsel %vm6913, %v4715, 0
        %v6948 = vsel %vm6913, %v4727, 0
        %6950 = vmatprep.subr.bf16.mxu0 0
        %6951 = vmatpush1.bf16.xpose.msra.mxu0 %v6948
        %6952 = vmatprep.subr.bf16.mxu0 0
        %6953 = vmatpush1.bf16.xpose.msra.mxu0 %v6945
        %6954 = vmatprep.subr.bf16.mxu0 0
        %6955 = vmatpush1.bf16.xpose.msra.mxu0 %v6942
        %6956 = vmatprep.subr.bf16.mxu0 0
        %6957 = vmatpush1.bf16.xpose.msra.mxu0 %v6939
        %6958 = vmatprep.subr.bf16.mxu0 0
        %6959 = vmatpush1.bf16.xpose.msra.mxu0 %v6936
        %6960 = vmatprep.subr.bf16.mxu0 0
        %6961 = vmatpush1.bf16.xpose.msra.mxu0 %v6933
        %6962 = vmatprep.subr.bf16.mxu0 0
        %6963 = vmatpush1.bf16.xpose.msra.mxu0 %v6930
        %6964 = vmatprep.subr.bf16.mxu0 0
        %6965 = vmatpush1.bf16.xpose.msra.mxu0 %v6927
        %6966 = vmatprep.subr.bf16.mxu0 0
        %6967 = vmatpush2.bf16.xpose.msra.mxu0 0
        %6968 = vmatprep.subr.bf16.mxu0 0
        %6969 = vmatpush2.bf16.xpose.msra.mxu0 0
        %6970 = vmatprep.subr.bf16.mxu0 0
        %6971 = vmatpush2.bf16.xpose.msra.mxu0 0
        %6972 = vmatprep.subr.bf16.mxu0 0
        %6973 = vmatpush2.bf16.xpose.msra.mxu0 0
        %6974 = vmatprep.subr.bf16.mxu0 0
        %6975 = vmatpush2.bf16.xpose.msra.mxu0 0
        %6976 = vmatprep.subr.bf16.mxu0 0
        %6977 = vmatpush2.bf16.xpose.msra.mxu0 0
        %6978 = vmatprep.subr.bf16.mxu0 0
        %6979 = vmatpush2.bf16.xpose.msra.mxu0 0
        %6980 = vmatprep.subr.bf16.mxu0 0
        %6981 = vmatpush2.bf16.xpose.msra.mxu0 0
        %6982 = vmatprep.mubr.bf16.mxu0 0
        %6983 = vmatmul.mubr.bf16.gmra.mxu0 %v6915
        %v6984 = vpop.f32.mrf.mxu0
        %v6985 = vadd.f32 0.0, %v6984
        %v6986 = vpop.f32.mrf.mxu0
        %v6987 = vpop.f32.mrf.mxu0
        %v6988 = vadd.f32 0.0, %v6987
        %v6989 = vpop.f32.mrf.mxu0
        %6990 = vmatprep.mubr.bf16.mxu0 0
        %6991 = vmatmul.mubr.bf16.gmra.mxu0 %v6918
        %v6992 = vpop.f32.mrf.mxu0
        %v6993 = vadd.f32 0.0, %v6992
        %v6994 = vpop.f32.mrf.mxu0
        %v6995 = vpop.f32.mrf.mxu0
        %v6996 = vadd.f32 0.0, %v6995
        %v6997 = vpop.f32.mrf.mxu0
        %6998 = vmatprep.mubr.bf16.mxu0 0
        %6999 = vmatmul.mubr.bf16.gmra.mxu0 %v6921
        %v7000 = vpop.f32.mrf.mxu0
        %v7001 = vadd.f32 0.0, %v7000
        %v7002 = vpop.f32.mrf.mxu0
        %v7003 = vpop.f32.mrf.mxu0
        %v7004 = vadd.f32 0.0, %v7003
        %v7005 = vpop.f32.mrf.mxu0
        %7006 = vmatprep.mubr.bf16.mxu0 0
        %7007 = vmatmul.mubr.bf16.gmra.mxu0 %v6924
        %v7008 = vpop.f32.mrf.mxu0
        %v7009 = vadd.f32 0.0, %v7008
        %v7010 = vpop.f32.mrf.mxu0
        %v7011 = vpop.f32.mrf.mxu0
        %v7012 = vadd.f32 0.0, %v7011
        %v7013 = vpop.f32.mrf.mxu0
        %7014 = vdwg.mxu0
        %v7016 = vsel %vm6913, %v2550, 0
        %v7019 = vsel %vm6913, %v2562, 0
        %v7022 = vsel %vm6913, %v2574, 0
        %v7025 = vsel %vm6913, %v2586, 0
        %v7028 = vsel %vm6913, %v4646, 0
        %v7031 = vsel %vm6913, %v4658, 0
        %v7034 = vsel %vm6913, %v4670, 0
        %v7037 = vsel %vm6913, %v4682, 0
        %v7040 = vsel %vm6913, %v4694, 0
        %v7043 = vsel %vm6913, %v4706, 0
        %v7046 = vsel %vm6913, %v4718, 0
        %v7049 = vsel %vm6913, %v4730, 0
        %7051 = vmatprep.subr.bf16.mxu0 0
        %7052 = vmatpush1.bf16.xpose.msra.mxu0 %v7049
        %7053 = vmatprep.subr.bf16.mxu0 0
        %7054 = vmatpush1.bf16.xpose.msra.mxu0 %v7046
        %7055 = vmatprep.subr.bf16.mxu0 0
        %7056 = vmatpush1.bf16.xpose.msra.mxu0 %v7043
        %7057 = vmatprep.subr.bf16.mxu0 0
        %7058 = vmatpush1.bf16.xpose.msra.mxu0 %v7040
        %7059 = vmatprep.subr.bf16.mxu0 0
        %7060 = vmatpush1.bf16.xpose.msra.mxu0 %v7037
        %7061 = vmatprep.subr.bf16.mxu0 0
        %7062 = vmatpush1.bf16.xpose.msra.mxu0 %v7034
        %7063 = vmatprep.subr.bf16.mxu0 0
        %7064 = vmatpush1.bf16.xpose.msra.mxu0 %v7031
        %7065 = vmatprep.subr.bf16.mxu0 0
        %7066 = vmatpush1.bf16.xpose.msra.mxu0 %v7028
        %7067 = vmatprep.subr.bf16.mxu0 0
        %7068 = vmatpush2.bf16.xpose.msra.mxu0 0
        %7069 = vmatprep.subr.bf16.mxu0 0
        %7070 = vmatpush2.bf16.xpose.msra.mxu0 0
        %7071 = vmatprep.subr.bf16.mxu0 0
        %7072 = vmatpush2.bf16.xpose.msra.mxu0 0
        %7073 = vmatprep.subr.bf16.mxu0 0
        %7074 = vmatpush2.bf16.xpose.msra.mxu0 0
        %7075 = vmatprep.subr.bf16.mxu0 0
        %7076 = vmatpush2.bf16.xpose.msra.mxu0 0
        %7077 = vmatprep.subr.bf16.mxu0 0
        %7078 = vmatpush2.bf16.xpose.msra.mxu0 0
        %7079 = vmatprep.subr.bf16.mxu0 0
        %7080 = vmatpush2.bf16.xpose.msra.mxu0 0
        %7081 = vmatprep.subr.bf16.mxu0 0
        %7082 = vmatpush2.bf16.xpose.msra.mxu0 0
        %7083 = vmatprep.mubr.bf16.mxu0 0
        %7084 = vmatmul.mubr.bf16.gmra.mxu0 %v7016
        %v7085 = vpop.f32.mrf.mxu0
        %v7086 = vadd.f32 0.0, %v7085
        %v7087 = vpop.f32.mrf.mxu0
        %v7088 = vpop.f32.mrf.mxu0
        %v7089 = vadd.f32 0.0, %v7088
        %v7090 = vpop.f32.mrf.mxu0
        %7091 = vmatprep.mubr.bf16.mxu0 0
        %7092 = vmatmul.mubr.bf16.gmra.mxu0 %v7019
        %v7093 = vpop.f32.mrf.mxu0
        %v7094 = vadd.f32 0.0, %v7093
        %v7095 = vpop.f32.mrf.mxu0
        %v7096 = vpop.f32.mrf.mxu0
        %v7097 = vadd.f32 0.0, %v7096
        %v7098 = vpop.f32.mrf.mxu0
        %7099 = vmatprep.mubr.bf16.mxu0 0
        %7100 = vmatmul.mubr.bf16.gmra.mxu0 %v7022
        %v7101 = vpop.f32.mrf.mxu0
        %v7102 = vadd.f32 0.0, %v7101
        %v7103 = vpop.f32.mrf.mxu0
        %v7104 = vpop.f32.mrf.mxu0
        %v7105 = vadd.f32 0.0, %v7104
        %v7106 = vpop.f32.mrf.mxu0
        %7107 = vmatprep.mubr.bf16.mxu0 0
        %7108 = vmatmul.mubr.bf16.gmra.mxu0 %v7025
        %v7109 = vpop.f32.mrf.mxu0
        %v7110 = vadd.f32 0.0, %v7109
        %v7111 = vpop.f32.mrf.mxu0
        %v7112 = vpop.f32.mrf.mxu0
        %v7113 = vadd.f32 0.0, %v7112
        %v7114 = vpop.f32.mrf.mxu0
        %7115 = vdwg.mxu0
        %v7117 = vsel %vm6913, %v2553, 0
        %v7120 = vsel %vm6913, %v2565, 0
        %v7123 = vsel %vm6913, %v2577, 0
        %v7126 = vsel %vm6913, %v2589, 0
        %v7129 = vsel %vm6913, %v4649, 0
        %v7132 = vsel %vm6913, %v4661, 0
        %v7135 = vsel %vm6913, %v4673, 0
        %v7138 = vsel %vm6913, %v4685, 0
        %v7141 = vsel %vm6913, %v4697, 0
        %v7144 = vsel %vm6913, %v4709, 0
        %v7147 = vsel %vm6913, %v4721, 0
        %v7150 = vsel %vm6913, %v4733, 0
        %7152 = vmatprep.subr.bf16.mxu0 0
        %7153 = vmatpush1.bf16.xpose.msra.mxu0 %v7150
        %7154 = vmatprep.subr.bf16.mxu0 0
        %7155 = vmatpush1.bf16.xpose.msra.mxu0 %v7147
        %7156 = vmatprep.subr.bf16.mxu0 0
        %7157 = vmatpush1.bf16.xpose.msra.mxu0 %v7144
        %7158 = vmatprep.subr.bf16.mxu0 0
        %7159 = vmatpush1.bf16.xpose.msra.mxu0 %v7141
        %7160 = vmatprep.subr.bf16.mxu0 0
        %7161 = vmatpush1.bf16.xpose.msra.mxu0 %v7138
        %7162 = vmatprep.subr.bf16.mxu0 0
        %7163 = vmatpush1.bf16.xpose.msra.mxu0 %v7135
        %7164 = vmatprep.subr.bf16.mxu0 0
        %7165 = vmatpush1.bf16.xpose.msra.mxu0 %v7132
        %7166 = vmatprep.subr.bf16.mxu0 0
        %7167 = vmatpush1.bf16.xpose.msra.mxu0 %v7129
        %7168 = vmatprep.subr.bf16.mxu0 0
        %7169 = vmatpush2.bf16.xpose.msra.mxu0 0
        %7170 = vmatprep.subr.bf16.mxu0 0
        %7171 = vmatpush2.bf16.xpose.msra.mxu0 0
        %7172 = vmatprep.subr.bf16.mxu0 0
        %7173 = vmatpush2.bf16.xpose.msra.mxu0 0
        %7174 = vmatprep.subr.bf16.mxu0 0
        %7175 = vmatpush2.bf16.xpose.msra.mxu0 0
        %7176 = vmatprep.subr.bf16.mxu0 0
        %7177 = vmatpush2.bf16.xpose.msra.mxu0 0
        %7178 = vmatprep.subr.bf16.mxu0 0
        %7179 = vmatpush2.bf16.xpose.msra.mxu0 0
        %7180 = vmatprep.subr.bf16.mxu0 0
        %7181 = vmatpush2.bf16.xpose.msra.mxu0 0
        %7182 = vmatprep.subr.bf16.mxu0 0
        %7183 = vmatpush2.bf16.xpose.msra.mxu0 0
        %7184 = vmatprep.mubr.bf16.mxu0 0
        %7185 = vmatmul.mubr.bf16.gmra.mxu0 %v7117
        %v7186 = vpop.f32.mrf.mxu0
        %v7187 = vadd.f32 0.0, %v7186
        %v7188 = vpop.f32.mrf.mxu0
        %v7189 = vpop.f32.mrf.mxu0
        %v7190 = vadd.f32 0.0, %v7189
        %v7191 = vpop.f32.mrf.mxu0
        %7192 = vmatprep.mubr.bf16.mxu0 0
        %7193 = vmatmul.mubr.bf16.gmra.mxu0 %v7120
        %v7194 = vpop.f32.mrf.mxu0
        %v7195 = vadd.f32 0.0, %v7194
        %v7196 = vpop.f32.mrf.mxu0
        %v7197 = vpop.f32.mrf.mxu0
        %v7198 = vadd.f32 0.0, %v7197
        %v7199 = vpop.f32.mrf.mxu0
        %7200 = vmatprep.mubr.bf16.mxu0 0
        %7201 = vmatmul.mubr.bf16.gmra.mxu0 %v7123
        %v7202 = vpop.f32.mrf.mxu0
        %v7203 = vadd.f32 0.0, %v7202
        %v7204 = vpop.f32.mrf.mxu0
        %v7205 = vpop.f32.mrf.mxu0
        %v7206 = vadd.f32 0.0, %v7205
        %v7207 = vpop.f32.mrf.mxu0
        %7208 = vmatprep.mubr.bf16.mxu0 0
        %7209 = vmatmul.mubr.bf16.gmra.mxu0 %v7126
        %v7210 = vpop.f32.mrf.mxu0
        %v7211 = vadd.f32 0.0, %v7210
        %v7212 = vpop.f32.mrf.mxu0
        %v7213 = vpop.f32.mrf.mxu0
        %v7214 = vadd.f32 0.0, %v7213
        %v7215 = vpop.f32.mrf.mxu0
        %7216 = vdwg.mxu0
        %v7218 = vsel %vm6913, %v2556, 0
        %v7221 = vsel %vm6913, %v2568, 0
        %v7224 = vsel %vm6913, %v2580, 0
        %v7227 = vsel %vm6913, %v2592, 0
        %v7230 = vsel %vm6913, %v4652, 0
        %v7233 = vsel %vm6913, %v4664, 0
        %v7236 = vsel %vm6913, %v4676, 0
        %v7239 = vsel %vm6913, %v4688, 0
        %v7242 = vsel %vm6913, %v4700, 0
        %v7245 = vsel %vm6913, %v4712, 0
        %v7248 = vsel %vm6913, %v4724, 0
        %v7251 = vsel %vm6913, %v4736, 0
        %7253 = vmatprep.subr.bf16.mxu0 0
        %7254 = vmatpush1.bf16.xpose.msra.mxu0 %v7251
        %7255 = vmatprep.subr.bf16.mxu0 0
        %7256 = vmatpush1.bf16.xpose.msra.mxu0 %v7248
        %7257 = vmatprep.subr.bf16.mxu0 0
        %7258 = vmatpush1.bf16.xpose.msra.mxu0 %v7245
        %7259 = vmatprep.subr.bf16.mxu0 0
        %7260 = vmatpush1.bf16.xpose.msra.mxu0 %v7242
        %7261 = vmatprep.subr.bf16.mxu0 0
        %7262 = vmatpush1.bf16.xpose.msra.mxu0 %v7239
        %7263 = vmatprep.subr.bf16.mxu0 0
        %7264 = vmatpush1.bf16.xpose.msra.mxu0 %v7236
        %7265 = vmatprep.subr.bf16.mxu0 0
        %7266 = vmatpush1.bf16.xpose.msra.mxu0 %v7233
        %7267 = vmatprep.subr.bf16.mxu0 0
        %7268 = vmatpush1.bf16.xpose.msra.mxu0 %v7230
        %7269 = vmatprep.subr.bf16.mxu0 0
        %7270 = vmatpush2.bf16.xpose.msra.mxu0 0
        %7271 = vmatprep.subr.bf16.mxu0 0
        %7272 = vmatpush2.bf16.xpose.msra.mxu0 0
        %7273 = vmatprep.subr.bf16.mxu0 0
        %7274 = vmatpush2.bf16.xpose.msra.mxu0 0
        %7275 = vmatprep.subr.bf16.mxu0 0
        %7276 = vmatpush2.bf16.xpose.msra.mxu0 0
        %7277 = vmatprep.subr.bf16.mxu0 0
        %7278 = vmatpush2.bf16.xpose.msra.mxu0 0
        %7279 = vmatprep.subr.bf16.mxu0 0
        %7280 = vmatpush2.bf16.xpose.msra.mxu0 0
        %7281 = vmatprep.subr.bf16.mxu0 0
        %7282 = vmatpush2.bf16.xpose.msra.mxu0 0
        %7283 = vmatprep.subr.bf16.mxu0 0
        %7284 = vmatpush2.bf16.xpose.msra.mxu0 0
        %7285 = vmatprep.mubr.bf16.mxu0 0
        %7286 = vmatmul.mubr.bf16.gmra.mxu0 %v7218
        %v7287 = vpop.f32.mrf.mxu0
        %v7288 = vadd.f32 0.0, %v7287
        %v7289 = vpop.f32.mrf.mxu0
        %v7290 = vpop.f32.mrf.mxu0
        %v7291 = vadd.f32 0.0, %v7290
        %v7292 = vpop.f32.mrf.mxu0
        %7293 = vmatprep.mubr.bf16.mxu0 0
        %7294 = vmatmul.mubr.bf16.gmra.mxu0 %v7221
        %v7295 = vpop.f32.mrf.mxu0
        %v7296 = vadd.f32 0.0, %v7295
        %v7297 = vpop.f32.mrf.mxu0
        %v7298 = vpop.f32.mrf.mxu0
        %v7299 = vadd.f32 0.0, %v7298
        %v7300 = vpop.f32.mrf.mxu0
        %7301 = vmatprep.mubr.bf16.mxu0 0
        %7302 = vmatmul.mubr.bf16.gmra.mxu0 %v7224
        %v7303 = vpop.f32.mrf.mxu0
        %v7304 = vadd.f32 0.0, %v7303
        %v7305 = vpop.f32.mrf.mxu0
        %v7306 = vpop.f32.mrf.mxu0
        %v7307 = vadd.f32 0.0, %v7306
        %v7308 = vpop.f32.mrf.mxu0
        %7309 = vmatprep.mubr.bf16.mxu0 0
        %7310 = vmatmul.mubr.bf16.gmra.mxu0 %v7227
        %v7311 = vpop.f32.mrf.mxu0
        %v7312 = vadd.f32 0.0, %v7311
        %v7313 = vpop.f32.mrf.mxu0
        %v7314 = vpop.f32.mrf.mxu0
        %v7315 = vadd.f32 0.0, %v7314
        %v7316 = vpop.f32.mrf.mxu0
        %7317 = vdwg.mxu0
        %v7318 = vlaneseq
        %v7319 = vshrl.u32 %v7318, 7
        %v7320 = vadd.s32 %v7319, 8
        %v7321 = vadd.s32 %v7319, 16
        %v7322 = vadd.s32 %v7319, 24
        %v7323 = vadd.s32 %v7319, 32
        %v7324 = vadd.s32 %v7319, 40
        %v7325 = vadd.s32 %v7319, 48
        %v7326 = vadd.s32 %v7319, 56
        %v7327 = vstv %s670
        %v7328 = vadd.s32 %v7327, %v7319
        %v7329 = vadd.s32 %v7327, %v7320
        %v7330 = vadd.s32 %v7327, %v7321
        %v7331 = vadd.s32 %v7327, %v7322
        %v7332 = vadd.s32 %v7327, %v7323
        %v7333 = vadd.s32 %v7327, %v7324
        %v7334 = vadd.s32 %v7327, %v7325
        %v7335 = vadd.s32 %v7327, %v7326
        %v7336 = vlaneseq
        %v7337 = vand.u32 %v7336, 127
        %vm7338 = vcmp.le.s32.totalorder %v7337, %v7328
        %vm7339 = vcmp.le.s32.totalorder %v7337, %v7329
        %vm7340 = vcmp.le.s32.totalorder %v7337, %v7330
        %vm7341 = vcmp.le.s32.totalorder %v7337, %v7331
        %vm7342 = vcmp.le.s32.totalorder %v7337, %v7332
        %vm7343 = vcmp.le.s32.totalorder %v7337, %v7333
        %vm7344 = vcmp.le.s32.totalorder %v7337, %v7334
        %vm7345 = vcmp.le.s32.totalorder %v7337, %v7335
        %v7346 = vsel %vm7338, %v6985, -1e+09
        %v7347 = vsel %vm7339, %v6988, -1e+09
        %v7348 = vsel %vm7340, %v6993, -1e+09
        %v7349 = vsel %vm7341, %v6996, -1e+09
        %v7350 = vsel %vm7342, %v7001, -1e+09
        %v7351 = vsel %vm7343, %v7004, -1e+09
        %v7352 = vsel %vm7344, %v7009, -1e+09
        %v7353 = vsel %vm7345, %v7012, -1e+09
        %v7354 = vsel %vm7338, %v7086, -1e+09
        %v7355 = vsel %vm7339, %v7089, -1e+09
        %v7356 = vsel %vm7340, %v7094, -1e+09
        %v7357 = vsel %vm7341, %v7097, -1e+09
        %v7358 = vsel %vm7342, %v7102, -1e+09
        %v7359 = vsel %vm7343, %v7105, -1e+09
        %v7360 = vsel %vm7344, %v7110, -1e+09
        %v7361 = vsel %vm7345, %v7113, -1e+09
        %v7362 = vsel %vm7338, %v7187, -1e+09
        %v7363 = vsel %vm7339, %v7190, -1e+09
        %v7364 = vsel %vm7340, %v7195, -1e+09
        %v7365 = vsel %vm7341, %v7198, -1e+09
        %v7366 = vsel %vm7342, %v7203, -1e+09
        %v7367 = vsel %vm7343, %v7206, -1e+09
        %v7368 = vsel %vm7344, %v7211, -1e+09
        %v7369 = vsel %vm7345, %v7214, -1e+09
        %v7370 = vsel %vm7338, %v7288, -1e+09
        %v7371 = vsel %vm7339, %v7291, -1e+09
        %v7372 = vsel %vm7340, %v7296, -1e+09
        %v7373 = vsel %vm7341, %v7299, -1e+09
        %v7374 = vsel %vm7342, %v7304, -1e+09
        %v7375 = vsel %vm7343, %v7307, -1e+09
        %v7376 = vsel %vm7344, %v7312, -1e+09
        %v7377 = vsel %vm7345, %v7315, -1e+09
        %7378 = vmax.xlane.f32.xlu0 %v7346
        %v7379 = vpop.xlane.xlu0 %7378
        %7380 = vmax.xlane.f32.xlu0 %v7347
        %v7381 = vpop.xlane.xlu0 %7380
        %7382 = vmax.xlane.f32.xlu0 %v7348
        %v7383 = vpop.xlane.xlu0 %7382
        %7384 = vmax.xlane.f32.xlu0 %v7349
        %v7385 = vpop.xlane.xlu0 %7384
        %7386 = vmax.xlane.f32.xlu0 %v7350
        %v7387 = vpop.xlane.xlu0 %7386
        %7388 = vmax.xlane.f32.xlu0 %v7351
        %v7389 = vpop.xlane.xlu0 %7388
        %7390 = vmax.xlane.f32.xlu0 %v7352
        %v7391 = vpop.xlane.xlu0 %7390
        %7392 = vmax.xlane.f32.xlu0 %v7353
        %v7393 = vpop.xlane.xlu0 %7392
        %7394 = vmax.xlane.f32.xlu0 %v7354
        %v7395 = vpop.xlane.xlu0 %7394
        %7396 = vmax.xlane.f32.xlu0 %v7355
        %v7397 = vpop.xlane.xlu0 %7396
        %7398 = vmax.xlane.f32.xlu0 %v7356
        %v7399 = vpop.xlane.xlu0 %7398
        %7400 = vmax.xlane.f32.xlu0 %v7357
        %v7401 = vpop.xlane.xlu0 %7400
        %7402 = vmax.xlane.f32.xlu0 %v7358
        %v7403 = vpop.xlane.xlu0 %7402
        %7404 = vmax.xlane.f32.xlu0 %v7359
        %v7405 = vpop.xlane.xlu0 %7404
        %7406 = vmax.xlane.f32.xlu0 %v7360
        %v7407 = vpop.xlane.xlu0 %7406
        %7408 = vmax.xlane.f32.xlu0 %v7361
        %v7409 = vpop.xlane.xlu0 %7408
        %7410 = vmax.xlane.f32.xlu0 %v7362
        %v7411 = vpop.xlane.xlu0 %7410
        %7412 = vmax.xlane.f32.xlu0 %v7363
        %v7413 = vpop.xlane.xlu0 %7412
        %7414 = vmax.xlane.f32.xlu0 %v7364
        %v7415 = vpop.xlane.xlu0 %7414
        %7416 = vmax.xlane.f32.xlu0 %v7365
        %v7417 = vpop.xlane.xlu0 %7416
        %7418 = vmax.xlane.f32.xlu0 %v7366
        %v7419 = vpop.xlane.xlu0 %7418
        %7420 = vmax.xlane.f32.xlu0 %v7367
        %v7421 = vpop.xlane.xlu0 %7420
        %7422 = vmax.xlane.f32.xlu0 %v7368
        %v7423 = vpop.xlane.xlu0 %7422
        %7424 = vmax.xlane.f32.xlu0 %v7369
        %v7425 = vpop.xlane.xlu0 %7424
        %7426 = vmax.xlane.f32.xlu0 %v7370
        %v7427 = vpop.xlane.xlu0 %7426
        %7428 = vmax.xlane.f32.xlu0 %v7371
        %v7429 = vpop.xlane.xlu0 %7428
        %7430 = vmax.xlane.f32.xlu0 %v7372
        %v7431 = vpop.xlane.xlu0 %7430
        %7432 = vmax.xlane.f32.xlu0 %v7373
        %v7433 = vpop.xlane.xlu0 %7432
        %7434 = vmax.xlane.f32.xlu0 %v7374
        %v7435 = vpop.xlane.xlu0 %7434
        %7436 = vmax.xlane.f32.xlu0 %v7375
        %v7437 = vpop.xlane.xlu0 %7436
        %7438 = vmax.xlane.f32.xlu0 %v7376
        %v7439 = vpop.xlane.xlu0 %7438
        %7440 = vmax.xlane.f32.xlu0 %v7377
        %v7441 = vpop.xlane.xlu0 %7440
        %v7442 = vsub.f32 %v7346, %v7379
        %v7443 = vsub.f32 %v7347, %v7381
        %v7444 = vsub.f32 %v7348, %v7383
        %v7445 = vsub.f32 %v7349, %v7385
        %v7446 = vsub.f32 %v7350, %v7387
        %v7447 = vsub.f32 %v7351, %v7389
        %v7448 = vsub.f32 %v7352, %v7391
        %v7449 = vsub.f32 %v7353, %v7393
        %v7450 = vsub.f32 %v7354, %v7395
        %v7451 = vsub.f32 %v7355, %v7397
        %v7452 = vsub.f32 %v7356, %v7399
        %v7453 = vsub.f32 %v7357, %v7401
        %v7454 = vsub.f32 %v7358, %v7403
        %v7455 = vsub.f32 %v7359, %v7405
        %v7456 = vsub.f32 %v7360, %v7407
        %v7457 = vsub.f32 %v7361, %v7409
        %v7458 = vsub.f32 %v7362, %v7411
        %v7459 = vsub.f32 %v7363, %v7413
        %v7460 = vsub.f32 %v7364, %v7415
        %v7461 = vsub.f32 %v7365, %v7417
        %v7462 = vsub.f32 %v7366, %v7419
        %v7463 = vsub.f32 %v7367, %v7421
        %v7464 = vsub.f32 %v7368, %v7423
        %v7465 = vsub.f32 %v7369, %v7425
        %v7466 = vsub.f32 %v7370, %v7427
        %v7467 = vsub.f32 %v7371, %v7429
        %v7468 = vsub.f32 %v7372, %v7431
        %v7469 = vsub.f32 %v7373, %v7433
        %v7470 = vsub.f32 %v7374, %v7435
        %v7471 = vsub.f32 %v7375, %v7437
        %v7472 = vsub.f32 %v7376, %v7439
        %v7473 = vsub.f32 %v7377, %v7441
        %v7474 = vmul.f32 %v7442, 1.442695
        %v7475 = vpow.pop %v7474
        %v7476 = vmul.f32 %v7443, 1.442695
        %v7477 = vpow.pop %v7476
        %v7478 = vmul.f32 %v7444, 1.442695
        %v7479 = vpow.pop %v7478
        %v7480 = vmul.f32 %v7445, 1.442695
        %v7481 = vpow.pop %v7480
        %v7482 = vmul.f32 %v7446, 1.442695
        %v7483 = vpow.pop %v7482
        %v7484 = vmul.f32 %v7447, 1.442695
        %v7485 = vpow.pop %v7484
        %v7486 = vmul.f32 %v7448, 1.442695
        %v7487 = vpow.pop %v7486
        %v7488 = vmul.f32 %v7449, 1.442695
        %v7489 = vpow.pop %v7488
        %v7490 = vmul.f32 %v7450, 1.442695
        %v7491 = vpow.pop %v7490
        %v7492 = vmul.f32 %v7451, 1.442695
        %v7493 = vpow.pop %v7492
        %v7494 = vmul.f32 %v7452, 1.442695
        %v7495 = vpow.pop %v7494
        %v7496 = vmul.f32 %v7453, 1.442695
        %v7497 = vpow.pop %v7496
        %v7498 = vmul.f32 %v7454, 1.442695
        %v7499 = vpow.pop %v7498
        %v7500 = vmul.f32 %v7455, 1.442695
        %v7501 = vpow.pop %v7500
        %v7502 = vmul.f32 %v7456, 1.442695
        %v7503 = vpow.pop %v7502
        %v7504 = vmul.f32 %v7457, 1.442695
        %v7505 = vpow.pop %v7504
        %v7506 = vmul.f32 %v7458, 1.442695
        %v7507 = vpow.pop %v7506
        %v7508 = vmul.f32 %v7459, 1.442695
        %v7509 = vpow.pop %v7508
        %v7510 = vmul.f32 %v7460, 1.442695
        %v7511 = vpow.pop %v7510
        %v7512 = vmul.f32 %v7461, 1.442695
        %v7513 = vpow.pop %v7512
        %v7514 = vmul.f32 %v7462, 1.442695
        %v7515 = vpow.pop %v7514
        %v7516 = vmul.f32 %v7463, 1.442695
        %v7517 = vpow.pop %v7516
        %v7518 = vmul.f32 %v7464, 1.442695
        %v7519 = vpow.pop %v7518
        %v7520 = vmul.f32 %v7465, 1.442695
        %v7521 = vpow.pop %v7520
        %v7522 = vmul.f32 %v7466, 1.442695
        %v7523 = vpow.pop %v7522
        %v7524 = vmul.f32 %v7467, 1.442695
        %v7525 = vpow.pop %v7524
        %v7526 = vmul.f32 %v7468, 1.442695
        %v7527 = vpow.pop %v7526
        %v7528 = vmul.f32 %v7469, 1.442695
        %v7529 = vpow.pop %v7528
        %v7530 = vmul.f32 %v7470, 1.442695
        %v7531 = vpow.pop %v7530
        %v7532 = vmul.f32 %v7471, 1.442695
        %v7533 = vpow.pop %v7532
        %v7534 = vmul.f32 %v7472, 1.442695
        %v7535 = vpow.pop %v7534
        %v7536 = vmul.f32 %v7473, 1.442695
        %v7537 = vpow.pop %v7536
        %7538 = vadd.xlane.f32.xlu0 %v7475
        %v7539 = vpop.xlane.xlu0 %7538
        %7540 = vadd.xlane.f32.xlu0 %v7477
        %v7541 = vpop.xlane.xlu0 %7540
        %7542 = vadd.xlane.f32.xlu0 %v7479
        %v7543 = vpop.xlane.xlu0 %7542
        %7544 = vadd.xlane.f32.xlu0 %v7481
        %v7545 = vpop.xlane.xlu0 %7544
        %7546 = vadd.xlane.f32.xlu0 %v7483
        %v7547 = vpop.xlane.xlu0 %7546
        %7548 = vadd.xlane.f32.xlu0 %v7485
        %v7549 = vpop.xlane.xlu0 %7548
        %7550 = vadd.xlane.f32.xlu0 %v7487
        %v7551 = vpop.xlane.xlu0 %7550
        %7552 = vadd.xlane.f32.xlu0 %v7489
        %v7553 = vpop.xlane.xlu0 %7552
        %7554 = vadd.xlane.f32.xlu0 %v7491
        %v7555 = vpop.xlane.xlu0 %7554
        %7556 = vadd.xlane.f32.xlu0 %v7493
        %v7557 = vpop.xlane.xlu0 %7556
        %7558 = vadd.xlane.f32.xlu0 %v7495
        %v7559 = vpop.xlane.xlu0 %7558
        %7560 = vadd.xlane.f32.xlu0 %v7497
        %v7561 = vpop.xlane.xlu0 %7560
        %7562 = vadd.xlane.f32.xlu0 %v7499
        %v7563 = vpop.xlane.xlu0 %7562
        %7564 = vadd.xlane.f32.xlu0 %v7501
        %v7565 = vpop.xlane.xlu0 %7564
        %7566 = vadd.xlane.f32.xlu0 %v7503
        %v7567 = vpop.xlane.xlu0 %7566
        %7568 = vadd.xlane.f32.xlu0 %v7505
        %v7569 = vpop.xlane.xlu0 %7568
        %7570 = vadd.xlane.f32.xlu0 %v7507
        %v7571 = vpop.xlane.xlu0 %7570
        %7572 = vadd.xlane.f32.xlu0 %v7509
        %v7573 = vpop.xlane.xlu0 %7572
        %7574 = vadd.xlane.f32.xlu0 %v7511
        %v7575 = vpop.xlane.xlu0 %7574
        %7576 = vadd.xlane.f32.xlu0 %v7513
        %v7577 = vpop.xlane.xlu0 %7576
        %7578 = vadd.xlane.f32.xlu0 %v7515
        %v7579 = vpop.xlane.xlu0 %7578
        %7580 = vadd.xlane.f32.xlu0 %v7517
        %v7581 = vpop.xlane.xlu0 %7580
        %7582 = vadd.xlane.f32.xlu0 %v7519
        %v7583 = vpop.xlane.xlu0 %7582
        %7584 = vadd.xlane.f32.xlu0 %v7521
        %v7585 = vpop.xlane.xlu0 %7584
        %7586 = vadd.xlane.f32.xlu0 %v7523
        %v7587 = vpop.xlane.xlu0 %7586
        %7588 = vadd.xlane.f32.xlu0 %v7525
        %v7589 = vpop.xlane.xlu0 %7588
        %7590 = vadd.xlane.f32.xlu0 %v7527
        %v7591 = vpop.xlane.xlu0 %7590
        %7592 = vadd.xlane.f32.xlu0 %v7529
        %v7593 = vpop.xlane.xlu0 %7592
        %7594 = vadd.xlane.f32.xlu0 %v7531
        %v7595 = vpop.xlane.xlu0 %7594
        %7596 = vadd.xlane.f32.xlu0 %v7533
        %v7597 = vpop.xlane.xlu0 %7596
        %7598 = vadd.xlane.f32.xlu0 %v7535
        %v7599 = vpop.xlane.xlu0 %7598
        %7600 = vadd.xlane.f32.xlu0 %v7537
        %v7601 = vpop.xlane.xlu0 %7600
        %v7602 = vrcp.pop %v7539
        %v7603 = vrcp.pop %v7541
        %v7604 = vrcp.pop %v7543
        %v7605 = vrcp.pop %v7545
        %v7606 = vrcp.pop %v7547
        %v7607 = vrcp.pop %v7549
        %v7608 = vrcp.pop %v7551
        %v7609 = vrcp.pop %v7553
        %v7610 = vrcp.pop %v7555
        %v7611 = vrcp.pop %v7557
        %v7612 = vrcp.pop %v7559
        %v7613 = vrcp.pop %v7561
        %v7614 = vrcp.pop %v7563
        %v7615 = vrcp.pop %v7565
        %v7616 = vrcp.pop %v7567
        %v7617 = vrcp.pop %v7569
        %v7618 = vrcp.pop %v7571
        %v7619 = vrcp.pop %v7573
        %v7620 = vrcp.pop %v7575
        %v7621 = vrcp.pop %v7577
        %v7622 = vrcp.pop %v7579
        %v7623 = vrcp.pop %v7581
        %v7624 = vrcp.pop %v7583
        %v7625 = vrcp.pop %v7585
        %v7626 = vrcp.pop %v7587
        %v7627 = vrcp.pop %v7589
        %v7628 = vrcp.pop %v7591
        %v7629 = vrcp.pop %v7593
        %v7630 = vrcp.pop %v7595
        %v7631 = vrcp.pop %v7597
        %v7632 = vrcp.pop %v7599
        %v7633 = vrcp.pop %v7601
        %v7634 = vmul.f32 %v7475, %v7602
        %v7635 = vmul.f32 %v7477, %v7603
        %v7636 = vmul.f32 %v7479, %v7604
        %v7637 = vmul.f32 %v7481, %v7605
        %v7638 = vmul.f32 %v7483, %v7606
        %v7639 = vmul.f32 %v7485, %v7607
        %v7640 = vmul.f32 %v7487, %v7608
        %v7641 = vmul.f32 %v7489, %v7609
        %v7642 = vmul.f32 %v7491, %v7610
        %v7643 = vmul.f32 %v7493, %v7611
        %v7644 = vmul.f32 %v7495, %v7612
        %v7645 = vmul.f32 %v7497, %v7613
        %v7646 = vmul.f32 %v7499, %v7614
        %v7647 = vmul.f32 %v7501, %v7615
        %v7648 = vmul.f32 %v7503, %v7616
        %v7649 = vmul.f32 %v7505, %v7617
        %v7650 = vmul.f32 %v7507, %v7618
        %v7651 = vmul.f32 %v7509, %v7619
        %v7652 = vmul.f32 %v7511, %v7620
        %v7653 = vmul.f32 %v7513, %v7621
        %v7654 = vmul.f32 %v7515, %v7622
        %v7655 = vmul.f32 %v7517, %v7623
        %v7656 = vmul.f32 %v7519, %v7624
        %v7657 = vmul.f32 %v7521, %v7625
        %v7658 = vmul.f32 %v7523, %v7626
        %v7659 = vmul.f32 %v7525, %v7627
        %v7660 = vmul.f32 %v7527, %v7628
        %v7661 = vmul.f32 %v7529, %v7629
        %v7662 = vmul.f32 %v7531, %v7630
        %v7663 = vmul.f32 %v7533, %v7631
        %v7664 = vmul.f32 %v7535, %v7632
        %v7665 = vmul.f32 %v7537, %v7633
        %v7666 = vpack.c.bf16 %v7635, %v7634
        %v7667 = vpack.c.bf16 %v7637, %v7636
        %v7668 = vpack.c.bf16 %v7639, %v7638
        %v7669 = vpack.c.bf16 %v7641, %v7640
        %v7670 = vpack.c.bf16 %v7643, %v7642
        %v7671 = vpack.c.bf16 %v7645, %v7644
        %v7672 = vpack.c.bf16 %v7647, %v7646
        %v7673 = vpack.c.bf16 %v7649, %v7648
        %v7674 = vpack.c.bf16 %v7651, %v7650
        %v7675 = vpack.c.bf16 %v7653, %v7652
        %v7676 = vpack.c.bf16 %v7655, %v7654
        %v7677 = vpack.c.bf16 %v7657, %v7656
        %v7678 = vpack.c.bf16 %v7659, %v7658
        %v7679 = vpack.c.bf16 %v7661, %v7660
        %v7680 = vpack.c.bf16 %v7663, %v7662
        %v7681 = vpack.c.bf16 %v7665, %v7664
        %7682 = vmatprep.subr.bf16.mxu0 0
        %7683 = vmatpush1.bf16.msra.mxu0 %v6899
        %7684 = vmatprep.subr.bf16.mxu0 0
        %7685 = vmatpush1.bf16.msra.mxu0 %v6883
        %7686 = vmatprep.subr.bf16.mxu0 0
        %7687 = vmatpush1.bf16.msra.mxu0 %v6867
        %7688 = vmatprep.subr.bf16.mxu0 0
        %7689 = vmatpush1.bf16.msra.mxu0 %v6851
        %7690 = vmatprep.subr.bf16.mxu0 0
        %7691 = vmatpush1.bf16.msra.mxu0 %v6835
        %7692 = vmatprep.subr.bf16.mxu0 0
        %7693 = vmatpush1.bf16.msra.mxu0 %v6819
        %7694 = vmatprep.subr.bf16.mxu0 0
        %7695 = vmatpush1.bf16.msra.mxu0 %v6803
        %7696 = vmatprep.subr.bf16.mxu0 0
        %7697 = vmatpush1.bf16.msra.mxu0 %v6787
        %7698 = vmatprep.subr.bf16.mxu0 0
        %7699 = vmatpush2.bf16.msra.mxu0 0
        %7700 = vmatprep.subr.bf16.mxu0 0
        %7701 = vmatpush2.bf16.msra.mxu0 0
        %7702 = vmatprep.subr.bf16.mxu0 0
        %7703 = vmatpush2.bf16.msra.mxu0 0
        %7704 = vmatprep.subr.bf16.mxu0 0
        %7705 = vmatpush2.bf16.msra.mxu0 0
        %7706 = vmatprep.subr.bf16.mxu0 0
        %7707 = vmatpush2.bf16.msra.mxu0 0
        %7708 = vmatprep.subr.bf16.mxu0 0
        %7709 = vmatpush2.bf16.msra.mxu0 0
        %7710 = vmatprep.subr.bf16.mxu0 0
        %7711 = vmatpush2.bf16.msra.mxu0 0
        %7712 = vmatprep.subr.bf16.mxu0 0
        %7713 = vmatpush2.bf16.msra.mxu0 0
        %7714 = vmatprep.mubr.bf16.mxu0 0
        %7715 = vmatmul.mubr.bf16.gmra.mxu0 %v7666
        %v7716 = vpop.f32.mrf.mxu0
        %v7717 = vadd.f32 0.0, %v7716
        %v7718 = vpop.f32.mrf.mxu0
        %v7719 = vpop.f32.mrf.mxu0
        %v7720 = vadd.f32 0.0, %v7719
        %v7721 = vpop.f32.mrf.mxu0
        %7722 = vmatprep.mubr.bf16.mxu0 0
        %7723 = vmatmul.mubr.bf16.gmra.mxu0 %v7667
        %v7724 = vpop.f32.mrf.mxu0
        %v7725 = vadd.f32 0.0, %v7724
        %v7726 = vpop.f32.mrf.mxu0
        %v7727 = vpop.f32.mrf.mxu0
        %v7728 = vadd.f32 0.0, %v7727
        %v7729 = vpop.f32.mrf.mxu0
        %7730 = vmatprep.mubr.bf16.mxu0 0
        %7731 = vmatmul.mubr.bf16.gmra.mxu0 %v7668
        %v7732 = vpop.f32.mrf.mxu0
        %v7733 = vadd.f32 0.0, %v7732
        %v7734 = vpop.f32.mrf.mxu0
        %v7735 = vpop.f32.mrf.mxu0
        %v7736 = vadd.f32 0.0, %v7735
        %v7737 = vpop.f32.mrf.mxu0
        %7738 = vmatprep.mubr.bf16.mxu0 0
        %7739 = vmatmul.mubr.bf16.gmra.mxu0 %v7669
        %v7740 = vpop.f32.mrf.mxu0
        %v7741 = vadd.f32 0.0, %v7740
        %v7742 = vpop.f32.mrf.mxu0
        %v7743 = vpop.f32.mrf.mxu0
        %v7744 = vadd.f32 0.0, %v7743
        %v7745 = vpop.f32.mrf.mxu0
        %7746 = vdwg.mxu0
        %7747 = vmatprep.subr.bf16.mxu0 0
        %7748 = vmatpush1.bf16.msra.mxu0 %v6903
        %7749 = vmatprep.subr.bf16.mxu0 0
        %7750 = vmatpush1.bf16.msra.mxu0 %v6887
        %7751 = vmatprep.subr.bf16.mxu0 0
        %7752 = vmatpush1.bf16.msra.mxu0 %v6871
        %7753 = vmatprep.subr.bf16.mxu0 0
        %7754 = vmatpush1.bf16.msra.mxu0 %v6855
        %7755 = vmatprep.subr.bf16.mxu0 0
        %7756 = vmatpush1.bf16.msra.mxu0 %v6839
        %7757 = vmatprep.subr.bf16.mxu0 0
        %7758 = vmatpush1.bf16.msra.mxu0 %v6823
        %7759 = vmatprep.subr.bf16.mxu0 0
        %7760 = vmatpush1.bf16.msra.mxu0 %v6807
        %7761 = vmatprep.subr.bf16.mxu0 0
        %7762 = vmatpush1.bf16.msra.mxu0 %v6791
        %7763 = vmatprep.subr.bf16.mxu0 0
        %7764 = vmatpush2.bf16.msra.mxu0 0
        %7765 = vmatprep.subr.bf16.mxu0 0
        %7766 = vmatpush2.bf16.msra.mxu0 0
        %7767 = vmatprep.subr.bf16.mxu0 0
        %7768 = vmatpush2.bf16.msra.mxu0 0
        %7769 = vmatprep.subr.bf16.mxu0 0
        %7770 = vmatpush2.bf16.msra.mxu0 0
        %7771 = vmatprep.subr.bf16.mxu0 0
        %7772 = vmatpush2.bf16.msra.mxu0 0
        %7773 = vmatprep.subr.bf16.mxu0 0
        %7774 = vmatpush2.bf16.msra.mxu0 0
        %7775 = vmatprep.subr.bf16.mxu0 0
        %7776 = vmatpush2.bf16.msra.mxu0 0
        %7777 = vmatprep.subr.bf16.mxu0 0
        %7778 = vmatpush2.bf16.msra.mxu0 0
        %7779 = vmatprep.mubr.bf16.mxu0 0
        %7780 = vmatmul.mubr.bf16.gmra.mxu0 %v7670
        %v7781 = vpop.f32.mrf.mxu0
        %v7782 = vadd.f32 0.0, %v7781
        %v7783 = vpop.f32.mrf.mxu0
        %v7784 = vpop.f32.mrf.mxu0
        %v7785 = vadd.f32 0.0, %v7784
        %v7786 = vpop.f32.mrf.mxu0
        %7787 = vmatprep.mubr.bf16.mxu0 0
        %7788 = vmatmul.mubr.bf16.gmra.mxu0 %v7671
        %v7789 = vpop.f32.mrf.mxu0
        %v7790 = vadd.f32 0.0, %v7789
        %v7791 = vpop.f32.mrf.mxu0
        %v7792 = vpop.f32.mrf.mxu0
        %v7793 = vadd.f32 0.0, %v7792
        %v7794 = vpop.f32.mrf.mxu0
        %7795 = vmatprep.mubr.bf16.mxu0 0
        %7796 = vmatmul.mubr.bf16.gmra.mxu0 %v7672
        %v7797 = vpop.f32.mrf.mxu0
        %v7798 = vadd.f32 0.0, %v7797
        %v7799 = vpop.f32.mrf.mxu0
        %v7800 = vpop.f32.mrf.mxu0
        %v7801 = vadd.f32 0.0, %v7800
        %v7802 = vpop.f32.mrf.mxu0
        %7803 = vmatprep.mubr.bf16.mxu0 0
        %7804 = vmatmul.mubr.bf16.gmra.mxu0 %v7673
        %v7805 = vpop.f32.mrf.mxu0
        %v7806 = vadd.f32 0.0, %v7805
        %v7807 = vpop.f32.mrf.mxu0
        %v7808 = vpop.f32.mrf.mxu0
        %v7809 = vadd.f32 0.0, %v7808
        %v7810 = vpop.f32.mrf.mxu0
        %7811 = vdwg.mxu0
        %7812 = vmatprep.subr.bf16.mxu0 0
        %7813 = vmatpush1.bf16.msra.mxu0 %v6907
        %7814 = vmatprep.subr.bf16.mxu0 0
        %7815 = vmatpush1.bf16.msra.mxu0 %v6891
        %7816 = vmatprep.subr.bf16.mxu0 0
        %7817 = vmatpush1.bf16.msra.mxu0 %v6875
        %7818 = vmatprep.subr.bf16.mxu0 0
        %7819 = vmatpush1.bf16.msra.mxu0 %v6859
        %7820 = vmatprep.subr.bf16.mxu0 0
        %7821 = vmatpush1.bf16.msra.mxu0 %v6843
        %7822 = vmatprep.subr.bf16.mxu0 0
        %7823 = vmatpush1.bf16.msra.mxu0 %v6827
        %7824 = vmatprep.subr.bf16.mxu0 0
        %7825 = vmatpush1.bf16.msra.mxu0 %v6811
        %7826 = vmatprep.subr.bf16.mxu0 0
        %7827 = vmatpush1.bf16.msra.mxu0 %v6795
        %7828 = vmatprep.subr.bf16.mxu0 0
        %7829 = vmatpush2.bf16.msra.mxu0 0
        %7830 = vmatprep.subr.bf16.mxu0 0
        %7831 = vmatpush2.bf16.msra.mxu0 0
        %7832 = vmatprep.subr.bf16.mxu0 0
        %7833 = vmatpush2.bf16.msra.mxu0 0
        %7834 = vmatprep.subr.bf16.mxu0 0
        %7835 = vmatpush2.bf16.msra.mxu0 0
        %7836 = vmatprep.subr.bf16.mxu0 0
        %7837 = vmatpush2.bf16.msra.mxu0 0
        %7838 = vmatprep.subr.bf16.mxu0 0
        %7839 = vmatpush2.bf16.msra.mxu0 0
        %7840 = vmatprep.subr.bf16.mxu0 0
        %7841 = vmatpush2.bf16.msra.mxu0 0
        %7842 = vmatprep.subr.bf16.mxu0 0
        %7843 = vmatpush2.bf16.msra.mxu0 0
        %7844 = vmatprep.mubr.bf16.mxu0 0
        %7845 = vmatmul.mubr.bf16.gmra.mxu0 %v7674
        %v7846 = vpop.f32.mrf.mxu0
        %v7847 = vadd.f32 0.0, %v7846
        %v7848 = vpop.f32.mrf.mxu0
        %v7849 = vpop.f32.mrf.mxu0
        %v7850 = vadd.f32 0.0, %v7849
        %v7851 = vpop.f32.mrf.mxu0
        %7852 = vmatprep.mubr.bf16.mxu0 0
        %7853 = vmatmul.mubr.bf16.gmra.mxu0 %v7675
        %v7854 = vpop.f32.mrf.mxu0
        %v7855 = vadd.f32 0.0, %v7854
        %v7856 = vpop.f32.mrf.mxu0
        %v7857 = vpop.f32.mrf.mxu0
        %v7858 = vadd.f32 0.0, %v7857
        %v7859 = vpop.f32.mrf.mxu0
        %7860 = vmatprep.mubr.bf16.mxu0 0
        %7861 = vmatmul.mubr.bf16.gmra.mxu0 %v7676
        %v7862 = vpop.f32.mrf.mxu0
        %v7863 = vadd.f32 0.0, %v7862
        %v7864 = vpop.f32.mrf.mxu0
        %v7865 = vpop.f32.mrf.mxu0
        %v7866 = vadd.f32 0.0, %v7865
        %v7867 = vpop.f32.mrf.mxu0
        %7868 = vmatprep.mubr.bf16.mxu0 0
        %7869 = vmatmul.mubr.bf16.gmra.mxu0 %v7677
        %v7870 = vpop.f32.mrf.mxu0
        %v7871 = vadd.f32 0.0, %v7870
        %v7872 = vpop.f32.mrf.mxu0
        %v7873 = vpop.f32.mrf.mxu0
        %v7874 = vadd.f32 0.0, %v7873
        %v7875 = vpop.f32.mrf.mxu0
        %7876 = vdwg.mxu0
        %7877 = vmatprep.subr.bf16.mxu0 0
        %7878 = vmatpush1.bf16.msra.mxu0 %v6911
        %7879 = vmatprep.subr.bf16.mxu0 0
        %7880 = vmatpush1.bf16.msra.mxu0 %v6895
        %7881 = vmatprep.subr.bf16.mxu0 0
        %7882 = vmatpush1.bf16.msra.mxu0 %v6879
        %7883 = vmatprep.subr.bf16.mxu0 0
        %7884 = vmatpush1.bf16.msra.mxu0 %v6863
        %7885 = vmatprep.subr.bf16.mxu0 0
        %7886 = vmatpush1.bf16.msra.mxu0 %v6847
        %7887 = vmatprep.subr.bf16.mxu0 0
        %7888 = vmatpush1.bf16.msra.mxu0 %v6831
        %7889 = vmatprep.subr.bf16.mxu0 0
        %7890 = vmatpush1.bf16.msra.mxu0 %v6815
        %7891 = vmatprep.subr.bf16.mxu0 0
        %7892 = vmatpush1.bf16.msra.mxu0 %v6799
        %7893 = vmatprep.subr.bf16.mxu0 0
        %7894 = vmatpush2.bf16.msra.mxu0 0
        %7895 = vmatprep.subr.bf16.mxu0 0
        %7896 = vmatpush2.bf16.msra.mxu0 0
        %7897 = vmatprep.subr.bf16.mxu0 0
        %7898 = vmatpush2.bf16.msra.mxu0 0
        %7899 = vmatprep.subr.bf16.mxu0 0
        %7900 = vmatpush2.bf16.msra.mxu0 0
        %7901 = vmatprep.subr.bf16.mxu0 0
        %7902 = vmatpush2.bf16.msra.mxu0 0
        %7903 = vmatprep.subr.bf16.mxu0 0
        %7904 = vmatpush2.bf16.msra.mxu0 0
        %7905 = vmatprep.subr.bf16.mxu0 0
        %7906 = vmatpush2.bf16.msra.mxu0 0
        %7907 = vmatprep.subr.bf16.mxu0 0
        %7908 = vmatpush2.bf16.msra.mxu0 0
        %7909 = vmatprep.mubr.bf16.mxu0 0
        %7910 = vmatmul.mubr.bf16.gmra.mxu0 %v7678
        %v7911 = vpop.f32.mrf.mxu0
        %v7912 = vadd.f32 0.0, %v7911
        %v7913 = vpop.f32.mrf.mxu0
        %v7914 = vpop.f32.mrf.mxu0
        %v7915 = vadd.f32 0.0, %v7914
        %v7916 = vpop.f32.mrf.mxu0
        %7917 = vmatprep.mubr.bf16.mxu0 0
        %7918 = vmatmul.mubr.bf16.gmra.mxu0 %v7679
        %v7919 = vpop.f32.mrf.mxu0
        %v7920 = vadd.f32 0.0, %v7919
        %v7921 = vpop.f32.mrf.mxu0
        %v7922 = vpop.f32.mrf.mxu0
        %v7923 = vadd.f32 0.0, %v7922
        %v7924 = vpop.f32.mrf.mxu0
        %7925 = vmatprep.mubr.bf16.mxu0 0
        %7926 = vmatmul.mubr.bf16.gmra.mxu0 %v7680
        %v7927 = vpop.f32.mrf.mxu0
        %v7928 = vadd.f32 0.0, %v7927
        %v7929 = vpop.f32.mrf.mxu0
        %v7930 = vpop.f32.mrf.mxu0
        %v7931 = vadd.f32 0.0, %v7930
        %v7932 = vpop.f32.mrf.mxu0
        %7933 = vmatprep.mubr.bf16.mxu0 0
        %7934 = vmatmul.mubr.bf16.gmra.mxu0 %v7681
        %v7935 = vpop.f32.mrf.mxu0
        %v7936 = vadd.f32 0.0, %v7935
        %v7937 = vpop.f32.mrf.mxu0
        %v7938 = vpop.f32.mrf.mxu0
        %v7939 = vadd.f32 0.0, %v7938
        %v7940 = vpop.f32.mrf.mxu0
        %7941 = vdwg.mxu0
        %v7942 = vpack.c.bf16 %v7720, %v7717
        %v7943 = vpack.c.bf16 %v7728, %v7725
        %v7944 = vpack.c.bf16 %v7736, %v7733
        %v7945 = vpack.c.bf16 %v7744, %v7741
        %v7946 = vpack.c.bf16 %v7785, %v7782
        %v7947 = vpack.c.bf16 %v7793, %v7790
        %v7948 = vpack.c.bf16 %v7801, %v7798
        %v7949 = vpack.c.bf16 %v7809, %v7806
        %v7950 = vpack.c.bf16 %v7850, %v7847
        %v7951 = vpack.c.bf16 %v7858, %v7855
        %v7952 = vpack.c.bf16 %v7866, %v7863
        %v7953 = vpack.c.bf16 %v7874, %v7871
        %v7954 = vpack.c.bf16 %v7915, %v7912
        %v7955 = vpack.c.bf16 %v7923, %v7920
        %v7956 = vpack.c.bf16 %v7931, %v7928
        %v7957 = vpack.c.bf16 %v7939, %v7936
        %v7960 = vpack.i.b16 %v7946, %v7942
        %v7962 = vshrl.u32 %v7942, 16
        %v7963 = vshrl.u32 %v7946, 16
        %v7964 = vpack.i.b16 %v7963, %v7962
        %v7968 = vpack.i.b16 %v7954, %v7950
        %v7970 = vshrl.u32 %v7950, 16
        %v7971 = vshrl.u32 %v7954, 16
        %v7972 = vpack.i.b16 %v7971, %v7970
        %v7976 = vpack.i.b16 %v7947, %v7943
        %v7978 = vshrl.u32 %v7943, 16
        %v7979 = vshrl.u32 %v7947, 16
        %v7980 = vpack.i.b16 %v7979, %v7978
        %v7984 = vpack.i.b16 %v7955, %v7951
        %v7986 = vshrl.u32 %v7951, 16
        %v7987 = vshrl.u32 %v7955, 16
        %v7988 = vpack.i.b16 %v7987, %v7986
        %v7992 = vpack.i.b16 %v7948, %v7944
        %v7994 = vshrl.u32 %v7944, 16
        %v7995 = vshrl.u32 %v7948, 16
        %v7996 = vpack.i.b16 %v7995, %v7994
        %v8000 = vpack.i.b16 %v7956, %v7952
        %v8002 = vshrl.u32 %v7952, 16
        %v8003 = vshrl.u32 %v7956, 16
        %v8004 = vpack.i.b16 %v8003, %v8002
        %v8008 = vpack.i.b16 %v7949, %v7945
        %v8010 = vshrl.u32 %v7945, 16
        %v8011 = vshrl.u32 %v7949, 16
        %v8012 = vpack.i.b16 %v8011, %v8010
        %v8016 = vpack.i.b16 %v7957, %v7953
        %v8018 = vshrl.u32 %v7953, 16
        %v8019 = vshrl.u32 %v7957, 16
        %v8020 = vpack.i.b16 %v8019, %v8018
        %v8022 = vcombine.high %v7960, %v1564
        %v8024 = vunpack.c.l.s4 1983009808
        %v8025 = vunpack.c.0.s8 %v8024
        %v8026 = vlaneseq
        %v8027 = vshrl.u32 %v8026, 7
        %v8028 = vsub.s32 %v8025, %v8027
        %v8029 = vrot.slane %v7960, %v8028
        %v8031 = vunpack.c.l.s4 1983009808
        %v8032 = vunpack.c.0.s8 %v8031
        %v8033 = vlaneseq
        %v8034 = vshrl.u32 %v8033, 7
        %v8035 = vsub.s32 %v8032, %v8034
        %v8036 = vrot.slane %v8022, %v8035
        %v8037 = vcombine.high %v7968, %v1564
        %v8039 = vunpack.c.l.s4 1983009808
        %v8040 = vunpack.c.0.s8 %v8039
        %v8041 = vlaneseq
        %v8042 = vshrl.u32 %v8041, 7
        %v8043 = vsub.s32 %v8040, %v8042
        %v8044 = vrot.slane %v7968, %v8043
        %v8046 = vunpack.c.l.s4 1983009808
        %v8047 = vunpack.c.0.s8 %v8046
        %v8048 = vlaneseq
        %v8049 = vshrl.u32 %v8048, 7
        %v8050 = vsub.s32 %v8047, %v8049
        %v8051 = vrot.slane %v8037, %v8050
        %v8052 = vcombine.low %v8029, %v8044
        %v8053 = vcombine.high %v8029, %v8044
        %v8055 = vunpack.c.l.s4 1934713408
        %v8056 = vunpack.c.0.s8 %v8055
        %v8057 = vlaneseq
        %v8058 = vshrl.u32 %v8057, 7
        %v8059 = vsub.s32 %v8056, %v8058
        %v8060 = vrot.slane %v8052, %v8059
        %v8062 = vunpack.c.l.s4 1934713408
        %v8063 = vunpack.c.0.s8 %v8062
        %v8064 = vlaneseq
        %v8065 = vshrl.u32 %v8064, 7
        %v8066 = vsub.s32 %v8063, %v8065
        %v8067 = vrot.slane %v8053, %v8066
        %v8068 = vcombine.low %v8036, %v8051
        %v8069 = vcombine.high %v8036, %v8051
        %v8071 = vunpack.c.l.s4 1934713408
        %v8072 = vunpack.c.0.s8 %v8071
        %v8073 = vlaneseq
        %v8074 = vshrl.u32 %v8073, 7
        %v8075 = vsub.s32 %v8072, %v8074
        %v8076 = vrot.slane %v8068, %v8075
        %v8078 = vunpack.c.l.s4 1934713408
        %v8079 = vunpack.c.0.s8 %v8078
        %v8080 = vlaneseq
        %v8081 = vshrl.u32 %v8080, 7
        %v8082 = vsub.s32 %v8079, %v8081
        %v8083 = vrot.slane %v8069, %v8082
        %v8084 = vcombine.high %v8060, 0
        %v8085 = vcombine.high %v8067, 0
        %v8086 = vcombine.high %v8076, 0
        %v8087 = vcombine.high %v8083, 0
        %v8088 = vcombine.high %v7964, %v1567
        %v8090 = vunpack.c.l.s4 1983009808
        %v8091 = vunpack.c.0.s8 %v8090
        %v8092 = vlaneseq
        %v8093 = vshrl.u32 %v8092, 7
        %v8094 = vsub.s32 %v8091, %v8093
        %v8095 = vrot.slane %v7964, %v8094
        %v8097 = vunpack.c.l.s4 1983009808
        %v8098 = vunpack.c.0.s8 %v8097
        %v8099 = vlaneseq
        %v8100 = vshrl.u32 %v8099, 7
        %v8101 = vsub.s32 %v8098, %v8100
        %v8102 = vrot.slane %v8088, %v8101
        %v8103 = vcombine.high %v7972, %v1567
        %v8105 = vunpack.c.l.s4 1983009808
        %v8106 = vunpack.c.0.s8 %v8105
        %v8107 = vlaneseq
        %v8108 = vshrl.u32 %v8107, 7
        %v8109 = vsub.s32 %v8106, %v8108
        %v8110 = vrot.slane %v7972, %v8109
        %v8112 = vunpack.c.l.s4 1983009808
        %v8113 = vunpack.c.0.s8 %v8112
        %v8114 = vlaneseq
        %v8115 = vshrl.u32 %v8114, 7
        %v8116 = vsub.s32 %v8113, %v8115
        %v8117 = vrot.slane %v8103, %v8116
        %v8118 = vcombine.low %v8095, %v8110
        %v8119 = vcombine.high %v8095, %v8110
        %v8121 = vunpack.c.l.s4 1934713408
        %v8122 = vunpack.c.0.s8 %v8121
        %v8123 = vlaneseq
        %v8124 = vshrl.u32 %v8123, 7
        %v8125 = vsub.s32 %v8122, %v8124
        %v8126 = vrot.slane %v8118, %v8125
        %v8128 = vunpack.c.l.s4 1934713408
        %v8129 = vunpack.c.0.s8 %v8128
        %v8130 = vlaneseq
        %v8131 = vshrl.u32 %v8130, 7
        %v8132 = vsub.s32 %v8129, %v8131
        %v8133 = vrot.slane %v8119, %v8132
        %v8134 = vcombine.low %v8102, %v8117
        %v8135 = vcombine.high %v8102, %v8117
        %v8137 = vunpack.c.l.s4 1934713408
        %v8138 = vunpack.c.0.s8 %v8137
        %v8139 = vlaneseq
        %v8140 = vshrl.u32 %v8139, 7
        %v8141 = vsub.s32 %v8138, %v8140
        %v8142 = vrot.slane %v8134, %v8141
        %v8144 = vunpack.c.l.s4 1934713408
        %v8145 = vunpack.c.0.s8 %v8144
        %v8146 = vlaneseq
        %v8147 = vshrl.u32 %v8146, 7
        %v8148 = vsub.s32 %v8145, %v8147
        %v8149 = vrot.slane %v8135, %v8148
        %v8150 = vcombine.high %v8126, 0
        %v8151 = vcombine.high %v8133, 0
        %v8152 = vcombine.high %v8142, 0
        %v8153 = vcombine.high %v8149, 0
        %v8154 = vcombine.high %v7976, %v1564
        %v8156 = vunpack.c.l.s4 1983009808
        %v8157 = vunpack.c.0.s8 %v8156
        %v8158 = vlaneseq
        %v8159 = vshrl.u32 %v8158, 7
        %v8160 = vsub.s32 %v8157, %v8159
        %v8161 = vrot.slane %v7976, %v8160
        %v8163 = vunpack.c.l.s4 1983009808
        %v8164 = vunpack.c.0.s8 %v8163
        %v8165 = vlaneseq
        %v8166 = vshrl.u32 %v8165, 7
        %v8167 = vsub.s32 %v8164, %v8166
        %v8168 = vrot.slane %v8154, %v8167
        %v8169 = vcombine.high %v7984, %v1564
        %v8171 = vunpack.c.l.s4 1983009808
        %v8172 = vunpack.c.0.s8 %v8171
        %v8173 = vlaneseq
        %v8174 = vshrl.u32 %v8173, 7
        %v8175 = vsub.s32 %v8172, %v8174
        %v8176 = vrot.slane %v7984, %v8175
        %v8178 = vunpack.c.l.s4 1983009808
        %v8179 = vunpack.c.0.s8 %v8178
        %v8180 = vlaneseq
        %v8181 = vshrl.u32 %v8180, 7
        %v8182 = vsub.s32 %v8179, %v8181
        %v8183 = vrot.slane %v8169, %v8182
        %v8184 = vcombine.low %v8161, %v8176
        %v8185 = vcombine.high %v8161, %v8176
        %v8187 = vunpack.c.l.s4 1934713408
        %v8188 = vunpack.c.0.s8 %v8187
        %v8189 = vlaneseq
        %v8190 = vshrl.u32 %v8189, 7
        %v8191 = vsub.s32 %v8188, %v8190
        %v8192 = vrot.slane %v8184, %v8191
        %v8194 = vunpack.c.l.s4 1934713408
        %v8195 = vunpack.c.0.s8 %v8194
        %v8196 = vlaneseq
        %v8197 = vshrl.u32 %v8196, 7
        %v8198 = vsub.s32 %v8195, %v8197
        %v8199 = vrot.slane %v8185, %v8198
        %v8200 = vcombine.low %v8168, %v8183
        %v8201 = vcombine.high %v8168, %v8183
        %v8203 = vunpack.c.l.s4 1934713408
        %v8204 = vunpack.c.0.s8 %v8203
        %v8205 = vlaneseq
        %v8206 = vshrl.u32 %v8205, 7
        %v8207 = vsub.s32 %v8204, %v8206
        %v8208 = vrot.slane %v8200, %v8207
        %v8210 = vunpack.c.l.s4 1934713408
        %v8211 = vunpack.c.0.s8 %v8210
        %v8212 = vlaneseq
        %v8213 = vshrl.u32 %v8212, 7
        %v8214 = vsub.s32 %v8211, %v8213
        %v8215 = vrot.slane %v8201, %v8214
        %v8216 = vcombine.high %v8192, 0
        %v8217 = vcombine.high %v8199, 0
        %v8218 = vcombine.high %v8208, 0
        %v8219 = vcombine.high %v8215, 0
        %v8220 = vcombine.high %v7980, %v1567
        %v8222 = vunpack.c.l.s4 1983009808
        %v8223 = vunpack.c.0.s8 %v8222
        %v8224 = vlaneseq
        %v8225 = vshrl.u32 %v8224, 7
        %v8226 = vsub.s32 %v8223, %v8225
        %v8227 = vrot.slane %v7980, %v8226
        %v8229 = vunpack.c.l.s4 1983009808
        %v8230 = vunpack.c.0.s8 %v8229
        %v8231 = vlaneseq
        %v8232 = vshrl.u32 %v8231, 7
        %v8233 = vsub.s32 %v8230, %v8232
        %v8234 = vrot.slane %v8220, %v8233
        %v8235 = vcombine.high %v7988, %v1567
        %v8237 = vunpack.c.l.s4 1983009808
        %v8238 = vunpack.c.0.s8 %v8237
        %v8239 = vlaneseq
        %v8240 = vshrl.u32 %v8239, 7
        %v8241 = vsub.s32 %v8238, %v8240
        %v8242 = vrot.slane %v7988, %v8241
        %v8244 = vunpack.c.l.s4 1983009808
        %v8245 = vunpack.c.0.s8 %v8244
        %v8246 = vlaneseq
        %v8247 = vshrl.u32 %v8246, 7
        %v8248 = vsub.s32 %v8245, %v8247
        %v8249 = vrot.slane %v8235, %v8248
        %v8250 = vcombine.low %v8227, %v8242
        %v8251 = vcombine.high %v8227, %v8242
        %v8253 = vunpack.c.l.s4 1934713408
        %v8254 = vunpack.c.0.s8 %v8253
        %v8255 = vlaneseq
        %v8256 = vshrl.u32 %v8255, 7
        %v8257 = vsub.s32 %v8254, %v8256
        %v8258 = vrot.slane %v8250, %v8257
        %v8260 = vunpack.c.l.s4 1934713408
        %v8261 = vunpack.c.0.s8 %v8260
        %v8262 = vlaneseq
        %v8263 = vshrl.u32 %v8262, 7
        %v8264 = vsub.s32 %v8261, %v8263
        %v8265 = vrot.slane %v8251, %v8264
        %v8266 = vcombine.low %v8234, %v8249
        %v8267 = vcombine.high %v8234, %v8249
        %v8269 = vunpack.c.l.s4 1934713408
        %v8270 = vunpack.c.0.s8 %v8269
        %v8271 = vlaneseq
        %v8272 = vshrl.u32 %v8271, 7
        %v8273 = vsub.s32 %v8270, %v8272
        %v8274 = vrot.slane %v8266, %v8273
        %v8276 = vunpack.c.l.s4 1934713408
        %v8277 = vunpack.c.0.s8 %v8276
        %v8278 = vlaneseq
        %v8279 = vshrl.u32 %v8278, 7
        %v8280 = vsub.s32 %v8277, %v8279
        %v8281 = vrot.slane %v8267, %v8280
        %v8282 = vcombine.high %v8258, 0
        %v8283 = vcombine.high %v8265, 0
        %v8284 = vcombine.high %v8274, 0
        %v8285 = vcombine.high %v8281, 0
        %v8286 = vcombine.high %v7992, %v1564
        %v8288 = vunpack.c.l.s4 1983009808
        %v8289 = vunpack.c.0.s8 %v8288
        %v8290 = vlaneseq
        %v8291 = vshrl.u32 %v8290, 7
        %v8292 = vsub.s32 %v8289, %v8291
        %v8293 = vrot.slane %v7992, %v8292
        %v8295 = vunpack.c.l.s4 1983009808
        %v8296 = vunpack.c.0.s8 %v8295
        %v8297 = vlaneseq
        %v8298 = vshrl.u32 %v8297, 7
        %v8299 = vsub.s32 %v8296, %v8298
        %v8300 = vrot.slane %v8286, %v8299
        %v8301 = vcombine.high %v8000, %v1564
        %v8303 = vunpack.c.l.s4 1983009808
        %v8304 = vunpack.c.0.s8 %v8303
        %v8305 = vlaneseq
        %v8306 = vshrl.u32 %v8305, 7
        %v8307 = vsub.s32 %v8304, %v8306
        %v8308 = vrot.slane %v8000, %v8307
        %v8310 = vunpack.c.l.s4 1983009808
        %v8311 = vunpack.c.0.s8 %v8310
        %v8312 = vlaneseq
        %v8313 = vshrl.u32 %v8312, 7
        %v8314 = vsub.s32 %v8311, %v8313
        %v8315 = vrot.slane %v8301, %v8314
        %v8316 = vcombine.low %v8293, %v8308
        %v8317 = vcombine.high %v8293, %v8308
        %v8319 = vunpack.c.l.s4 1934713408
        %v8320 = vunpack.c.0.s8 %v8319
        %v8321 = vlaneseq
        %v8322 = vshrl.u32 %v8321, 7
        %v8323 = vsub.s32 %v8320, %v8322
        %v8324 = vrot.slane %v8316, %v8323
        %v8326 = vunpack.c.l.s4 1934713408
        %v8327 = vunpack.c.0.s8 %v8326
        %v8328 = vlaneseq
        %v8329 = vshrl.u32 %v8328, 7
        %v8330 = vsub.s32 %v8327, %v8329
        %v8331 = vrot.slane %v8317, %v8330
        %v8332 = vcombine.low %v8300, %v8315
        %v8333 = vcombine.high %v8300, %v8315
        %v8335 = vunpack.c.l.s4 1934713408
        %v8336 = vunpack.c.0.s8 %v8335
        %v8337 = vlaneseq
        %v8338 = vshrl.u32 %v8337, 7
        %v8339 = vsub.s32 %v8336, %v8338
        %v8340 = vrot.slane %v8332, %v8339
        %v8342 = vunpack.c.l.s4 1934713408
        %v8343 = vunpack.c.0.s8 %v8342
        %v8344 = vlaneseq
        %v8345 = vshrl.u32 %v8344, 7
        %v8346 = vsub.s32 %v8343, %v8345
        %v8347 = vrot.slane %v8333, %v8346
        %v8348 = vcombine.high %v8324, 0
        %v8349 = vcombine.high %v8331, 0
        %v8350 = vcombine.high %v8340, 0
        %v8351 = vcombine.high %v8347, 0
        %v8352 = vcombine.high %v7996, %v1567
        %v8354 = vunpack.c.l.s4 1983009808
        %v8355 = vunpack.c.0.s8 %v8354
        %v8356 = vlaneseq
        %v8357 = vshrl.u32 %v8356, 7
        %v8358 = vsub.s32 %v8355, %v8357
        %v8359 = vrot.slane %v7996, %v8358
        %v8361 = vunpack.c.l.s4 1983009808
        %v8362 = vunpack.c.0.s8 %v8361
        %v8363 = vlaneseq
        %v8364 = vshrl.u32 %v8363, 7
        %v8365 = vsub.s32 %v8362, %v8364
        %v8366 = vrot.slane %v8352, %v8365
        %v8367 = vcombine.high %v8004, %v1567
        %v8369 = vunpack.c.l.s4 1983009808
        %v8370 = vunpack.c.0.s8 %v8369
        %v8371 = vlaneseq
        %v8372 = vshrl.u32 %v8371, 7
        %v8373 = vsub.s32 %v8370, %v8372
        %v8374 = vrot.slane %v8004, %v8373
        %v8376 = vunpack.c.l.s4 1983009808
        %v8377 = vunpack.c.0.s8 %v8376
        %v8378 = vlaneseq
        %v8379 = vshrl.u32 %v8378, 7
        %v8380 = vsub.s32 %v8377, %v8379
        %v8381 = vrot.slane %v8367, %v8380
        %v8382 = vcombine.low %v8359, %v8374
        %v8383 = vcombine.high %v8359, %v8374
        %v8385 = vunpack.c.l.s4 1934713408
        %v8386 = vunpack.c.0.s8 %v8385
        %v8387 = vlaneseq
        %v8388 = vshrl.u32 %v8387, 7
        %v8389 = vsub.s32 %v8386, %v8388
        %v8390 = vrot.slane %v8382, %v8389
        %v8392 = vunpack.c.l.s4 1934713408
        %v8393 = vunpack.c.0.s8 %v8392
        %v8394 = vlaneseq
        %v8395 = vshrl.u32 %v8394, 7
        %v8396 = vsub.s32 %v8393, %v8395
        %v8397 = vrot.slane %v8383, %v8396
        %v8398 = vcombine.low %v8366, %v8381
        %v8399 = vcombine.high %v8366, %v8381
        %v8401 = vunpack.c.l.s4 1934713408
        %v8402 = vunpack.c.0.s8 %v8401
        %v8403 = vlaneseq
        %v8404 = vshrl.u32 %v8403, 7
        %v8405 = vsub.s32 %v8402, %v8404
        %v8406 = vrot.slane %v8398, %v8405
        %v8408 = vunpack.c.l.s4 1934713408
        %v8409 = vunpack.c.0.s8 %v8408
        %v8410 = vlaneseq
        %v8411 = vshrl.u32 %v8410, 7
        %v8412 = vsub.s32 %v8409, %v8411
        %v8413 = vrot.slane %v8399, %v8412
        %v8414 = vcombine.high %v8390, 0
        %v8415 = vcombine.high %v8397, 0
        %v8416 = vcombine.high %v8406, 0
        %v8417 = vcombine.high %v8413, 0
        %v8418 = vcombine.high %v8008, %v1564
        %v8420 = vunpack.c.l.s4 1983009808
        %v8421 = vunpack.c.0.s8 %v8420
        %v8422 = vlaneseq
        %v8423 = vshrl.u32 %v8422, 7
        %v8424 = vsub.s32 %v8421, %v8423
        %v8425 = vrot.slane %v8008, %v8424
        %v8427 = vunpack.c.l.s4 1983009808
        %v8428 = vunpack.c.0.s8 %v8427
        %v8429 = vlaneseq
        %v8430 = vshrl.u32 %v8429, 7
        %v8431 = vsub.s32 %v8428, %v8430
        %v8432 = vrot.slane %v8418, %v8431
        %v8433 = vcombine.high %v8016, %v1564
        %v8435 = vunpack.c.l.s4 1983009808
        %v8436 = vunpack.c.0.s8 %v8435
        %v8437 = vlaneseq
        %v8438 = vshrl.u32 %v8437, 7
        %v8439 = vsub.s32 %v8436, %v8438
        %v8440 = vrot.slane %v8016, %v8439
        %v8442 = vunpack.c.l.s4 1983009808
        %v8443 = vunpack.c.0.s8 %v8442
        %v8444 = vlaneseq
        %v8445 = vshrl.u32 %v8444, 7
        %v8446 = vsub.s32 %v8443, %v8445
        %v8447 = vrot.slane %v8433, %v8446
        %v8448 = vcombine.low %v8425, %v8440
        %v8449 = vcombine.high %v8425, %v8440
        %v8451 = vunpack.c.l.s4 1934713408
        %v8452 = vunpack.c.0.s8 %v8451
        %v8453 = vlaneseq
        %v8454 = vshrl.u32 %v8453, 7
        %v8455 = vsub.s32 %v8452, %v8454
        %v8456 = vrot.slane %v8448, %v8455
        %v8458 = vunpack.c.l.s4 1934713408
        %v8459 = vunpack.c.0.s8 %v8458
        %v8460 = vlaneseq
        %v8461 = vshrl.u32 %v8460, 7
        %v8462 = vsub.s32 %v8459, %v8461
        %v8463 = vrot.slane %v8449, %v8462
        %v8464 = vcombine.low %v8432, %v8447
        %v8465 = vcombine.high %v8432, %v8447
        %v8467 = vunpack.c.l.s4 1934713408
        %v8468 = vunpack.c.0.s8 %v8467
        %v8469 = vlaneseq
        %v8470 = vshrl.u32 %v8469, 7
        %v8471 = vsub.s32 %v8468, %v8470
        %v8472 = vrot.slane %v8464, %v8471
        %v8474 = vunpack.c.l.s4 1934713408
        %v8475 = vunpack.c.0.s8 %v8474
        %v8476 = vlaneseq
        %v8477 = vshrl.u32 %v8476, 7
        %v8478 = vsub.s32 %v8475, %v8477
        %v8479 = vrot.slane %v8465, %v8478
        %v8480 = vcombine.high %v8456, 0
        %v8481 = vcombine.high %v8463, 0
        %v8482 = vcombine.high %v8472, 0
        %v8483 = vcombine.high %v8479, 0
        %v8484 = vcombine.high %v8012, %v1567
        %v8486 = vunpack.c.l.s4 1983009808
        %v8487 = vunpack.c.0.s8 %v8486
        %v8488 = vlaneseq
        %v8489 = vshrl.u32 %v8488, 7
        %v8490 = vsub.s32 %v8487, %v8489
        %v8491 = vrot.slane %v8012, %v8490
        %v8493 = vunpack.c.l.s4 1983009808
        %v8494 = vunpack.c.0.s8 %v8493
        %v8495 = vlaneseq
        %v8496 = vshrl.u32 %v8495, 7
        %v8497 = vsub.s32 %v8494, %v8496
        %v8498 = vrot.slane %v8484, %v8497
        %v8499 = vcombine.high %v8020, %v1567
        %v8501 = vunpack.c.l.s4 1983009808
        %v8502 = vunpack.c.0.s8 %v8501
        %v8503 = vlaneseq
        %v8504 = vshrl.u32 %v8503, 7
        %v8505 = vsub.s32 %v8502, %v8504
        %v8506 = vrot.slane %v8020, %v8505
        %v8508 = vunpack.c.l.s4 1983009808
        %v8509 = vunpack.c.0.s8 %v8508
        %v8510 = vlaneseq
        %v8511 = vshrl.u32 %v8510, 7
        %v8512 = vsub.s32 %v8509, %v8511
        %v8513 = vrot.slane %v8499, %v8512
        %v8514 = vcombine.low %v8491, %v8506
        %v8515 = vcombine.high %v8491, %v8506
        %v8517 = vunpack.c.l.s4 1934713408
        %v8518 = vunpack.c.0.s8 %v8517
        %v8519 = vlaneseq
        %v8520 = vshrl.u32 %v8519, 7
        %v8521 = vsub.s32 %v8518, %v8520
        %v8522 = vrot.slane %v8514, %v8521
        %v8524 = vunpack.c.l.s4 1934713408
        %v8525 = vunpack.c.0.s8 %v8524
        %v8526 = vlaneseq
        %v8527 = vshrl.u32 %v8526, 7
        %v8528 = vsub.s32 %v8525, %v8527
        %v8529 = vrot.slane %v8515, %v8528
        %v8530 = vcombine.low %v8498, %v8513
        %v8531 = vcombine.high %v8498, %v8513
        %v8533 = vunpack.c.l.s4 1934713408
        %v8534 = vunpack.c.0.s8 %v8533
        %v8535 = vlaneseq
        %v8536 = vshrl.u32 %v8535, 7
        %v8537 = vsub.s32 %v8534, %v8536
        %v8538 = vrot.slane %v8530, %v8537
        %v8540 = vunpack.c.l.s4 1934713408
        %v8541 = vunpack.c.0.s8 %v8540
        %v8542 = vlaneseq
        %v8543 = vshrl.u32 %v8542, 7
        %v8544 = vsub.s32 %v8541, %v8543
        %v8545 = vrot.slane %v8531, %v8544
        %v8546 = vcombine.high %v8522, 0
        %v8547 = vcombine.high %v8529, 0
        %v8548 = vcombine.high %v8538, 0
        %v8549 = vcombine.high %v8545, 0
        %v8550 = vcombine.low %v8060, %v8067
        %v8552 = vunpack.c.l.s4 1983009808
        %v8553 = vunpack.c.0.s8 %v8552
        %v8554 = vlaneseq
        %v8555 = vshrl.u32 %v8554, 7
        %v8556 = vsub.s32 %v8553, %v8555
        %v8557 = vrot.slane %v8550, %v8556
        %v8558 = vcombine.low %v8084, %v8085
        %v8560 = vunpack.c.l.s4 1983009808
        %v8561 = vunpack.c.0.s8 %v8560
        %v8562 = vlaneseq
        %v8563 = vshrl.u32 %v8562, 7
        %v8564 = vsub.s32 %v8561, %v8563
        %v8565 = vrot.slane %v8558, %v8564
        %v8566 = vcombine.low %v8076, %v8083
        %v8568 = vunpack.c.l.s4 1983009808
        %v8569 = vunpack.c.0.s8 %v8568
        %v8570 = vlaneseq
        %v8571 = vshrl.u32 %v8570, 7
        %v8572 = vsub.s32 %v8569, %v8571
        %v8573 = vrot.slane %v8566, %v8572
        %v8574 = vcombine.low %v8086, %v8087
        %v8576 = vunpack.c.l.s4 1983009808
        %v8577 = vunpack.c.0.s8 %v8576
        %v8578 = vlaneseq
        %v8579 = vshrl.u32 %v8578, 7
        %v8580 = vsub.s32 %v8577, %v8579
        %v8581 = vrot.slane %v8574, %v8580
        %v8582 = vcombine.low %v8557, %v8565
        %v8584 = vunpack.c.l.s4 1934713408
        %v8585 = vunpack.c.0.s8 %v8584
        %v8586 = vlaneseq
        %v8587 = vshrl.u32 %v8586, 7
        %v8588 = vsub.s32 %v8585, %v8587
        %v8589 = vrot.slane %v8582, %v8588
        %v8590 = vcombine.low %v8573, %v8581
        %v8592 = vunpack.c.l.s4 1934713408
        %v8593 = vunpack.c.0.s8 %v8592
        %v8594 = vlaneseq
        %v8595 = vshrl.u32 %v8594, 7
        %v8596 = vsub.s32 %v8593, %v8595
        %v8597 = vrot.slane %v8590, %v8596
        %v8598 = vcombine.low %v8589, %v8597
        %v8599 = vcombine.high %v8589, %v8597
        %v8600 = vcombine.low %v8126, %v8133
        %v8602 = vunpack.c.l.s4 1983009808
        %v8603 = vunpack.c.0.s8 %v8602
        %v8604 = vlaneseq
        %v8605 = vshrl.u32 %v8604, 7
        %v8606 = vsub.s32 %v8603, %v8605
        %v8607 = vrot.slane %v8600, %v8606
        %v8608 = vcombine.low %v8150, %v8151
        %v8610 = vunpack.c.l.s4 1983009808
        %v8611 = vunpack.c.0.s8 %v8610
        %v8612 = vlaneseq
        %v8613 = vshrl.u32 %v8612, 7
        %v8614 = vsub.s32 %v8611, %v8613
        %v8615 = vrot.slane %v8608, %v8614
        %v8616 = vcombine.low %v8142, %v8149
        %v8618 = vunpack.c.l.s4 1983009808
        %v8619 = vunpack.c.0.s8 %v8618
        %v8620 = vlaneseq
        %v8621 = vshrl.u32 %v8620, 7
        %v8622 = vsub.s32 %v8619, %v8621
        %v8623 = vrot.slane %v8616, %v8622
        %v8624 = vcombine.low %v8152, %v8153
        %v8626 = vunpack.c.l.s4 1983009808
        %v8627 = vunpack.c.0.s8 %v8626
        %v8628 = vlaneseq
        %v8629 = vshrl.u32 %v8628, 7
        %v8630 = vsub.s32 %v8627, %v8629
        %v8631 = vrot.slane %v8624, %v8630
        %v8632 = vcombine.low %v8607, %v8615
        %v8634 = vunpack.c.l.s4 1934713408
        %v8635 = vunpack.c.0.s8 %v8634
        %v8636 = vlaneseq
        %v8637 = vshrl.u32 %v8636, 7
        %v8638 = vsub.s32 %v8635, %v8637
        %v8639 = vrot.slane %v8632, %v8638
        %v8640 = vcombine.low %v8623, %v8631
        %v8642 = vunpack.c.l.s4 1934713408
        %v8643 = vunpack.c.0.s8 %v8642
        %v8644 = vlaneseq
        %v8645 = vshrl.u32 %v8644, 7
        %v8646 = vsub.s32 %v8643, %v8645
        %v8647 = vrot.slane %v8640, %v8646
        %v8648 = vcombine.low %v8639, %v8647
        %v8649 = vcombine.high %v8639, %v8647
        %v8650 = vcombine.low %v8192, %v8199
        %v8652 = vunpack.c.l.s4 1983009808
        %v8653 = vunpack.c.0.s8 %v8652
        %v8654 = vlaneseq
        %v8655 = vshrl.u32 %v8654, 7
        %v8656 = vsub.s32 %v8653, %v8655
        %v8657 = vrot.slane %v8650, %v8656
        %v8658 = vcombine.low %v8216, %v8217
        %v8660 = vunpack.c.l.s4 1983009808
        %v8661 = vunpack.c.0.s8 %v8660
        %v8662 = vlaneseq
        %v8663 = vshrl.u32 %v8662, 7
        %v8664 = vsub.s32 %v8661, %v8663
        %v8665 = vrot.slane %v8658, %v8664
        %v8666 = vcombine.low %v8208, %v8215
        %v8668 = vunpack.c.l.s4 1983009808
        %v8669 = vunpack.c.0.s8 %v8668
        %v8670 = vlaneseq
        %v8671 = vshrl.u32 %v8670, 7
        %v8672 = vsub.s32 %v8669, %v8671
        %v8673 = vrot.slane %v8666, %v8672
        %v8674 = vcombine.low %v8218, %v8219
        %v8676 = vunpack.c.l.s4 1983009808
        %v8677 = vunpack.c.0.s8 %v8676
        %v8678 = vlaneseq
        %v8679 = vshrl.u32 %v8678, 7
        %v8680 = vsub.s32 %v8677, %v8679
        %v8681 = vrot.slane %v8674, %v8680
        %v8682 = vcombine.low %v8657, %v8665
        %v8684 = vunpack.c.l.s4 1934713408
        %v8685 = vunpack.c.0.s8 %v8684
        %v8686 = vlaneseq
        %v8687 = vshrl.u32 %v8686, 7
        %v8688 = vsub.s32 %v8685, %v8687
        %v8689 = vrot.slane %v8682, %v8688
        %v8690 = vcombine.low %v8673, %v8681
        %v8692 = vunpack.c.l.s4 1934713408
        %v8693 = vunpack.c.0.s8 %v8692
        %v8694 = vlaneseq
        %v8695 = vshrl.u32 %v8694, 7
        %v8696 = vsub.s32 %v8693, %v8695
        %v8697 = vrot.slane %v8690, %v8696
        %v8698 = vcombine.low %v8689, %v8697
        %v8699 = vcombine.high %v8689, %v8697
        %v8700 = vcombine.low %v8258, %v8265
        %v8702 = vunpack.c.l.s4 1983009808
        %v8703 = vunpack.c.0.s8 %v8702
        %v8704 = vlaneseq
        %v8705 = vshrl.u32 %v8704, 7
        %v8706 = vsub.s32 %v8703, %v8705
        %v8707 = vrot.slane %v8700, %v8706
        %v8708 = vcombine.low %v8282, %v8283
        %v8710 = vunpack.c.l.s4 1983009808
        %v8711 = vunpack.c.0.s8 %v8710
        %v8712 = vlaneseq
        %v8713 = vshrl.u32 %v8712, 7
        %v8714 = vsub.s32 %v8711, %v8713
        %v8715 = vrot.slane %v8708, %v8714
        %v8716 = vcombine.low %v8274, %v8281
        %v8718 = vunpack.c.l.s4 1983009808
        %v8719 = vunpack.c.0.s8 %v8718
        %v8720 = vlaneseq
        %v8721 = vshrl.u32 %v8720, 7
        %v8722 = vsub.s32 %v8719, %v8721
        %v8723 = vrot.slane %v8716, %v8722
        %v8724 = vcombine.low %v8284, %v8285
        %v8726 = vunpack.c.l.s4 1983009808
        %v8727 = vunpack.c.0.s8 %v8726
        %v8728 = vlaneseq
        %v8729 = vshrl.u32 %v8728, 7
        %v8730 = vsub.s32 %v8727, %v8729
        %v8731 = vrot.slane %v8724, %v8730
        %v8732 = vcombine.low %v8707, %v8715
        %v8734 = vunpack.c.l.s4 1934713408
        %v8735 = vunpack.c.0.s8 %v8734
        %v8736 = vlaneseq
        %v8737 = vshrl.u32 %v8736, 7
        %v8738 = vsub.s32 %v8735, %v8737
        %v8739 = vrot.slane %v8732, %v8738
        %v8740 = vcombine.low %v8723, %v8731
        %v8742 = vunpack.c.l.s4 1934713408
        %v8743 = vunpack.c.0.s8 %v8742
        %v8744 = vlaneseq
        %v8745 = vshrl.u32 %v8744, 7
        %v8746 = vsub.s32 %v8743, %v8745
        %v8747 = vrot.slane %v8740, %v8746
        %v8748 = vcombine.low %v8739, %v8747
        %v8749 = vcombine.high %v8739, %v8747
        %v8750 = vcombine.low %v8324, %v8331
        %v8752 = vunpack.c.l.s4 1983009808
        %v8753 = vunpack.c.0.s8 %v8752
        %v8754 = vlaneseq
        %v8755 = vshrl.u32 %v8754, 7
        %v8756 = vsub.s32 %v8753, %v8755
        %v8757 = vrot.slane %v8750, %v8756
        %v8758 = vcombine.low %v8348, %v8349
        %v8760 = vunpack.c.l.s4 1983009808
        %v8761 = vunpack.c.0.s8 %v8760
        %v8762 = vlaneseq
        %v8763 = vshrl.u32 %v8762, 7
        %v8764 = vsub.s32 %v8761, %v8763
        %v8765 = vrot.slane %v8758, %v8764
        %v8766 = vcombine.low %v8340, %v8347
        %v8768 = vunpack.c.l.s4 1983009808
        %v8769 = vunpack.c.0.s8 %v8768
        %v8770 = vlaneseq
        %v8771 = vshrl.u32 %v8770, 7
        %v8772 = vsub.s32 %v8769, %v8771
        %v8773 = vrot.slane %v8766, %v8772
        %v8774 = vcombine.low %v8350, %v8351
        %v8776 = vunpack.c.l.s4 1983009808
        %v8777 = vunpack.c.0.s8 %v8776
        %v8778 = vlaneseq
        %v8779 = vshrl.u32 %v8778, 7
        %v8780 = vsub.s32 %v8777, %v8779
        %v8781 = vrot.slane %v8774, %v8780
        %v8782 = vcombine.low %v8757, %v8765
        %v8784 = vunpack.c.l.s4 1934713408
        %v8785 = vunpack.c.0.s8 %v8784
        %v8786 = vlaneseq
        %v8787 = vshrl.u32 %v8786, 7
        %v8788 = vsub.s32 %v8785, %v8787
        %v8789 = vrot.slane %v8782, %v8788
        %v8790 = vcombine.low %v8773, %v8781
        %v8792 = vunpack.c.l.s4 1934713408
        %v8793 = vunpack.c.0.s8 %v8792
        %v8794 = vlaneseq
        %v8795 = vshrl.u32 %v8794, 7
        %v8796 = vsub.s32 %v8793, %v8795
        %v8797 = vrot.slane %v8790, %v8796
        %v8798 = vcombine.low %v8789, %v8797
        %v8799 = vcombine.high %v8789, %v8797
        %v8800 = vcombine.low %v8390, %v8397
        %v8802 = vunpack.c.l.s4 1983009808
        %v8803 = vunpack.c.0.s8 %v8802
        %v8804 = vlaneseq
        %v8805 = vshrl.u32 %v8804, 7
        %v8806 = vsub.s32 %v8803, %v8805
        %v8807 = vrot.slane %v8800, %v8806
        %v8808 = vcombine.low %v8414, %v8415
        %v8810 = vunpack.c.l.s4 1983009808
        %v8811 = vunpack.c.0.s8 %v8810
        %v8812 = vlaneseq
        %v8813 = vshrl.u32 %v8812, 7
        %v8814 = vsub.s32 %v8811, %v8813
        %v8815 = vrot.slane %v8808, %v8814
        %v8816 = vcombine.low %v8406, %v8413
        %v8818 = vunpack.c.l.s4 1983009808
        %v8819 = vunpack.c.0.s8 %v8818
        %v8820 = vlaneseq
        %v8821 = vshrl.u32 %v8820, 7
        %v8822 = vsub.s32 %v8819, %v8821
        %v8823 = vrot.slane %v8816, %v8822
        %v8824 = vcombine.low %v8416, %v8417
        %v8826 = vunpack.c.l.s4 1983009808
        %v8827 = vunpack.c.0.s8 %v8826
        %v8828 = vlaneseq
        %v8829 = vshrl.u32 %v8828, 7
        %v8830 = vsub.s32 %v8827, %v8829
        %v8831 = vrot.slane %v8824, %v8830
        %v8832 = vcombine.low %v8807, %v8815
        %v8834 = vunpack.c.l.s4 1934713408
        %v8835 = vunpack.c.0.s8 %v8834
        %v8836 = vlaneseq
        %v8837 = vshrl.u32 %v8836, 7
        %v8838 = vsub.s32 %v8835, %v8837
        %v8839 = vrot.slane %v8832, %v8838
        %v8840 = vcombine.low %v8823, %v8831
        %v8842 = vunpack.c.l.s4 1934713408
        %v8843 = vunpack.c.0.s8 %v8842
        %v8844 = vlaneseq
        %v8845 = vshrl.u32 %v8844, 7
        %v8846 = vsub.s32 %v8843, %v8845
        %v8847 = vrot.slane %v8840, %v8846
        %v8848 = vcombine.low %v8839, %v8847
        %v8849 = vcombine.high %v8839, %v8847
        %v8850 = vcombine.low %v8456, %v8463
        %v8852 = vunpack.c.l.s4 1983009808
        %v8853 = vunpack.c.0.s8 %v8852
        %v8854 = vlaneseq
        %v8855 = vshrl.u32 %v8854, 7
        %v8856 = vsub.s32 %v8853, %v8855
        %v8857 = vrot.slane %v8850, %v8856
        %v8858 = vcombine.low %v8480, %v8481
        %v8860 = vunpack.c.l.s4 1983009808
        %v8861 = vunpack.c.0.s8 %v8860
        %v8862 = vlaneseq
        %v8863 = vshrl.u32 %v8862, 7
        %v8864 = vsub.s32 %v8861, %v8863
        %v8865 = vrot.slane %v8858, %v8864
        %v8866 = vcombine.low %v8472, %v8479
        %v8868 = vunpack.c.l.s4 1983009808
        %v8869 = vunpack.c.0.s8 %v8868
        %v8870 = vlaneseq
        %v8871 = vshrl.u32 %v8870, 7
        %v8872 = vsub.s32 %v8869, %v8871
        %v8873 = vrot.slane %v8866, %v8872
        %v8874 = vcombine.low %v8482, %v8483
        %v8876 = vunpack.c.l.s4 1983009808
        %v8877 = vunpack.c.0.s8 %v8876
        %v8878 = vlaneseq
        %v8879 = vshrl.u32 %v8878, 7
        %v8880 = vsub.s32 %v8877, %v8879
        %v8881 = vrot.slane %v8874, %v8880
        %v8882 = vcombine.low %v8857, %v8865
        %v8884 = vunpack.c.l.s4 1934713408
        %v8885 = vunpack.c.0.s8 %v8884
        %v8886 = vlaneseq
        %v8887 = vshrl.u32 %v8886, 7
        %v8888 = vsub.s32 %v8885, %v8887
        %v8889 = vrot.slane %v8882, %v8888
        %v8890 = vcombine.low %v8873, %v8881
        %v8892 = vunpack.c.l.s4 1934713408
        %v8893 = vunpack.c.0.s8 %v8892
        %v8894 = vlaneseq
        %v8895 = vshrl.u32 %v8894, 7
        %v8896 = vsub.s32 %v8893, %v8895
        %v8897 = vrot.slane %v8890, %v8896
        %v8898 = vcombine.low %v8889, %v8897
        %v8899 = vcombine.high %v8889, %v8897
        %v8900 = vcombine.low %v8522, %v8529
        %v8902 = vunpack.c.l.s4 1983009808
        %v8903 = vunpack.c.0.s8 %v8902
        %v8904 = vlaneseq
        %v8905 = vshrl.u32 %v8904, 7
        %v8906 = vsub.s32 %v8903, %v8905
        %v8907 = vrot.slane %v8900, %v8906
        %v8908 = vcombine.low %v8546, %v8547
        %v8910 = vunpack.c.l.s4 1983009808
        %v8911 = vunpack.c.0.s8 %v8910
        %v8912 = vlaneseq
        %v8913 = vshrl.u32 %v8912, 7
        %v8914 = vsub.s32 %v8911, %v8913
        %v8915 = vrot.slane %v8908, %v8914
        %v8916 = vcombine.low %v8538, %v8545
        %v8918 = vunpack.c.l.s4 1983009808
        %v8919 = vunpack.c.0.s8 %v8918
        %v8920 = vlaneseq
        %v8921 = vshrl.u32 %v8920, 7
        %v8922 = vsub.s32 %v8919, %v8921
        %v8923 = vrot.slane %v8916, %v8922
        %v8924 = vcombine.low %v8548, %v8549
        %v8926 = vunpack.c.l.s4 1983009808
        %v8927 = vunpack.c.0.s8 %v8926
        %v8928 = vlaneseq
        %v8929 = vshrl.u32 %v8928, 7
        %v8930 = vsub.s32 %v8927, %v8929
        %v8931 = vrot.slane %v8924, %v8930
        %v8932 = vcombine.low %v8907, %v8915
        %v8934 = vunpack.c.l.s4 1934713408
        %v8935 = vunpack.c.0.s8 %v8934
        %v8936 = vlaneseq
        %v8937 = vshrl.u32 %v8936, 7
        %v8938 = vsub.s32 %v8935, %v8937
        %v8939 = vrot.slane %v8932, %v8938
        %v8940 = vcombine.low %v8923, %v8931
        %v8942 = vunpack.c.l.s4 1934713408
        %v8943 = vunpack.c.0.s8 %v8942
        %v8944 = vlaneseq
        %v8945 = vshrl.u32 %v8944, 7
        %v8946 = vsub.s32 %v8943, %v8945
        %v8947 = vrot.slane %v8940, %v8946
        %v8948 = vcombine.low %v8939, %v8947
        %v8949 = vcombine.high %v8939, %v8947
        %v8952 = vpack.i.b16 %v8648, %v8598
        %v8953 = vshrl.u32 %v8598, 16
        %v8954 = vshrl.u32 %v8648, 16
        %v8955 = vpack.i.b16 %v8954, %v8953
        %v8958 = vpack.i.b16 %v8649, %v8599
        %v8959 = vshrl.u32 %v8599, 16
        %v8960 = vshrl.u32 %v8649, 16
        %v8961 = vpack.i.b16 %v8960, %v8959
        %v8964 = vpack.i.b16 %v8748, %v8698
        %v8965 = vshrl.u32 %v8698, 16
        %v8966 = vshrl.u32 %v8748, 16
        %v8967 = vpack.i.b16 %v8966, %v8965
        %v8970 = vpack.i.b16 %v8749, %v8699
        %v8971 = vshrl.u32 %v8699, 16
        %v8972 = vshrl.u32 %v8749, 16
        %v8973 = vpack.i.b16 %v8972, %v8971
        %v8976 = vpack.i.b16 %v8848, %v8798
        %v8977 = vshrl.u32 %v8798, 16
        %v8978 = vshrl.u32 %v8848, 16
        %v8979 = vpack.i.b16 %v8978, %v8977
        %v8982 = vpack.i.b16 %v8849, %v8799
        %v8983 = vshrl.u32 %v8799, 16
        %v8984 = vshrl.u32 %v8849, 16
        %v8985 = vpack.i.b16 %v8984, %v8983
        %v8988 = vpack.i.b16 %v8948, %v8898
        %v8989 = vshrl.u32 %v8898, 16
        %v8990 = vshrl.u32 %v8948, 16
        %v8991 = vpack.i.b16 %v8990, %v8989
        %v8994 = vpack.i.b16 %v8949, %v8899
        %v8995 = vshrl.u32 %v8899, 16
        %v8996 = vshrl.u32 %v8949, 16
        %v8997 = vpack.i.b16 %v8996, %v8995
        %8998 = vrot.lane.b32.xlu0 %v8955, 32
        %v8999 = vpop.permute.xlu0 %8998
        %9000 = vrot.lane.b32.xlu0 %v8967, 32
        %v9001 = vpop.permute.xlu0 %9000
        %9002 = vrot.lane.b32.xlu0 %v8979, 32
        %v9003 = vpop.permute.xlu0 %9002
        %9004 = vrot.lane.b32.xlu0 %v8991, 32
        %v9005 = vpop.permute.xlu0 %9004
        %9006 = vrot.lane.b32.xlu0 %v8958, 64
        %v9007 = vpop.permute.xlu0 %9006
        %9008 = vrot.lane.b32.xlu0 %v8970, 64
        %v9009 = vpop.permute.xlu0 %9008
        %9010 = vrot.lane.b32.xlu0 %v8982, 64
        %v9011 = vpop.permute.xlu0 %9010
        %9012 = vrot.lane.b32.xlu0 %v8994, 64
        %v9013 = vpop.permute.xlu0 %9012
        %9014 = vrot.lane.b32.xlu0 %v8961, 96
        %v9015 = vpop.permute.xlu0 %9014
        %9016 = vrot.lane.b32.xlu0 %v8973, 96
        %v9017 = vpop.permute.xlu0 %9016
        %9018 = vrot.lane.b32.xlu0 %v8985, 96
        %v9019 = vpop.permute.xlu0 %9018
        %9020 = vrot.lane.b32.xlu0 %v8997, 96
        %v9021 = vpop.permute.xlu0 %9020
        %v9024 = vsel %vm6913, %v8952, %v8999
        %v9027 = vsel %vm6913, %v8964, %v9001
        %v9030 = vsel %vm6913, %v8976, %v9003
        %v9033 = vsel %vm6913, %v8988, %v9005
        %vm9034 = vcmask 523264
        %v9036 = vsel %vm9034, %v9024, %v9007
        %v9038 = vsel %vm9034, %v9027, %v9009
        %v9040 = vsel %vm9034, %v9030, %v9011
        %v9042 = vsel %vm9034, %v9033, %v9013
        %vm9043 = vcmask 785408
        %v9045 = vsel %vm9043, %v9036, %v9015
        %v9048 = vsel %vm9043, %v9038, %v9017
        %v9051 = vsel %vm9043, %v9040, %v9019
        %v9054 = vsel %vm9043, %v9042, %v9021
        %v9056 = vld [vmem:[#allocation10] sm:$0xf]
        %v9057 = vld [vmem:[#allocation10 + $0x4] sm:$0xf]
        %v9058 = vld [vmem:[#allocation10 + $0x8] sm:$0xf]
        %v9059 = vld [vmem:[#allocation10 + $0xc] sm:$0xf]
        %v9060 = vld [vmem:[#allocation10 + $0x10] sm:$0xf]
        %v9061 = vld [vmem:[#allocation10 + $0x14] sm:$0xf]
        %v9062 = vld [vmem:[#allocation10 + $0x18] sm:$0xf]
        %v9063 = vld [vmem:[#allocation10 + $0x1c] sm:$0xf]
        %v9064 = vld [vmem:[#allocation10 + $0x20] sm:$0xf]
        %v9065 = vld [vmem:[#allocation10 + $0x24] sm:$0xf]
        %v9066 = vld [vmem:[#allocation10 + $0x28] sm:$0xf]
        %v9067 = vld [vmem:[#allocation10 + $0x2c] sm:$0xf]
        %v9068 = vld [vmem:[#allocation10 + $0x30] sm:$0xf]
        %v9069 = vld [vmem:[#allocation10 + $0x34] sm:$0xf]
        %v9070 = vld [vmem:[#allocation10 + $0x38] sm:$0xf]
        %v9071 = vld [vmem:[#allocation10 + $0x3c] sm:$0xf]
        %v9072 = vld [vmem:[%s8] sm:$0x1]
        %v9074 = vlaneseq
        %v9075 = vshrl.u32 %v9074, 7
        %v9076 = vsub.s32 0, %v9075
        %v9077 = vrot.slane %v9072, %v9076
        %v9095 = vunpack.c.l.b16 %v9056
        %v9096 = vunpack.c.l.b16 %v9057
        %v9097 = vunpack.c.l.b16 %v9058
        %v9098 = vunpack.c.l.b16 %v9059
        %v9099 = vunpack.c.l.b16 %v9060
        %v9100 = vunpack.c.l.b16 %v9061
        %v9101 = vunpack.c.l.b16 %v9062
        %v9102 = vunpack.c.l.b16 %v9063
        %v9103 = vunpack.c.l.b16 %v9064
        %v9104 = vunpack.c.l.b16 %v9065
        %v9105 = vunpack.c.l.b16 %v9066
        %v9106 = vunpack.c.l.b16 %v9067
        %v9107 = vunpack.c.l.b16 %v9068
        %v9108 = vunpack.c.l.b16 %v9069
        %v9109 = vunpack.c.l.b16 %v9070
        %v9110 = vunpack.c.l.b16 %v9071
        %v9111 = vpack.c.b16 %v9096, %v9095
        %v9112 = vpack.c.b16 %v9098, %v9097
        %v9113 = vpack.c.b16 %v9100, %v9099
        %v9114 = vpack.c.b16 %v9102, %v9101
        %v9115 = vpack.c.b16 %v9104, %v9103
        %v9116 = vpack.c.b16 %v9106, %v9105
        %v9117 = vpack.c.b16 %v9108, %v9107
        %v9118 = vpack.c.b16 %v9110, %v9109
        %9127 = vmatprep.subr.bf16.mxu0 0
        %9128 = vmatpush1.bf16.msra.mxu0 %v9118
        %9129 = vmatprep.subr.bf16.mxu0 0
        %9130 = vmatpush1.bf16.msra.mxu0 %v9117
        %9131 = vmatprep.subr.bf16.mxu0 0
        %9132 = vmatpush1.bf16.msra.mxu0 %v9116
        %9133 = vmatprep.subr.bf16.mxu0 0
        %9134 = vmatpush1.bf16.msra.mxu0 %v9115
        %9135 = vmatprep.subr.bf16.mxu0 0
        %9136 = vmatpush1.bf16.msra.mxu0 %v9114
        %9137 = vmatprep.subr.bf16.mxu0 0
        %9138 = vmatpush1.bf16.msra.mxu0 %v9113
        %9139 = vmatprep.subr.bf16.mxu0 0
        %9140 = vmatpush1.bf16.msra.mxu0 %v9112
        %9141 = vmatprep.subr.bf16.mxu0 0
        %9142 = vmatpush1.bf16.msra.mxu0 %v9111
        %9143 = vmatprep.subr.bf16.mxu0 0
        %9144 = vmatpush2.bf16.msra.mxu0 0
        %9145 = vmatprep.subr.bf16.mxu0 0
        %9146 = vmatpush2.bf16.msra.mxu0 0
        %9147 = vmatprep.subr.bf16.mxu0 0
        %9148 = vmatpush2.bf16.msra.mxu0 0
        %9149 = vmatprep.subr.bf16.mxu0 0
        %9150 = vmatpush2.bf16.msra.mxu0 0
        %9151 = vmatprep.subr.bf16.mxu0 0
        %9152 = vmatpush2.bf16.msra.mxu0 0
        %9153 = vmatprep.subr.bf16.mxu0 0
        %9154 = vmatpush2.bf16.msra.mxu0 0
        %9155 = vmatprep.subr.bf16.mxu0 0
        %9156 = vmatpush2.bf16.msra.mxu0 0
        %9157 = vmatprep.subr.bf16.mxu0 0
        %9158 = vmatpush2.bf16.msra.mxu0 0
        %9159 = vmatprep.mubr.bf16.mxu0 0
        %9160 = vmatmul.mubr.bf16.gmra.mxu0 %v9045
        %v9161 = vpop.f32.mrf.mxu0
        %v9162 = vadd.f32 %v9077, %v9161
        %v9163 = vpop.f32.mrf.mxu0
        %v9164 = vpop.f32.mrf.mxu0
        %v9165 = vadd.f32 %v9077, %v9164
        %v9166 = vpop.f32.mrf.mxu0
        %9167 = vmatprep.mubr.bf16.mxu0 0
        %9168 = vmatmul.mubr.bf16.gmra.mxu0 %v9048
        %v9169 = vpop.f32.mrf.mxu0
        %v9170 = vadd.f32 %v9077, %v9169
        %v9171 = vpop.f32.mrf.mxu0
        %v9172 = vpop.f32.mrf.mxu0
        %v9173 = vadd.f32 %v9077, %v9172
        %v9174 = vpop.f32.mrf.mxu0
        %9175 = vmatprep.mubr.bf16.mxu0 0
        %9176 = vmatmul.mubr.bf16.gmra.mxu0 %v9051
        %v9177 = vpop.f32.mrf.mxu0
        %v9178 = vadd.f32 %v9077, %v9177
        %v9179 = vpop.f32.mrf.mxu0
        %v9180 = vpop.f32.mrf.mxu0
        %v9181 = vadd.f32 %v9077, %v9180
        %v9182 = vpop.f32.mrf.mxu0
        %9183 = vmatprep.mubr.bf16.mxu0 0
        %9184 = vmatmul.mubr.bf16.gmra.mxu0 %v9054
        %v9185 = vpop.f32.mrf.mxu0
        %v9186 = vadd.f32 %v9077, %v9185
        %v9187 = vpop.f32.mrf.mxu0
        %v9188 = vpop.f32.mrf.mxu0
        %v9189 = vadd.f32 %v9077, %v9188
        %v9190 = vpop.f32.mrf.mxu0
        %9191 = vdwg.mxu0
        %v9192 = vadd.f32 %v919, %v9162
        %v9193 = vadd.f32 %v920, %v9165
        %v9194 = vadd.f32 %v921, %v9170
        %v9195 = vadd.f32 %v922, %v9173
        %v9196 = vadd.f32 %v923, %v9178
        %v9197 = vadd.f32 %v924, %v9181
        %v9198 = vadd.f32 %v925, %v9186
        %v9199 = vadd.f32 %v926, %v9189
        %v9200 = vld [vmem:[%s11] sm:$0x1]
        %v9201 = vld [vmem:[%s12] sm:$0x1]
        %9202 = vadd.xlane.f32.xlu0 %v9192
        %v9203 = vpop.xlane.xlu0 %9202
        %9204 = vadd.xlane.f32.xlu0 %v9193
        %v9205 = vpop.xlane.xlu0 %9204
        %9206 = vadd.xlane.f32.xlu0 %v9194
        %v9207 = vpop.xlane.xlu0 %9206
        %9208 = vadd.xlane.f32.xlu0 %v9195
        %v9209 = vpop.xlane.xlu0 %9208
        %9210 = vadd.xlane.f32.xlu0 %v9196
        %v9211 = vpop.xlane.xlu0 %9210
        %9212 = vadd.xlane.f32.xlu0 %v9197
        %v9213 = vpop.xlane.xlu0 %9212
        %9214 = vadd.xlane.f32.xlu0 %v9198
        %v9215 = vpop.xlane.xlu0 %9214
        %9216 = vadd.xlane.f32.xlu0 %v9199
        %v9217 = vpop.xlane.xlu0 %9216
        %v9218 = vmul.f32 %v9203, %v721
        %v9219 = vmul.f32 %v9205, %v721
        %v9220 = vmul.f32 %v9207, %v721
        %v9221 = vmul.f32 %v9209, %v721
        %v9222 = vmul.f32 %v9211, %v721
        %v9223 = vmul.f32 %v9213, %v721
        %v9224 = vmul.f32 %v9215, %v721
        %v9225 = vmul.f32 %v9217, %v721
        %v9226 = vsub.f32 %v9192, %v9218
        %v9227 = vsub.f32 %v9193, %v9219
        %v9228 = vsub.f32 %v9194, %v9220
        %v9229 = vsub.f32 %v9195, %v9221
        %v9230 = vsub.f32 %v9196, %v9222
        %v9231 = vsub.f32 %v9197, %v9223
        %v9232 = vsub.f32 %v9198, %v9224
        %v9233 = vsub.f32 %v9199, %v9225
        %v9234 = vmul.f32 %v9226, %v9226
        %v9235 = vmul.f32 %v9227, %v9227
        %v9236 = vmul.f32 %v9228, %v9228
        %v9237 = vmul.f32 %v9229, %v9229
        %v9238 = vmul.f32 %v9230, %v9230
        %v9239 = vmul.f32 %v9231, %v9231
        %v9240 = vmul.f32 %v9232, %v9232
        %v9241 = vmul.f32 %v9233, %v9233
        %9242 = vadd.xlane.f32.xlu0 %v9234
        %v9243 = vpop.xlane.xlu0 %9242
        %9244 = vadd.xlane.f32.xlu0 %v9235
        %v9245 = vpop.xlane.xlu0 %9244
        %9246 = vadd.xlane.f32.xlu0 %v9236
        %v9247 = vpop.xlane.xlu0 %9246
        %9248 = vadd.xlane.f32.xlu0 %v9237
        %v9249 = vpop.xlane.xlu0 %9248
        %9250 = vadd.xlane.f32.xlu0 %v9238
        %v9251 = vpop.xlane.xlu0 %9250
        %9252 = vadd.xlane.f32.xlu0 %v9239
        %v9253 = vpop.xlane.xlu0 %9252
        %9254 = vadd.xlane.f32.xlu0 %v9240
        %v9255 = vpop.xlane.xlu0 %9254
        %9256 = vadd.xlane.f32.xlu0 %v9241
        %v9257 = vpop.xlane.xlu0 %9256
        %v9258 = vmul.f32 %v9243, %v721
        %v9259 = vmul.f32 %v9245, %v721
        %v9260 = vmul.f32 %v9247, %v721
        %v9261 = vmul.f32 %v9249, %v721
        %v9262 = vmul.f32 %v9251, %v721
        %v9263 = vmul.f32 %v9253, %v721
        %v9264 = vmul.f32 %v9255, %v721
        %v9265 = vmul.f32 %v9257, %v721
        %v9266 = vadd.f32 %v9258, 1e-05
        %v9267 = vadd.f32 %v9259, 1e-05
        %v9268 = vadd.f32 %v9260, 1e-05
        %v9269 = vadd.f32 %v9261, 1e-05
        %v9270 = vadd.f32 %v9262, 1e-05
        %v9271 = vadd.f32 %v9263, 1e-05
        %v9272 = vadd.f32 %v9264, 1e-05
        %v9273 = vadd.f32 %v9265, 1e-05
        %v9274 = vrsqrt.pop %v9266
        %v9275 = vrsqrt.pop %v9267
        %v9276 = vrsqrt.pop %v9268
        %v9277 = vrsqrt.pop %v9269
        %v9278 = vrsqrt.pop %v9270
        %v9279 = vrsqrt.pop %v9271
        %v9280 = vrsqrt.pop %v9272
        %v9281 = vrsqrt.pop %v9273
        %v9282 = vmul.f32 %v9226, %v9274
        %v9283 = vmul.f32 %v9227, %v9275
        %v9284 = vmul.f32 %v9228, %v9276
        %v9285 = vmul.f32 %v9229, %v9277
        %v9286 = vmul.f32 %v9230, %v9278
        %v9287 = vmul.f32 %v9231, %v9279
        %v9288 = vmul.f32 %v9232, %v9280
        %v9289 = vmul.f32 %v9233, %v9281
        %v9291 = vlaneseq
        %v9292 = vshrl.u32 %v9291, 7
        %v9293 = vsub.s32 0, %v9292
        %v9294 = vrot.slane %v9200, %v9293
        %v9296 = vmul.f32 %v9282, %v9294
        %v9297 = vmul.f32 %v9283, %v9294
        %v9298 = vmul.f32 %v9284, %v9294
        %v9299 = vmul.f32 %v9285, %v9294
        %v9300 = vmul.f32 %v9286, %v9294
        %v9301 = vmul.f32 %v9287, %v9294
        %v9302 = vmul.f32 %v9288, %v9294
        %v9303 = vmul.f32 %v9289, %v9294
        %v9305 = vlaneseq
        %v9306 = vshrl.u32 %v9305, 7
        %v9307 = vsub.s32 0, %v9306
        %v9308 = vrot.slane %v9201, %v9307
        %v9310 = vadd.f32 %v9296, %v9308
        %v9311 = vadd.f32 %v9297, %v9308
        %v9312 = vadd.f32 %v9298, %v9308
        %v9313 = vadd.f32 %v9299, %v9308
        %v9314 = vadd.f32 %v9300, %v9308
        %v9315 = vadd.f32 %v9301, %v9308
        %v9316 = vadd.f32 %v9302, %v9308
        %v9317 = vadd.f32 %v9303, %v9308
        %v9318 = vpack.c.bf16 %v9311, %v9310
        %v9319 = vpack.c.bf16 %v9313, %v9312
        %v9320 = vpack.c.bf16 %v9315, %v9314
        %v9321 = vpack.c.bf16 %v9317, %v9316
        %v9322 = vld [vmem:[#allocation11] sm:$0xff]
        %v9323 = vld [vmem:[#allocation11 + $0x8] sm:$0xff]
        %v9324 = vld [vmem:[#allocation11 + $0x10] sm:$0xff]
        %v9325 = vld [vmem:[#allocation11 + $0x18] sm:$0xff]
        %v9326 = vld [vmem:[#allocation11 + $0x20] sm:$0xff]
        %v9327 = vld [vmem:[#allocation11 + $0x28] sm:$0xff]
        %v9328 = vld [vmem:[#allocation11 + $0x30] sm:$0xff]
        %v9329 = vld [vmem:[#allocation11 + $0x38] sm:$0xff]
        %v9330 = vld [vmem:[#allocation11 + $0x40] sm:$0xff]
        %v9331 = vld [vmem:[#allocation11 + $0x48] sm:$0xff]
        %v9332 = vld [vmem:[#allocation11 + $0x50] sm:$0xff]
        %v9333 = vld [vmem:[#allocation11 + $0x58] sm:$0xff]
        %v9334 = vld [vmem:[#allocation11 + $0x60] sm:$0xff]
        %v9335 = vld [vmem:[#allocation11 + $0x68] sm:$0xff]
        %v9336 = vld [vmem:[#allocation11 + $0x70] sm:$0xff]
        %v9337 = vld [vmem:[#allocation11 + $0x78] sm:$0xff]
        %v9338 = vld [vmem:[%s14] sm:$0x3]
        %v9340 = vlaneseq
        %v9341 = vshrl.u32 %v9340, 7
        %v9342 = vsub.s32 0, %v9341
        %v9343 = vrot.slane %v9338, %v9342
        %v9344 = vlaneseq
        %v9345 = vshrl.u32 %v9344, 7
        %v9346 = vsub.s32 1, %v9345
        %v9347 = vrot.slane %v9338, %v9346
        %v9366 = vunpack.c.l.b16 %v9322
        %v9367 = vunpack.c.h.b16 %v9322
        %v9368 = vunpack.c.l.b16 %v9323
        %v9369 = vunpack.c.h.b16 %v9323
        %v9370 = vunpack.c.l.b16 %v9324
        %v9371 = vunpack.c.h.b16 %v9324
        %v9372 = vunpack.c.l.b16 %v9325
        %v9373 = vunpack.c.h.b16 %v9325
        %v9374 = vunpack.c.l.b16 %v9326
        %v9375 = vunpack.c.h.b16 %v9326
        %v9376 = vunpack.c.l.b16 %v9327
        %v9377 = vunpack.c.h.b16 %v9327
        %v9378 = vunpack.c.l.b16 %v9328
        %v9379 = vunpack.c.h.b16 %v9328
        %v9380 = vunpack.c.l.b16 %v9329
        %v9381 = vunpack.c.h.b16 %v9329
        %v9382 = vunpack.c.l.b16 %v9330
        %v9383 = vunpack.c.h.b16 %v9330
        %v9384 = vunpack.c.l.b16 %v9331
        %v9385 = vunpack.c.h.b16 %v9331
        %v9386 = vunpack.c.l.b16 %v9332
        %v9387 = vunpack.c.h.b16 %v9332
        %v9388 = vunpack.c.l.b16 %v9333
        %v9389 = vunpack.c.h.b16 %v9333
        %v9390 = vunpack.c.l.b16 %v9334
        %v9391 = vunpack.c.h.b16 %v9334
        %v9392 = vunpack.c.l.b16 %v9335
        %v9393 = vunpack.c.h.b16 %v9335
        %v9394 = vunpack.c.l.b16 %v9336
        %v9395 = vunpack.c.h.b16 %v9336
        %v9396 = vunpack.c.l.b16 %v9337
        %v9397 = vunpack.c.h.b16 %v9337
        %v9398 = vpack.c.b16 %v9368, %v9366
        %v9399 = vpack.c.b16 %v9369, %v9367
        %v9400 = vpack.c.b16 %v9372, %v9370
        %v9401 = vpack.c.b16 %v9373, %v9371
        %v9402 = vpack.c.b16 %v9376, %v9374
        %v9403 = vpack.c.b16 %v9377, %v9375
        %v9404 = vpack.c.b16 %v9380, %v9378
        %v9405 = vpack.c.b16 %v9381, %v9379
        %v9406 = vpack.c.b16 %v9384, %v9382
        %v9407 = vpack.c.b16 %v9385, %v9383
        %v9408 = vpack.c.b16 %v9388, %v9386
        %v9409 = vpack.c.b16 %v9389, %v9387
        %v9410 = vpack.c.b16 %v9392, %v9390
        %v9411 = vpack.c.b16 %v9393, %v9391
        %v9412 = vpack.c.b16 %v9396, %v9394
        %v9413 = vpack.c.b16 %v9397, %v9395
        %9430 = vmatprep.subr.bf16.mxu0 %v9413
        %9431 = vmatpush1.bf16.msra.mxu0 %v9412
        %9432 = vmatprep.subr.bf16.mxu0 %v9411
        %9433 = vmatpush1.bf16.msra.mxu0 %v9410
        %9434 = vmatprep.subr.bf16.mxu0 %v9409
        %9435 = vmatpush1.bf16.msra.mxu0 %v9408
        %9436 = vmatprep.subr.bf16.mxu0 %v9407
        %9437 = vmatpush1.bf16.msra.mxu0 %v9406
        %9438 = vmatprep.subr.bf16.mxu0 %v9405
        %9439 = vmatpush1.bf16.msra.mxu0 %v9404
        %9440 = vmatprep.subr.bf16.mxu0 %v9403
        %9441 = vmatpush1.bf16.msra.mxu0 %v9402
        %9442 = vmatprep.subr.bf16.mxu0 %v9401
        %9443 = vmatpush1.bf16.msra.mxu0 %v9400
        %9444 = vmatprep.subr.bf16.mxu0 %v9399
        %9445 = vmatpush1.bf16.msra.mxu0 %v9398
        %9446 = vmatprep.subr.bf16.mxu0 0
        %9447 = vmatpush2.bf16.msra.mxu0 0
        %9448 = vmatprep.subr.bf16.mxu0 0
        %9449 = vmatpush2.bf16.msra.mxu0 0
        %9450 = vmatprep.subr.bf16.mxu0 0
        %9451 = vmatpush2.bf16.msra.mxu0 0
        %9452 = vmatprep.subr.bf16.mxu0 0
        %9453 = vmatpush2.bf16.msra.mxu0 0
        %9454 = vmatprep.subr.bf16.mxu0 0
        %9455 = vmatpush2.bf16.msra.mxu0 0
        %9456 = vmatprep.subr.bf16.mxu0 0
        %9457 = vmatpush2.bf16.msra.mxu0 0
        %9458 = vmatprep.subr.bf16.mxu0 0
        %9459 = vmatpush2.bf16.msra.mxu0 0
        %9460 = vmatprep.subr.bf16.mxu0 0
        %9461 = vmatpush2.bf16.msra.mxu0 0
        %9462 = vmatprep.mubr.bf16.mxu0 0
        %9463 = vmatmul.mubr.bf16.gmra.mxu0 %v9318
        %v9464 = vpop.f32.mrf.mxu0
        %v9465 = vadd.f32 %v9343, %v9464
        %v9466 = vpop.f32.mrf.mxu0
        %v9467 = vadd.f32 %v9347, %v9466
        %v9468 = vpop.f32.mrf.mxu0
        %v9469 = vadd.f32 %v9343, %v9468
        %v9470 = vpop.f32.mrf.mxu0
        %v9471 = vadd.f32 %v9347, %v9470
        %9472 = vmatprep.mubr.bf16.mxu0 0
        %9473 = vmatmul.mubr.bf16.gmra.mxu0 %v9319
        %v9474 = vpop.f32.mrf.mxu0
        %v9475 = vadd.f32 %v9343, %v9474
        %v9476 = vpop.f32.mrf.mxu0
        %v9477 = vadd.f32 %v9347, %v9476
        %v9478 = vpop.f32.mrf.mxu0
        %v9479 = vadd.f32 %v9343, %v9478
        %v9480 = vpop.f32.mrf.mxu0
        %v9481 = vadd.f32 %v9347, %v9480
        %9482 = vmatprep.mubr.bf16.mxu0 0
        %9483 = vmatmul.mubr.bf16.gmra.mxu0 %v9320
        %v9484 = vpop.f32.mrf.mxu0
        %v9485 = vadd.f32 %v9343, %v9484
        %v9486 = vpop.f32.mrf.mxu0
        %v9487 = vadd.f32 %v9347, %v9486
        %v9488 = vpop.f32.mrf.mxu0
        %v9489 = vadd.f32 %v9343, %v9488
        %v9490 = vpop.f32.mrf.mxu0
        %v9491 = vadd.f32 %v9347, %v9490
        %9492 = vmatprep.mubr.bf16.mxu0 0
        %9493 = vmatmul.mubr.bf16.gmra.mxu0 %v9321
        %v9494 = vpop.f32.mrf.mxu0
        %v9495 = vadd.f32 %v9343, %v9494
        %v9496 = vpop.f32.mrf.mxu0
        %v9497 = vadd.f32 %v9347, %v9496
        %v9498 = vpop.f32.mrf.mxu0
        %v9499 = vadd.f32 %v9343, %v9498
        %v9500 = vpop.f32.mrf.mxu0
        %v9501 = vadd.f32 %v9347, %v9500
        %9502 = vdwg.mxu0
        %v9503 = vmax.f32 %v9465, 0.0
        %v9504 = vmax.f32 %v9467, 0.0
        %v9505 = vmax.f32 %v9469, 0.0
        %v9506 = vmax.f32 %v9471, 0.0
        %v9507 = vmax.f32 %v9475, 0.0
        %v9508 = vmax.f32 %v9477, 0.0
        %v9509 = vmax.f32 %v9479, 0.0
        %v9510 = vmax.f32 %v9481, 0.0
        %v9511 = vmax.f32 %v9485, 0.0
        %v9512 = vmax.f32 %v9487, 0.0
        %v9513 = vmax.f32 %v9489, 0.0
        %v9514 = vmax.f32 %v9491, 0.0
        %v9515 = vmax.f32 %v9495, 0.0
        %v9516 = vmax.f32 %v9497, 0.0
        %v9517 = vmax.f32 %v9499, 0.0
        %v9518 = vmax.f32 %v9501, 0.0
        %v9519 = vpack.c.bf16 %v9505, %v9503
        %v9520 = vpack.c.bf16 %v9506, %v9504
        %v9521 = vpack.c.bf16 %v9509, %v9507
        %v9522 = vpack.c.bf16 %v9510, %v9508
        %v9523 = vpack.c.bf16 %v9513, %v9511
        %v9524 = vpack.c.bf16 %v9514, %v9512
        %v9525 = vpack.c.bf16 %v9517, %v9515
        %v9526 = vpack.c.bf16 %v9518, %v9516
        %v9527 = vld [vmem:[#allocation13] sm:$0xf]
        %v9528 = vld [vmem:[#allocation13 + $0x4] sm:$0xf]
        %v9529 = vld [vmem:[#allocation13 + $0x8] sm:$0xf]
        %v9530 = vld [vmem:[#allocation13 + $0xc] sm:$0xf]
        %v9531 = vld [vmem:[#allocation13 + $0x10] sm:$0xf]
        %v9532 = vld [vmem:[#allocation13 + $0x14] sm:$0xf]
        %v9533 = vld [vmem:[#allocation13 + $0x18] sm:$0xf]
        %v9534 = vld [vmem:[#allocation13 + $0x1c] sm:$0xf]
        %v9535 = vld [vmem:[#allocation13 + $0x20] sm:$0xf]
        %v9536 = vld [vmem:[#allocation13 + $0x24] sm:$0xf]
        %v9537 = vld [vmem:[#allocation13 + $0x28] sm:$0xf]
        %v9538 = vld [vmem:[#allocation13 + $0x2c] sm:$0xf]
        %v9539 = vld [vmem:[#allocation13 + $0x30] sm:$0xf]
        %v9540 = vld [vmem:[#allocation13 + $0x34] sm:$0xf]
        %v9541 = vld [vmem:[#allocation13 + $0x38] sm:$0xf]
        %v9542 = vld [vmem:[#allocation13 + $0x3c] sm:$0xf]
        %v9543 = vld [vmem:[#allocation13 + $0x40] sm:$0xf]
        %v9544 = vld [vmem:[#allocation13 + $0x44] sm:$0xf]
        %v9545 = vld [vmem:[#allocation13 + $0x48] sm:$0xf]
        %v9546 = vld [vmem:[#allocation13 + $0x4c] sm:$0xf]
        %v9547 = vld [vmem:[#allocation13 + $0x50] sm:$0xf]
        %v9548 = vld [vmem:[#allocation13 + $0x54] sm:$0xf]
        %v9549 = vld [vmem:[#allocation13 + $0x58] sm:$0xf]
        %v9550 = vld [vmem:[#allocation13 + $0x5c] sm:$0xf]
        %v9551 = vld [vmem:[#allocation13 + $0x60] sm:$0xf]
        %v9552 = vld [vmem:[#allocation13 + $0x64] sm:$0xf]
        %v9553 = vld [vmem:[#allocation13 + $0x68] sm:$0xf]
        %v9554 = vld [vmem:[#allocation13 + $0x6c] sm:$0xf]
        %v9555 = vld [vmem:[#allocation13 + $0x70] sm:$0xf]
        %v9556 = vld [vmem:[#allocation13 + $0x74] sm:$0xf]
        %v9557 = vld [vmem:[#allocation13 + $0x78] sm:$0xf]
        %v9558 = vld [vmem:[#allocation13 + $0x7c] sm:$0xf]
        %v9559 = vld [vmem:[%s16] sm:$0x1]
        %v9561 = vlaneseq
        %v9562 = vshrl.u32 %v9561, 7
        %v9563 = vsub.s32 0, %v9562
        %v9564 = vrot.slane %v9559, %v9563
        %v9598 = vunpack.c.l.b16 %v9527
        %v9599 = vunpack.c.l.b16 %v9528
        %v9600 = vunpack.c.l.b16 %v9529
        %v9601 = vunpack.c.l.b16 %v9530
        %v9602 = vunpack.c.l.b16 %v9531
        %v9603 = vunpack.c.l.b16 %v9532
        %v9604 = vunpack.c.l.b16 %v9533
        %v9605 = vunpack.c.l.b16 %v9534
        %v9606 = vunpack.c.l.b16 %v9535
        %v9607 = vunpack.c.l.b16 %v9536
        %v9608 = vunpack.c.l.b16 %v9537
        %v9609 = vunpack.c.l.b16 %v9538
        %v9610 = vunpack.c.l.b16 %v9539
        %v9611 = vunpack.c.l.b16 %v9540
        %v9612 = vunpack.c.l.b16 %v9541
        %v9613 = vunpack.c.l.b16 %v9542
        %v9614 = vunpack.c.l.b16 %v9543
        %v9615 = vunpack.c.l.b16 %v9544
        %v9616 = vunpack.c.l.b16 %v9545
        %v9617 = vunpack.c.l.b16 %v9546
        %v9618 = vunpack.c.l.b16 %v9547
        %v9619 = vunpack.c.l.b16 %v9548
        %v9620 = vunpack.c.l.b16 %v9549
        %v9621 = vunpack.c.l.b16 %v9550
        %v9622 = vunpack.c.l.b16 %v9551
        %v9623 = vunpack.c.l.b16 %v9552
        %v9624 = vunpack.c.l.b16 %v9553
        %v9625 = vunpack.c.l.b16 %v9554
        %v9626 = vunpack.c.l.b16 %v9555
        %v9627 = vunpack.c.l.b16 %v9556
        %v9628 = vunpack.c.l.b16 %v9557
        %v9629 = vunpack.c.l.b16 %v9558
        %v9630 = vpack.c.b16 %v9599, %v9598
        %v9631 = vpack.c.b16 %v9601, %v9600
        %v9632 = vpack.c.b16 %v9603, %v9602
        %v9633 = vpack.c.b16 %v9605, %v9604
        %v9634 = vpack.c.b16 %v9607, %v9606
        %v9635 = vpack.c.b16 %v9609, %v9608
        %v9636 = vpack.c.b16 %v9611, %v9610
        %v9637 = vpack.c.b16 %v9613, %v9612
        %v9638 = vpack.c.b16 %v9615, %v9614
        %v9639 = vpack.c.b16 %v9617, %v9616
        %v9640 = vpack.c.b16 %v9619, %v9618
        %v9641 = vpack.c.b16 %v9621, %v9620
        %v9642 = vpack.c.b16 %v9623, %v9622
        %v9643 = vpack.c.b16 %v9625, %v9624
        %v9644 = vpack.c.b16 %v9627, %v9626
        %v9645 = vpack.c.b16 %v9629, %v9628
        %9662 = vmatprep.subr.bf16.mxu0 0
        %9663 = vmatpush1.bf16.msra.mxu0 %v9637
        %9664 = vmatprep.subr.bf16.mxu0 0
        %9665 = vmatpush1.bf16.msra.mxu0 %v9636
        %9666 = vmatprep.subr.bf16.mxu0 0
        %9667 = vmatpush1.bf16.msra.mxu0 %v9635
        %9668 = vmatprep.subr.bf16.mxu0 0
        %9669 = vmatpush1.bf16.msra.mxu0 %v9634
        %9670 = vmatprep.subr.bf16.mxu0 0
        %9671 = vmatpush1.bf16.msra.mxu0 %v9633
        %9672 = vmatprep.subr.bf16.mxu0 0
        %9673 = vmatpush1.bf16.msra.mxu0 %v9632
        %9674 = vmatprep.subr.bf16.mxu0 0
        %9675 = vmatpush1.bf16.msra.mxu0 %v9631
        %9676 = vmatprep.subr.bf16.mxu0 0
        %9677 = vmatpush1.bf16.msra.mxu0 %v9630
        %9678 = vmatprep.subr.bf16.mxu0 0
        %9679 = vmatpush2.bf16.msra.mxu0 %v9645
        %9680 = vmatprep.subr.bf16.mxu0 0
        %9681 = vmatpush2.bf16.msra.mxu0 %v9644
        %9682 = vmatprep.subr.bf16.mxu0 0
        %9683 = vmatpush2.bf16.msra.mxu0 %v9643
        %9684 = vmatprep.subr.bf16.mxu0 0
        %9685 = vmatpush2.bf16.msra.mxu0 %v9642
        %9686 = vmatprep.subr.bf16.mxu0 0
        %9687 = vmatpush2.bf16.msra.mxu0 %v9641
        %9688 = vmatprep.subr.bf16.mxu0 0
        %9689 = vmatpush2.bf16.msra.mxu0 %v9640
        %9690 = vmatprep.subr.bf16.mxu0 0
        %9691 = vmatpush2.bf16.msra.mxu0 %v9639
        %9692 = vmatprep.subr.bf16.mxu0 0
        %9693 = vmatpush2.bf16.msra.mxu0 %v9638
        %9694 = vmatprep.mubr.bf16.mxu0 %v9520
        %9695 = vmatmul.mubr.bf16.gmra.mxu0 %v9519
        %v9696 = vpop.f32.mrf.mxu0
        %v9697 = vadd.f32 %v9564, %v9696
        %v9698 = vpop.f32.mrf.mxu0
        %v9699 = vpop.f32.mrf.mxu0
        %v9700 = vadd.f32 %v9564, %v9699
        %v9701 = vpop.f32.mrf.mxu0
        %9702 = vmatprep.mubr.bf16.mxu0 %v9522
        %9703 = vmatmul.mubr.bf16.gmra.mxu0 %v9521
        %v9704 = vpop.f32.mrf.mxu0
        %v9705 = vadd.f32 %v9564, %v9704
        %v9706 = vpop.f32.mrf.mxu0
        %v9707 = vpop.f32.mrf.mxu0
        %v9708 = vadd.f32 %v9564, %v9707
        %v9709 = vpop.f32.mrf.mxu0
        %9710 = vmatprep.mubr.bf16.mxu0 %v9524
        %9711 = vmatmul.mubr.bf16.gmra.mxu0 %v9523
        %v9712 = vpop.f32.mrf.mxu0
        %v9713 = vadd.f32 %v9564, %v9712
        %v9714 = vpop.f32.mrf.mxu0
        %v9715 = vpop.f32.mrf.mxu0
        %v9716 = vadd.f32 %v9564, %v9715
        %v9717 = vpop.f32.mrf.mxu0
        %9718 = vmatprep.mubr.bf16.mxu0 %v9526
        %9719 = vmatmul.mubr.bf16.gmra.mxu0 %v9525
        %v9720 = vpop.f32.mrf.mxu0
        %v9721 = vadd.f32 %v9564, %v9720
        %v9722 = vpop.f32.mrf.mxu0
        %v9723 = vpop.f32.mrf.mxu0
        %v9724 = vadd.f32 %v9564, %v9723
        %v9725 = vpop.f32.mrf.mxu0
        %9726 = vdwg.mxu0
        %v9727 = vadd.f32 %v9192, %v9697
        %v9728 = vadd.f32 %v9193, %v9700
        %v9729 = vadd.f32 %v9194, %v9705
        %v9730 = vadd.f32 %v9195, %v9708
        %v9731 = vadd.f32 %v9196, %v9713
        %v9732 = vadd.f32 %v9197, %v9716
        %v9733 = vadd.f32 %v9198, %v9721
        %v9734 = vadd.f32 %v9199, %v9724
        %9735 = vst [vmem:[%s667] sm:$0xff] %v9727
        %9736 = vst [vmem:[%s667 + $0x8] sm:$0xff] %v9728
        %9737 = vst [vmem:[%s667 + $0x10] sm:$0xff] %v9729
        %9738 = vst [vmem:[%s667 + $0x18] sm:$0xff] %v9730
        %9739 = vst [vmem:[%s667 + $0x20] sm:$0xff] %v9731
        %9740 = vst [vmem:[%s667 + $0x28] sm:$0xff] %v9732
        %9741 = vst [vmem:[%s667 + $0x30] sm:$0xff] %v9733
        %9742 = vst [vmem:[%s667 + $0x38] sm:$0xff] %v9734
        %s9743 = sand.u32 %s421, 1
        %s9744 = scalar_lea.sflag [#allocation4], %s9743
        %s9745 = sand.u32 %s421, 1
        %s9746 = smul.addr %s9745, 64
        %s9747 = scalar_lea.vmem [#allocation14], %s9746
        // Predicated region
        $region117: #{tpu_custom_call.1} parent=87 // pred_check
          %p9748 = pneg %p431
        $region118: #{tpu_custom_call.1} parent=87 // pred_check_branch
          %9750 = sbr.rel (%p9748) target = $region120
        $region119: #{tpu_custom_call.1} parent=87 // pred_region
          %s9751 = smul.u32 8, %s42
          %s9753 = ssub.s32 1024, 1024
          %9754 = vsyncadd %s9744, %s9753
          %s9755 = smul.addr %s41, 16
          %s9756 = sadd.s32 %s9751, %s9755
          %s9757 = smul.addr %s9756, 128
          %s9758 = scalar_lea.hbm %s17, %s9757
          %s9759 = sshll.u32 %s9747, 4
          %s9760 = int_to_ptr.vmem [resolvable:$true] %s9759
          %9765 = dma.vmem_to_hbm [thread:$0]  %s9760, 1024, %s9758, %s9744, 128, 128, 8
        $region120: #{tpu_custom_call.1} parent=87 // pred_fallthru
          _
      $region88: #{tpu_custom_call.1} parent=5 // pred_fallthru
        _
      %p9766 = scmp.le.s32.totalorder 2, %s32
      // Predicated region
      $region121: #{tpu_custom_call.1} parent=5 // pred_check
        %p9767 = pneg %p9766
      $region122: #{tpu_custom_call.1} parent=5 // pred_check_branch
        %9769 = sbr.rel (%p9767) target = $region124
      $region123: #{tpu_custom_call.1} parent=5 // pred_region
        %s9770 = ssub.s32 %s32, 2
        // Predicated region
        $region125: #{tpu_custom_call.1} parent=123 // pred_check
          %p9771 = pneg %p437
        $region126: #{tpu_custom_call.1} parent=123 // pred_check_branch
          %9773 = sbr.rel (%p9771) target = $region128
        $region127: #{tpu_custom_call.1} parent=123 // pred_region
          %s9774 = sand.u32 %s422, 1
          %s9775 = scalar_lea.sflag [#allocation4], %s9774
          %s9776 = sand.u32 %s422, 1
          %s9777 = smul.addr %s9776, 64
          %s9778 = scalar_lea.vmem [#allocation14], %s9777
          %9779 = dma.done %s9775, 1024
        $region128: #{tpu_custom_call.1} parent=123 // pred_fallthru
          _
      $region124: #{tpu_custom_call.1} parent=5 // pred_fallthru
        _
    $region6: #{tpu_custom_call.1} parent=1 // loop_footer
      %s36 = sadd.s32 1, %s32
    $region7: #{tpu_custom_call.1} parent=1 // loop_footer_branch
      %31 = sbr.rel target = $region3
    $region8: #{tpu_custom_call.1} parent=1 // loop_exit
      _
    %9780 = vsyncpa [#allocation3], 1
    %s9781 = scalar_lea.sflag [#allocation3], 1
    %9782 = vsyncpa %s9781, 1
    %9783 = vsyncpa [#allocation6], 1
    %9784 = vsyncpa [#allocation9], 1
    %9785 = vsyncpa [#allocation12], 1
    %9786 = vsyncpa [#allocation4], 1
    %s9787 = scalar_lea.sflag [#allocation4], 1
    %9788 = vsyncpa %s9787, 1

</llo_original>
